<compile_context>
chip_gen: v5e
topology: v5e:2x2
jax: 0.10.0
libtpu: 0.0.40
codegen_flags: <defaults>
</compile_context>

<pallas_src>
import jax
import jax.numpy as jnp
from jax.experimental import pallas as pl
from jax.experimental.pallas import tpu as pltpu

EPS = 1e-5
IN_FEATURES = 3 * 80 * 80          # 19200, divisible by 128
HPAD = 128                         # all hidden/output dims lane-padded to 128
NUM_CLASSES = 5


# ----------------------------------------------------------------------------
# Kernel: 4 matmuls (BN pre-folded into weights), bias add, relu between layers.
# x arrives f32 and is cast to bf16 in-kernel; weights are bf16; acc is f32.
# ----------------------------------------------------------------------------
def mlp_kernel(x_ref, w1_ref, b1_ref, w2_ref, b2_ref, w3_ref, b3_ref,
               w4_ref, b4_ref, o_ref):
    # first_layer (+bn1 folded) -> relu        (dropout1 = identity in eval)
    x = x_ref[...].astype(jnp.bfloat16)
    h = jnp.dot(x, w1_ref[...], preferred_element_type=jnp.float32) + b1_ref[...]
    h = jnp.maximum(h, 0.0)

    # second_layer (+bn2 folded) -> relu
    h = jnp.dot(h.astype(jnp.bfloat16), w2_ref[...],
                preferred_element_type=jnp.float32) + b2_ref[...]
    h = jnp.maximum(h, 0.0)

    # third_layer (+bn3 folded) -> relu
    h = jnp.dot(h.astype(jnp.bfloat16), w3_ref[...],
                preferred_element_type=jnp.float32) + b3_ref[...]
    h = jnp.maximum(h, 0.0)

    # output_layer (padded to 128 cols; cols 5..127 are zero and sliced off)
    o_ref[...] = (
        jnp.dot(h.astype(jnp.bfloat16), w4_ref[...],
                preferred_element_type=jnp.float32) + b4_ref[...]
    ).astype(o_ref.dtype)


# ----------------------------------------------------------------------------
# One-time parameter preparation (hoisted out of the forward path).
# ----------------------------------------------------------------------------
def _fold_bn(w, b, gamma, beta, mean, var):
    """Fold eval-mode BatchNorm1d into the preceding Linear (per out column)."""
    scale = gamma * jax.lax.rsqrt(var + EPS)          # (1, fo)
    return w * scale, (b - mean) * scale + beta


def _pad_cols(a, n):
    return jnp.pad(a, ((0, 0), (0, n - a.shape[1])))


def _pad_rows(a, n):
    return jnp.pad(a, ((0, n - a.shape[0]), (0, 0)))


def prepare_params(params):
    """Fold BN, zero-pad hidden/output dims to 128 lanes, cast weights to bf16.

    Call once; reuse the result for every forward call.
    """
    (w1, b1, g1, be1, m1, v1,
     w2, b2, g2, be2, m2, v2,
     w3, b3, g3, be3, m3, v3,
     w4, b4) = params

    w1f, b1f = _fold_bn(w1, b1, g1, be1, m1, v1)
    w2f, b2f = _fold_bn(w2, b2, g2, be2, m2, v2)
    w3f, b3f = _fold_bn(w3, b3, g3, be3, m3, v3)

    # Zero padding is exact: padded weight cols + zero bias -> relu(0) = 0 in
    # the extra hidden lanes, and padded (zero) weight rows in the next layer
    # contribute nothing.
    w1p = _pad_cols(w1f, HPAD)                              # (19200, 128)
    w2p = _pad_cols(_pad_rows(w2f, HPAD), HPAD)             # (128, 128)
    w3p = _pad_cols(_pad_rows(w3f, HPAD), HPAD)             # (128, 128)
    w4p = _pad_cols(_pad_rows(w4, HPAD), HPAD)              # (128, 128)
    b1p = _pad_cols(b1f, HPAD)
    b2p = _pad_cols(b2f, HPAD)
    b3p = _pad_cols(b3f, HPAD)
    b4p = _pad_cols(b4, HPAD)

    return (w1p.astype(jnp.bfloat16), b1p,
            w2p.astype(jnp.bfloat16), b2p,
            w3p.astype(jnp.bfloat16), b3p,
            w4p.astype(jnp.bfloat16), b4p)


# ----------------------------------------------------------------------------
# Forward wrapper: flatten, tile over batch, one pallas_call.
# ----------------------------------------------------------------------------
def _device_caps():
    """(max batch-tile rows, vmem_limit cap) per TPU generation."""
    kind = ""
    try:
        kind = jax.devices()[0].device_kind.lower()
    except Exception:
        pass
    if "v7" in kind:
        # 64 MiB physical VMEM; smaller x tile also keeps >= 2 grid steps so
        # the "parallel" batch axis spans both TensorCores.
        return 128, 48 << 20
    return 256, 96 << 20


def neural_network_forward(x_nchw, prepared):
    w1, b1, w2, b2, w3, b3, w4, b4 = prepared

    B = x_nchw.shape[0]
    x = x_nchw.reshape(B, -1)                         # nn.Flatten (metadata only)
    K = x.shape[1]

    max_tile, vmem_cap = _device_caps()
    tile_b = B if B <= max_tile else max_tile
    grid = (pl.cdiv(B, tile_b),)                      # ragged tail rows discarded

    # VMEM: double-buffered f32 x tile + double-buffered bf16 W1 + slack.
    vmem_est = 2 * tile_b * K * 4 + 2 * K * HPAD * 2 + (8 << 20)
    vmem_limit = min(max(vmem_est, 32 << 20), vmem_cap)

    def fixed(shape):
        # Whole array as one block; constant index_map keeps it VMEM-resident
        # across batch tiles.
        return pl.BlockSpec(shape, lambda i: (0,) * len(shape))

    in_specs = [
        pl.BlockSpec((tile_b, K), lambda i: (i, 0)),  # x : tiled over batch
        fixed(w1.shape), fixed(b1.shape),
        fixed(w2.shape), fixed(b2.shape),
        fixed(w3.shape), fixed(b3.shape),
        fixed(w4.shape), fixed(b4.shape),
    ]
    out_specs = pl.BlockSpec((tile_b, HPAD), lambda i: (i, 0))
    out_shape = jax.ShapeDtypeStruct((B, HPAD), jnp.float32)

    out = pl.pallas_call(
        mlp_kernel,
        out_shape=out_shape,
        grid=grid,
        in_specs=in_specs,
        out_specs=out_specs,
        compiler_params=pltpu.CompilerParams(
            dimension_semantics=("parallel",),
            vmem_limit_bytes=vmem_limit,
        ),
    )(x, w1, b1, w2, b2, w3, b3, w4, b4)

    return out[:, :NUM_CLASSES]


# ----------------------------------------------------------------------------
# Parameter construction matching the PyTorch module's initialization.
# ----------------------------------------------------------------------------
def _xavier_uniform(key, fan_in, fan_out):
    bound = (6.0 / (fan_in + fan_out)) ** 0.5
    # stored (in_features, out_features) = PyTorch weight.T
    return jax.random.uniform(
        key, (fan_in, fan_out), dtype=jnp.float32, minval=-bound, maxval=bound
    )


def make_params(key):
    dims = [(IN_FEATURES, 100), (100, 50), (50, 100), (100, NUM_CLASSES)]
    keys = jax.random.split(key, len(dims))
    params = []
    for i, (fi, fo) in enumerate(dims):
        w = _xavier_uniform(keys[i], fi, fo)
        b = jnp.zeros((1, fo), jnp.float32)                 # bias init to 0
        params.append(w)
        params.append(b)
        if i < 3:  # BatchNorm1d (gamma, beta, running_mean, running_var)
            params.append(jnp.ones((1, fo), jnp.float32))   # gamma = 1
            params.append(jnp.zeros((1, fo), jnp.float32))  # beta  = 0
            params.append(jnp.zeros((1, fo), jnp.float32))  # running_mean
            params.append(jnp.ones((1, fo), jnp.float32))   # running_var
    return params


# ----------------------------------------------------------------------------
# Pure-JAX references.
# ----------------------------------------------------------------------------
def _reference_prepared(x_nchw, prepared):
    """Same math/dtypes as the kernel (plumbing check)."""
    w1, b1, w2, b2, w3, b3, w4, b4 = prepared
    B = x_nchw.shape[0]
    h = x_nchw.reshape(B, -1).astype(jnp.bfloat16)
    h = jnp.maximum(jnp.dot(h, w1, preferred_element_type=jnp.float32) + b1, 0.0)
    h = jnp.maximum(jnp.dot(h.astype(jnp.bfloat16), w2,
                            preferred_element_type=jnp.float32) + b2, 0.0)
    h = jnp.maximum(jnp.dot(h.astype(jnp.bfloat16), w3,
                            preferred_element_type=jnp.float32) + b3, 0.0)
    out = jnp.dot(h.astype(jnp.bfloat16), w4,
                  preferred_element_type=jnp.float32) + b4
    return out[:, :NUM_CLASSES]


def _reference_f32(x_nchw, params):
    """Unfolded eval-mode semantics in full f32 (ground truth)."""
    (w1, b1, g1, be1, m1, v1,
     w2, b2, g2, be2, m2, v2,
     w3, b3, g3, be3, m3, v3,
     w4, b4) = params
    hi = jax.lax.Precision.HIGHEST
    B = x_nchw.shape[0]
    x = x_nchw.reshape(B, -1)

    def bn(h, g, be, m, v):
        return (h - m) * g * jax.lax.rsqrt(v + EPS) + be

    h = jnp.maximum(bn(jnp.dot(x, w1, precision=hi) + b1, g1, be1, m1, v1), 0.0)
    h = jnp.maximum(bn(jnp.dot(h, w2, precision=hi) + b2, g2, be2, m2, v2), 0.0)
    h = jnp.maximum(bn(jnp.dot(h, w3, precision=hi) + b3, g3, be3, m3, v3), 0.0)
    return jnp.dot(h, w4, precision=hi) + b4


if __name__ == "__main__":
    key = jax.random.PRNGKey(0)
    k_x, k_p = jax.random.split(key)

    # Input consistent with the module: (B, 3, 80, 80) NCHW, small batch.
    x = jax.random.normal(k_x, (8, 3, 80, 80), dtype=jnp.float32)
    params = make_params(k_p)

    # One-time prep (hoisted out of the forward path).
    prepared = jax.block_until_ready(prepare_params(params))

    fwd = jax.jit(neural_network_forward)
    out = jax.block_until_ready(fwd(x, prepared))

    assert out.shape == (8, NUM_CLASSES) and out.dtype == jnp.float32
    assert bool(jnp.all(jnp.isfinite(out)))

    # Plumbing check: same math/dtypes as the kernel.
    ref_match = jax.block_until_ready(_reference_prepared(x, prepared))
    assert bool(jnp.allclose(out, ref_match, atol=1e-2, rtol=1e-2)), (
        "Pallas output deviates from matched JAX reference"
    )

    # Semantics check: unfolded eval-mode f32 reference (looser tol for bf16).
    ref_f32 = jax.block_until_ready(_reference_f32(x, params))
    assert bool(jnp.allclose(out, ref_f32, atol=1e-1, rtol=1e-1)), (
        "Pallas output deviates from f32 eval-mode reference"
    )

    print("KERNEL_OK")
</pallas_src>

<mosaic_0001>
module attributes {stable_mosaic.version = 11 : i64} {
  func.func @mlp_kernel(%arg0: i32, %arg1: memref<8x19200xf32, #tpu.memory_space<vmem>>, %arg2: memref<19200x128xbf16, #tpu.memory_space<vmem>>, %arg3: memref<1x128xf32, #tpu.memory_space<vmem>>, %arg4: memref<128x128xbf16, #tpu.memory_space<vmem>>, %arg5: memref<1x128xf32, #tpu.memory_space<vmem>>, %arg6: memref<128x128xbf16, #tpu.memory_space<vmem>>, %arg7: memref<1x128xf32, #tpu.memory_space<vmem>>, %arg8: memref<128x128xbf16, #tpu.memory_space<vmem>>, %arg9: memref<1x128xf32, #tpu.memory_space<vmem>>, %arg10: memref<8x128xf32, #tpu.memory_space<vmem>>) attributes {dimension_semantics = [#tpu.dimension_semantics<parallel>], iteration_bounds = array<i64: 1>, scalar_prefetch = 0 : i64, scratch_operands = 0 : i64, tpu.core_type = #tpu.core_type<tc>, window_params = [{transform_indices = @transform_0, window_bounds = array<i64: 8, 19200>}, {pipeline_mode = #tpu.pipeline_mode<synchronous>, transform_indices = @transform_1, window_bounds = array<i64: 19200, 128>}, {pipeline_mode = #tpu.pipeline_mode<synchronous>, transform_indices = @transform_2, window_bounds = array<i64: 1, 128>}, {pipeline_mode = #tpu.pipeline_mode<synchronous>, transform_indices = @transform_3, window_bounds = array<i64: 128, 128>}, {pipeline_mode = #tpu.pipeline_mode<synchronous>, transform_indices = @transform_4, window_bounds = array<i64: 1, 128>}, {pipeline_mode = #tpu.pipeline_mode<synchronous>, transform_indices = @transform_5, window_bounds = array<i64: 128, 128>}, {pipeline_mode = #tpu.pipeline_mode<synchronous>, transform_indices = @transform_6, window_bounds = array<i64: 1, 128>}, {pipeline_mode = #tpu.pipeline_mode<synchronous>, transform_indices = @transform_7, window_bounds = array<i64: 128, 128>}, {pipeline_mode = #tpu.pipeline_mode<synchronous>, transform_indices = @transform_8, window_bounds = array<i64: 1, 128>}, {transform_indices = @transform_9, window_bounds = array<i64: 8, 128>}]} {
    %c0 = arith.constant 0 : index
    %c0_0 = arith.constant 0 : index
    %0 = vector.load %arg1[%c0, %c0_0] : memref<8x19200xf32, #tpu.memory_space<vmem>>, vector<8x19200xf32>
    %1 = arith.truncf %0 : vector<8x19200xf32> to vector<8x19200xbf16>
    %c0_1 = arith.constant 0 : index
    %c0_2 = arith.constant 0 : index
    %2 = vector.load %arg2[%c0_1, %c0_2] : memref<19200x128xbf16, #tpu.memory_space<vmem>>, vector<19200x128xbf16>
    %cst = arith.constant dense<0.000000e+00> : vector<8x128xf32>
    %3 = tpu.matmul %1, %2, %cst {dimension_numbers = #tpu.dot_dimension_numbers<[1], [0], [0], [1], [0, 0, 1, 1], [], []>} : vector<8x19200xbf16>, vector<19200x128xbf16>, vector<8x128xf32> -> vector<8x128xf32>
    %c0_3 = arith.constant 0 : index
    %c0_4 = arith.constant 0 : index
    %4 = vector.load %arg3[%c0_3, %c0_4] : memref<1x128xf32, #tpu.memory_space<vmem>>, vector<1x128xf32>
    %5 = vector.broadcast %4 : vector<1x128xf32> to vector<8x128xf32>
    %6 = arith.addf %3, %5 : vector<8x128xf32>
    %cst_5 = arith.constant 0.000000e+00 : f32
    %7 = vector.broadcast %cst_5 : f32 to vector<8x128xf32>
    %8 = arith.maximumf %6, %7 : vector<8x128xf32>
    %9 = arith.truncf %8 : vector<8x128xf32> to vector<8x128xbf16>
    %c0_6 = arith.constant 0 : index
    %c0_7 = arith.constant 0 : index
    %10 = vector.load %arg4[%c0_6, %c0_7] : memref<128x128xbf16, #tpu.memory_space<vmem>>, vector<128x128xbf16>
    %cst_8 = arith.constant dense<0.000000e+00> : vector<8x128xf32>
    %11 = tpu.matmul %9, %10, %cst_8 {dimension_numbers = #tpu.dot_dimension_numbers<[1], [0], [0], [1], [0, 0, 1, 1], [], []>} : vector<8x128xbf16>, vector<128x128xbf16>, vector<8x128xf32> -> vector<8x128xf32>
    %c0_9 = arith.constant 0 : index
    %c0_10 = arith.constant 0 : index
    %12 = vector.load %arg5[%c0_9, %c0_10] : memref<1x128xf32, #tpu.memory_space<vmem>>, vector<1x128xf32>
    %13 = vector.broadcast %12 : vector<1x128xf32> to vector<8x128xf32>
    %14 = arith.addf %11, %13 : vector<8x128xf32>
    %cst_11 = arith.constant 0.000000e+00 : f32
    %15 = vector.broadcast %cst_11 : f32 to vector<8x128xf32>
    %16 = arith.maximumf %14, %15 : vector<8x128xf32>
    %17 = arith.truncf %16 : vector<8x128xf32> to vector<8x128xbf16>
    %c0_12 = arith.constant 0 : index
    %c0_13 = arith.constant 0 : index
    %18 = vector.load %arg6[%c0_12, %c0_13] : memref<128x128xbf16, #tpu.memory_space<vmem>>, vector<128x128xbf16>
    %cst_14 = arith.constant dense<0.000000e+00> : vector<8x128xf32>
    %19 = tpu.matmul %17, %18, %cst_14 {dimension_numbers = #tpu.dot_dimension_numbers<[1], [0], [0], [1], [0, 0, 1, 1], [], []>} : vector<8x128xbf16>, vector<128x128xbf16>, vector<8x128xf32> -> vector<8x128xf32>
    %c0_15 = arith.constant 0 : index
    %c0_16 = arith.constant 0 : index
    %20 = vector.load %arg7[%c0_15, %c0_16] : memref<1x128xf32, #tpu.memory_space<vmem>>, vector<1x128xf32>
    %21 = vector.broadcast %20 : vector<1x128xf32> to vector<8x128xf32>
    %22 = arith.addf %19, %21 : vector<8x128xf32>
    %cst_17 = arith.constant 0.000000e+00 : f32
    %23 = vector.broadcast %cst_17 : f32 to vector<8x128xf32>
    %24 = arith.maximumf %22, %23 : vector<8x128xf32>
    %25 = arith.truncf %24 : vector<8x128xf32> to vector<8x128xbf16>
    %c0_18 = arith.constant 0 : index
    %c0_19 = arith.constant 0 : index
    %26 = vector.load %arg8[%c0_18, %c0_19] : memref<128x128xbf16, #tpu.memory_space<vmem>>, vector<128x128xbf16>
    %cst_20 = arith.constant dense<0.000000e+00> : vector<8x128xf32>
    %27 = tpu.matmul %25, %26, %cst_20 {dimension_numbers = #tpu.dot_dimension_numbers<[1], [0], [0], [1], [0, 0, 1, 1], [], []>} : vector<8x128xbf16>, vector<128x128xbf16>, vector<8x128xf32> -> vector<8x128xf32>
    %c0_21 = arith.constant 0 : index
    %c0_22 = arith.constant 0 : index
    %28 = vector.load %arg9[%c0_21, %c0_22] : memref<1x128xf32, #tpu.memory_space<vmem>>, vector<1x128xf32>
    %29 = vector.broadcast %28 : vector<1x128xf32> to vector<8x128xf32>
    %30 = arith.addf %27, %29 : vector<8x128xf32>
    %c0_23 = arith.constant 0 : index
    %c0_24 = arith.constant 0 : index
    %31 = vector.load %arg10[%c0_23, %c0_24] : memref<8x128xf32, #tpu.memory_space<vmem>>, vector<8x128xf32>
    tpu.vector_store %arg10[%c0_23, %c0_24], %30 {strides = array<i32>} : memref<8x128xf32, #tpu.memory_space<vmem>>, vector<8x128xf32>,
    return
  }
  func.func @transform_0(%arg0: i32) -> (i32, i32) {
    %c0_i32 = arith.constant 0 : i32
    %c0_i32_0 = arith.constant 0 : i32
    return %arg0, %c0_i32 : i32, i32
  }
  func.func @transform_1(%arg0: i32) -> (i32, i32) {
    %c0_i32 = arith.constant 0 : i32
    %c0_i32_0 = arith.constant 0 : i32
    %c0_i32_1 = arith.constant 0 : i32
    return %c0_i32, %c0_i32_0 : i32, i32
  }
  func.func @transform_2(%arg0: i32) -> (i32, i32) {
    %c0_i32 = arith.constant 0 : i32
    %c0_i32_0 = arith.constant 0 : i32
    %c0_i32_1 = arith.constant 0 : i32
    return %c0_i32, %c0_i32_0 : i32, i32
  }
  func.func @transform_3(%arg0: i32) -> (i32, i32) {
    %c0_i32 = arith.constant 0 : i32
    %c0_i32_0 = arith.constant 0 : i32
    %c0_i32_1 = arith.constant 0 : i32
    return %c0_i32, %c0_i32_0 : i32, i32
  }
  func.func @transform_4(%arg0: i32) -> (i32, i32) {
    %c0_i32 = arith.constant 0 : i32
    %c0_i32_0 = arith.constant 0 : i32
    %c0_i32_1 = arith.constant 0 : i32
    return %c0_i32, %c0_i32_0 : i32, i32
  }
  func.func @transform_5(%arg0: i32) -> (i32, i32) {
    %c0_i32 = arith.constant 0 : i32
    %c0_i32_0 = arith.constant 0 : i32
    %c0_i32_1 = arith.constant 0 : i32
    return %c0_i32, %c0_i32_0 : i32, i32
  }
  func.func @transform_6(%arg0: i32) -> (i32, i32) {
    %c0_i32 = arith.constant 0 : i32
    %c0_i32_0 = arith.constant 0 : i32
    %c0_i32_1 = arith.constant 0 : i32
    return %c0_i32, %c0_i32_0 : i32, i32
  }
  func.func @transform_7(%arg0: i32) -> (i32, i32) {
    %c0_i32 = arith.constant 0 : i32
    %c0_i32_0 = arith.constant 0 : i32
    %c0_i32_1 = arith.constant 0 : i32
    return %c0_i32, %c0_i32_0 : i32, i32
  }
  func.func @transform_8(%arg0: i32) -> (i32, i32) {
    %c0_i32 = arith.constant 0 : i32
    %c0_i32_0 = arith.constant 0 : i32
    %c0_i32_1 = arith.constant 0 : i32
    return %c0_i32, %c0_i32_0 : i32, i32
  }
  func.func @transform_9(%arg0: i32) -> (i32, i32) {
    %c0_i32 = arith.constant 0 : i32
    %c0_i32_0 = arith.constant 0 : i32
    return %arg0, %c0_i32 : i32, i32
  }
}

</mosaic_0001>

<llo_original>
// kernel: neural_network_forward.1
$region0: #{neural_network_forward.1}
  #allocation0 [shape = 'u32[]', space=smem, size = 0x4, offset = 0x4, fixed_abs, tag = 'smem constant byte address 0x4 - core index']
  #allocation1 [shape = 'u32[72,128]{1,0:T(1,128)}', space=vmem, size = 0x9000, scoped, tag = 'internal scratch']
  %s0 = inlined_call_operand.vmem [shape: f32[8,19200], index: 0, kind: input, shape index: {}]
  %s1 = inlined_call_operand.hbm [shape: bf16[19200,128], index: 1, kind: input, shape index: {}]
  %s2 = inlined_call_operand.hbm [shape: f32[1,128], index: 2, kind: input, shape index: {}]
  %s3 = inlined_call_operand.hbm [shape: bf16[128,128], index: 3, kind: input, shape index: {}]
  %s4 = inlined_call_operand.hbm [shape: f32[1,128], index: 4, kind: input, shape index: {}]
  %s5 = inlined_call_operand.hbm [shape: bf16[128,128], index: 5, kind: input, shape index: {}]
  %s6 = inlined_call_operand.hbm [shape: f32[1,128], index: 6, kind: input, shape index: {}]
  %s7 = inlined_call_operand.hbm [shape: bf16[128,128], index: 7, kind: input, shape index: {}]
  %s8 = inlined_call_operand.hbm [shape: f32[1,128], index: 8, kind: input, shape index: {}]
  %s9 = inlined_call_operand.hbm [shape: f32[8,128], index: 9, kind: output, shape index: {}]
  %s10 = sld [smem:[#allocation0]]
  $region78: #{neural_network_forward.1} parent=0
    _
  %s12 = ssub.s32 1, %s10
  %s13 = scalar_select 0, %s12, %s10
  $region1: #{neural_network_forward.1} parent=0
    #allocation2 [shape = 'u8[4915200]{0}', space=vmem, size = 0x4b0000, scoped, tag = 'input window, operand 1, single buffered']
    #allocation3 [shape = 's32[1]{0}', space=sflag, size = 0x4, scoped, tag = 'scoped memory for neural_network_forward.1']
    #allocation4 [shape = 's32[1]{0}', space=sflag, size = 0x4, scoped, tag = 'scoped memory for neural_network_forward.1']
    #allocation5 [shape = 'u8[512]{0}', space=vmem, size = 0x400, scoped, tag = 'input window, operand 2, single buffered']
    #allocation6 [shape = 's32[1]{0}', space=sflag, size = 0x4, scoped, tag = 'scoped memory for neural_network_forward.1']
    #allocation7 [shape = 'u8[32768]{0}', space=vmem, size = 0x8000, scoped, tag = 'input window, operand 3, single buffered']
    #allocation8 [shape = 'u8[512]{0}', space=vmem, size = 0x400, scoped, tag = 'input window, operand 4, single buffered']
    #allocation9 [shape = 's32[1]{0}', space=sflag, size = 0x4, scoped, tag = 'scoped memory for neural_network_forward.1']
    #allocation10 [shape = 'u8[32768]{0}', space=vmem, size = 0x8000, scoped, tag = 'input window, operand 5, single buffered']
    #allocation11 [shape = 'u8[512]{0}', space=vmem, size = 0x400, scoped, tag = 'input window, operand 6, single buffered']
    #allocation12 [shape = 's32[1]{0}', space=sflag, size = 0x4, scoped, tag = 'scoped memory for neural_network_forward.1']
    #allocation13 [shape = 'u8[32768]{0}', space=vmem, size = 0x8000, scoped, tag = 'input window, operand 7, single buffered']
    #allocation14 [shape = 'u8[512]{0}', space=vmem, size = 0x400, scoped, tag = 'input window, operand 8, single buffered']
    #allocation15 [shape = 's32[1]{0}', space=sflag, size = 0x4, scoped, tag = 'scoped memory for neural_network_forward.1']
    #allocation16 [shape = 'u8[4096]{0}', space=vmem, size = 0x1000, scoped, tag = 'output window, operand 0, single buffered']
    %14 = vsyncpa [#allocation3], 0
    %15 = vsyncpa [#allocation6], 0
    %16 = vsyncpa [#allocation9], 0
    %17 = vsyncpa [#allocation12], 0
    %18 = vsyncpa [#allocation15], 0
    %19 = vsyncpa [#allocation4], 0
    // Predicated region
    $region2: #{neural_network_forward.1} parent=1 // pred_check
      _
    $region3: #{neural_network_forward.1} parent=1 // pred_check_branch
      %21 = sbr.rel (0) target = $region5
    $region4: #{neural_network_forward.1} parent=1 // pred_region
      _
    $region5: #{neural_network_forward.1} parent=1 // pred_fallthru
      _
    // Predicated region
    $region6: #{neural_network_forward.1} parent=1 // pred_check
      _
    $region7: #{neural_network_forward.1} parent=1 // pred_check_branch
      %23 = sbr.rel (0) target = $region9
    $region8: #{neural_network_forward.1} parent=1 // pred_region
      %25 = vsyncadd [#allocation3], 0
      %s26 = sshll.u32 %s1, 4
      %s27 = int_to_ptr.hbm [resolvable:$true] %s26
      %s28 = sshll.u32 [#allocation2], 4
      %s29 = int_to_ptr.vmem [resolvable:$true] %s28
      %34 = dma.hbm_to_vmem [thread:$0]  %s27, 153600, %s29, [#allocation3], 64, 64, 4
    $region9: #{neural_network_forward.1} parent=1 // pred_fallthru
      _
    // Predicated region
    $region10: #{neural_network_forward.1} parent=1 // pred_check
      _
    $region11: #{neural_network_forward.1} parent=1 // pred_check_branch
      %36 = sbr.rel (0) target = $region13
    $region12: #{neural_network_forward.1} parent=1 // pred_region
      %38 = vsyncadd [#allocation6], 0
      %s40 = sshll.u32 %s2, 4
      %s41 = int_to_ptr.hbm [resolvable:$true] %s40
      %s42 = sshll.u32 [#allocation5], 4
      %s43 = int_to_ptr.vmem [resolvable:$true] %s42
      %45 = dma.hbm_to_vmem [thread:$0]  %s41, 16, %s43, [#allocation6]
    $region13: #{neural_network_forward.1} parent=1 // pred_fallthru
      _
    // Predicated region
    $region14: #{neural_network_forward.1} parent=1 // pred_check
      _
    $region15: #{neural_network_forward.1} parent=1 // pred_check_branch
      %47 = sbr.rel (0) target = $region17
    $region16: #{neural_network_forward.1} parent=1 // pred_region
      %49 = vsyncadd [#allocation6], 0
      %s50 = sshll.u32 %s3, 4
      %s51 = int_to_ptr.hbm [resolvable:$true] %s50
      %s52 = sshll.u32 [#allocation7], 4
      %s53 = int_to_ptr.vmem [resolvable:$true] %s52
      %58 = dma.hbm_to_vmem [thread:$0]  %s51, 1024, %s53, [#allocation6], 64, 64, 4
    $region17: #{neural_network_forward.1} parent=1 // pred_fallthru
      _
    // Predicated region
    $region18: #{neural_network_forward.1} parent=1 // pred_check
      _
    $region19: #{neural_network_forward.1} parent=1 // pred_check_branch
      %60 = sbr.rel (0) target = $region21
    $region20: #{neural_network_forward.1} parent=1 // pred_region
      %62 = vsyncadd [#allocation9], 0
      %s64 = sshll.u32 %s4, 4
      %s65 = int_to_ptr.hbm [resolvable:$true] %s64
      %s66 = sshll.u32 [#allocation8], 4
      %s67 = int_to_ptr.vmem [resolvable:$true] %s66
      %69 = dma.hbm_to_vmem [thread:$0]  %s65, 16, %s67, [#allocation9]
    $region21: #{neural_network_forward.1} parent=1 // pred_fallthru
      _
    // Predicated region
    $region22: #{neural_network_forward.1} parent=1 // pred_check
      _
    $region23: #{neural_network_forward.1} parent=1 // pred_check_branch
      %71 = sbr.rel (0) target = $region25
    $region24: #{neural_network_forward.1} parent=1 // pred_region
      %73 = vsyncadd [#allocation9], 0
      %s74 = sshll.u32 %s5, 4
      %s75 = int_to_ptr.hbm [resolvable:$true] %s74
      %s76 = sshll.u32 [#allocation10], 4
      %s77 = int_to_ptr.vmem [resolvable:$true] %s76
      %82 = dma.hbm_to_vmem [thread:$0]  %s75, 1024, %s77, [#allocation9], 64, 64, 4
    $region25: #{neural_network_forward.1} parent=1 // pred_fallthru
      _
    // Predicated region
    $region26: #{neural_network_forward.1} parent=1 // pred_check
      _
    $region27: #{neural_network_forward.1} parent=1 // pred_check_branch
      %84 = sbr.rel (0) target = $region29
    $region28: #{neural_network_forward.1} parent=1 // pred_region
      %86 = vsyncadd [#allocation12], 0
      %s88 = sshll.u32 %s6, 4
      %s89 = int_to_ptr.hbm [resolvable:$true] %s88
      %s90 = sshll.u32 [#allocation11], 4
      %s91 = int_to_ptr.vmem [resolvable:$true] %s90
      %93 = dma.hbm_to_vmem [thread:$0]  %s89, 16, %s91, [#allocation12]
    $region29: #{neural_network_forward.1} parent=1 // pred_fallthru
      _
    // Predicated region
    $region30: #{neural_network_forward.1} parent=1 // pred_check
      _
    $region31: #{neural_network_forward.1} parent=1 // pred_check_branch
      %95 = sbr.rel (0) target = $region33
    $region32: #{neural_network_forward.1} parent=1 // pred_region
      %97 = vsyncadd [#allocation12], 0
      %s98 = sshll.u32 %s7, 4
      %s99 = int_to_ptr.hbm [resolvable:$true] %s98
      %s100 = sshll.u32 [#allocation13], 4
      %s101 = int_to_ptr.vmem [resolvable:$true] %s100
      %106 = dma.hbm_to_vmem [thread:$0]  %s99, 1024, %s101, [#allocation12], 64, 64, 4
    $region33: #{neural_network_forward.1} parent=1 // pred_fallthru
      _
    // Predicated region
    $region34: #{neural_network_forward.1} parent=1 // pred_check
      _
    $region35: #{neural_network_forward.1} parent=1 // pred_check_branch
      %108 = sbr.rel (0) target = $region37
    $region36: #{neural_network_forward.1} parent=1 // pred_region
      %110 = vsyncadd [#allocation15], 0
      %s112 = sshll.u32 %s8, 4
      %s113 = int_to_ptr.hbm [resolvable:$true] %s112
      %s114 = sshll.u32 [#allocation14], 4
      %s115 = int_to_ptr.vmem [resolvable:$true] %s114
      %117 = dma.hbm_to_vmem [thread:$0]  %s113, 16, %s115, [#allocation15]
    $region37: #{neural_network_forward.1} parent=1 // pred_fallthru
      _
    // Predicated region
    $region38: #{neural_network_forward.1} parent=1 // pred_check
      _
    $region39: #{neural_network_forward.1} parent=1 // pred_check_branch
      %119 = sbr.rel (0) target = $region41
    $region40: #{neural_network_forward.1} parent=1 // pred_region
      %121 = dma.done [#allocation3], 153600
    $region41: #{neural_network_forward.1} parent=1 // pred_fallthru
      _
    // Predicated region
    $region42: #{neural_network_forward.1} parent=1 // pred_check
      _
    $region43: #{neural_network_forward.1} parent=1 // pred_check_branch
      %123 = sbr.rel (0) target = $region45
    $region44: #{neural_network_forward.1} parent=1 // pred_region
      %125 = dma.done [#allocation6], 16
    $region45: #{neural_network_forward.1} parent=1 // pred_fallthru
      _
    // Predicated region
    $region46: #{neural_network_forward.1} parent=1 // pred_check
      _
    $region47: #{neural_network_forward.1} parent=1 // pred_check_branch
      %127 = sbr.rel (0) target = $region49
    $region48: #{neural_network_forward.1} parent=1 // pred_region
      %129 = dma.done [#allocation6], 1024
    $region49: #{neural_network_forward.1} parent=1 // pred_fallthru
      _
    // Predicated region
    $region50: #{neural_network_forward.1} parent=1 // pred_check
      _
    $region51: #{neural_network_forward.1} parent=1 // pred_check_branch
      %131 = sbr.rel (0) target = $region53
    $region52: #{neural_network_forward.1} parent=1 // pred_region
      %133 = dma.done [#allocation9], 16
    $region53: #{neural_network_forward.1} parent=1 // pred_fallthru
      _
    // Predicated region
    $region54: #{neural_network_forward.1} parent=1 // pred_check
      _
    $region55: #{neural_network_forward.1} parent=1 // pred_check_branch
      %135 = sbr.rel (0) target = $region57
    $region56: #{neural_network_forward.1} parent=1 // pred_region
      %137 = dma.done [#allocation9], 1024
    $region57: #{neural_network_forward.1} parent=1 // pred_fallthru
      _
    // Predicated region
    $region58: #{neural_network_forward.1} parent=1 // pred_check
      _
    $region59: #{neural_network_forward.1} parent=1 // pred_check_branch
      %139 = sbr.rel (0) target = $region61
    $region60: #{neural_network_forward.1} parent=1 // pred_region
      %141 = dma.done [#allocation12], 16
    $region61: #{neural_network_forward.1} parent=1 // pred_fallthru
      _
    // Predicated region
    $region62: #{neural_network_forward.1} parent=1 // pred_check
      _
    $region63: #{neural_network_forward.1} parent=1 // pred_check_branch
      %143 = sbr.rel (0) target = $region65
    $region64: #{neural_network_forward.1} parent=1 // pred_region
      %145 = dma.done [#allocation12], 1024
    $region65: #{neural_network_forward.1} parent=1 // pred_fallthru
      _
    // Predicated region
    $region66: #{neural_network_forward.1} parent=1 // pred_check
      _
    $region67: #{neural_network_forward.1} parent=1 // pred_check_branch
      %147 = sbr.rel (0) target = $region69
    $region68: #{neural_network_forward.1} parent=1 // pred_region
      %149 = dma.done [#allocation15], 16
    $region69: #{neural_network_forward.1} parent=1 // pred_fallthru
      _
    %v150 = vld [vmem:[%s0] sm:$0xff]
    %v151 = vld [vmem:[%s0 + $0x8] sm:$0xff]
    %v152 = vld [vmem:[%s0 + $0x10] sm:$0xff]
    %v153 = vld [vmem:[%s0 + $0x18] sm:$0xff]
    %v154 = vld [vmem:[%s0 + $0x20] sm:$0xff]
    %v155 = vld [vmem:[%s0 + $0x28] sm:$0xff]
    %v156 = vld [vmem:[%s0 + $0x30] sm:$0xff]
    %v157 = vld [vmem:[%s0 + $0x38] sm:$0xff]
    %v158 = vld [vmem:[%s0 + $0x40] sm:$0xff]
    %v159 = vld [vmem:[%s0 + $0x48] sm:$0xff]
    %v160 = vld [vmem:[%s0 + $0x50] sm:$0xff]
    %v161 = vld [vmem:[%s0 + $0x58] sm:$0xff]
    %v162 = vld [vmem:[%s0 + $0x60] sm:$0xff]
    %v163 = vld [vmem:[%s0 + $0x68] sm:$0xff]
    %v164 = vld [vmem:[%s0 + $0x70] sm:$0xff]
    %v165 = vld [vmem:[%s0 + $0x78] sm:$0xff]
    %v166 = vld [vmem:[%s0 + $0x80] sm:$0xff]
    %v167 = vld [vmem:[%s0 + $0x88] sm:$0xff]
    %v168 = vld [vmem:[%s0 + $0x90] sm:$0xff]
    %v169 = vld [vmem:[%s0 + $0x98] sm:$0xff]
    %v170 = vld [vmem:[%s0 + $0xa0] sm:$0xff]
    %v171 = vld [vmem:[%s0 + $0xa8] sm:$0xff]
    %v172 = vld [vmem:[%s0 + $0xb0] sm:$0xff]
    %v173 = vld [vmem:[%s0 + $0xb8] sm:$0xff]
    %v174 = vld [vmem:[%s0 + $0xc0] sm:$0xff]
    %v175 = vld [vmem:[%s0 + $0xc8] sm:$0xff]
    %v176 = vld [vmem:[%s0 + $0xd0] sm:$0xff]
    %v177 = vld [vmem:[%s0 + $0xd8] sm:$0xff]
    %v178 = vld [vmem:[%s0 + $0xe0] sm:$0xff]
    %v179 = vld [vmem:[%s0 + $0xe8] sm:$0xff]
    %v180 = vld [vmem:[%s0 + $0xf0] sm:$0xff]
    %v181 = vld [vmem:[%s0 + $0xf8] sm:$0xff]
    %v182 = vld [vmem:[%s0 + $0x100] sm:$0xff]
    %v183 = vld [vmem:[%s0 + $0x108] sm:$0xff]
    %v184 = vld [vmem:[%s0 + $0x110] sm:$0xff]
    %v185 = vld [vmem:[%s0 + $0x118] sm:$0xff]
    %v186 = vld [vmem:[%s0 + $0x120] sm:$0xff]
    %v187 = vld [vmem:[%s0 + $0x128] sm:$0xff]
    %v188 = vld [vmem:[%s0 + $0x130] sm:$0xff]
    %v189 = vld [vmem:[%s0 + $0x138] sm:$0xff]
    %v190 = vld [vmem:[%s0 + $0x140] sm:$0xff]
    %v191 = vld [vmem:[%s0 + $0x148] sm:$0xff]
    %v192 = vld [vmem:[%s0 + $0x150] sm:$0xff]
    %v193 = vld [vmem:[%s0 + $0x158] sm:$0xff]
    %v194 = vld [vmem:[%s0 + $0x160] sm:$0xff]
    %v195 = vld [vmem:[%s0 + $0x168] sm:$0xff]
    %v196 = vld [vmem:[%s0 + $0x170] sm:$0xff]
    %v197 = vld [vmem:[%s0 + $0x178] sm:$0xff]
    %v198 = vld [vmem:[%s0 + $0x180] sm:$0xff]
    %v199 = vld [vmem:[%s0 + $0x188] sm:$0xff]
    %v200 = vld [vmem:[%s0 + $0x190] sm:$0xff]
    %v201 = vld [vmem:[%s0 + $0x198] sm:$0xff]
    %v202 = vld [vmem:[%s0 + $0x1a0] sm:$0xff]
    %v203 = vld [vmem:[%s0 + $0x1a8] sm:$0xff]
    %v204 = vld [vmem:[%s0 + $0x1b0] sm:$0xff]
    %v205 = vld [vmem:[%s0 + $0x1b8] sm:$0xff]
    %v206 = vld [vmem:[%s0 + $0x1c0] sm:$0xff]
    %v207 = vld [vmem:[%s0 + $0x1c8] sm:$0xff]
    %v208 = vld [vmem:[%s0 + $0x1d0] sm:$0xff]
    %v209 = vld [vmem:[%s0 + $0x1d8] sm:$0xff]
    %v210 = vld [vmem:[%s0 + $0x1e0] sm:$0xff]
    %v211 = vld [vmem:[%s0 + $0x1e8] sm:$0xff]
    %v212 = vld [vmem:[%s0 + $0x1f0] sm:$0xff]
    %v213 = vld [vmem:[%s0 + $0x1f8] sm:$0xff]
    %v214 = vld [vmem:[%s0 + $0x200] sm:$0xff]
    %v215 = vld [vmem:[%s0 + $0x208] sm:$0xff]
    %v216 = vld [vmem:[%s0 + $0x210] sm:$0xff]
    %v217 = vld [vmem:[%s0 + $0x218] sm:$0xff]
    %v218 = vld [vmem:[%s0 + $0x220] sm:$0xff]
    %v219 = vld [vmem:[%s0 + $0x228] sm:$0xff]
    %v220 = vld [vmem:[%s0 + $0x230] sm:$0xff]
    %v221 = vld [vmem:[%s0 + $0x238] sm:$0xff]
    %v222 = vld [vmem:[%s0 + $0x240] sm:$0xff]
    %v223 = vld [vmem:[%s0 + $0x248] sm:$0xff]
    %v224 = vld [vmem:[%s0 + $0x250] sm:$0xff]
    %v225 = vld [vmem:[%s0 + $0x258] sm:$0xff]
    %v226 = vld [vmem:[%s0 + $0x260] sm:$0xff]
    %v227 = vld [vmem:[%s0 + $0x268] sm:$0xff]
    %v228 = vld [vmem:[%s0 + $0x270] sm:$0xff]
    %v229 = vld [vmem:[%s0 + $0x278] sm:$0xff]
    %v230 = vld [vmem:[%s0 + $0x280] sm:$0xff]
    %v231 = vld [vmem:[%s0 + $0x288] sm:$0xff]
    %v232 = vld [vmem:[%s0 + $0x290] sm:$0xff]
    %v233 = vld [vmem:[%s0 + $0x298] sm:$0xff]
    %v234 = vld [vmem:[%s0 + $0x2a0] sm:$0xff]
    %v235 = vld [vmem:[%s0 + $0x2a8] sm:$0xff]
    %v236 = vld [vmem:[%s0 + $0x2b0] sm:$0xff]
    %v237 = vld [vmem:[%s0 + $0x2b8] sm:$0xff]
    %v238 = vld [vmem:[%s0 + $0x2c0] sm:$0xff]
    %v239 = vld [vmem:[%s0 + $0x2c8] sm:$0xff]
    %v240 = vld [vmem:[%s0 + $0x2d0] sm:$0xff]
    %v241 = vld [vmem:[%s0 + $0x2d8] sm:$0xff]
    %v242 = vld [vmem:[%s0 + $0x2e0] sm:$0xff]
    %v243 = vld [vmem:[%s0 + $0x2e8] sm:$0xff]
    %v244 = vld [vmem:[%s0 + $0x2f0] sm:$0xff]
    %v245 = vld [vmem:[%s0 + $0x2f8] sm:$0xff]
    %v246 = vld [vmem:[%s0 + $0x300] sm:$0xff]
    %v247 = vld [vmem:[%s0 + $0x308] sm:$0xff]
    %v248 = vld [vmem:[%s0 + $0x310] sm:$0xff]
    %v249 = vld [vmem:[%s0 + $0x318] sm:$0xff]
    %v250 = vld [vmem:[%s0 + $0x320] sm:$0xff]
    %v251 = vld [vmem:[%s0 + $0x328] sm:$0xff]
    %v252 = vld [vmem:[%s0 + $0x330] sm:$0xff]
    %v253 = vld [vmem:[%s0 + $0x338] sm:$0xff]
    %v254 = vld [vmem:[%s0 + $0x340] sm:$0xff]
    %v255 = vld [vmem:[%s0 + $0x348] sm:$0xff]
    %v256 = vld [vmem:[%s0 + $0x350] sm:$0xff]
    %v257 = vld [vmem:[%s0 + $0x358] sm:$0xff]
    %v258 = vld [vmem:[%s0 + $0x360] sm:$0xff]
    %v259 = vld [vmem:[%s0 + $0x368] sm:$0xff]
    %v260 = vld [vmem:[%s0 + $0x370] sm:$0xff]
    %v261 = vld [vmem:[%s0 + $0x378] sm:$0xff]
    %v262 = vld [vmem:[%s0 + $0x380] sm:$0xff]
    %v263 = vld [vmem:[%s0 + $0x388] sm:$0xff]
    %v264 = vld [vmem:[%s0 + $0x390] sm:$0xff]
    %v265 = vld [vmem:[%s0 + $0x398] sm:$0xff]
    %v266 = vld [vmem:[%s0 + $0x3a0] sm:$0xff]
    %v267 = vld [vmem:[%s0 + $0x3a8] sm:$0xff]
    %v268 = vld [vmem:[%s0 + $0x3b0] sm:$0xff]
    %v269 = vld [vmem:[%s0 + $0x3b8] sm:$0xff]
    %v270 = vld [vmem:[%s0 + $0x3c0] sm:$0xff]
    %v271 = vld [vmem:[%s0 + $0x3c8] sm:$0xff]
    %v272 = vld [vmem:[%s0 + $0x3d0] sm:$0xff]
    %v273 = vld [vmem:[%s0 + $0x3d8] sm:$0xff]
    %v274 = vld [vmem:[%s0 + $0x3e0] sm:$0xff]
    %v275 = vld [vmem:[%s0 + $0x3e8] sm:$0xff]
    %v276 = vld [vmem:[%s0 + $0x3f0] sm:$0xff]
    %v277 = vld [vmem:[%s0 + $0x3f8] sm:$0xff]
    %v278 = vld [vmem:[%s0 + $0x400] sm:$0xff]
    %v279 = vld [vmem:[%s0 + $0x408] sm:$0xff]
    %v280 = vld [vmem:[%s0 + $0x410] sm:$0xff]
    %v281 = vld [vmem:[%s0 + $0x418] sm:$0xff]
    %v282 = vld [vmem:[%s0 + $0x420] sm:$0xff]
    %v283 = vld [vmem:[%s0 + $0x428] sm:$0xff]
    %v284 = vld [vmem:[%s0 + $0x430] sm:$0xff]
    %v285 = vld [vmem:[%s0 + $0x438] sm:$0xff]
    %v286 = vld [vmem:[%s0 + $0x440] sm:$0xff]
    %v287 = vld [vmem:[%s0 + $0x448] sm:$0xff]
    %v288 = vld [vmem:[%s0 + $0x450] sm:$0xff]
    %v289 = vld [vmem:[%s0 + $0x458] sm:$0xff]
    %v290 = vld [vmem:[%s0 + $0x460] sm:$0xff]
    %v291 = vld [vmem:[%s0 + $0x468] sm:$0xff]
    %v292 = vld [vmem:[%s0 + $0x470] sm:$0xff]
    %v293 = vld [vmem:[%s0 + $0x478] sm:$0xff]
    %v294 = vld [vmem:[%s0 + $0x480] sm:$0xff]
    %v295 = vld [vmem:[%s0 + $0x488] sm:$0xff]
    %v296 = vld [vmem:[%s0 + $0x490] sm:$0xff]
    %v297 = vld [vmem:[%s0 + $0x498] sm:$0xff]
    %v298 = vld [vmem:[%s0 + $0x4a0] sm:$0xff]
    %v299 = vld [vmem:[%s0 + $0x4a8] sm:$0xff]
    %v300 = vpack.c.bf16 %v150, %v150
    %v301 = vpack.c.bf16 %v151, %v151
    %v302 = vpack.c.bf16 %v152, %v152
    %v303 = vpack.c.bf16 %v153, %v153
    %v304 = vpack.c.bf16 %v154, %v154
    %v305 = vpack.c.bf16 %v155, %v155
    %v306 = vpack.c.bf16 %v156, %v156
    %v307 = vpack.c.bf16 %v157, %v157
    %v308 = vpack.c.bf16 %v158, %v158
    %v309 = vpack.c.bf16 %v159, %v159
    %v310 = vpack.c.bf16 %v160, %v160
    %v311 = vpack.c.bf16 %v161, %v161
    %v312 = vpack.c.bf16 %v162, %v162
    %v313 = vpack.c.bf16 %v163, %v163
    %v314 = vpack.c.bf16 %v164, %v164
    %v315 = vpack.c.bf16 %v165, %v165
    %v316 = vpack.c.bf16 %v166, %v166
    %v317 = vpack.c.bf16 %v167, %v167
    %v318 = vpack.c.bf16 %v168, %v168
    %v319 = vpack.c.bf16 %v169, %v169
    %v320 = vpack.c.bf16 %v170, %v170
    %v321 = vpack.c.bf16 %v171, %v171
    %v322 = vpack.c.bf16 %v172, %v172
    %v323 = vpack.c.bf16 %v173, %v173
    %v324 = vpack.c.bf16 %v174, %v174
    %v325 = vpack.c.bf16 %v175, %v175
    %v326 = vpack.c.bf16 %v176, %v176
    %v327 = vpack.c.bf16 %v177, %v177
    %v328 = vpack.c.bf16 %v178, %v178
    %v329 = vpack.c.bf16 %v179, %v179
    %v330 = vpack.c.bf16 %v180, %v180
    %v331 = vpack.c.bf16 %v181, %v181
    %v332 = vpack.c.bf16 %v182, %v182
    %v333 = vpack.c.bf16 %v183, %v183
    %v334 = vpack.c.bf16 %v184, %v184
    %v335 = vpack.c.bf16 %v185, %v185
    %v336 = vpack.c.bf16 %v186, %v186
    %v337 = vpack.c.bf16 %v187, %v187
    %v338 = vpack.c.bf16 %v188, %v188
    %v339 = vpack.c.bf16 %v189, %v189
    %v340 = vpack.c.bf16 %v190, %v190
    %v341 = vpack.c.bf16 %v191, %v191
    %v342 = vpack.c.bf16 %v192, %v192
    %v343 = vpack.c.bf16 %v193, %v193
    %v344 = vpack.c.bf16 %v194, %v194
    %v345 = vpack.c.bf16 %v195, %v195
    %v346 = vpack.c.bf16 %v196, %v196
    %v347 = vpack.c.bf16 %v197, %v197
    %v348 = vpack.c.bf16 %v198, %v198
    %v349 = vpack.c.bf16 %v199, %v199
    %v350 = vpack.c.bf16 %v200, %v200
    %v351 = vpack.c.bf16 %v201, %v201
    %v352 = vpack.c.bf16 %v202, %v202
    %v353 = vpack.c.bf16 %v203, %v203
    %v354 = vpack.c.bf16 %v204, %v204
    %v355 = vpack.c.bf16 %v205, %v205
    %v356 = vpack.c.bf16 %v206, %v206
    %v357 = vpack.c.bf16 %v207, %v207
    %v358 = vpack.c.bf16 %v208, %v208
    %v359 = vpack.c.bf16 %v209, %v209
    %v360 = vpack.c.bf16 %v210, %v210
    %v361 = vpack.c.bf16 %v211, %v211
    %v362 = vpack.c.bf16 %v212, %v212
    %v363 = vpack.c.bf16 %v213, %v213
    %v364 = vpack.c.bf16 %v214, %v214
    %v365 = vpack.c.bf16 %v215, %v215
    %v366 = vpack.c.bf16 %v216, %v216
    %v367 = vpack.c.bf16 %v217, %v217
    %v368 = vpack.c.bf16 %v218, %v218
    %v369 = vpack.c.bf16 %v219, %v219
    %v370 = vpack.c.bf16 %v220, %v220
    %v371 = vpack.c.bf16 %v221, %v221
    %v372 = vpack.c.bf16 %v222, %v222
    %v373 = vpack.c.bf16 %v223, %v223
    %v374 = vpack.c.bf16 %v224, %v224
    %v375 = vpack.c.bf16 %v225, %v225
    %v376 = vpack.c.bf16 %v226, %v226
    %v377 = vpack.c.bf16 %v227, %v227
    %v378 = vpack.c.bf16 %v228, %v228
    %v379 = vpack.c.bf16 %v229, %v229
    %v380 = vpack.c.bf16 %v230, %v230
    %v381 = vpack.c.bf16 %v231, %v231
    %v382 = vpack.c.bf16 %v232, %v232
    %v383 = vpack.c.bf16 %v233, %v233
    %v384 = vpack.c.bf16 %v234, %v234
    %v385 = vpack.c.bf16 %v235, %v235
    %v386 = vpack.c.bf16 %v236, %v236
    %v387 = vpack.c.bf16 %v237, %v237
    %v388 = vpack.c.bf16 %v238, %v238
    %v389 = vpack.c.bf16 %v239, %v239
    %v390 = vpack.c.bf16 %v240, %v240
    %v391 = vpack.c.bf16 %v241, %v241
    %v392 = vpack.c.bf16 %v242, %v242
    %v393 = vpack.c.bf16 %v243, %v243
    %v394 = vpack.c.bf16 %v244, %v244
    %v395 = vpack.c.bf16 %v245, %v245
    %v396 = vpack.c.bf16 %v246, %v246
    %v397 = vpack.c.bf16 %v247, %v247
    %v398 = vpack.c.bf16 %v248, %v248
    %v399 = vpack.c.bf16 %v249, %v249
    %v400 = vpack.c.bf16 %v250, %v250
    %v401 = vpack.c.bf16 %v251, %v251
    %v402 = vpack.c.bf16 %v252, %v252
    %v403 = vpack.c.bf16 %v253, %v253
    %v404 = vpack.c.bf16 %v254, %v254
    %v405 = vpack.c.bf16 %v255, %v255
    %v406 = vpack.c.bf16 %v256, %v256
    %v407 = vpack.c.bf16 %v257, %v257
    %v408 = vpack.c.bf16 %v258, %v258
    %v409 = vpack.c.bf16 %v259, %v259
    %v410 = vpack.c.bf16 %v260, %v260
    %v411 = vpack.c.bf16 %v261, %v261
    %v412 = vpack.c.bf16 %v262, %v262
    %v413 = vpack.c.bf16 %v263, %v263
    %v414 = vpack.c.bf16 %v264, %v264
    %v415 = vpack.c.bf16 %v265, %v265
    %v416 = vpack.c.bf16 %v266, %v266
    %v417 = vpack.c.bf16 %v267, %v267
    %v418 = vpack.c.bf16 %v268, %v268
    %v419 = vpack.c.bf16 %v269, %v269
    %v420 = vpack.c.bf16 %v270, %v270
    %v421 = vpack.c.bf16 %v271, %v271
    %v422 = vpack.c.bf16 %v272, %v272
    %v423 = vpack.c.bf16 %v273, %v273
    %v424 = vpack.c.bf16 %v274, %v274
    %v425 = vpack.c.bf16 %v275, %v275
    %v426 = vpack.c.bf16 %v276, %v276
    %v427 = vpack.c.bf16 %v277, %v277
    %v428 = vpack.c.bf16 %v278, %v278
    %v429 = vpack.c.bf16 %v279, %v279
    %v430 = vpack.c.bf16 %v280, %v280
    %v431 = vpack.c.bf16 %v281, %v281
    %v432 = vpack.c.bf16 %v282, %v282
    %v433 = vpack.c.bf16 %v283, %v283
    %v434 = vpack.c.bf16 %v284, %v284
    %v435 = vpack.c.bf16 %v285, %v285
    %v436 = vpack.c.bf16 %v286, %v286
    %v437 = vpack.c.bf16 %v287, %v287
    %v438 = vpack.c.bf16 %v288, %v288
    %v439 = vpack.c.bf16 %v289, %v289
    %v440 = vpack.c.bf16 %v290, %v290
    %v441 = vpack.c.bf16 %v291, %v291
    %v442 = vpack.c.bf16 %v292, %v292
    %v443 = vpack.c.bf16 %v293, %v293
    %v444 = vpack.c.bf16 %v294, %v294
    %v445 = vpack.c.bf16 %v295, %v295
    %v446 = vpack.c.bf16 %v296, %v296
    %v447 = vpack.c.bf16 %v297, %v297
    %v448 = vpack.c.bf16 %v298, %v298
    %v449 = vpack.c.bf16 %v299, %v299
    %v450 = vld [vmem:[#allocation2] sm:$0xf]
    %v451 = vld [vmem:[#allocation2 + $0x4] sm:$0xf]
    %v452 = vld [vmem:[#allocation2 + $0x8] sm:$0xf]
    %v453 = vld [vmem:[#allocation2 + $0xc] sm:$0xf]
    %v454 = vld [vmem:[#allocation2 + $0x10] sm:$0xf]
    %v455 = vld [vmem:[#allocation2 + $0x14] sm:$0xf]
    %v456 = vld [vmem:[#allocation2 + $0x18] sm:$0xf]
    %v457 = vld [vmem:[#allocation2 + $0x1c] sm:$0xf]
    %v458 = vld [vmem:[#allocation2 + $0x20] sm:$0xf]
    %v459 = vld [vmem:[#allocation2 + $0x24] sm:$0xf]
    %v460 = vld [vmem:[#allocation2 + $0x28] sm:$0xf]
    %v461 = vld [vmem:[#allocation2 + $0x2c] sm:$0xf]
    %v462 = vld [vmem:[#allocation2 + $0x30] sm:$0xf]
    %v463 = vld [vmem:[#allocation2 + $0x34] sm:$0xf]
    %v464 = vld [vmem:[#allocation2 + $0x38] sm:$0xf]
    %v465 = vld [vmem:[#allocation2 + $0x3c] sm:$0xf]
    %v466 = vld [vmem:[#allocation2 + $0x40] sm:$0xf]
    %v467 = vld [vmem:[#allocation2 + $0x44] sm:$0xf]
    %v468 = vld [vmem:[#allocation2 + $0x48] sm:$0xf]
    %v469 = vld [vmem:[#allocation2 + $0x4c] sm:$0xf]
    %v470 = vld [vmem:[#allocation2 + $0x50] sm:$0xf]
    %v471 = vld [vmem:[#allocation2 + $0x54] sm:$0xf]
    %v472 = vld [vmem:[#allocation2 + $0x58] sm:$0xf]
    %v473 = vld [vmem:[#allocation2 + $0x5c] sm:$0xf]
    %v474 = vld [vmem:[#allocation2 + $0x60] sm:$0xf]
    %v475 = vld [vmem:[#allocation2 + $0x64] sm:$0xf]
    %v476 = vld [vmem:[#allocation2 + $0x68] sm:$0xf]
    %v477 = vld [vmem:[#allocation2 + $0x6c] sm:$0xf]
    %v478 = vld [vmem:[#allocation2 + $0x70] sm:$0xf]
    %v479 = vld [vmem:[#allocation2 + $0x74] sm:$0xf]
    %v480 = vld [vmem:[#allocation2 + $0x78] sm:$0xf]
    %v481 = vld [vmem:[#allocation2 + $0x7c] sm:$0xf]
    %v482 = vld [vmem:[#allocation2 + $0x80] sm:$0xf]
    %v483 = vld [vmem:[#allocation2 + $0x84] sm:$0xf]
    %v484 = vld [vmem:[#allocation2 + $0x88] sm:$0xf]
    %v485 = vld [vmem:[#allocation2 + $0x8c] sm:$0xf]
    %v486 = vld [vmem:[#allocation2 + $0x90] sm:$0xf]
    %v487 = vld [vmem:[#allocation2 + $0x94] sm:$0xf]
    %v488 = vld [vmem:[#allocation2 + $0x98] sm:$0xf]
    %v489 = vld [vmem:[#allocation2 + $0x9c] sm:$0xf]
    %v490 = vld [vmem:[#allocation2 + $0xa0] sm:$0xf]
    %v491 = vld [vmem:[#allocation2 + $0xa4] sm:$0xf]
    %v492 = vld [vmem:[#allocation2 + $0xa8] sm:$0xf]
    %v493 = vld [vmem:[#allocation2 + $0xac] sm:$0xf]
    %v494 = vld [vmem:[#allocation2 + $0xb0] sm:$0xf]
    %v495 = vld [vmem:[#allocation2 + $0xb4] sm:$0xf]
    %v496 = vld [vmem:[#allocation2 + $0xb8] sm:$0xf]
    %v497 = vld [vmem:[#allocation2 + $0xbc] sm:$0xf]
    %v498 = vld [vmem:[#allocation2 + $0xc0] sm:$0xf]
    %v499 = vld [vmem:[#allocation2 + $0xc4] sm:$0xf]
    %v500 = vld [vmem:[#allocation2 + $0xc8] sm:$0xf]
    %v501 = vld [vmem:[#allocation2 + $0xcc] sm:$0xf]
    %v502 = vld [vmem:[#allocation2 + $0xd0] sm:$0xf]
    %v503 = vld [vmem:[#allocation2 + $0xd4] sm:$0xf]
    %v504 = vld [vmem:[#allocation2 + $0xd8] sm:$0xf]
    %v505 = vld [vmem:[#allocation2 + $0xdc] sm:$0xf]
    %v506 = vld [vmem:[#allocation2 + $0xe0] sm:$0xf]
    %v507 = vld [vmem:[#allocation2 + $0xe4] sm:$0xf]
    %v508 = vld [vmem:[#allocation2 + $0xe8] sm:$0xf]
    %v509 = vld [vmem:[#allocation2 + $0xec] sm:$0xf]
    %v510 = vld [vmem:[#allocation2 + $0xf0] sm:$0xf]
    %v511 = vld [vmem:[#allocation2 + $0xf4] sm:$0xf]
    %v512 = vld [vmem:[#allocation2 + $0xf8] sm:$0xf]
    %v513 = vld [vmem:[#allocation2 + $0xfc] sm:$0xf]
    %v514 = vld [vmem:[#allocation2 + $0x100] sm:$0xf]
    %v515 = vld [vmem:[#allocation2 + $0x104] sm:$0xf]
    %v516 = vld [vmem:[#allocation2 + $0x108] sm:$0xf]
    %v517 = vld [vmem:[#allocation2 + $0x10c] sm:$0xf]
    %v518 = vld [vmem:[#allocation2 + $0x110] sm:$0xf]
    %v519 = vld [vmem:[#allocation2 + $0x114] sm:$0xf]
    %v520 = vld [vmem:[#allocation2 + $0x118] sm:$0xf]
    %v521 = vld [vmem:[#allocation2 + $0x11c] sm:$0xf]
    %v522 = vld [vmem:[#allocation2 + $0x120] sm:$0xf]
    %v523 = vld [vmem:[#allocation2 + $0x124] sm:$0xf]
    %v524 = vld [vmem:[#allocation2 + $0x128] sm:$0xf]
    %v525 = vld [vmem:[#allocation2 + $0x12c] sm:$0xf]
    %v526 = vld [vmem:[#allocation2 + $0x130] sm:$0xf]
    %v527 = vld [vmem:[#allocation2 + $0x134] sm:$0xf]
    %v528 = vld [vmem:[#allocation2 + $0x138] sm:$0xf]
    %v529 = vld [vmem:[#allocation2 + $0x13c] sm:$0xf]
    %v530 = vld [vmem:[#allocation2 + $0x140] sm:$0xf]
    %v531 = vld [vmem:[#allocation2 + $0x144] sm:$0xf]
    %v532 = vld [vmem:[#allocation2 + $0x148] sm:$0xf]
    %v533 = vld [vmem:[#allocation2 + $0x14c] sm:$0xf]
    %v534 = vld [vmem:[#allocation2 + $0x150] sm:$0xf]
    %v535 = vld [vmem:[#allocation2 + $0x154] sm:$0xf]
    %v536 = vld [vmem:[#allocation2 + $0x158] sm:$0xf]
    %v537 = vld [vmem:[#allocation2 + $0x15c] sm:$0xf]
    %v538 = vld [vmem:[#allocation2 + $0x160] sm:$0xf]
    %v539 = vld [vmem:[#allocation2 + $0x164] sm:$0xf]
    %v540 = vld [vmem:[#allocation2 + $0x168] sm:$0xf]
    %v541 = vld [vmem:[#allocation2 + $0x16c] sm:$0xf]
    %v542 = vld [vmem:[#allocation2 + $0x170] sm:$0xf]
    %v543 = vld [vmem:[#allocation2 + $0x174] sm:$0xf]
    %v544 = vld [vmem:[#allocation2 + $0x178] sm:$0xf]
    %v545 = vld [vmem:[#allocation2 + $0x17c] sm:$0xf]
    %v546 = vld [vmem:[#allocation2 + $0x180] sm:$0xf]
    %v547 = vld [vmem:[#allocation2 + $0x184] sm:$0xf]
    %v548 = vld [vmem:[#allocation2 + $0x188] sm:$0xf]
    %v549 = vld [vmem:[#allocation2 + $0x18c] sm:$0xf]
    %v550 = vld [vmem:[#allocation2 + $0x190] sm:$0xf]
    %v551 = vld [vmem:[#allocation2 + $0x194] sm:$0xf]
    %v552 = vld [vmem:[#allocation2 + $0x198] sm:$0xf]
    %v553 = vld [vmem:[#allocation2 + $0x19c] sm:$0xf]
    %v554 = vld [vmem:[#allocation2 + $0x1a0] sm:$0xf]
    %v555 = vld [vmem:[#allocation2 + $0x1a4] sm:$0xf]
    %v556 = vld [vmem:[#allocation2 + $0x1a8] sm:$0xf]
    %v557 = vld [vmem:[#allocation2 + $0x1ac] sm:$0xf]
    %v558 = vld [vmem:[#allocation2 + $0x1b0] sm:$0xf]
    %v559 = vld [vmem:[#allocation2 + $0x1b4] sm:$0xf]
    %v560 = vld [vmem:[#allocation2 + $0x1b8] sm:$0xf]
    %v561 = vld [vmem:[#allocation2 + $0x1bc] sm:$0xf]
    %v562 = vld [vmem:[#allocation2 + $0x1c0] sm:$0xf]
    %v563 = vld [vmem:[#allocation2 + $0x1c4] sm:$0xf]
    %v564 = vld [vmem:[#allocation2 + $0x1c8] sm:$0xf]
    %v565 = vld [vmem:[#allocation2 + $0x1cc] sm:$0xf]
    %v566 = vld [vmem:[#allocation2 + $0x1d0] sm:$0xf]
    %v567 = vld [vmem:[#allocation2 + $0x1d4] sm:$0xf]
    %v568 = vld [vmem:[#allocation2 + $0x1d8] sm:$0xf]
    %v569 = vld [vmem:[#allocation2 + $0x1dc] sm:$0xf]
    %v570 = vld [vmem:[#allocation2 + $0x1e0] sm:$0xf]
    %v571 = vld [vmem:[#allocation2 + $0x1e4] sm:$0xf]
    %v572 = vld [vmem:[#allocation2 + $0x1e8] sm:$0xf]
    %v573 = vld [vmem:[#allocation2 + $0x1ec] sm:$0xf]
    %v574 = vld [vmem:[#allocation2 + $0x1f0] sm:$0xf]
    %v575 = vld [vmem:[#allocation2 + $0x1f4] sm:$0xf]
    %v576 = vld [vmem:[#allocation2 + $0x1f8] sm:$0xf]
    %v577 = vld [vmem:[#allocation2 + $0x1fc] sm:$0xf]
    %v578 = vld [vmem:[#allocation2 + $0x200] sm:$0xf]
    %v579 = vld [vmem:[#allocation2 + $0x204] sm:$0xf]
    %v580 = vld [vmem:[#allocation2 + $0x208] sm:$0xf]
    %v581 = vld [vmem:[#allocation2 + $0x20c] sm:$0xf]
    %v582 = vld [vmem:[#allocation2 + $0x210] sm:$0xf]
    %v583 = vld [vmem:[#allocation2 + $0x214] sm:$0xf]
    %v584 = vld [vmem:[#allocation2 + $0x218] sm:$0xf]
    %v585 = vld [vmem:[#allocation2 + $0x21c] sm:$0xf]
    %v586 = vld [vmem:[#allocation2 + $0x220] sm:$0xf]
    %v587 = vld [vmem:[#allocation2 + $0x224] sm:$0xf]
    %v588 = vld [vmem:[#allocation2 + $0x228] sm:$0xf]
    %v589 = vld [vmem:[#allocation2 + $0x22c] sm:$0xf]
    %v590 = vld [vmem:[#allocation2 + $0x230] sm:$0xf]
    %v591 = vld [vmem:[#allocation2 + $0x234] sm:$0xf]
    %v592 = vld [vmem:[#allocation2 + $0x238] sm:$0xf]
    %v593 = vld [vmem:[#allocation2 + $0x23c] sm:$0xf]
    %v594 = vld [vmem:[#allocation2 + $0x240] sm:$0xf]
    %v595 = vld [vmem:[#allocation2 + $0x244] sm:$0xf]
    %v596 = vld [vmem:[#allocation2 + $0x248] sm:$0xf]
    %v597 = vld [vmem:[#allocation2 + $0x24c] sm:$0xf]
    %v598 = vld [vmem:[#allocation2 + $0x250] sm:$0xf]
    %v599 = vld [vmem:[#allocation2 + $0x254] sm:$0xf]
    %v600 = vld [vmem:[#allocation2 + $0x258] sm:$0xf]
    %v601 = vld [vmem:[#allocation2 + $0x25c] sm:$0xf]
    %v602 = vld [vmem:[#allocation2 + $0x260] sm:$0xf]
    %v603 = vld [vmem:[#allocation2 + $0x264] sm:$0xf]
    %v604 = vld [vmem:[#allocation2 + $0x268] sm:$0xf]
    %v605 = vld [vmem:[#allocation2 + $0x26c] sm:$0xf]
    %v606 = vld [vmem:[#allocation2 + $0x270] sm:$0xf]
    %v607 = vld [vmem:[#allocation2 + $0x274] sm:$0xf]
    %v608 = vld [vmem:[#allocation2 + $0x278] sm:$0xf]
    %v609 = vld [vmem:[#allocation2 + $0x27c] sm:$0xf]
    %v610 = vld [vmem:[#allocation2 + $0x280] sm:$0xf]
    %v611 = vld [vmem:[#allocation2 + $0x284] sm:$0xf]
    %v612 = vld [vmem:[#allocation2 + $0x288] sm:$0xf]
    %v613 = vld [vmem:[#allocation2 + $0x28c] sm:$0xf]
    %v614 = vld [vmem:[#allocation2 + $0x290] sm:$0xf]
    %v615 = vld [vmem:[#allocation2 + $0x294] sm:$0xf]
    %v616 = vld [vmem:[#allocation2 + $0x298] sm:$0xf]
    %v617 = vld [vmem:[#allocation2 + $0x29c] sm:$0xf]
    %v618 = vld [vmem:[#allocation2 + $0x2a0] sm:$0xf]
    %v619 = vld [vmem:[#allocation2 + $0x2a4] sm:$0xf]
    %v620 = vld [vmem:[#allocation2 + $0x2a8] sm:$0xf]
    %v621 = vld [vmem:[#allocation2 + $0x2ac] sm:$0xf]
    %v622 = vld [vmem:[#allocation2 + $0x2b0] sm:$0xf]
    %v623 = vld [vmem:[#allocation2 + $0x2b4] sm:$0xf]
    %v624 = vld [vmem:[#allocation2 + $0x2b8] sm:$0xf]
    %v625 = vld [vmem:[#allocation2 + $0x2bc] sm:$0xf]
    %v626 = vld [vmem:[#allocation2 + $0x2c0] sm:$0xf]
    %v627 = vld [vmem:[#allocation2 + $0x2c4] sm:$0xf]
    %v628 = vld [vmem:[#allocation2 + $0x2c8] sm:$0xf]
    %v629 = vld [vmem:[#allocation2 + $0x2cc] sm:$0xf]
    %v630 = vld [vmem:[#allocation2 + $0x2d0] sm:$0xf]
    %v631 = vld [vmem:[#allocation2 + $0x2d4] sm:$0xf]
    %v632 = vld [vmem:[#allocation2 + $0x2d8] sm:$0xf]
    %v633 = vld [vmem:[#allocation2 + $0x2dc] sm:$0xf]
    %v634 = vld [vmem:[#allocation2 + $0x2e0] sm:$0xf]
    %v635 = vld [vmem:[#allocation2 + $0x2e4] sm:$0xf]
    %v636 = vld [vmem:[#allocation2 + $0x2e8] sm:$0xf]
    %v637 = vld [vmem:[#allocation2 + $0x2ec] sm:$0xf]
    %v638 = vld [vmem:[#allocation2 + $0x2f0] sm:$0xf]
    %v639 = vld [vmem:[#allocation2 + $0x2f4] sm:$0xf]
    %v640 = vld [vmem:[#allocation2 + $0x2f8] sm:$0xf]
    %v641 = vld [vmem:[#allocation2 + $0x2fc] sm:$0xf]
    %v642 = vld [vmem:[#allocation2 + $0x300] sm:$0xf]
    %v643 = vld [vmem:[#allocation2 + $0x304] sm:$0xf]
    %v644 = vld [vmem:[#allocation2 + $0x308] sm:$0xf]
    %v645 = vld [vmem:[#allocation2 + $0x30c] sm:$0xf]
    %v646 = vld [vmem:[#allocation2 + $0x310] sm:$0xf]
    %v647 = vld [vmem:[#allocation2 + $0x314] sm:$0xf]
    %v648 = vld [vmem:[#allocation2 + $0x318] sm:$0xf]
    %v649 = vld [vmem:[#allocation2 + $0x31c] sm:$0xf]
    %v650 = vld [vmem:[#allocation2 + $0x320] sm:$0xf]
    %v651 = vld [vmem:[#allocation2 + $0x324] sm:$0xf]
    %v652 = vld [vmem:[#allocation2 + $0x328] sm:$0xf]
    %v653 = vld [vmem:[#allocation2 + $0x32c] sm:$0xf]
    %v654 = vld [vmem:[#allocation2 + $0x330] sm:$0xf]
    %v655 = vld [vmem:[#allocation2 + $0x334] sm:$0xf]
    %v656 = vld [vmem:[#allocation2 + $0x338] sm:$0xf]
    %v657 = vld [vmem:[#allocation2 + $0x33c] sm:$0xf]
    %v658 = vld [vmem:[#allocation2 + $0x340] sm:$0xf]
    %v659 = vld [vmem:[#allocation2 + $0x344] sm:$0xf]
    %v660 = vld [vmem:[#allocation2 + $0x348] sm:$0xf]
    %v661 = vld [vmem:[#allocation2 + $0x34c] sm:$0xf]
    %v662 = vld [vmem:[#allocation2 + $0x350] sm:$0xf]
    %v663 = vld [vmem:[#allocation2 + $0x354] sm:$0xf]
    %v664 = vld [vmem:[#allocation2 + $0x358] sm:$0xf]
    %v665 = vld [vmem:[#allocation2 + $0x35c] sm:$0xf]
    %v666 = vld [vmem:[#allocation2 + $0x360] sm:$0xf]
    %v667 = vld [vmem:[#allocation2 + $0x364] sm:$0xf]
    %v668 = vld [vmem:[#allocation2 + $0x368] sm:$0xf]
    %v669 = vld [vmem:[#allocation2 + $0x36c] sm:$0xf]
    %v670 = vld [vmem:[#allocation2 + $0x370] sm:$0xf]
    %v671 = vld [vmem:[#allocation2 + $0x374] sm:$0xf]
    %v672 = vld [vmem:[#allocation2 + $0x378] sm:$0xf]
    %v673 = vld [vmem:[#allocation2 + $0x37c] sm:$0xf]
    %v674 = vld [vmem:[#allocation2 + $0x380] sm:$0xf]
    %v675 = vld [vmem:[#allocation2 + $0x384] sm:$0xf]
    %v676 = vld [vmem:[#allocation2 + $0x388] sm:$0xf]
    %v677 = vld [vmem:[#allocation2 + $0x38c] sm:$0xf]
    %v678 = vld [vmem:[#allocation2 + $0x390] sm:$0xf]
    %v679 = vld [vmem:[#allocation2 + $0x394] sm:$0xf]
    %v680 = vld [vmem:[#allocation2 + $0x398] sm:$0xf]
    %v681 = vld [vmem:[#allocation2 + $0x39c] sm:$0xf]
    %v682 = vld [vmem:[#allocation2 + $0x3a0] sm:$0xf]
    %v683 = vld [vmem:[#allocation2 + $0x3a4] sm:$0xf]
    %v684 = vld [vmem:[#allocation2 + $0x3a8] sm:$0xf]
    %v685 = vld [vmem:[#allocation2 + $0x3ac] sm:$0xf]
    %v686 = vld [vmem:[#allocation2 + $0x3b0] sm:$0xf]
    %v687 = vld [vmem:[#allocation2 + $0x3b4] sm:$0xf]
    %v688 = vld [vmem:[#allocation2 + $0x3b8] sm:$0xf]
    %v689 = vld [vmem:[#allocation2 + $0x3bc] sm:$0xf]
    %v690 = vld [vmem:[#allocation2 + $0x3c0] sm:$0xf]
    %v691 = vld [vmem:[#allocation2 + $0x3c4] sm:$0xf]
    %v692 = vld [vmem:[#allocation2 + $0x3c8] sm:$0xf]
    %v693 = vld [vmem:[#allocation2 + $0x3cc] sm:$0xf]
    %v694 = vld [vmem:[#allocation2 + $0x3d0] sm:$0xf]
    %v695 = vld [vmem:[#allocation2 + $0x3d4] sm:$0xf]
    %v696 = vld [vmem:[#allocation2 + $0x3d8] sm:$0xf]
    %v697 = vld [vmem:[#allocation2 + $0x3dc] sm:$0xf]
    %v698 = vld [vmem:[#allocation2 + $0x3e0] sm:$0xf]
    %v699 = vld [vmem:[#allocation2 + $0x3e4] sm:$0xf]
    %v700 = vld [vmem:[#allocation2 + $0x3e8] sm:$0xf]
    %v701 = vld [vmem:[#allocation2 + $0x3ec] sm:$0xf]
    %v702 = vld [vmem:[#allocation2 + $0x3f0] sm:$0xf]
    %v703 = vld [vmem:[#allocation2 + $0x3f4] sm:$0xf]
    %v704 = vld [vmem:[#allocation2 + $0x3f8] sm:$0xf]
    %v705 = vld [vmem:[#allocation2 + $0x3fc] sm:$0xf]
    %v706 = vld [vmem:[#allocation2 + $0x400] sm:$0xf]
    %v707 = vld [vmem:[#allocation2 + $0x404] sm:$0xf]
    %v708 = vld [vmem:[#allocation2 + $0x408] sm:$0xf]
    %v709 = vld [vmem:[#allocation2 + $0x40c] sm:$0xf]
    %v710 = vld [vmem:[#allocation2 + $0x410] sm:$0xf]
    %v711 = vld [vmem:[#allocation2 + $0x414] sm:$0xf]
    %v712 = vld [vmem:[#allocation2 + $0x418] sm:$0xf]
    %v713 = vld [vmem:[#allocation2 + $0x41c] sm:$0xf]
    %v714 = vld [vmem:[#allocation2 + $0x420] sm:$0xf]
    %v715 = vld [vmem:[#allocation2 + $0x424] sm:$0xf]
    %v716 = vld [vmem:[#allocation2 + $0x428] sm:$0xf]
    %v717 = vld [vmem:[#allocation2 + $0x42c] sm:$0xf]
    %v718 = vld [vmem:[#allocation2 + $0x430] sm:$0xf]
    %v719 = vld [vmem:[#allocation2 + $0x434] sm:$0xf]
    %v720 = vld [vmem:[#allocation2 + $0x438] sm:$0xf]
    %v721 = vld [vmem:[#allocation2 + $0x43c] sm:$0xf]
    %v722 = vld [vmem:[#allocation2 + $0x440] sm:$0xf]
    %v723 = vld [vmem:[#allocation2 + $0x444] sm:$0xf]
    %v724 = vld [vmem:[#allocation2 + $0x448] sm:$0xf]
    %v725 = vld [vmem:[#allocation2 + $0x44c] sm:$0xf]
    %v726 = vld [vmem:[#allocation2 + $0x450] sm:$0xf]
    %v727 = vld [vmem:[#allocation2 + $0x454] sm:$0xf]
    %v728 = vld [vmem:[#allocation2 + $0x458] sm:$0xf]
    %v729 = vld [vmem:[#allocation2 + $0x45c] sm:$0xf]
    %v730 = vld [vmem:[#allocation2 + $0x460] sm:$0xf]
    %v731 = vld [vmem:[#allocation2 + $0x464] sm:$0xf]
    %v732 = vld [vmem:[#allocation2 + $0x468] sm:$0xf]
    %v733 = vld [vmem:[#allocation2 + $0x46c] sm:$0xf]
    %v734 = vld [vmem:[#allocation2 + $0x470] sm:$0xf]
    %v735 = vld [vmem:[#allocation2 + $0x474] sm:$0xf]
    %v736 = vld [vmem:[#allocation2 + $0x478] sm:$0xf]
    %v737 = vld [vmem:[#allocation2 + $0x47c] sm:$0xf]
    %v738 = vld [vmem:[#allocation2 + $0x480] sm:$0xf]
    %v739 = vld [vmem:[#allocation2 + $0x484] sm:$0xf]
    %v740 = vld [vmem:[#allocation2 + $0x488] sm:$0xf]
    %v741 = vld [vmem:[#allocation2 + $0x48c] sm:$0xf]
    %v742 = vld [vmem:[#allocation2 + $0x490] sm:$0xf]
    %v743 = vld [vmem:[#allocation2 + $0x494] sm:$0xf]
    %v744 = vld [vmem:[#allocation2 + $0x498] sm:$0xf]
    %v745 = vld [vmem:[#allocation2 + $0x49c] sm:$0xf]
    %v746 = vld [vmem:[#allocation2 + $0x4a0] sm:$0xf]
    %v747 = vld [vmem:[#allocation2 + $0x4a4] sm:$0xf]
    %v748 = vld [vmem:[#allocation2 + $0x4a8] sm:$0xf]
    %v749 = vld [vmem:[#allocation2 + $0x4ac] sm:$0xf]
    %v750 = vld [vmem:[#allocation2 + $0x4b0] sm:$0xf]
    %v751 = vld [vmem:[#allocation2 + $0x4b4] sm:$0xf]
    %v752 = vld [vmem:[#allocation2 + $0x4b8] sm:$0xf]
    %v753 = vld [vmem:[#allocation2 + $0x4bc] sm:$0xf]
    %v754 = vld [vmem:[#allocation2 + $0x4c0] sm:$0xf]
    %v755 = vld [vmem:[#allocation2 + $0x4c4] sm:$0xf]
    %v756 = vld [vmem:[#allocation2 + $0x4c8] sm:$0xf]
    %v757 = vld [vmem:[#allocation2 + $0x4cc] sm:$0xf]
    %v758 = vld [vmem:[#allocation2 + $0x4d0] sm:$0xf]
    %v759 = vld [vmem:[#allocation2 + $0x4d4] sm:$0xf]
    %v760 = vld [vmem:[#allocation2 + $0x4d8] sm:$0xf]
    %v761 = vld [vmem:[#allocation2 + $0x4dc] sm:$0xf]
    %v762 = vld [vmem:[#allocation2 + $0x4e0] sm:$0xf]
    %v763 = vld [vmem:[#allocation2 + $0x4e4] sm:$0xf]
    %v764 = vld [vmem:[#allocation2 + $0x4e8] sm:$0xf]
    %v765 = vld [vmem:[#allocation2 + $0x4ec] sm:$0xf]
    %v766 = vld [vmem:[#allocation2 + $0x4f0] sm:$0xf]
    %v767 = vld [vmem:[#allocation2 + $0x4f4] sm:$0xf]
    %v768 = vld [vmem:[#allocation2 + $0x4f8] sm:$0xf]
    %v769 = vld [vmem:[#allocation2 + $0x4fc] sm:$0xf]
    %v770 = vld [vmem:[#allocation2 + $0x500] sm:$0xf]
    %v771 = vld [vmem:[#allocation2 + $0x504] sm:$0xf]
    %v772 = vld [vmem:[#allocation2 + $0x508] sm:$0xf]
    %v773 = vld [vmem:[#allocation2 + $0x50c] sm:$0xf]
    %v774 = vld [vmem:[#allocation2 + $0x510] sm:$0xf]
    %v775 = vld [vmem:[#allocation2 + $0x514] sm:$0xf]
    %v776 = vld [vmem:[#allocation2 + $0x518] sm:$0xf]
    %v777 = vld [vmem:[#allocation2 + $0x51c] sm:$0xf]
    %v778 = vld [vmem:[#allocation2 + $0x520] sm:$0xf]
    %v779 = vld [vmem:[#allocation2 + $0x524] sm:$0xf]
    %v780 = vld [vmem:[#allocation2 + $0x528] sm:$0xf]
    %v781 = vld [vmem:[#allocation2 + $0x52c] sm:$0xf]
    %v782 = vld [vmem:[#allocation2 + $0x530] sm:$0xf]
    %v783 = vld [vmem:[#allocation2 + $0x534] sm:$0xf]
    %v784 = vld [vmem:[#allocation2 + $0x538] sm:$0xf]
    %v785 = vld [vmem:[#allocation2 + $0x53c] sm:$0xf]
    %v786 = vld [vmem:[#allocation2 + $0x540] sm:$0xf]
    %v787 = vld [vmem:[#allocation2 + $0x544] sm:$0xf]
    %v788 = vld [vmem:[#allocation2 + $0x548] sm:$0xf]
    %v789 = vld [vmem:[#allocation2 + $0x54c] sm:$0xf]
    %v790 = vld [vmem:[#allocation2 + $0x550] sm:$0xf]
    %v791 = vld [vmem:[#allocation2 + $0x554] sm:$0xf]
    %v792 = vld [vmem:[#allocation2 + $0x558] sm:$0xf]
    %v793 = vld [vmem:[#allocation2 + $0x55c] sm:$0xf]
    %v794 = vld [vmem:[#allocation2 + $0x560] sm:$0xf]
    %v795 = vld [vmem:[#allocation2 + $0x564] sm:$0xf]
    %v796 = vld [vmem:[#allocation2 + $0x568] sm:$0xf]
    %v797 = vld [vmem:[#allocation2 + $0x56c] sm:$0xf]
    %v798 = vld [vmem:[#allocation2 + $0x570] sm:$0xf]
    %v799 = vld [vmem:[#allocation2 + $0x574] sm:$0xf]
    %v800 = vld [vmem:[#allocation2 + $0x578] sm:$0xf]
    %v801 = vld [vmem:[#allocation2 + $0x57c] sm:$0xf]
    %v802 = vld [vmem:[#allocation2 + $0x580] sm:$0xf]
    %v803 = vld [vmem:[#allocation2 + $0x584] sm:$0xf]
    %v804 = vld [vmem:[#allocation2 + $0x588] sm:$0xf]
    %v805 = vld [vmem:[#allocation2 + $0x58c] sm:$0xf]
    %v806 = vld [vmem:[#allocation2 + $0x590] sm:$0xf]
    %v807 = vld [vmem:[#allocation2 + $0x594] sm:$0xf]
    %v808 = vld [vmem:[#allocation2 + $0x598] sm:$0xf]
    %v809 = vld [vmem:[#allocation2 + $0x59c] sm:$0xf]
    %v810 = vld [vmem:[#allocation2 + $0x5a0] sm:$0xf]
    %v811 = vld [vmem:[#allocation2 + $0x5a4] sm:$0xf]
    %v812 = vld [vmem:[#allocation2 + $0x5a8] sm:$0xf]
    %v813 = vld [vmem:[#allocation2 + $0x5ac] sm:$0xf]
    %v814 = vld [vmem:[#allocation2 + $0x5b0] sm:$0xf]
    %v815 = vld [vmem:[#allocation2 + $0x5b4] sm:$0xf]
    %v816 = vld [vmem:[#allocation2 + $0x5b8] sm:$0xf]
    %v817 = vld [vmem:[#allocation2 + $0x5bc] sm:$0xf]
    %v818 = vld [vmem:[#allocation2 + $0x5c0] sm:$0xf]
    %v819 = vld [vmem:[#allocation2 + $0x5c4] sm:$0xf]
    %v820 = vld [vmem:[#allocation2 + $0x5c8] sm:$0xf]
    %v821 = vld [vmem:[#allocation2 + $0x5cc] sm:$0xf]
    %v822 = vld [vmem:[#allocation2 + $0x5d0] sm:$0xf]
    %v823 = vld [vmem:[#allocation2 + $0x5d4] sm:$0xf]
    %v824 = vld [vmem:[#allocation2 + $0x5d8] sm:$0xf]
    %v825 = vld [vmem:[#allocation2 + $0x5dc] sm:$0xf]
    %v826 = vld [vmem:[#allocation2 + $0x5e0] sm:$0xf]
    %v827 = vld [vmem:[#allocation2 + $0x5e4] sm:$0xf]
    %v828 = vld [vmem:[#allocation2 + $0x5e8] sm:$0xf]
    %v829 = vld [vmem:[#allocation2 + $0x5ec] sm:$0xf]
    %v830 = vld [vmem:[#allocation2 + $0x5f0] sm:$0xf]
    %v831 = vld [vmem:[#allocation2 + $0x5f4] sm:$0xf]
    %v832 = vld [vmem:[#allocation2 + $0x5f8] sm:$0xf]
    %v833 = vld [vmem:[#allocation2 + $0x5fc] sm:$0xf]
    %v834 = vld [vmem:[#allocation2 + $0x600] sm:$0xf]
    %v835 = vld [vmem:[#allocation2 + $0x604] sm:$0xf]
    %v836 = vld [vmem:[#allocation2 + $0x608] sm:$0xf]
    %v837 = vld [vmem:[#allocation2 + $0x60c] sm:$0xf]
    %v838 = vld [vmem:[#allocation2 + $0x610] sm:$0xf]
    %v839 = vld [vmem:[#allocation2 + $0x614] sm:$0xf]
    %v840 = vld [vmem:[#allocation2 + $0x618] sm:$0xf]
    %v841 = vld [vmem:[#allocation2 + $0x61c] sm:$0xf]
    %v842 = vld [vmem:[#allocation2 + $0x620] sm:$0xf]
    %v843 = vld [vmem:[#allocation2 + $0x624] sm:$0xf]
    %v844 = vld [vmem:[#allocation2 + $0x628] sm:$0xf]
    %v845 = vld [vmem:[#allocation2 + $0x62c] sm:$0xf]
    %v846 = vld [vmem:[#allocation2 + $0x630] sm:$0xf]
    %v847 = vld [vmem:[#allocation2 + $0x634] sm:$0xf]
    %v848 = vld [vmem:[#allocation2 + $0x638] sm:$0xf]
    %v849 = vld [vmem:[#allocation2 + $0x63c] sm:$0xf]
    %v850 = vld [vmem:[#allocation2 + $0x640] sm:$0xf]
    %v851 = vld [vmem:[#allocation2 + $0x644] sm:$0xf]
    %v852 = vld [vmem:[#allocation2 + $0x648] sm:$0xf]
    %v853 = vld [vmem:[#allocation2 + $0x64c] sm:$0xf]
    %v854 = vld [vmem:[#allocation2 + $0x650] sm:$0xf]
    %v855 = vld [vmem:[#allocation2 + $0x654] sm:$0xf]
    %v856 = vld [vmem:[#allocation2 + $0x658] sm:$0xf]
    %v857 = vld [vmem:[#allocation2 + $0x65c] sm:$0xf]
    %v858 = vld [vmem:[#allocation2 + $0x660] sm:$0xf]
    %v859 = vld [vmem:[#allocation2 + $0x664] sm:$0xf]
    %v860 = vld [vmem:[#allocation2 + $0x668] sm:$0xf]
    %v861 = vld [vmem:[#allocation2 + $0x66c] sm:$0xf]
    %v862 = vld [vmem:[#allocation2 + $0x670] sm:$0xf]
    %v863 = vld [vmem:[#allocation2 + $0x674] sm:$0xf]
    %v864 = vld [vmem:[#allocation2 + $0x678] sm:$0xf]
    %v865 = vld [vmem:[#allocation2 + $0x67c] sm:$0xf]
    %v866 = vld [vmem:[#allocation2 + $0x680] sm:$0xf]
    %v867 = vld [vmem:[#allocation2 + $0x684] sm:$0xf]
    %v868 = vld [vmem:[#allocation2 + $0x688] sm:$0xf]
    %v869 = vld [vmem:[#allocation2 + $0x68c] sm:$0xf]
    %v870 = vld [vmem:[#allocation2 + $0x690] sm:$0xf]
    %v871 = vld [vmem:[#allocation2 + $0x694] sm:$0xf]
    %v872 = vld [vmem:[#allocation2 + $0x698] sm:$0xf]
    %v873 = vld [vmem:[#allocation2 + $0x69c] sm:$0xf]
    %v874 = vld [vmem:[#allocation2 + $0x6a0] sm:$0xf]
    %v875 = vld [vmem:[#allocation2 + $0x6a4] sm:$0xf]
    %v876 = vld [vmem:[#allocation2 + $0x6a8] sm:$0xf]
    %v877 = vld [vmem:[#allocation2 + $0x6ac] sm:$0xf]
    %v878 = vld [vmem:[#allocation2 + $0x6b0] sm:$0xf]
    %v879 = vld [vmem:[#allocation2 + $0x6b4] sm:$0xf]
    %v880 = vld [vmem:[#allocation2 + $0x6b8] sm:$0xf]
    %v881 = vld [vmem:[#allocation2 + $0x6bc] sm:$0xf]
    %v882 = vld [vmem:[#allocation2 + $0x6c0] sm:$0xf]
    %v883 = vld [vmem:[#allocation2 + $0x6c4] sm:$0xf]
    %v884 = vld [vmem:[#allocation2 + $0x6c8] sm:$0xf]
    %v885 = vld [vmem:[#allocation2 + $0x6cc] sm:$0xf]
    %v886 = vld [vmem:[#allocation2 + $0x6d0] sm:$0xf]
    %v887 = vld [vmem:[#allocation2 + $0x6d4] sm:$0xf]
    %v888 = vld [vmem:[#allocation2 + $0x6d8] sm:$0xf]
    %v889 = vld [vmem:[#allocation2 + $0x6dc] sm:$0xf]
    %v890 = vld [vmem:[#allocation2 + $0x6e0] sm:$0xf]
    %v891 = vld [vmem:[#allocation2 + $0x6e4] sm:$0xf]
    %v892 = vld [vmem:[#allocation2 + $0x6e8] sm:$0xf]
    %v893 = vld [vmem:[#allocation2 + $0x6ec] sm:$0xf]
    %v894 = vld [vmem:[#allocation2 + $0x6f0] sm:$0xf]
    %v895 = vld [vmem:[#allocation2 + $0x6f4] sm:$0xf]
    %v896 = vld [vmem:[#allocation2 + $0x6f8] sm:$0xf]
    %v897 = vld [vmem:[#allocation2 + $0x6fc] sm:$0xf]
    %v898 = vld [vmem:[#allocation2 + $0x700] sm:$0xf]
    %v899 = vld [vmem:[#allocation2 + $0x704] sm:$0xf]
    %v900 = vld [vmem:[#allocation2 + $0x708] sm:$0xf]
    %v901 = vld [vmem:[#allocation2 + $0x70c] sm:$0xf]
    %v902 = vld [vmem:[#allocation2 + $0x710] sm:$0xf]
    %v903 = vld [vmem:[#allocation2 + $0x714] sm:$0xf]
    %v904 = vld [vmem:[#allocation2 + $0x718] sm:$0xf]
    %v905 = vld [vmem:[#allocation2 + $0x71c] sm:$0xf]
    %v906 = vld [vmem:[#allocation2 + $0x720] sm:$0xf]
    %v907 = vld [vmem:[#allocation2 + $0x724] sm:$0xf]
    %v908 = vld [vmem:[#allocation2 + $0x728] sm:$0xf]
    %v909 = vld [vmem:[#allocation2 + $0x72c] sm:$0xf]
    %v910 = vld [vmem:[#allocation2 + $0x730] sm:$0xf]
    %v911 = vld [vmem:[#allocation2 + $0x734] sm:$0xf]
    %v912 = vld [vmem:[#allocation2 + $0x738] sm:$0xf]
    %v913 = vld [vmem:[#allocation2 + $0x73c] sm:$0xf]
    %v914 = vld [vmem:[#allocation2 + $0x740] sm:$0xf]
    %v915 = vld [vmem:[#allocation2 + $0x744] sm:$0xf]
    %v916 = vld [vmem:[#allocation2 + $0x748] sm:$0xf]
    %v917 = vld [vmem:[#allocation2 + $0x74c] sm:$0xf]
    %v918 = vld [vmem:[#allocation2 + $0x750] sm:$0xf]
    %v919 = vld [vmem:[#allocation2 + $0x754] sm:$0xf]
    %v920 = vld [vmem:[#allocation2 + $0x758] sm:$0xf]
    %v921 = vld [vmem:[#allocation2 + $0x75c] sm:$0xf]
    %v922 = vld [vmem:[#allocation2 + $0x760] sm:$0xf]
    %v923 = vld [vmem:[#allocation2 + $0x764] sm:$0xf]
    %v924 = vld [vmem:[#allocation2 + $0x768] sm:$0xf]
    %v925 = vld [vmem:[#allocation2 + $0x76c] sm:$0xf]
    %v926 = vld [vmem:[#allocation2 + $0x770] sm:$0xf]
    %v927 = vld [vmem:[#allocation2 + $0x774] sm:$0xf]
    %v928 = vld [vmem:[#allocation2 + $0x778] sm:$0xf]
    %v929 = vld [vmem:[#allocation2 + $0x77c] sm:$0xf]
    %v930 = vld [vmem:[#allocation2 + $0x780] sm:$0xf]
    %v931 = vld [vmem:[#allocation2 + $0x784] sm:$0xf]
    %v932 = vld [vmem:[#allocation2 + $0x788] sm:$0xf]
    %v933 = vld [vmem:[#allocation2 + $0x78c] sm:$0xf]
    %v934 = vld [vmem:[#allocation2 + $0x790] sm:$0xf]
    %v935 = vld [vmem:[#allocation2 + $0x794] sm:$0xf]
    %v936 = vld [vmem:[#allocation2 + $0x798] sm:$0xf]
    %v937 = vld [vmem:[#allocation2 + $0x79c] sm:$0xf]
    %v938 = vld [vmem:[#allocation2 + $0x7a0] sm:$0xf]
    %v939 = vld [vmem:[#allocation2 + $0x7a4] sm:$0xf]
    %v940 = vld [vmem:[#allocation2 + $0x7a8] sm:$0xf]
    %v941 = vld [vmem:[#allocation2 + $0x7ac] sm:$0xf]
    %v942 = vld [vmem:[#allocation2 + $0x7b0] sm:$0xf]
    %v943 = vld [vmem:[#allocation2 + $0x7b4] sm:$0xf]
    %v944 = vld [vmem:[#allocation2 + $0x7b8] sm:$0xf]
    %v945 = vld [vmem:[#allocation2 + $0x7bc] sm:$0xf]
    %v946 = vld [vmem:[#allocation2 + $0x7c0] sm:$0xf]
    %v947 = vld [vmem:[#allocation2 + $0x7c4] sm:$0xf]
    %v948 = vld [vmem:[#allocation2 + $0x7c8] sm:$0xf]
    %v949 = vld [vmem:[#allocation2 + $0x7cc] sm:$0xf]
    %v950 = vld [vmem:[#allocation2 + $0x7d0] sm:$0xf]
    %v951 = vld [vmem:[#allocation2 + $0x7d4] sm:$0xf]
    %v952 = vld [vmem:[#allocation2 + $0x7d8] sm:$0xf]
    %v953 = vld [vmem:[#allocation2 + $0x7dc] sm:$0xf]
    %v954 = vld [vmem:[#allocation2 + $0x7e0] sm:$0xf]
    %v955 = vld [vmem:[#allocation2 + $0x7e4] sm:$0xf]
    %v956 = vld [vmem:[#allocation2 + $0x7e8] sm:$0xf]
    %v957 = vld [vmem:[#allocation2 + $0x7ec] sm:$0xf]
    %v958 = vld [vmem:[#allocation2 + $0x7f0] sm:$0xf]
    %v959 = vld [vmem:[#allocation2 + $0x7f4] sm:$0xf]
    %v960 = vld [vmem:[#allocation2 + $0x7f8] sm:$0xf]
    %v961 = vld [vmem:[#allocation2 + $0x7fc] sm:$0xf]
    %v962 = vld [vmem:[#allocation2 + $0x800] sm:$0xf]
    %v963 = vld [vmem:[#allocation2 + $0x804] sm:$0xf]
    %v964 = vld [vmem:[#allocation2 + $0x808] sm:$0xf]
    %v965 = vld [vmem:[#allocation2 + $0x80c] sm:$0xf]
    %v966 = vld [vmem:[#allocation2 + $0x810] sm:$0xf]
    %v967 = vld [vmem:[#allocation2 + $0x814] sm:$0xf]
    %v968 = vld [vmem:[#allocation2 + $0x818] sm:$0xf]
    %v969 = vld [vmem:[#allocation2 + $0x81c] sm:$0xf]
    %v970 = vld [vmem:[#allocation2 + $0x820] sm:$0xf]
    %v971 = vld [vmem:[#allocation2 + $0x824] sm:$0xf]
    %v972 = vld [vmem:[#allocation2 + $0x828] sm:$0xf]
    %v973 = vld [vmem:[#allocation2 + $0x82c] sm:$0xf]
    %v974 = vld [vmem:[#allocation2 + $0x830] sm:$0xf]
    %v975 = vld [vmem:[#allocation2 + $0x834] sm:$0xf]
    %v976 = vld [vmem:[#allocation2 + $0x838] sm:$0xf]
    %v977 = vld [vmem:[#allocation2 + $0x83c] sm:$0xf]
    %v978 = vld [vmem:[#allocation2 + $0x840] sm:$0xf]
    %v979 = vld [vmem:[#allocation2 + $0x844] sm:$0xf]
    %v980 = vld [vmem:[#allocation2 + $0x848] sm:$0xf]
    %v981 = vld [vmem:[#allocation2 + $0x84c] sm:$0xf]
    %v982 = vld [vmem:[#allocation2 + $0x850] sm:$0xf]
    %v983 = vld [vmem:[#allocation2 + $0x854] sm:$0xf]
    %v984 = vld [vmem:[#allocation2 + $0x858] sm:$0xf]
    %v985 = vld [vmem:[#allocation2 + $0x85c] sm:$0xf]
    %v986 = vld [vmem:[#allocation2 + $0x860] sm:$0xf]
    %v987 = vld [vmem:[#allocation2 + $0x864] sm:$0xf]
    %v988 = vld [vmem:[#allocation2 + $0x868] sm:$0xf]
    %v989 = vld [vmem:[#allocation2 + $0x86c] sm:$0xf]
    %v990 = vld [vmem:[#allocation2 + $0x870] sm:$0xf]
    %v991 = vld [vmem:[#allocation2 + $0x874] sm:$0xf]
    %v992 = vld [vmem:[#allocation2 + $0x878] sm:$0xf]
    %v993 = vld [vmem:[#allocation2 + $0x87c] sm:$0xf]
    %v994 = vld [vmem:[#allocation2 + $0x880] sm:$0xf]
    %v995 = vld [vmem:[#allocation2 + $0x884] sm:$0xf]
    %v996 = vld [vmem:[#allocation2 + $0x888] sm:$0xf]
    %v997 = vld [vmem:[#allocation2 + $0x88c] sm:$0xf]
    %v998 = vld [vmem:[#allocation2 + $0x890] sm:$0xf]
    %v999 = vld [vmem:[#allocation2 + $0x894] sm:$0xf]
    %v1000 = vld [vmem:[#allocation2 + $0x898] sm:$0xf]
    %v1001 = vld [vmem:[#allocation2 + $0x89c] sm:$0xf]
    %v1002 = vld [vmem:[#allocation2 + $0x8a0] sm:$0xf]
    %v1003 = vld [vmem:[#allocation2 + $0x8a4] sm:$0xf]
    %v1004 = vld [vmem:[#allocation2 + $0x8a8] sm:$0xf]
    %v1005 = vld [vmem:[#allocation2 + $0x8ac] sm:$0xf]
    %v1006 = vld [vmem:[#allocation2 + $0x8b0] sm:$0xf]
    %v1007 = vld [vmem:[#allocation2 + $0x8b4] sm:$0xf]
    %v1008 = vld [vmem:[#allocation2 + $0x8b8] sm:$0xf]
    %v1009 = vld [vmem:[#allocation2 + $0x8bc] sm:$0xf]
    %v1010 = vld [vmem:[#allocation2 + $0x8c0] sm:$0xf]
    %v1011 = vld [vmem:[#allocation2 + $0x8c4] sm:$0xf]
    %v1012 = vld [vmem:[#allocation2 + $0x8c8] sm:$0xf]
    %v1013 = vld [vmem:[#allocation2 + $0x8cc] sm:$0xf]
    %v1014 = vld [vmem:[#allocation2 + $0x8d0] sm:$0xf]
    %v1015 = vld [vmem:[#allocation2 + $0x8d4] sm:$0xf]
    %v1016 = vld [vmem:[#allocation2 + $0x8d8] sm:$0xf]
    %v1017 = vld [vmem:[#allocation2 + $0x8dc] sm:$0xf]
    %v1018 = vld [vmem:[#allocation2 + $0x8e0] sm:$0xf]
    %v1019 = vld [vmem:[#allocation2 + $0x8e4] sm:$0xf]
    %v1020 = vld [vmem:[#allocation2 + $0x8e8] sm:$0xf]
    %v1021 = vld [vmem:[#allocation2 + $0x8ec] sm:$0xf]
    %v1022 = vld [vmem:[#allocation2 + $0x8f0] sm:$0xf]
    %v1023 = vld [vmem:[#allocation2 + $0x8f4] sm:$0xf]
    %v1024 = vld [vmem:[#allocation2 + $0x8f8] sm:$0xf]
    %v1025 = vld [vmem:[#allocation2 + $0x8fc] sm:$0xf]
    %v1026 = vld [vmem:[#allocation2 + $0x900] sm:$0xf]
    %v1027 = vld [vmem:[#allocation2 + $0x904] sm:$0xf]
    %v1028 = vld [vmem:[#allocation2 + $0x908] sm:$0xf]
    %v1029 = vld [vmem:[#allocation2 + $0x90c] sm:$0xf]
    %v1030 = vld [vmem:[#allocation2 + $0x910] sm:$0xf]
    %v1031 = vld [vmem:[#allocation2 + $0x914] sm:$0xf]
    %v1032 = vld [vmem:[#allocation2 + $0x918] sm:$0xf]
    %v1033 = vld [vmem:[#allocation2 + $0x91c] sm:$0xf]
    %v1034 = vld [vmem:[#allocation2 + $0x920] sm:$0xf]
    %v1035 = vld [vmem:[#allocation2 + $0x924] sm:$0xf]
    %v1036 = vld [vmem:[#allocation2 + $0x928] sm:$0xf]
    %v1037 = vld [vmem:[#allocation2 + $0x92c] sm:$0xf]
    %v1038 = vld [vmem:[#allocation2 + $0x930] sm:$0xf]
    %v1039 = vld [vmem:[#allocation2 + $0x934] sm:$0xf]
    %v1040 = vld [vmem:[#allocation2 + $0x938] sm:$0xf]
    %v1041 = vld [vmem:[#allocation2 + $0x93c] sm:$0xf]
    %v1042 = vld [vmem:[#allocation2 + $0x940] sm:$0xf]
    %v1043 = vld [vmem:[#allocation2 + $0x944] sm:$0xf]
    %v1044 = vld [vmem:[#allocation2 + $0x948] sm:$0xf]
    %v1045 = vld [vmem:[#allocation2 + $0x94c] sm:$0xf]
    %v1046 = vld [vmem:[#allocation2 + $0x950] sm:$0xf]
    %v1047 = vld [vmem:[#allocation2 + $0x954] sm:$0xf]
    %v1048 = vld [vmem:[#allocation2 + $0x958] sm:$0xf]
    %v1049 = vld [vmem:[#allocation2 + $0x95c] sm:$0xf]
    %v1050 = vld [vmem:[#allocation2 + $0x960] sm:$0xf]
    %v1051 = vld [vmem:[#allocation2 + $0x964] sm:$0xf]
    %v1052 = vld [vmem:[#allocation2 + $0x968] sm:$0xf]
    %v1053 = vld [vmem:[#allocation2 + $0x96c] sm:$0xf]
    %v1054 = vld [vmem:[#allocation2 + $0x970] sm:$0xf]
    %v1055 = vld [vmem:[#allocation2 + $0x974] sm:$0xf]
    %v1056 = vld [vmem:[#allocation2 + $0x978] sm:$0xf]
    %v1057 = vld [vmem:[#allocation2 + $0x97c] sm:$0xf]
    %v1058 = vld [vmem:[#allocation2 + $0x980] sm:$0xf]
    %v1059 = vld [vmem:[#allocation2 + $0x984] sm:$0xf]
    %v1060 = vld [vmem:[#allocation2 + $0x988] sm:$0xf]
    %v1061 = vld [vmem:[#allocation2 + $0x98c] sm:$0xf]
    %v1062 = vld [vmem:[#allocation2 + $0x990] sm:$0xf]
    %v1063 = vld [vmem:[#allocation2 + $0x994] sm:$0xf]
    %v1064 = vld [vmem:[#allocation2 + $0x998] sm:$0xf]
    %v1065 = vld [vmem:[#allocation2 + $0x99c] sm:$0xf]
    %v1066 = vld [vmem:[#allocation2 + $0x9a0] sm:$0xf]
    %v1067 = vld [vmem:[#allocation2 + $0x9a4] sm:$0xf]
    %v1068 = vld [vmem:[#allocation2 + $0x9a8] sm:$0xf]
    %v1069 = vld [vmem:[#allocation2 + $0x9ac] sm:$0xf]
    %v1070 = vld [vmem:[#allocation2 + $0x9b0] sm:$0xf]
    %v1071 = vld [vmem:[#allocation2 + $0x9b4] sm:$0xf]
    %v1072 = vld [vmem:[#allocation2 + $0x9b8] sm:$0xf]
    %v1073 = vld [vmem:[#allocation2 + $0x9bc] sm:$0xf]
    %v1074 = vld [vmem:[#allocation2 + $0x9c0] sm:$0xf]
    %v1075 = vld [vmem:[#allocation2 + $0x9c4] sm:$0xf]
    %v1076 = vld [vmem:[#allocation2 + $0x9c8] sm:$0xf]
    %v1077 = vld [vmem:[#allocation2 + $0x9cc] sm:$0xf]
    %v1078 = vld [vmem:[#allocation2 + $0x9d0] sm:$0xf]
    %v1079 = vld [vmem:[#allocation2 + $0x9d4] sm:$0xf]
    %v1080 = vld [vmem:[#allocation2 + $0x9d8] sm:$0xf]
    %v1081 = vld [vmem:[#allocation2 + $0x9dc] sm:$0xf]
    %v1082 = vld [vmem:[#allocation2 + $0x9e0] sm:$0xf]
    %v1083 = vld [vmem:[#allocation2 + $0x9e4] sm:$0xf]
    %v1084 = vld [vmem:[#allocation2 + $0x9e8] sm:$0xf]
    %v1085 = vld [vmem:[#allocation2 + $0x9ec] sm:$0xf]
    %v1086 = vld [vmem:[#allocation2 + $0x9f0] sm:$0xf]
    %v1087 = vld [vmem:[#allocation2 + $0x9f4] sm:$0xf]
    %v1088 = vld [vmem:[#allocation2 + $0x9f8] sm:$0xf]
    %v1089 = vld [vmem:[#allocation2 + $0x9fc] sm:$0xf]
    %v1090 = vld [vmem:[#allocation2 + $0xa00] sm:$0xf]
    %v1091 = vld [vmem:[#allocation2 + $0xa04] sm:$0xf]
    %v1092 = vld [vmem:[#allocation2 + $0xa08] sm:$0xf]
    %v1093 = vld [vmem:[#allocation2 + $0xa0c] sm:$0xf]
    %v1094 = vld [vmem:[#allocation2 + $0xa10] sm:$0xf]
    %v1095 = vld [vmem:[#allocation2 + $0xa14] sm:$0xf]
    %v1096 = vld [vmem:[#allocation2 + $0xa18] sm:$0xf]
    %v1097 = vld [vmem:[#allocation2 + $0xa1c] sm:$0xf]
    %v1098 = vld [vmem:[#allocation2 + $0xa20] sm:$0xf]
    %v1099 = vld [vmem:[#allocation2 + $0xa24] sm:$0xf]
    %v1100 = vld [vmem:[#allocation2 + $0xa28] sm:$0xf]
    %v1101 = vld [vmem:[#allocation2 + $0xa2c] sm:$0xf]
    %v1102 = vld [vmem:[#allocation2 + $0xa30] sm:$0xf]
    %v1103 = vld [vmem:[#allocation2 + $0xa34] sm:$0xf]
    %v1104 = vld [vmem:[#allocation2 + $0xa38] sm:$0xf]
    %v1105 = vld [vmem:[#allocation2 + $0xa3c] sm:$0xf]
    %v1106 = vld [vmem:[#allocation2 + $0xa40] sm:$0xf]
    %v1107 = vld [vmem:[#allocation2 + $0xa44] sm:$0xf]
    %v1108 = vld [vmem:[#allocation2 + $0xa48] sm:$0xf]
    %v1109 = vld [vmem:[#allocation2 + $0xa4c] sm:$0xf]
    %v1110 = vld [vmem:[#allocation2 + $0xa50] sm:$0xf]
    %v1111 = vld [vmem:[#allocation2 + $0xa54] sm:$0xf]
    %v1112 = vld [vmem:[#allocation2 + $0xa58] sm:$0xf]
    %v1113 = vld [vmem:[#allocation2 + $0xa5c] sm:$0xf]
    %v1114 = vld [vmem:[#allocation2 + $0xa60] sm:$0xf]
    %v1115 = vld [vmem:[#allocation2 + $0xa64] sm:$0xf]
    %v1116 = vld [vmem:[#allocation2 + $0xa68] sm:$0xf]
    %v1117 = vld [vmem:[#allocation2 + $0xa6c] sm:$0xf]
    %v1118 = vld [vmem:[#allocation2 + $0xa70] sm:$0xf]
    %v1119 = vld [vmem:[#allocation2 + $0xa74] sm:$0xf]
    %v1120 = vld [vmem:[#allocation2 + $0xa78] sm:$0xf]
    %v1121 = vld [vmem:[#allocation2 + $0xa7c] sm:$0xf]
    %v1122 = vld [vmem:[#allocation2 + $0xa80] sm:$0xf]
    %v1123 = vld [vmem:[#allocation2 + $0xa84] sm:$0xf]
    %v1124 = vld [vmem:[#allocation2 + $0xa88] sm:$0xf]
    %v1125 = vld [vmem:[#allocation2 + $0xa8c] sm:$0xf]
    %v1126 = vld [vmem:[#allocation2 + $0xa90] sm:$0xf]
    %v1127 = vld [vmem:[#allocation2 + $0xa94] sm:$0xf]
    %v1128 = vld [vmem:[#allocation2 + $0xa98] sm:$0xf]
    %v1129 = vld [vmem:[#allocation2 + $0xa9c] sm:$0xf]
    %v1130 = vld [vmem:[#allocation2 + $0xaa0] sm:$0xf]
    %v1131 = vld [vmem:[#allocation2 + $0xaa4] sm:$0xf]
    %v1132 = vld [vmem:[#allocation2 + $0xaa8] sm:$0xf]
    %v1133 = vld [vmem:[#allocation2 + $0xaac] sm:$0xf]
    %v1134 = vld [vmem:[#allocation2 + $0xab0] sm:$0xf]
    %v1135 = vld [vmem:[#allocation2 + $0xab4] sm:$0xf]
    %v1136 = vld [vmem:[#allocation2 + $0xab8] sm:$0xf]
    %v1137 = vld [vmem:[#allocation2 + $0xabc] sm:$0xf]
    %v1138 = vld [vmem:[#allocation2 + $0xac0] sm:$0xf]
    %v1139 = vld [vmem:[#allocation2 + $0xac4] sm:$0xf]
    %v1140 = vld [vmem:[#allocation2 + $0xac8] sm:$0xf]
    %v1141 = vld [vmem:[#allocation2 + $0xacc] sm:$0xf]
    %v1142 = vld [vmem:[#allocation2 + $0xad0] sm:$0xf]
    %v1143 = vld [vmem:[#allocation2 + $0xad4] sm:$0xf]
    %v1144 = vld [vmem:[#allocation2 + $0xad8] sm:$0xf]
    %v1145 = vld [vmem:[#allocation2 + $0xadc] sm:$0xf]
    %v1146 = vld [vmem:[#allocation2 + $0xae0] sm:$0xf]
    %v1147 = vld [vmem:[#allocation2 + $0xae4] sm:$0xf]
    %v1148 = vld [vmem:[#allocation2 + $0xae8] sm:$0xf]
    %v1149 = vld [vmem:[#allocation2 + $0xaec] sm:$0xf]
    %v1150 = vld [vmem:[#allocation2 + $0xaf0] sm:$0xf]
    %v1151 = vld [vmem:[#allocation2 + $0xaf4] sm:$0xf]
    %v1152 = vld [vmem:[#allocation2 + $0xaf8] sm:$0xf]
    %v1153 = vld [vmem:[#allocation2 + $0xafc] sm:$0xf]
    %v1154 = vld [vmem:[#allocation2 + $0xb00] sm:$0xf]
    %v1155 = vld [vmem:[#allocation2 + $0xb04] sm:$0xf]
    %v1156 = vld [vmem:[#allocation2 + $0xb08] sm:$0xf]
    %v1157 = vld [vmem:[#allocation2 + $0xb0c] sm:$0xf]
    %v1158 = vld [vmem:[#allocation2 + $0xb10] sm:$0xf]
    %v1159 = vld [vmem:[#allocation2 + $0xb14] sm:$0xf]
    %v1160 = vld [vmem:[#allocation2 + $0xb18] sm:$0xf]
    %v1161 = vld [vmem:[#allocation2 + $0xb1c] sm:$0xf]
    %v1162 = vld [vmem:[#allocation2 + $0xb20] sm:$0xf]
    %v1163 = vld [vmem:[#allocation2 + $0xb24] sm:$0xf]
    %v1164 = vld [vmem:[#allocation2 + $0xb28] sm:$0xf]
    %v1165 = vld [vmem:[#allocation2 + $0xb2c] sm:$0xf]
    %v1166 = vld [vmem:[#allocation2 + $0xb30] sm:$0xf]
    %v1167 = vld [vmem:[#allocation2 + $0xb34] sm:$0xf]
    %v1168 = vld [vmem:[#allocation2 + $0xb38] sm:$0xf]
    %v1169 = vld [vmem:[#allocation2 + $0xb3c] sm:$0xf]
    %v1170 = vld [vmem:[#allocation2 + $0xb40] sm:$0xf]
    %v1171 = vld [vmem:[#allocation2 + $0xb44] sm:$0xf]
    %v1172 = vld [vmem:[#allocation2 + $0xb48] sm:$0xf]
    %v1173 = vld [vmem:[#allocation2 + $0xb4c] sm:$0xf]
    %v1174 = vld [vmem:[#allocation2 + $0xb50] sm:$0xf]
    %v1175 = vld [vmem:[#allocation2 + $0xb54] sm:$0xf]
    %v1176 = vld [vmem:[#allocation2 + $0xb58] sm:$0xf]
    %v1177 = vld [vmem:[#allocation2 + $0xb5c] sm:$0xf]
    %v1178 = vld [vmem:[#allocation2 + $0xb60] sm:$0xf]
    %v1179 = vld [vmem:[#allocation2 + $0xb64] sm:$0xf]
    %v1180 = vld [vmem:[#allocation2 + $0xb68] sm:$0xf]
    %v1181 = vld [vmem:[#allocation2 + $0xb6c] sm:$0xf]
    %v1182 = vld [vmem:[#allocation2 + $0xb70] sm:$0xf]
    %v1183 = vld [vmem:[#allocation2 + $0xb74] sm:$0xf]
    %v1184 = vld [vmem:[#allocation2 + $0xb78] sm:$0xf]
    %v1185 = vld [vmem:[#allocation2 + $0xb7c] sm:$0xf]
    %v1186 = vld [vmem:[#allocation2 + $0xb80] sm:$0xf]
    %v1187 = vld [vmem:[#allocation2 + $0xb84] sm:$0xf]
    %v1188 = vld [vmem:[#allocation2 + $0xb88] sm:$0xf]
    %v1189 = vld [vmem:[#allocation2 + $0xb8c] sm:$0xf]
    %v1190 = vld [vmem:[#allocation2 + $0xb90] sm:$0xf]
    %v1191 = vld [vmem:[#allocation2 + $0xb94] sm:$0xf]
    %v1192 = vld [vmem:[#allocation2 + $0xb98] sm:$0xf]
    %v1193 = vld [vmem:[#allocation2 + $0xb9c] sm:$0xf]
    %v1194 = vld [vmem:[#allocation2 + $0xba0] sm:$0xf]
    %v1195 = vld [vmem:[#allocation2 + $0xba4] sm:$0xf]
    %v1196 = vld [vmem:[#allocation2 + $0xba8] sm:$0xf]
    %v1197 = vld [vmem:[#allocation2 + $0xbac] sm:$0xf]
    %v1198 = vld [vmem:[#allocation2 + $0xbb0] sm:$0xf]
    %v1199 = vld [vmem:[#allocation2 + $0xbb4] sm:$0xf]
    %v1200 = vld [vmem:[#allocation2 + $0xbb8] sm:$0xf]
    %v1201 = vld [vmem:[#allocation2 + $0xbbc] sm:$0xf]
    %v1202 = vld [vmem:[#allocation2 + $0xbc0] sm:$0xf]
    %v1203 = vld [vmem:[#allocation2 + $0xbc4] sm:$0xf]
    %v1204 = vld [vmem:[#allocation2 + $0xbc8] sm:$0xf]
    %v1205 = vld [vmem:[#allocation2 + $0xbcc] sm:$0xf]
    %v1206 = vld [vmem:[#allocation2 + $0xbd0] sm:$0xf]
    %v1207 = vld [vmem:[#allocation2 + $0xbd4] sm:$0xf]
    %v1208 = vld [vmem:[#allocation2 + $0xbd8] sm:$0xf]
    %v1209 = vld [vmem:[#allocation2 + $0xbdc] sm:$0xf]
    %v1210 = vld [vmem:[#allocation2 + $0xbe0] sm:$0xf]
    %v1211 = vld [vmem:[#allocation2 + $0xbe4] sm:$0xf]
    %v1212 = vld [vmem:[#allocation2 + $0xbe8] sm:$0xf]
    %v1213 = vld [vmem:[#allocation2 + $0xbec] sm:$0xf]
    %v1214 = vld [vmem:[#allocation2 + $0xbf0] sm:$0xf]
    %v1215 = vld [vmem:[#allocation2 + $0xbf4] sm:$0xf]
    %v1216 = vld [vmem:[#allocation2 + $0xbf8] sm:$0xf]
    %v1217 = vld [vmem:[#allocation2 + $0xbfc] sm:$0xf]
    %v1218 = vld [vmem:[#allocation2 + $0xc00] sm:$0xf]
    %v1219 = vld [vmem:[#allocation2 + $0xc04] sm:$0xf]
    %v1220 = vld [vmem:[#allocation2 + $0xc08] sm:$0xf]
    %v1221 = vld [vmem:[#allocation2 + $0xc0c] sm:$0xf]
    %v1222 = vld [vmem:[#allocation2 + $0xc10] sm:$0xf]
    %v1223 = vld [vmem:[#allocation2 + $0xc14] sm:$0xf]
    %v1224 = vld [vmem:[#allocation2 + $0xc18] sm:$0xf]
    %v1225 = vld [vmem:[#allocation2 + $0xc1c] sm:$0xf]
    %v1226 = vld [vmem:[#allocation2 + $0xc20] sm:$0xf]
    %v1227 = vld [vmem:[#allocation2 + $0xc24] sm:$0xf]
    %v1228 = vld [vmem:[#allocation2 + $0xc28] sm:$0xf]
    %v1229 = vld [vmem:[#allocation2 + $0xc2c] sm:$0xf]
    %v1230 = vld [vmem:[#allocation2 + $0xc30] sm:$0xf]
    %v1231 = vld [vmem:[#allocation2 + $0xc34] sm:$0xf]
    %v1232 = vld [vmem:[#allocation2 + $0xc38] sm:$0xf]
    %v1233 = vld [vmem:[#allocation2 + $0xc3c] sm:$0xf]
    %v1234 = vld [vmem:[#allocation2 + $0xc40] sm:$0xf]
    %v1235 = vld [vmem:[#allocation2 + $0xc44] sm:$0xf]
    %v1236 = vld [vmem:[#allocation2 + $0xc48] sm:$0xf]
    %v1237 = vld [vmem:[#allocation2 + $0xc4c] sm:$0xf]
    %v1238 = vld [vmem:[#allocation2 + $0xc50] sm:$0xf]
    %v1239 = vld [vmem:[#allocation2 + $0xc54] sm:$0xf]
    %v1240 = vld [vmem:[#allocation2 + $0xc58] sm:$0xf]
    %v1241 = vld [vmem:[#allocation2 + $0xc5c] sm:$0xf]
    %v1242 = vld [vmem:[#allocation2 + $0xc60] sm:$0xf]
    %v1243 = vld [vmem:[#allocation2 + $0xc64] sm:$0xf]
    %v1244 = vld [vmem:[#allocation2 + $0xc68] sm:$0xf]
    %v1245 = vld [vmem:[#allocation2 + $0xc6c] sm:$0xf]
    %v1246 = vld [vmem:[#allocation2 + $0xc70] sm:$0xf]
    %v1247 = vld [vmem:[#allocation2 + $0xc74] sm:$0xf]
    %v1248 = vld [vmem:[#allocation2 + $0xc78] sm:$0xf]
    %v1249 = vld [vmem:[#allocation2 + $0xc7c] sm:$0xf]
    %v1250 = vld [vmem:[#allocation2 + $0xc80] sm:$0xf]
    %v1251 = vld [vmem:[#allocation2 + $0xc84] sm:$0xf]
    %v1252 = vld [vmem:[#allocation2 + $0xc88] sm:$0xf]
    %v1253 = vld [vmem:[#allocation2 + $0xc8c] sm:$0xf]
    %v1254 = vld [vmem:[#allocation2 + $0xc90] sm:$0xf]
    %v1255 = vld [vmem:[#allocation2 + $0xc94] sm:$0xf]
    %v1256 = vld [vmem:[#allocation2 + $0xc98] sm:$0xf]
    %v1257 = vld [vmem:[#allocation2 + $0xc9c] sm:$0xf]
    %v1258 = vld [vmem:[#allocation2 + $0xca0] sm:$0xf]
    %v1259 = vld [vmem:[#allocation2 + $0xca4] sm:$0xf]
    %v1260 = vld [vmem:[#allocation2 + $0xca8] sm:$0xf]
    %v1261 = vld [vmem:[#allocation2 + $0xcac] sm:$0xf]
    %v1262 = vld [vmem:[#allocation2 + $0xcb0] sm:$0xf]
    %v1263 = vld [vmem:[#allocation2 + $0xcb4] sm:$0xf]
    %v1264 = vld [vmem:[#allocation2 + $0xcb8] sm:$0xf]
    %v1265 = vld [vmem:[#allocation2 + $0xcbc] sm:$0xf]
    %v1266 = vld [vmem:[#allocation2 + $0xcc0] sm:$0xf]
    %v1267 = vld [vmem:[#allocation2 + $0xcc4] sm:$0xf]
    %v1268 = vld [vmem:[#allocation2 + $0xcc8] sm:$0xf]
    %v1269 = vld [vmem:[#allocation2 + $0xccc] sm:$0xf]
    %v1270 = vld [vmem:[#allocation2 + $0xcd0] sm:$0xf]
    %v1271 = vld [vmem:[#allocation2 + $0xcd4] sm:$0xf]
    %v1272 = vld [vmem:[#allocation2 + $0xcd8] sm:$0xf]
    %v1273 = vld [vmem:[#allocation2 + $0xcdc] sm:$0xf]
    %v1274 = vld [vmem:[#allocation2 + $0xce0] sm:$0xf]
    %v1275 = vld [vmem:[#allocation2 + $0xce4] sm:$0xf]
    %v1276 = vld [vmem:[#allocation2 + $0xce8] sm:$0xf]
    %v1277 = vld [vmem:[#allocation2 + $0xcec] sm:$0xf]
    %v1278 = vld [vmem:[#allocation2 + $0xcf0] sm:$0xf]
    %v1279 = vld [vmem:[#allocation2 + $0xcf4] sm:$0xf]
    %v1280 = vld [vmem:[#allocation2 + $0xcf8] sm:$0xf]
    %v1281 = vld [vmem:[#allocation2 + $0xcfc] sm:$0xf]
    %v1282 = vld [vmem:[#allocation2 + $0xd00] sm:$0xf]
    %v1283 = vld [vmem:[#allocation2 + $0xd04] sm:$0xf]
    %v1284 = vld [vmem:[#allocation2 + $0xd08] sm:$0xf]
    %v1285 = vld [vmem:[#allocation2 + $0xd0c] sm:$0xf]
    %v1286 = vld [vmem:[#allocation2 + $0xd10] sm:$0xf]
    %v1287 = vld [vmem:[#allocation2 + $0xd14] sm:$0xf]
    %v1288 = vld [vmem:[#allocation2 + $0xd18] sm:$0xf]
    %v1289 = vld [vmem:[#allocation2 + $0xd1c] sm:$0xf]
    %v1290 = vld [vmem:[#allocation2 + $0xd20] sm:$0xf]
    %v1291 = vld [vmem:[#allocation2 + $0xd24] sm:$0xf]
    %v1292 = vld [vmem:[#allocation2 + $0xd28] sm:$0xf]
    %v1293 = vld [vmem:[#allocation2 + $0xd2c] sm:$0xf]
    %v1294 = vld [vmem:[#allocation2 + $0xd30] sm:$0xf]
    %v1295 = vld [vmem:[#allocation2 + $0xd34] sm:$0xf]
    %v1296 = vld [vmem:[#allocation2 + $0xd38] sm:$0xf]
    %v1297 = vld [vmem:[#allocation2 + $0xd3c] sm:$0xf]
    %v1298 = vld [vmem:[#allocation2 + $0xd40] sm:$0xf]
    %v1299 = vld [vmem:[#allocation2 + $0xd44] sm:$0xf]
    %v1300 = vld [vmem:[#allocation2 + $0xd48] sm:$0xf]
    %v1301 = vld [vmem:[#allocation2 + $0xd4c] sm:$0xf]
    %v1302 = vld [vmem:[#allocation2 + $0xd50] sm:$0xf]
    %v1303 = vld [vmem:[#allocation2 + $0xd54] sm:$0xf]
    %v1304 = vld [vmem:[#allocation2 + $0xd58] sm:$0xf]
    %v1305 = vld [vmem:[#allocation2 + $0xd5c] sm:$0xf]
    %v1306 = vld [vmem:[#allocation2 + $0xd60] sm:$0xf]
    %v1307 = vld [vmem:[#allocation2 + $0xd64] sm:$0xf]
    %v1308 = vld [vmem:[#allocation2 + $0xd68] sm:$0xf]
    %v1309 = vld [vmem:[#allocation2 + $0xd6c] sm:$0xf]
    %v1310 = vld [vmem:[#allocation2 + $0xd70] sm:$0xf]
    %v1311 = vld [vmem:[#allocation2 + $0xd74] sm:$0xf]
    %v1312 = vld [vmem:[#allocation2 + $0xd78] sm:$0xf]
    %v1313 = vld [vmem:[#allocation2 + $0xd7c] sm:$0xf]
    %v1314 = vld [vmem:[#allocation2 + $0xd80] sm:$0xf]
    %v1315 = vld [vmem:[#allocation2 + $0xd84] sm:$0xf]
    %v1316 = vld [vmem:[#allocation2 + $0xd88] sm:$0xf]
    %v1317 = vld [vmem:[#allocation2 + $0xd8c] sm:$0xf]
    %v1318 = vld [vmem:[#allocation2 + $0xd90] sm:$0xf]
    %v1319 = vld [vmem:[#allocation2 + $0xd94] sm:$0xf]
    %v1320 = vld [vmem:[#allocation2 + $0xd98] sm:$0xf]
    %v1321 = vld [vmem:[#allocation2 + $0xd9c] sm:$0xf]
    %v1322 = vld [vmem:[#allocation2 + $0xda0] sm:$0xf]
    %v1323 = vld [vmem:[#allocation2 + $0xda4] sm:$0xf]
    %v1324 = vld [vmem:[#allocation2 + $0xda8] sm:$0xf]
    %v1325 = vld [vmem:[#allocation2 + $0xdac] sm:$0xf]
    %v1326 = vld [vmem:[#allocation2 + $0xdb0] sm:$0xf]
    %v1327 = vld [vmem:[#allocation2 + $0xdb4] sm:$0xf]
    %v1328 = vld [vmem:[#allocation2 + $0xdb8] sm:$0xf]
    %v1329 = vld [vmem:[#allocation2 + $0xdbc] sm:$0xf]
    %v1330 = vld [vmem:[#allocation2 + $0xdc0] sm:$0xf]
    %v1331 = vld [vmem:[#allocation2 + $0xdc4] sm:$0xf]
    %v1332 = vld [vmem:[#allocation2 + $0xdc8] sm:$0xf]
    %v1333 = vld [vmem:[#allocation2 + $0xdcc] sm:$0xf]
    %v1334 = vld [vmem:[#allocation2 + $0xdd0] sm:$0xf]
    %v1335 = vld [vmem:[#allocation2 + $0xdd4] sm:$0xf]
    %v1336 = vld [vmem:[#allocation2 + $0xdd8] sm:$0xf]
    %v1337 = vld [vmem:[#allocation2 + $0xddc] sm:$0xf]
    %v1338 = vld [vmem:[#allocation2 + $0xde0] sm:$0xf]
    %v1339 = vld [vmem:[#allocation2 + $0xde4] sm:$0xf]
    %v1340 = vld [vmem:[#allocation2 + $0xde8] sm:$0xf]
    %v1341 = vld [vmem:[#allocation2 + $0xdec] sm:$0xf]
    %v1342 = vld [vmem:[#allocation2 + $0xdf0] sm:$0xf]
    %v1343 = vld [vmem:[#allocation2 + $0xdf4] sm:$0xf]
    %v1344 = vld [vmem:[#allocation2 + $0xdf8] sm:$0xf]
    %v1345 = vld [vmem:[#allocation2 + $0xdfc] sm:$0xf]
    %v1346 = vld [vmem:[#allocation2 + $0xe00] sm:$0xf]
    %v1347 = vld [vmem:[#allocation2 + $0xe04] sm:$0xf]
    %v1348 = vld [vmem:[#allocation2 + $0xe08] sm:$0xf]
    %v1349 = vld [vmem:[#allocation2 + $0xe0c] sm:$0xf]
    %v1350 = vld [vmem:[#allocation2 + $0xe10] sm:$0xf]
    %v1351 = vld [vmem:[#allocation2 + $0xe14] sm:$0xf]
    %v1352 = vld [vmem:[#allocation2 + $0xe18] sm:$0xf]
    %v1353 = vld [vmem:[#allocation2 + $0xe1c] sm:$0xf]
    %v1354 = vld [vmem:[#allocation2 + $0xe20] sm:$0xf]
    %v1355 = vld [vmem:[#allocation2 + $0xe24] sm:$0xf]
    %v1356 = vld [vmem:[#allocation2 + $0xe28] sm:$0xf]
    %v1357 = vld [vmem:[#allocation2 + $0xe2c] sm:$0xf]
    %v1358 = vld [vmem:[#allocation2 + $0xe30] sm:$0xf]
    %v1359 = vld [vmem:[#allocation2 + $0xe34] sm:$0xf]
    %v1360 = vld [vmem:[#allocation2 + $0xe38] sm:$0xf]
    %v1361 = vld [vmem:[#allocation2 + $0xe3c] sm:$0xf]
    %v1362 = vld [vmem:[#allocation2 + $0xe40] sm:$0xf]
    %v1363 = vld [vmem:[#allocation2 + $0xe44] sm:$0xf]
    %v1364 = vld [vmem:[#allocation2 + $0xe48] sm:$0xf]
    %v1365 = vld [vmem:[#allocation2 + $0xe4c] sm:$0xf]
    %v1366 = vld [vmem:[#allocation2 + $0xe50] sm:$0xf]
    %v1367 = vld [vmem:[#allocation2 + $0xe54] sm:$0xf]
    %v1368 = vld [vmem:[#allocation2 + $0xe58] sm:$0xf]
    %v1369 = vld [vmem:[#allocation2 + $0xe5c] sm:$0xf]
    %v1370 = vld [vmem:[#allocation2 + $0xe60] sm:$0xf]
    %v1371 = vld [vmem:[#allocation2 + $0xe64] sm:$0xf]
    %v1372 = vld [vmem:[#allocation2 + $0xe68] sm:$0xf]
    %v1373 = vld [vmem:[#allocation2 + $0xe6c] sm:$0xf]
    %v1374 = vld [vmem:[#allocation2 + $0xe70] sm:$0xf]
    %v1375 = vld [vmem:[#allocation2 + $0xe74] sm:$0xf]
    %v1376 = vld [vmem:[#allocation2 + $0xe78] sm:$0xf]
    %v1377 = vld [vmem:[#allocation2 + $0xe7c] sm:$0xf]
    %v1378 = vld [vmem:[#allocation2 + $0xe80] sm:$0xf]
    %v1379 = vld [vmem:[#allocation2 + $0xe84] sm:$0xf]
    %v1380 = vld [vmem:[#allocation2 + $0xe88] sm:$0xf]
    %v1381 = vld [vmem:[#allocation2 + $0xe8c] sm:$0xf]
    %v1382 = vld [vmem:[#allocation2 + $0xe90] sm:$0xf]
    %v1383 = vld [vmem:[#allocation2 + $0xe94] sm:$0xf]
    %v1384 = vld [vmem:[#allocation2 + $0xe98] sm:$0xf]
    %v1385 = vld [vmem:[#allocation2 + $0xe9c] sm:$0xf]
    %v1386 = vld [vmem:[#allocation2 + $0xea0] sm:$0xf]
    %v1387 = vld [vmem:[#allocation2 + $0xea4] sm:$0xf]
    %v1388 = vld [vmem:[#allocation2 + $0xea8] sm:$0xf]
    %v1389 = vld [vmem:[#allocation2 + $0xeac] sm:$0xf]
    %v1390 = vld [vmem:[#allocation2 + $0xeb0] sm:$0xf]
    %v1391 = vld [vmem:[#allocation2 + $0xeb4] sm:$0xf]
    %v1392 = vld [vmem:[#allocation2 + $0xeb8] sm:$0xf]
    %v1393 = vld [vmem:[#allocation2 + $0xebc] sm:$0xf]
    %v1394 = vld [vmem:[#allocation2 + $0xec0] sm:$0xf]
    %v1395 = vld [vmem:[#allocation2 + $0xec4] sm:$0xf]
    %v1396 = vld [vmem:[#allocation2 + $0xec8] sm:$0xf]
    %v1397 = vld [vmem:[#allocation2 + $0xecc] sm:$0xf]
    %v1398 = vld [vmem:[#allocation2 + $0xed0] sm:$0xf]
    %v1399 = vld [vmem:[#allocation2 + $0xed4] sm:$0xf]
    %v1400 = vld [vmem:[#allocation2 + $0xed8] sm:$0xf]
    %v1401 = vld [vmem:[#allocation2 + $0xedc] sm:$0xf]
    %v1402 = vld [vmem:[#allocation2 + $0xee0] sm:$0xf]
    %v1403 = vld [vmem:[#allocation2 + $0xee4] sm:$0xf]
    %v1404 = vld [vmem:[#allocation2 + $0xee8] sm:$0xf]
    %v1405 = vld [vmem:[#allocation2 + $0xeec] sm:$0xf]
    %v1406 = vld [vmem:[#allocation2 + $0xef0] sm:$0xf]
    %v1407 = vld [vmem:[#allocation2 + $0xef4] sm:$0xf]
    %v1408 = vld [vmem:[#allocation2 + $0xef8] sm:$0xf]
    %v1409 = vld [vmem:[#allocation2 + $0xefc] sm:$0xf]
    %v1410 = vld [vmem:[#allocation2 + $0xf00] sm:$0xf]
    %v1411 = vld [vmem:[#allocation2 + $0xf04] sm:$0xf]
    %v1412 = vld [vmem:[#allocation2 + $0xf08] sm:$0xf]
    %v1413 = vld [vmem:[#allocation2 + $0xf0c] sm:$0xf]
    %v1414 = vld [vmem:[#allocation2 + $0xf10] sm:$0xf]
    %v1415 = vld [vmem:[#allocation2 + $0xf14] sm:$0xf]
    %v1416 = vld [vmem:[#allocation2 + $0xf18] sm:$0xf]
    %v1417 = vld [vmem:[#allocation2 + $0xf1c] sm:$0xf]
    %v1418 = vld [vmem:[#allocation2 + $0xf20] sm:$0xf]
    %v1419 = vld [vmem:[#allocation2 + $0xf24] sm:$0xf]
    %v1420 = vld [vmem:[#allocation2 + $0xf28] sm:$0xf]
    %v1421 = vld [vmem:[#allocation2 + $0xf2c] sm:$0xf]
    %v1422 = vld [vmem:[#allocation2 + $0xf30] sm:$0xf]
    %v1423 = vld [vmem:[#allocation2 + $0xf34] sm:$0xf]
    %v1424 = vld [vmem:[#allocation2 + $0xf38] sm:$0xf]
    %v1425 = vld [vmem:[#allocation2 + $0xf3c] sm:$0xf]
    %v1426 = vld [vmem:[#allocation2 + $0xf40] sm:$0xf]
    %v1427 = vld [vmem:[#allocation2 + $0xf44] sm:$0xf]
    %v1428 = vld [vmem:[#allocation2 + $0xf48] sm:$0xf]
    %v1429 = vld [vmem:[#allocation2 + $0xf4c] sm:$0xf]
    %v1430 = vld [vmem:[#allocation2 + $0xf50] sm:$0xf]
    %v1431 = vld [vmem:[#allocation2 + $0xf54] sm:$0xf]
    %v1432 = vld [vmem:[#allocation2 + $0xf58] sm:$0xf]
    %v1433 = vld [vmem:[#allocation2 + $0xf5c] sm:$0xf]
    %v1434 = vld [vmem:[#allocation2 + $0xf60] sm:$0xf]
    %v1435 = vld [vmem:[#allocation2 + $0xf64] sm:$0xf]
    %v1436 = vld [vmem:[#allocation2 + $0xf68] sm:$0xf]
    %v1437 = vld [vmem:[#allocation2 + $0xf6c] sm:$0xf]
    %v1438 = vld [vmem:[#allocation2 + $0xf70] sm:$0xf]
    %v1439 = vld [vmem:[#allocation2 + $0xf74] sm:$0xf]
    %v1440 = vld [vmem:[#allocation2 + $0xf78] sm:$0xf]
    %v1441 = vld [vmem:[#allocation2 + $0xf7c] sm:$0xf]
    %v1442 = vld [vmem:[#allocation2 + $0xf80] sm:$0xf]
    %v1443 = vld [vmem:[#allocation2 + $0xf84] sm:$0xf]
    %v1444 = vld [vmem:[#allocation2 + $0xf88] sm:$0xf]
    %v1445 = vld [vmem:[#allocation2 + $0xf8c] sm:$0xf]
    %v1446 = vld [vmem:[#allocation2 + $0xf90] sm:$0xf]
    %v1447 = vld [vmem:[#allocation2 + $0xf94] sm:$0xf]
    %v1448 = vld [vmem:[#allocation2 + $0xf98] sm:$0xf]
    %v1449 = vld [vmem:[#allocation2 + $0xf9c] sm:$0xf]
    %v1450 = vld [vmem:[#allocation2 + $0xfa0] sm:$0xf]
    %v1451 = vld [vmem:[#allocation2 + $0xfa4] sm:$0xf]
    %v1452 = vld [vmem:[#allocation2 + $0xfa8] sm:$0xf]
    %v1453 = vld [vmem:[#allocation2 + $0xfac] sm:$0xf]
    %v1454 = vld [vmem:[#allocation2 + $0xfb0] sm:$0xf]
    %v1455 = vld [vmem:[#allocation2 + $0xfb4] sm:$0xf]
    %v1456 = vld [vmem:[#allocation2 + $0xfb8] sm:$0xf]
    %v1457 = vld [vmem:[#allocation2 + $0xfbc] sm:$0xf]
    %v1458 = vld [vmem:[#allocation2 + $0xfc0] sm:$0xf]
    %v1459 = vld [vmem:[#allocation2 + $0xfc4] sm:$0xf]
    %v1460 = vld [vmem:[#allocation2 + $0xfc8] sm:$0xf]
    %v1461 = vld [vmem:[#allocation2 + $0xfcc] sm:$0xf]
    %v1462 = vld [vmem:[#allocation2 + $0xfd0] sm:$0xf]
    %v1463 = vld [vmem:[#allocation2 + $0xfd4] sm:$0xf]
    %v1464 = vld [vmem:[#allocation2 + $0xfd8] sm:$0xf]
    %v1465 = vld [vmem:[#allocation2 + $0xfdc] sm:$0xf]
    %v1466 = vld [vmem:[#allocation2 + $0xfe0] sm:$0xf]
    %v1467 = vld [vmem:[#allocation2 + $0xfe4] sm:$0xf]
    %v1468 = vld [vmem:[#allocation2 + $0xfe8] sm:$0xf]
    %v1469 = vld [vmem:[#allocation2 + $0xfec] sm:$0xf]
    %v1470 = vld [vmem:[#allocation2 + $0xff0] sm:$0xf]
    %v1471 = vld [vmem:[#allocation2 + $0xff4] sm:$0xf]
    %v1472 = vld [vmem:[#allocation2 + $0xff8] sm:$0xf]
    %v1473 = vld [vmem:[#allocation2 + $0xffc] sm:$0xf]
    %v1474 = vld [vmem:[#allocation2 + $0x1000] sm:$0xf]
    %v1475 = vld [vmem:[#allocation2 + $0x1004] sm:$0xf]
    %v1476 = vld [vmem:[#allocation2 + $0x1008] sm:$0xf]
    %v1477 = vld [vmem:[#allocation2 + $0x100c] sm:$0xf]
    %v1478 = vld [vmem:[#allocation2 + $0x1010] sm:$0xf]
    %v1479 = vld [vmem:[#allocation2 + $0x1014] sm:$0xf]
    %v1480 = vld [vmem:[#allocation2 + $0x1018] sm:$0xf]
    %v1481 = vld [vmem:[#allocation2 + $0x101c] sm:$0xf]
    %v1482 = vld [vmem:[#allocation2 + $0x1020] sm:$0xf]
    %v1483 = vld [vmem:[#allocation2 + $0x1024] sm:$0xf]
    %v1484 = vld [vmem:[#allocation2 + $0x1028] sm:$0xf]
    %v1485 = vld [vmem:[#allocation2 + $0x102c] sm:$0xf]
    %v1486 = vld [vmem:[#allocation2 + $0x1030] sm:$0xf]
    %v1487 = vld [vmem:[#allocation2 + $0x1034] sm:$0xf]
    %v1488 = vld [vmem:[#allocation2 + $0x1038] sm:$0xf]
    %v1489 = vld [vmem:[#allocation2 + $0x103c] sm:$0xf]
    %v1490 = vld [vmem:[#allocation2 + $0x1040] sm:$0xf]
    %v1491 = vld [vmem:[#allocation2 + $0x1044] sm:$0xf]
    %v1492 = vld [vmem:[#allocation2 + $0x1048] sm:$0xf]
    %v1493 = vld [vmem:[#allocation2 + $0x104c] sm:$0xf]
    %v1494 = vld [vmem:[#allocation2 + $0x1050] sm:$0xf]
    %v1495 = vld [vmem:[#allocation2 + $0x1054] sm:$0xf]
    %v1496 = vld [vmem:[#allocation2 + $0x1058] sm:$0xf]
    %v1497 = vld [vmem:[#allocation2 + $0x105c] sm:$0xf]
    %v1498 = vld [vmem:[#allocation2 + $0x1060] sm:$0xf]
    %v1499 = vld [vmem:[#allocation2 + $0x1064] sm:$0xf]
    %v1500 = vld [vmem:[#allocation2 + $0x1068] sm:$0xf]
    %v1501 = vld [vmem:[#allocation2 + $0x106c] sm:$0xf]
    %v1502 = vld [vmem:[#allocation2 + $0x1070] sm:$0xf]
    %v1503 = vld [vmem:[#allocation2 + $0x1074] sm:$0xf]
    %v1504 = vld [vmem:[#allocation2 + $0x1078] sm:$0xf]
    %v1505 = vld [vmem:[#allocation2 + $0x107c] sm:$0xf]
    %v1506 = vld [vmem:[#allocation2 + $0x1080] sm:$0xf]
    %v1507 = vld [vmem:[#allocation2 + $0x1084] sm:$0xf]
    %v1508 = vld [vmem:[#allocation2 + $0x1088] sm:$0xf]
    %v1509 = vld [vmem:[#allocation2 + $0x108c] sm:$0xf]
    %v1510 = vld [vmem:[#allocation2 + $0x1090] sm:$0xf]
    %v1511 = vld [vmem:[#allocation2 + $0x1094] sm:$0xf]
    %v1512 = vld [vmem:[#allocation2 + $0x1098] sm:$0xf]
    %v1513 = vld [vmem:[#allocation2 + $0x109c] sm:$0xf]
    %v1514 = vld [vmem:[#allocation2 + $0x10a0] sm:$0xf]
    %v1515 = vld [vmem:[#allocation2 + $0x10a4] sm:$0xf]
    %v1516 = vld [vmem:[#allocation2 + $0x10a8] sm:$0xf]
    %v1517 = vld [vmem:[#allocation2 + $0x10ac] sm:$0xf]
    %v1518 = vld [vmem:[#allocation2 + $0x10b0] sm:$0xf]
    %v1519 = vld [vmem:[#allocation2 + $0x10b4] sm:$0xf]
    %v1520 = vld [vmem:[#allocation2 + $0x10b8] sm:$0xf]
    %v1521 = vld [vmem:[#allocation2 + $0x10bc] sm:$0xf]
    %v1522 = vld [vmem:[#allocation2 + $0x10c0] sm:$0xf]
    %v1523 = vld [vmem:[#allocation2 + $0x10c4] sm:$0xf]
    %v1524 = vld [vmem:[#allocation2 + $0x10c8] sm:$0xf]
    %v1525 = vld [vmem:[#allocation2 + $0x10cc] sm:$0xf]
    %v1526 = vld [vmem:[#allocation2 + $0x10d0] sm:$0xf]
    %v1527 = vld [vmem:[#allocation2 + $0x10d4] sm:$0xf]
    %v1528 = vld [vmem:[#allocation2 + $0x10d8] sm:$0xf]
    %v1529 = vld [vmem:[#allocation2 + $0x10dc] sm:$0xf]
    %v1530 = vld [vmem:[#allocation2 + $0x10e0] sm:$0xf]
    %v1531 = vld [vmem:[#allocation2 + $0x10e4] sm:$0xf]
    %v1532 = vld [vmem:[#allocation2 + $0x10e8] sm:$0xf]
    %v1533 = vld [vmem:[#allocation2 + $0x10ec] sm:$0xf]
    %v1534 = vld [vmem:[#allocation2 + $0x10f0] sm:$0xf]
    %v1535 = vld [vmem:[#allocation2 + $0x10f4] sm:$0xf]
    %v1536 = vld [vmem:[#allocation2 + $0x10f8] sm:$0xf]
    %v1537 = vld [vmem:[#allocation2 + $0x10fc] sm:$0xf]
    %v1538 = vld [vmem:[#allocation2 + $0x1100] sm:$0xf]
    %v1539 = vld [vmem:[#allocation2 + $0x1104] sm:$0xf]
    %v1540 = vld [vmem:[#allocation2 + $0x1108] sm:$0xf]
    %v1541 = vld [vmem:[#allocation2 + $0x110c] sm:$0xf]
    %v1542 = vld [vmem:[#allocation2 + $0x1110] sm:$0xf]
    %v1543 = vld [vmem:[#allocation2 + $0x1114] sm:$0xf]
    %v1544 = vld [vmem:[#allocation2 + $0x1118] sm:$0xf]
    %v1545 = vld [vmem:[#allocation2 + $0x111c] sm:$0xf]
    %v1546 = vld [vmem:[#allocation2 + $0x1120] sm:$0xf]
    %v1547 = vld [vmem:[#allocation2 + $0x1124] sm:$0xf]
    %v1548 = vld [vmem:[#allocation2 + $0x1128] sm:$0xf]
    %v1549 = vld [vmem:[#allocation2 + $0x112c] sm:$0xf]
    %v1550 = vld [vmem:[#allocation2 + $0x1130] sm:$0xf]
    %v1551 = vld [vmem:[#allocation2 + $0x1134] sm:$0xf]
    %v1552 = vld [vmem:[#allocation2 + $0x1138] sm:$0xf]
    %v1553 = vld [vmem:[#allocation2 + $0x113c] sm:$0xf]
    %v1554 = vld [vmem:[#allocation2 + $0x1140] sm:$0xf]
    %v1555 = vld [vmem:[#allocation2 + $0x1144] sm:$0xf]
    %v1556 = vld [vmem:[#allocation2 + $0x1148] sm:$0xf]
    %v1557 = vld [vmem:[#allocation2 + $0x114c] sm:$0xf]
    %v1558 = vld [vmem:[#allocation2 + $0x1150] sm:$0xf]
    %v1559 = vld [vmem:[#allocation2 + $0x1154] sm:$0xf]
    %v1560 = vld [vmem:[#allocation2 + $0x1158] sm:$0xf]
    %v1561 = vld [vmem:[#allocation2 + $0x115c] sm:$0xf]
    %v1562 = vld [vmem:[#allocation2 + $0x1160] sm:$0xf]
    %v1563 = vld [vmem:[#allocation2 + $0x1164] sm:$0xf]
    %v1564 = vld [vmem:[#allocation2 + $0x1168] sm:$0xf]
    %v1565 = vld [vmem:[#allocation2 + $0x116c] sm:$0xf]
    %v1566 = vld [vmem:[#allocation2 + $0x1170] sm:$0xf]
    %v1567 = vld [vmem:[#allocation2 + $0x1174] sm:$0xf]
    %v1568 = vld [vmem:[#allocation2 + $0x1178] sm:$0xf]
    %v1569 = vld [vmem:[#allocation2 + $0x117c] sm:$0xf]
    %v1570 = vld [vmem:[#allocation2 + $0x1180] sm:$0xf]
    %v1571 = vld [vmem:[#allocation2 + $0x1184] sm:$0xf]
    %v1572 = vld [vmem:[#allocation2 + $0x1188] sm:$0xf]
    %v1573 = vld [vmem:[#allocation2 + $0x118c] sm:$0xf]
    %v1574 = vld [vmem:[#allocation2 + $0x1190] sm:$0xf]
    %v1575 = vld [vmem:[#allocation2 + $0x1194] sm:$0xf]
    %v1576 = vld [vmem:[#allocation2 + $0x1198] sm:$0xf]
    %v1577 = vld [vmem:[#allocation2 + $0x119c] sm:$0xf]
    %v1578 = vld [vmem:[#allocation2 + $0x11a0] sm:$0xf]
    %v1579 = vld [vmem:[#allocation2 + $0x11a4] sm:$0xf]
    %v1580 = vld [vmem:[#allocation2 + $0x11a8] sm:$0xf]
    %v1581 = vld [vmem:[#allocation2 + $0x11ac] sm:$0xf]
    %v1582 = vld [vmem:[#allocation2 + $0x11b0] sm:$0xf]
    %v1583 = vld [vmem:[#allocation2 + $0x11b4] sm:$0xf]
    %v1584 = vld [vmem:[#allocation2 + $0x11b8] sm:$0xf]
    %v1585 = vld [vmem:[#allocation2 + $0x11bc] sm:$0xf]
    %v1586 = vld [vmem:[#allocation2 + $0x11c0] sm:$0xf]
    %v1587 = vld [vmem:[#allocation2 + $0x11c4] sm:$0xf]
    %v1588 = vld [vmem:[#allocation2 + $0x11c8] sm:$0xf]
    %v1589 = vld [vmem:[#allocation2 + $0x11cc] sm:$0xf]
    %v1590 = vld [vmem:[#allocation2 + $0x11d0] sm:$0xf]
    %v1591 = vld [vmem:[#allocation2 + $0x11d4] sm:$0xf]
    %v1592 = vld [vmem:[#allocation2 + $0x11d8] sm:$0xf]
    %v1593 = vld [vmem:[#allocation2 + $0x11dc] sm:$0xf]
    %v1594 = vld [vmem:[#allocation2 + $0x11e0] sm:$0xf]
    %v1595 = vld [vmem:[#allocation2 + $0x11e4] sm:$0xf]
    %v1596 = vld [vmem:[#allocation2 + $0x11e8] sm:$0xf]
    %v1597 = vld [vmem:[#allocation2 + $0x11ec] sm:$0xf]
    %v1598 = vld [vmem:[#allocation2 + $0x11f0] sm:$0xf]
    %v1599 = vld [vmem:[#allocation2 + $0x11f4] sm:$0xf]
    %v1600 = vld [vmem:[#allocation2 + $0x11f8] sm:$0xf]
    %v1601 = vld [vmem:[#allocation2 + $0x11fc] sm:$0xf]
    %v1602 = vld [vmem:[#allocation2 + $0x1200] sm:$0xf]
    %v1603 = vld [vmem:[#allocation2 + $0x1204] sm:$0xf]
    %v1604 = vld [vmem:[#allocation2 + $0x1208] sm:$0xf]
    %v1605 = vld [vmem:[#allocation2 + $0x120c] sm:$0xf]
    %v1606 = vld [vmem:[#allocation2 + $0x1210] sm:$0xf]
    %v1607 = vld [vmem:[#allocation2 + $0x1214] sm:$0xf]
    %v1608 = vld [vmem:[#allocation2 + $0x1218] sm:$0xf]
    %v1609 = vld [vmem:[#allocation2 + $0x121c] sm:$0xf]
    %v1610 = vld [vmem:[#allocation2 + $0x1220] sm:$0xf]
    %v1611 = vld [vmem:[#allocation2 + $0x1224] sm:$0xf]
    %v1612 = vld [vmem:[#allocation2 + $0x1228] sm:$0xf]
    %v1613 = vld [vmem:[#allocation2 + $0x122c] sm:$0xf]
    %v1614 = vld [vmem:[#allocation2 + $0x1230] sm:$0xf]
    %v1615 = vld [vmem:[#allocation2 + $0x1234] sm:$0xf]
    %v1616 = vld [vmem:[#allocation2 + $0x1238] sm:$0xf]
    %v1617 = vld [vmem:[#allocation2 + $0x123c] sm:$0xf]
    %v1618 = vld [vmem:[#allocation2 + $0x1240] sm:$0xf]
    %v1619 = vld [vmem:[#allocation2 + $0x1244] sm:$0xf]
    %v1620 = vld [vmem:[#allocation2 + $0x1248] sm:$0xf]
    %v1621 = vld [vmem:[#allocation2 + $0x124c] sm:$0xf]
    %v1622 = vld [vmem:[#allocation2 + $0x1250] sm:$0xf]
    %v1623 = vld [vmem:[#allocation2 + $0x1254] sm:$0xf]
    %v1624 = vld [vmem:[#allocation2 + $0x1258] sm:$0xf]
    %v1625 = vld [vmem:[#allocation2 + $0x125c] sm:$0xf]
    %v1626 = vld [vmem:[#allocation2 + $0x1260] sm:$0xf]
    %v1627 = vld [vmem:[#allocation2 + $0x1264] sm:$0xf]
    %v1628 = vld [vmem:[#allocation2 + $0x1268] sm:$0xf]
    %v1629 = vld [vmem:[#allocation2 + $0x126c] sm:$0xf]
    %v1630 = vld [vmem:[#allocation2 + $0x1270] sm:$0xf]
    %v1631 = vld [vmem:[#allocation2 + $0x1274] sm:$0xf]
    %v1632 = vld [vmem:[#allocation2 + $0x1278] sm:$0xf]
    %v1633 = vld [vmem:[#allocation2 + $0x127c] sm:$0xf]
    %v1634 = vld [vmem:[#allocation2 + $0x1280] sm:$0xf]
    %v1635 = vld [vmem:[#allocation2 + $0x1284] sm:$0xf]
    %v1636 = vld [vmem:[#allocation2 + $0x1288] sm:$0xf]
    %v1637 = vld [vmem:[#allocation2 + $0x128c] sm:$0xf]
    %v1638 = vld [vmem:[#allocation2 + $0x1290] sm:$0xf]
    %v1639 = vld [vmem:[#allocation2 + $0x1294] sm:$0xf]
    %v1640 = vld [vmem:[#allocation2 + $0x1298] sm:$0xf]
    %v1641 = vld [vmem:[#allocation2 + $0x129c] sm:$0xf]
    %v1642 = vld [vmem:[#allocation2 + $0x12a0] sm:$0xf]
    %v1643 = vld [vmem:[#allocation2 + $0x12a4] sm:$0xf]
    %v1644 = vld [vmem:[#allocation2 + $0x12a8] sm:$0xf]
    %v1645 = vld [vmem:[#allocation2 + $0x12ac] sm:$0xf]
    %v1646 = vld [vmem:[#allocation2 + $0x12b0] sm:$0xf]
    %v1647 = vld [vmem:[#allocation2 + $0x12b4] sm:$0xf]
    %v1648 = vld [vmem:[#allocation2 + $0x12b8] sm:$0xf]
    %v1649 = vld [vmem:[#allocation2 + $0x12bc] sm:$0xf]
    %v1650 = vld [vmem:[#allocation2 + $0x12c0] sm:$0xf]
    %v1651 = vld [vmem:[#allocation2 + $0x12c4] sm:$0xf]
    %v1652 = vld [vmem:[#allocation2 + $0x12c8] sm:$0xf]
    %v1653 = vld [vmem:[#allocation2 + $0x12cc] sm:$0xf]
    %v1654 = vld [vmem:[#allocation2 + $0x12d0] sm:$0xf]
    %v1655 = vld [vmem:[#allocation2 + $0x12d4] sm:$0xf]
    %v1656 = vld [vmem:[#allocation2 + $0x12d8] sm:$0xf]
    %v1657 = vld [vmem:[#allocation2 + $0x12dc] sm:$0xf]
    %v1658 = vld [vmem:[#allocation2 + $0x12e0] sm:$0xf]
    %v1659 = vld [vmem:[#allocation2 + $0x12e4] sm:$0xf]
    %v1660 = vld [vmem:[#allocation2 + $0x12e8] sm:$0xf]
    %v1661 = vld [vmem:[#allocation2 + $0x12ec] sm:$0xf]
    %v1662 = vld [vmem:[#allocation2 + $0x12f0] sm:$0xf]
    %v1663 = vld [vmem:[#allocation2 + $0x12f4] sm:$0xf]
    %v1664 = vld [vmem:[#allocation2 + $0x12f8] sm:$0xf]
    %v1665 = vld [vmem:[#allocation2 + $0x12fc] sm:$0xf]
    %v1666 = vld [vmem:[#allocation2 + $0x1300] sm:$0xf]
    %v1667 = vld [vmem:[#allocation2 + $0x1304] sm:$0xf]
    %v1668 = vld [vmem:[#allocation2 + $0x1308] sm:$0xf]
    %v1669 = vld [vmem:[#allocation2 + $0x130c] sm:$0xf]
    %v1670 = vld [vmem:[#allocation2 + $0x1310] sm:$0xf]
    %v1671 = vld [vmem:[#allocation2 + $0x1314] sm:$0xf]
    %v1672 = vld [vmem:[#allocation2 + $0x1318] sm:$0xf]
    %v1673 = vld [vmem:[#allocation2 + $0x131c] sm:$0xf]
    %v1674 = vld [vmem:[#allocation2 + $0x1320] sm:$0xf]
    %v1675 = vld [vmem:[#allocation2 + $0x1324] sm:$0xf]
    %v1676 = vld [vmem:[#allocation2 + $0x1328] sm:$0xf]
    %v1677 = vld [vmem:[#allocation2 + $0x132c] sm:$0xf]
    %v1678 = vld [vmem:[#allocation2 + $0x1330] sm:$0xf]
    %v1679 = vld [vmem:[#allocation2 + $0x1334] sm:$0xf]
    %v1680 = vld [vmem:[#allocation2 + $0x1338] sm:$0xf]
    %v1681 = vld [vmem:[#allocation2 + $0x133c] sm:$0xf]
    %v1682 = vld [vmem:[#allocation2 + $0x1340] sm:$0xf]
    %v1683 = vld [vmem:[#allocation2 + $0x1344] sm:$0xf]
    %v1684 = vld [vmem:[#allocation2 + $0x1348] sm:$0xf]
    %v1685 = vld [vmem:[#allocation2 + $0x134c] sm:$0xf]
    %v1686 = vld [vmem:[#allocation2 + $0x1350] sm:$0xf]
    %v1687 = vld [vmem:[#allocation2 + $0x1354] sm:$0xf]
    %v1688 = vld [vmem:[#allocation2 + $0x1358] sm:$0xf]
    %v1689 = vld [vmem:[#allocation2 + $0x135c] sm:$0xf]
    %v1690 = vld [vmem:[#allocation2 + $0x1360] sm:$0xf]
    %v1691 = vld [vmem:[#allocation2 + $0x1364] sm:$0xf]
    %v1692 = vld [vmem:[#allocation2 + $0x1368] sm:$0xf]
    %v1693 = vld [vmem:[#allocation2 + $0x136c] sm:$0xf]
    %v1694 = vld [vmem:[#allocation2 + $0x1370] sm:$0xf]
    %v1695 = vld [vmem:[#allocation2 + $0x1374] sm:$0xf]
    %v1696 = vld [vmem:[#allocation2 + $0x1378] sm:$0xf]
    %v1697 = vld [vmem:[#allocation2 + $0x137c] sm:$0xf]
    %v1698 = vld [vmem:[#allocation2 + $0x1380] sm:$0xf]
    %v1699 = vld [vmem:[#allocation2 + $0x1384] sm:$0xf]
    %v1700 = vld [vmem:[#allocation2 + $0x1388] sm:$0xf]
    %v1701 = vld [vmem:[#allocation2 + $0x138c] sm:$0xf]
    %v1702 = vld [vmem:[#allocation2 + $0x1390] sm:$0xf]
    %v1703 = vld [vmem:[#allocation2 + $0x1394] sm:$0xf]
    %v1704 = vld [vmem:[#allocation2 + $0x1398] sm:$0xf]
    %v1705 = vld [vmem:[#allocation2 + $0x139c] sm:$0xf]
    %v1706 = vld [vmem:[#allocation2 + $0x13a0] sm:$0xf]
    %v1707 = vld [vmem:[#allocation2 + $0x13a4] sm:$0xf]
    %v1708 = vld [vmem:[#allocation2 + $0x13a8] sm:$0xf]
    %v1709 = vld [vmem:[#allocation2 + $0x13ac] sm:$0xf]
    %v1710 = vld [vmem:[#allocation2 + $0x13b0] sm:$0xf]
    %v1711 = vld [vmem:[#allocation2 + $0x13b4] sm:$0xf]
    %v1712 = vld [vmem:[#allocation2 + $0x13b8] sm:$0xf]
    %v1713 = vld [vmem:[#allocation2 + $0x13bc] sm:$0xf]
    %v1714 = vld [vmem:[#allocation2 + $0x13c0] sm:$0xf]
    %v1715 = vld [vmem:[#allocation2 + $0x13c4] sm:$0xf]
    %v1716 = vld [vmem:[#allocation2 + $0x13c8] sm:$0xf]
    %v1717 = vld [vmem:[#allocation2 + $0x13cc] sm:$0xf]
    %v1718 = vld [vmem:[#allocation2 + $0x13d0] sm:$0xf]
    %v1719 = vld [vmem:[#allocation2 + $0x13d4] sm:$0xf]
    %v1720 = vld [vmem:[#allocation2 + $0x13d8] sm:$0xf]
    %v1721 = vld [vmem:[#allocation2 + $0x13dc] sm:$0xf]
    %v1722 = vld [vmem:[#allocation2 + $0x13e0] sm:$0xf]
    %v1723 = vld [vmem:[#allocation2 + $0x13e4] sm:$0xf]
    %v1724 = vld [vmem:[#allocation2 + $0x13e8] sm:$0xf]
    %v1725 = vld [vmem:[#allocation2 + $0x13ec] sm:$0xf]
    %v1726 = vld [vmem:[#allocation2 + $0x13f0] sm:$0xf]
    %v1727 = vld [vmem:[#allocation2 + $0x13f4] sm:$0xf]
    %v1728 = vld [vmem:[#allocation2 + $0x13f8] sm:$0xf]
    %v1729 = vld [vmem:[#allocation2 + $0x13fc] sm:$0xf]
    %v1730 = vld [vmem:[#allocation2 + $0x1400] sm:$0xf]
    %v1731 = vld [vmem:[#allocation2 + $0x1404] sm:$0xf]
    %v1732 = vld [vmem:[#allocation2 + $0x1408] sm:$0xf]
    %v1733 = vld [vmem:[#allocation2 + $0x140c] sm:$0xf]
    %v1734 = vld [vmem:[#allocation2 + $0x1410] sm:$0xf]
    %v1735 = vld [vmem:[#allocation2 + $0x1414] sm:$0xf]
    %v1736 = vld [vmem:[#allocation2 + $0x1418] sm:$0xf]
    %v1737 = vld [vmem:[#allocation2 + $0x141c] sm:$0xf]
    %v1738 = vld [vmem:[#allocation2 + $0x1420] sm:$0xf]
    %v1739 = vld [vmem:[#allocation2 + $0x1424] sm:$0xf]
    %v1740 = vld [vmem:[#allocation2 + $0x1428] sm:$0xf]
    %v1741 = vld [vmem:[#allocation2 + $0x142c] sm:$0xf]
    %v1742 = vld [vmem:[#allocation2 + $0x1430] sm:$0xf]
    %v1743 = vld [vmem:[#allocation2 + $0x1434] sm:$0xf]
    %v1744 = vld [vmem:[#allocation2 + $0x1438] sm:$0xf]
    %v1745 = vld [vmem:[#allocation2 + $0x143c] sm:$0xf]
    %v1746 = vld [vmem:[#allocation2 + $0x1440] sm:$0xf]
    %v1747 = vld [vmem:[#allocation2 + $0x1444] sm:$0xf]
    %v1748 = vld [vmem:[#allocation2 + $0x1448] sm:$0xf]
    %v1749 = vld [vmem:[#allocation2 + $0x144c] sm:$0xf]
    %v1750 = vld [vmem:[#allocation2 + $0x1450] sm:$0xf]
    %v1751 = vld [vmem:[#allocation2 + $0x1454] sm:$0xf]
    %v1752 = vld [vmem:[#allocation2 + $0x1458] sm:$0xf]
    %v1753 = vld [vmem:[#allocation2 + $0x145c] sm:$0xf]
    %v1754 = vld [vmem:[#allocation2 + $0x1460] sm:$0xf]
    %v1755 = vld [vmem:[#allocation2 + $0x1464] sm:$0xf]
    %v1756 = vld [vmem:[#allocation2 + $0x1468] sm:$0xf]
    %v1757 = vld [vmem:[#allocation2 + $0x146c] sm:$0xf]
    %v1758 = vld [vmem:[#allocation2 + $0x1470] sm:$0xf]
    %v1759 = vld [vmem:[#allocation2 + $0x1474] sm:$0xf]
    %v1760 = vld [vmem:[#allocation2 + $0x1478] sm:$0xf]
    %v1761 = vld [vmem:[#allocation2 + $0x147c] sm:$0xf]
    %v1762 = vld [vmem:[#allocation2 + $0x1480] sm:$0xf]
    %v1763 = vld [vmem:[#allocation2 + $0x1484] sm:$0xf]
    %v1764 = vld [vmem:[#allocation2 + $0x1488] sm:$0xf]
    %v1765 = vld [vmem:[#allocation2 + $0x148c] sm:$0xf]
    %v1766 = vld [vmem:[#allocation2 + $0x1490] sm:$0xf]
    %v1767 = vld [vmem:[#allocation2 + $0x1494] sm:$0xf]
    %v1768 = vld [vmem:[#allocation2 + $0x1498] sm:$0xf]
    %v1769 = vld [vmem:[#allocation2 + $0x149c] sm:$0xf]
    %v1770 = vld [vmem:[#allocation2 + $0x14a0] sm:$0xf]
    %v1771 = vld [vmem:[#allocation2 + $0x14a4] sm:$0xf]
    %v1772 = vld [vmem:[#allocation2 + $0x14a8] sm:$0xf]
    %v1773 = vld [vmem:[#allocation2 + $0x14ac] sm:$0xf]
    %v1774 = vld [vmem:[#allocation2 + $0x14b0] sm:$0xf]
    %v1775 = vld [vmem:[#allocation2 + $0x14b4] sm:$0xf]
    %v1776 = vld [vmem:[#allocation2 + $0x14b8] sm:$0xf]
    %v1777 = vld [vmem:[#allocation2 + $0x14bc] sm:$0xf]
    %v1778 = vld [vmem:[#allocation2 + $0x14c0] sm:$0xf]
    %v1779 = vld [vmem:[#allocation2 + $0x14c4] sm:$0xf]
    %v1780 = vld [vmem:[#allocation2 + $0x14c8] sm:$0xf]
    %v1781 = vld [vmem:[#allocation2 + $0x14cc] sm:$0xf]
    %v1782 = vld [vmem:[#allocation2 + $0x14d0] sm:$0xf]
    %v1783 = vld [vmem:[#allocation2 + $0x14d4] sm:$0xf]
    %v1784 = vld [vmem:[#allocation2 + $0x14d8] sm:$0xf]
    %v1785 = vld [vmem:[#allocation2 + $0x14dc] sm:$0xf]
    %v1786 = vld [vmem:[#allocation2 + $0x14e0] sm:$0xf]
    %v1787 = vld [vmem:[#allocation2 + $0x14e4] sm:$0xf]
    %v1788 = vld [vmem:[#allocation2 + $0x14e8] sm:$0xf]
    %v1789 = vld [vmem:[#allocation2 + $0x14ec] sm:$0xf]
    %v1790 = vld [vmem:[#allocation2 + $0x14f0] sm:$0xf]
    %v1791 = vld [vmem:[#allocation2 + $0x14f4] sm:$0xf]
    %v1792 = vld [vmem:[#allocation2 + $0x14f8] sm:$0xf]
    %v1793 = vld [vmem:[#allocation2 + $0x14fc] sm:$0xf]
    %v1794 = vld [vmem:[#allocation2 + $0x1500] sm:$0xf]
    %v1795 = vld [vmem:[#allocation2 + $0x1504] sm:$0xf]
    %v1796 = vld [vmem:[#allocation2 + $0x1508] sm:$0xf]
    %v1797 = vld [vmem:[#allocation2 + $0x150c] sm:$0xf]
    %v1798 = vld [vmem:[#allocation2 + $0x1510] sm:$0xf]
    %v1799 = vld [vmem:[#allocation2 + $0x1514] sm:$0xf]
    %v1800 = vld [vmem:[#allocation2 + $0x1518] sm:$0xf]
    %v1801 = vld [vmem:[#allocation2 + $0x151c] sm:$0xf]
    %v1802 = vld [vmem:[#allocation2 + $0x1520] sm:$0xf]
    %v1803 = vld [vmem:[#allocation2 + $0x1524] sm:$0xf]
    %v1804 = vld [vmem:[#allocation2 + $0x1528] sm:$0xf]
    %v1805 = vld [vmem:[#allocation2 + $0x152c] sm:$0xf]
    %v1806 = vld [vmem:[#allocation2 + $0x1530] sm:$0xf]
    %v1807 = vld [vmem:[#allocation2 + $0x1534] sm:$0xf]
    %v1808 = vld [vmem:[#allocation2 + $0x1538] sm:$0xf]
    %v1809 = vld [vmem:[#allocation2 + $0x153c] sm:$0xf]
    %v1810 = vld [vmem:[#allocation2 + $0x1540] sm:$0xf]
    %v1811 = vld [vmem:[#allocation2 + $0x1544] sm:$0xf]
    %v1812 = vld [vmem:[#allocation2 + $0x1548] sm:$0xf]
    %v1813 = vld [vmem:[#allocation2 + $0x154c] sm:$0xf]
    %v1814 = vld [vmem:[#allocation2 + $0x1550] sm:$0xf]
    %v1815 = vld [vmem:[#allocation2 + $0x1554] sm:$0xf]
    %v1816 = vld [vmem:[#allocation2 + $0x1558] sm:$0xf]
    %v1817 = vld [vmem:[#allocation2 + $0x155c] sm:$0xf]
    %v1818 = vld [vmem:[#allocation2 + $0x1560] sm:$0xf]
    %v1819 = vld [vmem:[#allocation2 + $0x1564] sm:$0xf]
    %v1820 = vld [vmem:[#allocation2 + $0x1568] sm:$0xf]
    %v1821 = vld [vmem:[#allocation2 + $0x156c] sm:$0xf]
    %v1822 = vld [vmem:[#allocation2 + $0x1570] sm:$0xf]
    %v1823 = vld [vmem:[#allocation2 + $0x1574] sm:$0xf]
    %v1824 = vld [vmem:[#allocation2 + $0x1578] sm:$0xf]
    %v1825 = vld [vmem:[#allocation2 + $0x157c] sm:$0xf]
    %v1826 = vld [vmem:[#allocation2 + $0x1580] sm:$0xf]
    %v1827 = vld [vmem:[#allocation2 + $0x1584] sm:$0xf]
    %v1828 = vld [vmem:[#allocation2 + $0x1588] sm:$0xf]
    %v1829 = vld [vmem:[#allocation2 + $0x158c] sm:$0xf]
    %v1830 = vld [vmem:[#allocation2 + $0x1590] sm:$0xf]
    %v1831 = vld [vmem:[#allocation2 + $0x1594] sm:$0xf]
    %v1832 = vld [vmem:[#allocation2 + $0x1598] sm:$0xf]
    %v1833 = vld [vmem:[#allocation2 + $0x159c] sm:$0xf]
    %v1834 = vld [vmem:[#allocation2 + $0x15a0] sm:$0xf]
    %v1835 = vld [vmem:[#allocation2 + $0x15a4] sm:$0xf]
    %v1836 = vld [vmem:[#allocation2 + $0x15a8] sm:$0xf]
    %v1837 = vld [vmem:[#allocation2 + $0x15ac] sm:$0xf]
    %v1838 = vld [vmem:[#allocation2 + $0x15b0] sm:$0xf]
    %v1839 = vld [vmem:[#allocation2 + $0x15b4] sm:$0xf]
    %v1840 = vld [vmem:[#allocation2 + $0x15b8] sm:$0xf]
    %v1841 = vld [vmem:[#allocation2 + $0x15bc] sm:$0xf]
    %v1842 = vld [vmem:[#allocation2 + $0x15c0] sm:$0xf]
    %v1843 = vld [vmem:[#allocation2 + $0x15c4] sm:$0xf]
    %v1844 = vld [vmem:[#allocation2 + $0x15c8] sm:$0xf]
    %v1845 = vld [vmem:[#allocation2 + $0x15cc] sm:$0xf]
    %v1846 = vld [vmem:[#allocation2 + $0x15d0] sm:$0xf]
    %v1847 = vld [vmem:[#allocation2 + $0x15d4] sm:$0xf]
    %v1848 = vld [vmem:[#allocation2 + $0x15d8] sm:$0xf]
    %v1849 = vld [vmem:[#allocation2 + $0x15dc] sm:$0xf]
    %v1850 = vld [vmem:[#allocation2 + $0x15e0] sm:$0xf]
    %v1851 = vld [vmem:[#allocation2 + $0x15e4] sm:$0xf]
    %v1852 = vld [vmem:[#allocation2 + $0x15e8] sm:$0xf]
    %v1853 = vld [vmem:[#allocation2 + $0x15ec] sm:$0xf]
    %v1854 = vld [vmem:[#allocation2 + $0x15f0] sm:$0xf]
    %v1855 = vld [vmem:[#allocation2 + $0x15f4] sm:$0xf]
    %v1856 = vld [vmem:[#allocation2 + $0x15f8] sm:$0xf]
    %v1857 = vld [vmem:[#allocation2 + $0x15fc] sm:$0xf]
    %v1858 = vld [vmem:[#allocation2 + $0x1600] sm:$0xf]
    %v1859 = vld [vmem:[#allocation2 + $0x1604] sm:$0xf]
    %v1860 = vld [vmem:[#allocation2 + $0x1608] sm:$0xf]
    %v1861 = vld [vmem:[#allocation2 + $0x160c] sm:$0xf]
    %v1862 = vld [vmem:[#allocation2 + $0x1610] sm:$0xf]
    %v1863 = vld [vmem:[#allocation2 + $0x1614] sm:$0xf]
    %v1864 = vld [vmem:[#allocation2 + $0x1618] sm:$0xf]
    %v1865 = vld [vmem:[#allocation2 + $0x161c] sm:$0xf]
    %v1866 = vld [vmem:[#allocation2 + $0x1620] sm:$0xf]
    %v1867 = vld [vmem:[#allocation2 + $0x1624] sm:$0xf]
    %v1868 = vld [vmem:[#allocation2 + $0x1628] sm:$0xf]
    %v1869 = vld [vmem:[#allocation2 + $0x162c] sm:$0xf]
    %v1870 = vld [vmem:[#allocation2 + $0x1630] sm:$0xf]
    %v1871 = vld [vmem:[#allocation2 + $0x1634] sm:$0xf]
    %v1872 = vld [vmem:[#allocation2 + $0x1638] sm:$0xf]
    %v1873 = vld [vmem:[#allocation2 + $0x163c] sm:$0xf]
    %v1874 = vld [vmem:[#allocation2 + $0x1640] sm:$0xf]
    %v1875 = vld [vmem:[#allocation2 + $0x1644] sm:$0xf]
    %v1876 = vld [vmem:[#allocation2 + $0x1648] sm:$0xf]
    %v1877 = vld [vmem:[#allocation2 + $0x164c] sm:$0xf]
    %v1878 = vld [vmem:[#allocation2 + $0x1650] sm:$0xf]
    %v1879 = vld [vmem:[#allocation2 + $0x1654] sm:$0xf]
    %v1880 = vld [vmem:[#allocation2 + $0x1658] sm:$0xf]
    %v1881 = vld [vmem:[#allocation2 + $0x165c] sm:$0xf]
    %v1882 = vld [vmem:[#allocation2 + $0x1660] sm:$0xf]
    %v1883 = vld [vmem:[#allocation2 + $0x1664] sm:$0xf]
    %v1884 = vld [vmem:[#allocation2 + $0x1668] sm:$0xf]
    %v1885 = vld [vmem:[#allocation2 + $0x166c] sm:$0xf]
    %v1886 = vld [vmem:[#allocation2 + $0x1670] sm:$0xf]
    %v1887 = vld [vmem:[#allocation2 + $0x1674] sm:$0xf]
    %v1888 = vld [vmem:[#allocation2 + $0x1678] sm:$0xf]
    %v1889 = vld [vmem:[#allocation2 + $0x167c] sm:$0xf]
    %v1890 = vld [vmem:[#allocation2 + $0x1680] sm:$0xf]
    %v1891 = vld [vmem:[#allocation2 + $0x1684] sm:$0xf]
    %v1892 = vld [vmem:[#allocation2 + $0x1688] sm:$0xf]
    %v1893 = vld [vmem:[#allocation2 + $0x168c] sm:$0xf]
    %v1894 = vld [vmem:[#allocation2 + $0x1690] sm:$0xf]
    %v1895 = vld [vmem:[#allocation2 + $0x1694] sm:$0xf]
    %v1896 = vld [vmem:[#allocation2 + $0x1698] sm:$0xf]
    %v1897 = vld [vmem:[#allocation2 + $0x169c] sm:$0xf]
    %v1898 = vld [vmem:[#allocation2 + $0x16a0] sm:$0xf]
    %v1899 = vld [vmem:[#allocation2 + $0x16a4] sm:$0xf]
    %v1900 = vld [vmem:[#allocation2 + $0x16a8] sm:$0xf]
    %v1901 = vld [vmem:[#allocation2 + $0x16ac] sm:$0xf]
    %v1902 = vld [vmem:[#allocation2 + $0x16b0] sm:$0xf]
    %v1903 = vld [vmem:[#allocation2 + $0x16b4] sm:$0xf]
    %v1904 = vld [vmem:[#allocation2 + $0x16b8] sm:$0xf]
    %v1905 = vld [vmem:[#allocation2 + $0x16bc] sm:$0xf]
    %v1906 = vld [vmem:[#allocation2 + $0x16c0] sm:$0xf]
    %v1907 = vld [vmem:[#allocation2 + $0x16c4] sm:$0xf]
    %v1908 = vld [vmem:[#allocation2 + $0x16c8] sm:$0xf]
    %v1909 = vld [vmem:[#allocation2 + $0x16cc] sm:$0xf]
    %v1910 = vld [vmem:[#allocation2 + $0x16d0] sm:$0xf]
    %v1911 = vld [vmem:[#allocation2 + $0x16d4] sm:$0xf]
    %v1912 = vld [vmem:[#allocation2 + $0x16d8] sm:$0xf]
    %v1913 = vld [vmem:[#allocation2 + $0x16dc] sm:$0xf]
    %v1914 = vld [vmem:[#allocation2 + $0x16e0] sm:$0xf]
    %v1915 = vld [vmem:[#allocation2 + $0x16e4] sm:$0xf]
    %v1916 = vld [vmem:[#allocation2 + $0x16e8] sm:$0xf]
    %v1917 = vld [vmem:[#allocation2 + $0x16ec] sm:$0xf]
    %v1918 = vld [vmem:[#allocation2 + $0x16f0] sm:$0xf]
    %v1919 = vld [vmem:[#allocation2 + $0x16f4] sm:$0xf]
    %v1920 = vld [vmem:[#allocation2 + $0x16f8] sm:$0xf]
    %v1921 = vld [vmem:[#allocation2 + $0x16fc] sm:$0xf]
    %v1922 = vld [vmem:[#allocation2 + $0x1700] sm:$0xf]
    %v1923 = vld [vmem:[#allocation2 + $0x1704] sm:$0xf]
    %v1924 = vld [vmem:[#allocation2 + $0x1708] sm:$0xf]
    %v1925 = vld [vmem:[#allocation2 + $0x170c] sm:$0xf]
    %v1926 = vld [vmem:[#allocation2 + $0x1710] sm:$0xf]
    %v1927 = vld [vmem:[#allocation2 + $0x1714] sm:$0xf]
    %v1928 = vld [vmem:[#allocation2 + $0x1718] sm:$0xf]
    %v1929 = vld [vmem:[#allocation2 + $0x171c] sm:$0xf]
    %v1930 = vld [vmem:[#allocation2 + $0x1720] sm:$0xf]
    %v1931 = vld [vmem:[#allocation2 + $0x1724] sm:$0xf]
    %v1932 = vld [vmem:[#allocation2 + $0x1728] sm:$0xf]
    %v1933 = vld [vmem:[#allocation2 + $0x172c] sm:$0xf]
    %v1934 = vld [vmem:[#allocation2 + $0x1730] sm:$0xf]
    %v1935 = vld [vmem:[#allocation2 + $0x1734] sm:$0xf]
    %v1936 = vld [vmem:[#allocation2 + $0x1738] sm:$0xf]
    %v1937 = vld [vmem:[#allocation2 + $0x173c] sm:$0xf]
    %v1938 = vld [vmem:[#allocation2 + $0x1740] sm:$0xf]
    %v1939 = vld [vmem:[#allocation2 + $0x1744] sm:$0xf]
    %v1940 = vld [vmem:[#allocation2 + $0x1748] sm:$0xf]
    %v1941 = vld [vmem:[#allocation2 + $0x174c] sm:$0xf]
    %v1942 = vld [vmem:[#allocation2 + $0x1750] sm:$0xf]
    %v1943 = vld [vmem:[#allocation2 + $0x1754] sm:$0xf]
    %v1944 = vld [vmem:[#allocation2 + $0x1758] sm:$0xf]
    %v1945 = vld [vmem:[#allocation2 + $0x175c] sm:$0xf]
    %v1946 = vld [vmem:[#allocation2 + $0x1760] sm:$0xf]
    %v1947 = vld [vmem:[#allocation2 + $0x1764] sm:$0xf]
    %v1948 = vld [vmem:[#allocation2 + $0x1768] sm:$0xf]
    %v1949 = vld [vmem:[#allocation2 + $0x176c] sm:$0xf]
    %v1950 = vld [vmem:[#allocation2 + $0x1770] sm:$0xf]
    %v1951 = vld [vmem:[#allocation2 + $0x1774] sm:$0xf]
    %v1952 = vld [vmem:[#allocation2 + $0x1778] sm:$0xf]
    %v1953 = vld [vmem:[#allocation2 + $0x177c] sm:$0xf]
    %v1954 = vld [vmem:[#allocation2 + $0x1780] sm:$0xf]
    %v1955 = vld [vmem:[#allocation2 + $0x1784] sm:$0xf]
    %v1956 = vld [vmem:[#allocation2 + $0x1788] sm:$0xf]
    %v1957 = vld [vmem:[#allocation2 + $0x178c] sm:$0xf]
    %v1958 = vld [vmem:[#allocation2 + $0x1790] sm:$0xf]
    %v1959 = vld [vmem:[#allocation2 + $0x1794] sm:$0xf]
    %v1960 = vld [vmem:[#allocation2 + $0x1798] sm:$0xf]
    %v1961 = vld [vmem:[#allocation2 + $0x179c] sm:$0xf]
    %v1962 = vld [vmem:[#allocation2 + $0x17a0] sm:$0xf]
    %v1963 = vld [vmem:[#allocation2 + $0x17a4] sm:$0xf]
    %v1964 = vld [vmem:[#allocation2 + $0x17a8] sm:$0xf]
    %v1965 = vld [vmem:[#allocation2 + $0x17ac] sm:$0xf]
    %v1966 = vld [vmem:[#allocation2 + $0x17b0] sm:$0xf]
    %v1967 = vld [vmem:[#allocation2 + $0x17b4] sm:$0xf]
    %v1968 = vld [vmem:[#allocation2 + $0x17b8] sm:$0xf]
    %v1969 = vld [vmem:[#allocation2 + $0x17bc] sm:$0xf]
    %v1970 = vld [vmem:[#allocation2 + $0x17c0] sm:$0xf]
    %v1971 = vld [vmem:[#allocation2 + $0x17c4] sm:$0xf]
    %v1972 = vld [vmem:[#allocation2 + $0x17c8] sm:$0xf]
    %v1973 = vld [vmem:[#allocation2 + $0x17cc] sm:$0xf]
    %v1974 = vld [vmem:[#allocation2 + $0x17d0] sm:$0xf]
    %v1975 = vld [vmem:[#allocation2 + $0x17d4] sm:$0xf]
    %v1976 = vld [vmem:[#allocation2 + $0x17d8] sm:$0xf]
    %v1977 = vld [vmem:[#allocation2 + $0x17dc] sm:$0xf]
    %v1978 = vld [vmem:[#allocation2 + $0x17e0] sm:$0xf]
    %v1979 = vld [vmem:[#allocation2 + $0x17e4] sm:$0xf]
    %v1980 = vld [vmem:[#allocation2 + $0x17e8] sm:$0xf]
    %v1981 = vld [vmem:[#allocation2 + $0x17ec] sm:$0xf]
    %v1982 = vld [vmem:[#allocation2 + $0x17f0] sm:$0xf]
    %v1983 = vld [vmem:[#allocation2 + $0x17f4] sm:$0xf]
    %v1984 = vld [vmem:[#allocation2 + $0x17f8] sm:$0xf]
    %v1985 = vld [vmem:[#allocation2 + $0x17fc] sm:$0xf]
    %v1986 = vld [vmem:[#allocation2 + $0x1800] sm:$0xf]
    %v1987 = vld [vmem:[#allocation2 + $0x1804] sm:$0xf]
    %v1988 = vld [vmem:[#allocation2 + $0x1808] sm:$0xf]
    %v1989 = vld [vmem:[#allocation2 + $0x180c] sm:$0xf]
    %v1990 = vld [vmem:[#allocation2 + $0x1810] sm:$0xf]
    %v1991 = vld [vmem:[#allocation2 + $0x1814] sm:$0xf]
    %v1992 = vld [vmem:[#allocation2 + $0x1818] sm:$0xf]
    %v1993 = vld [vmem:[#allocation2 + $0x181c] sm:$0xf]
    %v1994 = vld [vmem:[#allocation2 + $0x1820] sm:$0xf]
    %v1995 = vld [vmem:[#allocation2 + $0x1824] sm:$0xf]
    %v1996 = vld [vmem:[#allocation2 + $0x1828] sm:$0xf]
    %v1997 = vld [vmem:[#allocation2 + $0x182c] sm:$0xf]
    %v1998 = vld [vmem:[#allocation2 + $0x1830] sm:$0xf]
    %v1999 = vld [vmem:[#allocation2 + $0x1834] sm:$0xf]
    %v2000 = vld [vmem:[#allocation2 + $0x1838] sm:$0xf]
    %v2001 = vld [vmem:[#allocation2 + $0x183c] sm:$0xf]
    %v2002 = vld [vmem:[#allocation2 + $0x1840] sm:$0xf]
    %v2003 = vld [vmem:[#allocation2 + $0x1844] sm:$0xf]
    %v2004 = vld [vmem:[#allocation2 + $0x1848] sm:$0xf]
    %v2005 = vld [vmem:[#allocation2 + $0x184c] sm:$0xf]
    %v2006 = vld [vmem:[#allocation2 + $0x1850] sm:$0xf]
    %v2007 = vld [vmem:[#allocation2 + $0x1854] sm:$0xf]
    %v2008 = vld [vmem:[#allocation2 + $0x1858] sm:$0xf]
    %v2009 = vld [vmem:[#allocation2 + $0x185c] sm:$0xf]
    %v2010 = vld [vmem:[#allocation2 + $0x1860] sm:$0xf]
    %v2011 = vld [vmem:[#allocation2 + $0x1864] sm:$0xf]
    %v2012 = vld [vmem:[#allocation2 + $0x1868] sm:$0xf]
    %v2013 = vld [vmem:[#allocation2 + $0x186c] sm:$0xf]
    %v2014 = vld [vmem:[#allocation2 + $0x1870] sm:$0xf]
    %v2015 = vld [vmem:[#allocation2 + $0x1874] sm:$0xf]
    %v2016 = vld [vmem:[#allocation2 + $0x1878] sm:$0xf]
    %v2017 = vld [vmem:[#allocation2 + $0x187c] sm:$0xf]
    %v2018 = vld [vmem:[#allocation2 + $0x1880] sm:$0xf]
    %v2019 = vld [vmem:[#allocation2 + $0x1884] sm:$0xf]
    %v2020 = vld [vmem:[#allocation2 + $0x1888] sm:$0xf]
    %v2021 = vld [vmem:[#allocation2 + $0x188c] sm:$0xf]
    %v2022 = vld [vmem:[#allocation2 + $0x1890] sm:$0xf]
    %v2023 = vld [vmem:[#allocation2 + $0x1894] sm:$0xf]
    %v2024 = vld [vmem:[#allocation2 + $0x1898] sm:$0xf]
    %v2025 = vld [vmem:[#allocation2 + $0x189c] sm:$0xf]
    %v2026 = vld [vmem:[#allocation2 + $0x18a0] sm:$0xf]
    %v2027 = vld [vmem:[#allocation2 + $0x18a4] sm:$0xf]
    %v2028 = vld [vmem:[#allocation2 + $0x18a8] sm:$0xf]
    %v2029 = vld [vmem:[#allocation2 + $0x18ac] sm:$0xf]
    %v2030 = vld [vmem:[#allocation2 + $0x18b0] sm:$0xf]
    %v2031 = vld [vmem:[#allocation2 + $0x18b4] sm:$0xf]
    %v2032 = vld [vmem:[#allocation2 + $0x18b8] sm:$0xf]
    %v2033 = vld [vmem:[#allocation2 + $0x18bc] sm:$0xf]
    %v2034 = vld [vmem:[#allocation2 + $0x18c0] sm:$0xf]
    %v2035 = vld [vmem:[#allocation2 + $0x18c4] sm:$0xf]
    %v2036 = vld [vmem:[#allocation2 + $0x18c8] sm:$0xf]
    %v2037 = vld [vmem:[#allocation2 + $0x18cc] sm:$0xf]
    %v2038 = vld [vmem:[#allocation2 + $0x18d0] sm:$0xf]
    %v2039 = vld [vmem:[#allocation2 + $0x18d4] sm:$0xf]
    %v2040 = vld [vmem:[#allocation2 + $0x18d8] sm:$0xf]
    %v2041 = vld [vmem:[#allocation2 + $0x18dc] sm:$0xf]
    %v2042 = vld [vmem:[#allocation2 + $0x18e0] sm:$0xf]
    %v2043 = vld [vmem:[#allocation2 + $0x18e4] sm:$0xf]
    %v2044 = vld [vmem:[#allocation2 + $0x18e8] sm:$0xf]
    %v2045 = vld [vmem:[#allocation2 + $0x18ec] sm:$0xf]
    %v2046 = vld [vmem:[#allocation2 + $0x18f0] sm:$0xf]
    %v2047 = vld [vmem:[#allocation2 + $0x18f4] sm:$0xf]
    %v2048 = vld [vmem:[#allocation2 + $0x18f8] sm:$0xf]
    %v2049 = vld [vmem:[#allocation2 + $0x18fc] sm:$0xf]
    %v2050 = vld [vmem:[#allocation2 + $0x1900] sm:$0xf]
    %v2051 = vld [vmem:[#allocation2 + $0x1904] sm:$0xf]
    %v2052 = vld [vmem:[#allocation2 + $0x1908] sm:$0xf]
    %v2053 = vld [vmem:[#allocation2 + $0x190c] sm:$0xf]
    %v2054 = vld [vmem:[#allocation2 + $0x1910] sm:$0xf]
    %v2055 = vld [vmem:[#allocation2 + $0x1914] sm:$0xf]
    %v2056 = vld [vmem:[#allocation2 + $0x1918] sm:$0xf]
    %v2057 = vld [vmem:[#allocation2 + $0x191c] sm:$0xf]
    %v2058 = vld [vmem:[#allocation2 + $0x1920] sm:$0xf]
    %v2059 = vld [vmem:[#allocation2 + $0x1924] sm:$0xf]
    %v2060 = vld [vmem:[#allocation2 + $0x1928] sm:$0xf]
    %v2061 = vld [vmem:[#allocation2 + $0x192c] sm:$0xf]
    %v2062 = vld [vmem:[#allocation2 + $0x1930] sm:$0xf]
    %v2063 = vld [vmem:[#allocation2 + $0x1934] sm:$0xf]
    %v2064 = vld [vmem:[#allocation2 + $0x1938] sm:$0xf]
    %v2065 = vld [vmem:[#allocation2 + $0x193c] sm:$0xf]
    %v2066 = vld [vmem:[#allocation2 + $0x1940] sm:$0xf]
    %v2067 = vld [vmem:[#allocation2 + $0x1944] sm:$0xf]
    %v2068 = vld [vmem:[#allocation2 + $0x1948] sm:$0xf]
    %v2069 = vld [vmem:[#allocation2 + $0x194c] sm:$0xf]
    %v2070 = vld [vmem:[#allocation2 + $0x1950] sm:$0xf]
    %v2071 = vld [vmem:[#allocation2 + $0x1954] sm:$0xf]
    %v2072 = vld [vmem:[#allocation2 + $0x1958] sm:$0xf]
    %v2073 = vld [vmem:[#allocation2 + $0x195c] sm:$0xf]
    %v2074 = vld [vmem:[#allocation2 + $0x1960] sm:$0xf]
    %v2075 = vld [vmem:[#allocation2 + $0x1964] sm:$0xf]
    %v2076 = vld [vmem:[#allocation2 + $0x1968] sm:$0xf]
    %v2077 = vld [vmem:[#allocation2 + $0x196c] sm:$0xf]
    %v2078 = vld [vmem:[#allocation2 + $0x1970] sm:$0xf]
    %v2079 = vld [vmem:[#allocation2 + $0x1974] sm:$0xf]
    %v2080 = vld [vmem:[#allocation2 + $0x1978] sm:$0xf]
    %v2081 = vld [vmem:[#allocation2 + $0x197c] sm:$0xf]
    %v2082 = vld [vmem:[#allocation2 + $0x1980] sm:$0xf]
    %v2083 = vld [vmem:[#allocation2 + $0x1984] sm:$0xf]
    %v2084 = vld [vmem:[#allocation2 + $0x1988] sm:$0xf]
    %v2085 = vld [vmem:[#allocation2 + $0x198c] sm:$0xf]
    %v2086 = vld [vmem:[#allocation2 + $0x1990] sm:$0xf]
    %v2087 = vld [vmem:[#allocation2 + $0x1994] sm:$0xf]
    %v2088 = vld [vmem:[#allocation2 + $0x1998] sm:$0xf]
    %v2089 = vld [vmem:[#allocation2 + $0x199c] sm:$0xf]
    %v2090 = vld [vmem:[#allocation2 + $0x19a0] sm:$0xf]
    %v2091 = vld [vmem:[#allocation2 + $0x19a4] sm:$0xf]
    %v2092 = vld [vmem:[#allocation2 + $0x19a8] sm:$0xf]
    %v2093 = vld [vmem:[#allocation2 + $0x19ac] sm:$0xf]
    %v2094 = vld [vmem:[#allocation2 + $0x19b0] sm:$0xf]
    %v2095 = vld [vmem:[#allocation2 + $0x19b4] sm:$0xf]
    %v2096 = vld [vmem:[#allocation2 + $0x19b8] sm:$0xf]
    %v2097 = vld [vmem:[#allocation2 + $0x19bc] sm:$0xf]
    %v2098 = vld [vmem:[#allocation2 + $0x19c0] sm:$0xf]
    %v2099 = vld [vmem:[#allocation2 + $0x19c4] sm:$0xf]
    %v2100 = vld [vmem:[#allocation2 + $0x19c8] sm:$0xf]
    %v2101 = vld [vmem:[#allocation2 + $0x19cc] sm:$0xf]
    %v2102 = vld [vmem:[#allocation2 + $0x19d0] sm:$0xf]
    %v2103 = vld [vmem:[#allocation2 + $0x19d4] sm:$0xf]
    %v2104 = vld [vmem:[#allocation2 + $0x19d8] sm:$0xf]
    %v2105 = vld [vmem:[#allocation2 + $0x19dc] sm:$0xf]
    %v2106 = vld [vmem:[#allocation2 + $0x19e0] sm:$0xf]
    %v2107 = vld [vmem:[#allocation2 + $0x19e4] sm:$0xf]
    %v2108 = vld [vmem:[#allocation2 + $0x19e8] sm:$0xf]
    %v2109 = vld [vmem:[#allocation2 + $0x19ec] sm:$0xf]
    %v2110 = vld [vmem:[#allocation2 + $0x19f0] sm:$0xf]
    %v2111 = vld [vmem:[#allocation2 + $0x19f4] sm:$0xf]
    %v2112 = vld [vmem:[#allocation2 + $0x19f8] sm:$0xf]
    %v2113 = vld [vmem:[#allocation2 + $0x19fc] sm:$0xf]
    %v2114 = vld [vmem:[#allocation2 + $0x1a00] sm:$0xf]
    %v2115 = vld [vmem:[#allocation2 + $0x1a04] sm:$0xf]
    %v2116 = vld [vmem:[#allocation2 + $0x1a08] sm:$0xf]
    %v2117 = vld [vmem:[#allocation2 + $0x1a0c] sm:$0xf]
    %v2118 = vld [vmem:[#allocation2 + $0x1a10] sm:$0xf]
    %v2119 = vld [vmem:[#allocation2 + $0x1a14] sm:$0xf]
    %v2120 = vld [vmem:[#allocation2 + $0x1a18] sm:$0xf]
    %v2121 = vld [vmem:[#allocation2 + $0x1a1c] sm:$0xf]
    %v2122 = vld [vmem:[#allocation2 + $0x1a20] sm:$0xf]
    %v2123 = vld [vmem:[#allocation2 + $0x1a24] sm:$0xf]
    %v2124 = vld [vmem:[#allocation2 + $0x1a28] sm:$0xf]
    %v2125 = vld [vmem:[#allocation2 + $0x1a2c] sm:$0xf]
    %v2126 = vld [vmem:[#allocation2 + $0x1a30] sm:$0xf]
    %v2127 = vld [vmem:[#allocation2 + $0x1a34] sm:$0xf]
    %v2128 = vld [vmem:[#allocation2 + $0x1a38] sm:$0xf]
    %v2129 = vld [vmem:[#allocation2 + $0x1a3c] sm:$0xf]
    %v2130 = vld [vmem:[#allocation2 + $0x1a40] sm:$0xf]
    %v2131 = vld [vmem:[#allocation2 + $0x1a44] sm:$0xf]
    %v2132 = vld [vmem:[#allocation2 + $0x1a48] sm:$0xf]
    %v2133 = vld [vmem:[#allocation2 + $0x1a4c] sm:$0xf]
    %v2134 = vld [vmem:[#allocation2 + $0x1a50] sm:$0xf]
    %v2135 = vld [vmem:[#allocation2 + $0x1a54] sm:$0xf]
    %v2136 = vld [vmem:[#allocation2 + $0x1a58] sm:$0xf]
    %v2137 = vld [vmem:[#allocation2 + $0x1a5c] sm:$0xf]
    %v2138 = vld [vmem:[#allocation2 + $0x1a60] sm:$0xf]
    %v2139 = vld [vmem:[#allocation2 + $0x1a64] sm:$0xf]
    %v2140 = vld [vmem:[#allocation2 + $0x1a68] sm:$0xf]
    %v2141 = vld [vmem:[#allocation2 + $0x1a6c] sm:$0xf]
    %v2142 = vld [vmem:[#allocation2 + $0x1a70] sm:$0xf]
    %v2143 = vld [vmem:[#allocation2 + $0x1a74] sm:$0xf]
    %v2144 = vld [vmem:[#allocation2 + $0x1a78] sm:$0xf]
    %v2145 = vld [vmem:[#allocation2 + $0x1a7c] sm:$0xf]
    %v2146 = vld [vmem:[#allocation2 + $0x1a80] sm:$0xf]
    %v2147 = vld [vmem:[#allocation2 + $0x1a84] sm:$0xf]
    %v2148 = vld [vmem:[#allocation2 + $0x1a88] sm:$0xf]
    %v2149 = vld [vmem:[#allocation2 + $0x1a8c] sm:$0xf]
    %v2150 = vld [vmem:[#allocation2 + $0x1a90] sm:$0xf]
    %v2151 = vld [vmem:[#allocation2 + $0x1a94] sm:$0xf]
    %v2152 = vld [vmem:[#allocation2 + $0x1a98] sm:$0xf]
    %v2153 = vld [vmem:[#allocation2 + $0x1a9c] sm:$0xf]
    %v2154 = vld [vmem:[#allocation2 + $0x1aa0] sm:$0xf]
    %v2155 = vld [vmem:[#allocation2 + $0x1aa4] sm:$0xf]
    %v2156 = vld [vmem:[#allocation2 + $0x1aa8] sm:$0xf]
    %v2157 = vld [vmem:[#allocation2 + $0x1aac] sm:$0xf]
    %v2158 = vld [vmem:[#allocation2 + $0x1ab0] sm:$0xf]
    %v2159 = vld [vmem:[#allocation2 + $0x1ab4] sm:$0xf]
    %v2160 = vld [vmem:[#allocation2 + $0x1ab8] sm:$0xf]
    %v2161 = vld [vmem:[#allocation2 + $0x1abc] sm:$0xf]
    %v2162 = vld [vmem:[#allocation2 + $0x1ac0] sm:$0xf]
    %v2163 = vld [vmem:[#allocation2 + $0x1ac4] sm:$0xf]
    %v2164 = vld [vmem:[#allocation2 + $0x1ac8] sm:$0xf]
    %v2165 = vld [vmem:[#allocation2 + $0x1acc] sm:$0xf]
    %v2166 = vld [vmem:[#allocation2 + $0x1ad0] sm:$0xf]
    %v2167 = vld [vmem:[#allocation2 + $0x1ad4] sm:$0xf]
    %v2168 = vld [vmem:[#allocation2 + $0x1ad8] sm:$0xf]
    %v2169 = vld [vmem:[#allocation2 + $0x1adc] sm:$0xf]
    %v2170 = vld [vmem:[#allocation2 + $0x1ae0] sm:$0xf]
    %v2171 = vld [vmem:[#allocation2 + $0x1ae4] sm:$0xf]
    %v2172 = vld [vmem:[#allocation2 + $0x1ae8] sm:$0xf]
    %v2173 = vld [vmem:[#allocation2 + $0x1aec] sm:$0xf]
    %v2174 = vld [vmem:[#allocation2 + $0x1af0] sm:$0xf]
    %v2175 = vld [vmem:[#allocation2 + $0x1af4] sm:$0xf]
    %v2176 = vld [vmem:[#allocation2 + $0x1af8] sm:$0xf]
    %v2177 = vld [vmem:[#allocation2 + $0x1afc] sm:$0xf]
    %v2178 = vld [vmem:[#allocation2 + $0x1b00] sm:$0xf]
    %v2179 = vld [vmem:[#allocation2 + $0x1b04] sm:$0xf]
    %v2180 = vld [vmem:[#allocation2 + $0x1b08] sm:$0xf]
    %v2181 = vld [vmem:[#allocation2 + $0x1b0c] sm:$0xf]
    %v2182 = vld [vmem:[#allocation2 + $0x1b10] sm:$0xf]
    %v2183 = vld [vmem:[#allocation2 + $0x1b14] sm:$0xf]
    %v2184 = vld [vmem:[#allocation2 + $0x1b18] sm:$0xf]
    %v2185 = vld [vmem:[#allocation2 + $0x1b1c] sm:$0xf]
    %v2186 = vld [vmem:[#allocation2 + $0x1b20] sm:$0xf]
    %v2187 = vld [vmem:[#allocation2 + $0x1b24] sm:$0xf]
    %v2188 = vld [vmem:[#allocation2 + $0x1b28] sm:$0xf]
    %v2189 = vld [vmem:[#allocation2 + $0x1b2c] sm:$0xf]
    %v2190 = vld [vmem:[#allocation2 + $0x1b30] sm:$0xf]
    %v2191 = vld [vmem:[#allocation2 + $0x1b34] sm:$0xf]
    %v2192 = vld [vmem:[#allocation2 + $0x1b38] sm:$0xf]
    %v2193 = vld [vmem:[#allocation2 + $0x1b3c] sm:$0xf]
    %v2194 = vld [vmem:[#allocation2 + $0x1b40] sm:$0xf]
    %v2195 = vld [vmem:[#allocation2 + $0x1b44] sm:$0xf]
    %v2196 = vld [vmem:[#allocation2 + $0x1b48] sm:$0xf]
    %v2197 = vld [vmem:[#allocation2 + $0x1b4c] sm:$0xf]
    %v2198 = vld [vmem:[#allocation2 + $0x1b50] sm:$0xf]
    %v2199 = vld [vmem:[#allocation2 + $0x1b54] sm:$0xf]
    %v2200 = vld [vmem:[#allocation2 + $0x1b58] sm:$0xf]
    %v2201 = vld [vmem:[#allocation2 + $0x1b5c] sm:$0xf]
    %v2202 = vld [vmem:[#allocation2 + $0x1b60] sm:$0xf]
    %v2203 = vld [vmem:[#allocation2 + $0x1b64] sm:$0xf]
    %v2204 = vld [vmem:[#allocation2 + $0x1b68] sm:$0xf]
    %v2205 = vld [vmem:[#allocation2 + $0x1b6c] sm:$0xf]
    %v2206 = vld [vmem:[#allocation2 + $0x1b70] sm:$0xf]
    %v2207 = vld [vmem:[#allocation2 + $0x1b74] sm:$0xf]
    %v2208 = vld [vmem:[#allocation2 + $0x1b78] sm:$0xf]
    %v2209 = vld [vmem:[#allocation2 + $0x1b7c] sm:$0xf]
    %v2210 = vld [vmem:[#allocation2 + $0x1b80] sm:$0xf]
    %v2211 = vld [vmem:[#allocation2 + $0x1b84] sm:$0xf]
    %v2212 = vld [vmem:[#allocation2 + $0x1b88] sm:$0xf]
    %v2213 = vld [vmem:[#allocation2 + $0x1b8c] sm:$0xf]
    %v2214 = vld [vmem:[#allocation2 + $0x1b90] sm:$0xf]
    %v2215 = vld [vmem:[#allocation2 + $0x1b94] sm:$0xf]
    %v2216 = vld [vmem:[#allocation2 + $0x1b98] sm:$0xf]
    %v2217 = vld [vmem:[#allocation2 + $0x1b9c] sm:$0xf]
    %v2218 = vld [vmem:[#allocation2 + $0x1ba0] sm:$0xf]
    %v2219 = vld [vmem:[#allocation2 + $0x1ba4] sm:$0xf]
    %v2220 = vld [vmem:[#allocation2 + $0x1ba8] sm:$0xf]
    %v2221 = vld [vmem:[#allocation2 + $0x1bac] sm:$0xf]
    %v2222 = vld [vmem:[#allocation2 + $0x1bb0] sm:$0xf]
    %v2223 = vld [vmem:[#allocation2 + $0x1bb4] sm:$0xf]
    %v2224 = vld [vmem:[#allocation2 + $0x1bb8] sm:$0xf]
    %v2225 = vld [vmem:[#allocation2 + $0x1bbc] sm:$0xf]
    %v2226 = vld [vmem:[#allocation2 + $0x1bc0] sm:$0xf]
    %v2227 = vld [vmem:[#allocation2 + $0x1bc4] sm:$0xf]
    %v2228 = vld [vmem:[#allocation2 + $0x1bc8] sm:$0xf]
    %v2229 = vld [vmem:[#allocation2 + $0x1bcc] sm:$0xf]
    %v2230 = vld [vmem:[#allocation2 + $0x1bd0] sm:$0xf]
    %v2231 = vld [vmem:[#allocation2 + $0x1bd4] sm:$0xf]
    %v2232 = vld [vmem:[#allocation2 + $0x1bd8] sm:$0xf]
    %v2233 = vld [vmem:[#allocation2 + $0x1bdc] sm:$0xf]
    %v2234 = vld [vmem:[#allocation2 + $0x1be0] sm:$0xf]
    %v2235 = vld [vmem:[#allocation2 + $0x1be4] sm:$0xf]
    %v2236 = vld [vmem:[#allocation2 + $0x1be8] sm:$0xf]
    %v2237 = vld [vmem:[#allocation2 + $0x1bec] sm:$0xf]
    %v2238 = vld [vmem:[#allocation2 + $0x1bf0] sm:$0xf]
    %v2239 = vld [vmem:[#allocation2 + $0x1bf4] sm:$0xf]
    %v2240 = vld [vmem:[#allocation2 + $0x1bf8] sm:$0xf]
    %v2241 = vld [vmem:[#allocation2 + $0x1bfc] sm:$0xf]
    %v2242 = vld [vmem:[#allocation2 + $0x1c00] sm:$0xf]
    %v2243 = vld [vmem:[#allocation2 + $0x1c04] sm:$0xf]
    %v2244 = vld [vmem:[#allocation2 + $0x1c08] sm:$0xf]
    %v2245 = vld [vmem:[#allocation2 + $0x1c0c] sm:$0xf]
    %v2246 = vld [vmem:[#allocation2 + $0x1c10] sm:$0xf]
    %v2247 = vld [vmem:[#allocation2 + $0x1c14] sm:$0xf]
    %v2248 = vld [vmem:[#allocation2 + $0x1c18] sm:$0xf]
    %v2249 = vld [vmem:[#allocation2 + $0x1c1c] sm:$0xf]
    %v2250 = vld [vmem:[#allocation2 + $0x1c20] sm:$0xf]
    %v2251 = vld [vmem:[#allocation2 + $0x1c24] sm:$0xf]
    %v2252 = vld [vmem:[#allocation2 + $0x1c28] sm:$0xf]
    %v2253 = vld [vmem:[#allocation2 + $0x1c2c] sm:$0xf]
    %v2254 = vld [vmem:[#allocation2 + $0x1c30] sm:$0xf]
    %v2255 = vld [vmem:[#allocation2 + $0x1c34] sm:$0xf]
    %v2256 = vld [vmem:[#allocation2 + $0x1c38] sm:$0xf]
    %v2257 = vld [vmem:[#allocation2 + $0x1c3c] sm:$0xf]
    %v2258 = vld [vmem:[#allocation2 + $0x1c40] sm:$0xf]
    %v2259 = vld [vmem:[#allocation2 + $0x1c44] sm:$0xf]
    %v2260 = vld [vmem:[#allocation2 + $0x1c48] sm:$0xf]
    %v2261 = vld [vmem:[#allocation2 + $0x1c4c] sm:$0xf]
    %v2262 = vld [vmem:[#allocation2 + $0x1c50] sm:$0xf]
    %v2263 = vld [vmem:[#allocation2 + $0x1c54] sm:$0xf]
    %v2264 = vld [vmem:[#allocation2 + $0x1c58] sm:$0xf]
    %v2265 = vld [vmem:[#allocation2 + $0x1c5c] sm:$0xf]
    %v2266 = vld [vmem:[#allocation2 + $0x1c60] sm:$0xf]
    %v2267 = vld [vmem:[#allocation2 + $0x1c64] sm:$0xf]
    %v2268 = vld [vmem:[#allocation2 + $0x1c68] sm:$0xf]
    %v2269 = vld [vmem:[#allocation2 + $0x1c6c] sm:$0xf]
    %v2270 = vld [vmem:[#allocation2 + $0x1c70] sm:$0xf]
    %v2271 = vld [vmem:[#allocation2 + $0x1c74] sm:$0xf]
    %v2272 = vld [vmem:[#allocation2 + $0x1c78] sm:$0xf]
    %v2273 = vld [vmem:[#allocation2 + $0x1c7c] sm:$0xf]
    %v2274 = vld [vmem:[#allocation2 + $0x1c80] sm:$0xf]
    %v2275 = vld [vmem:[#allocation2 + $0x1c84] sm:$0xf]
    %v2276 = vld [vmem:[#allocation2 + $0x1c88] sm:$0xf]
    %v2277 = vld [vmem:[#allocation2 + $0x1c8c] sm:$0xf]
    %v2278 = vld [vmem:[#allocation2 + $0x1c90] sm:$0xf]
    %v2279 = vld [vmem:[#allocation2 + $0x1c94] sm:$0xf]
    %v2280 = vld [vmem:[#allocation2 + $0x1c98] sm:$0xf]
    %v2281 = vld [vmem:[#allocation2 + $0x1c9c] sm:$0xf]
    %v2282 = vld [vmem:[#allocation2 + $0x1ca0] sm:$0xf]
    %v2283 = vld [vmem:[#allocation2 + $0x1ca4] sm:$0xf]
    %v2284 = vld [vmem:[#allocation2 + $0x1ca8] sm:$0xf]
    %v2285 = vld [vmem:[#allocation2 + $0x1cac] sm:$0xf]
    %v2286 = vld [vmem:[#allocation2 + $0x1cb0] sm:$0xf]
    %v2287 = vld [vmem:[#allocation2 + $0x1cb4] sm:$0xf]
    %v2288 = vld [vmem:[#allocation2 + $0x1cb8] sm:$0xf]
    %v2289 = vld [vmem:[#allocation2 + $0x1cbc] sm:$0xf]
    %v2290 = vld [vmem:[#allocation2 + $0x1cc0] sm:$0xf]
    %v2291 = vld [vmem:[#allocation2 + $0x1cc4] sm:$0xf]
    %v2292 = vld [vmem:[#allocation2 + $0x1cc8] sm:$0xf]
    %v2293 = vld [vmem:[#allocation2 + $0x1ccc] sm:$0xf]
    %v2294 = vld [vmem:[#allocation2 + $0x1cd0] sm:$0xf]
    %v2295 = vld [vmem:[#allocation2 + $0x1cd4] sm:$0xf]
    %v2296 = vld [vmem:[#allocation2 + $0x1cd8] sm:$0xf]
    %v2297 = vld [vmem:[#allocation2 + $0x1cdc] sm:$0xf]
    %v2298 = vld [vmem:[#allocation2 + $0x1ce0] sm:$0xf]
    %v2299 = vld [vmem:[#allocation2 + $0x1ce4] sm:$0xf]
    %v2300 = vld [vmem:[#allocation2 + $0x1ce8] sm:$0xf]
    %v2301 = vld [vmem:[#allocation2 + $0x1cec] sm:$0xf]
    %v2302 = vld [vmem:[#allocation2 + $0x1cf0] sm:$0xf]
    %v2303 = vld [vmem:[#allocation2 + $0x1cf4] sm:$0xf]
    %v2304 = vld [vmem:[#allocation2 + $0x1cf8] sm:$0xf]
    %v2305 = vld [vmem:[#allocation2 + $0x1cfc] sm:$0xf]
    %v2306 = vld [vmem:[#allocation2 + $0x1d00] sm:$0xf]
    %v2307 = vld [vmem:[#allocation2 + $0x1d04] sm:$0xf]
    %v2308 = vld [vmem:[#allocation2 + $0x1d08] sm:$0xf]
    %v2309 = vld [vmem:[#allocation2 + $0x1d0c] sm:$0xf]
    %v2310 = vld [vmem:[#allocation2 + $0x1d10] sm:$0xf]
    %v2311 = vld [vmem:[#allocation2 + $0x1d14] sm:$0xf]
    %v2312 = vld [vmem:[#allocation2 + $0x1d18] sm:$0xf]
    %v2313 = vld [vmem:[#allocation2 + $0x1d1c] sm:$0xf]
    %v2314 = vld [vmem:[#allocation2 + $0x1d20] sm:$0xf]
    %v2315 = vld [vmem:[#allocation2 + $0x1d24] sm:$0xf]
    %v2316 = vld [vmem:[#allocation2 + $0x1d28] sm:$0xf]
    %v2317 = vld [vmem:[#allocation2 + $0x1d2c] sm:$0xf]
    %v2318 = vld [vmem:[#allocation2 + $0x1d30] sm:$0xf]
    %v2319 = vld [vmem:[#allocation2 + $0x1d34] sm:$0xf]
    %v2320 = vld [vmem:[#allocation2 + $0x1d38] sm:$0xf]
    %v2321 = vld [vmem:[#allocation2 + $0x1d3c] sm:$0xf]
    %v2322 = vld [vmem:[#allocation2 + $0x1d40] sm:$0xf]
    %v2323 = vld [vmem:[#allocation2 + $0x1d44] sm:$0xf]
    %v2324 = vld [vmem:[#allocation2 + $0x1d48] sm:$0xf]
    %v2325 = vld [vmem:[#allocation2 + $0x1d4c] sm:$0xf]
    %v2326 = vld [vmem:[#allocation2 + $0x1d50] sm:$0xf]
    %v2327 = vld [vmem:[#allocation2 + $0x1d54] sm:$0xf]
    %v2328 = vld [vmem:[#allocation2 + $0x1d58] sm:$0xf]
    %v2329 = vld [vmem:[#allocation2 + $0x1d5c] sm:$0xf]
    %v2330 = vld [vmem:[#allocation2 + $0x1d60] sm:$0xf]
    %v2331 = vld [vmem:[#allocation2 + $0x1d64] sm:$0xf]
    %v2332 = vld [vmem:[#allocation2 + $0x1d68] sm:$0xf]
    %v2333 = vld [vmem:[#allocation2 + $0x1d6c] sm:$0xf]
    %v2334 = vld [vmem:[#allocation2 + $0x1d70] sm:$0xf]
    %v2335 = vld [vmem:[#allocation2 + $0x1d74] sm:$0xf]
    %v2336 = vld [vmem:[#allocation2 + $0x1d78] sm:$0xf]
    %v2337 = vld [vmem:[#allocation2 + $0x1d7c] sm:$0xf]
    %v2338 = vld [vmem:[#allocation2 + $0x1d80] sm:$0xf]
    %v2339 = vld [vmem:[#allocation2 + $0x1d84] sm:$0xf]
    %v2340 = vld [vmem:[#allocation2 + $0x1d88] sm:$0xf]
    %v2341 = vld [vmem:[#allocation2 + $0x1d8c] sm:$0xf]
    %v2342 = vld [vmem:[#allocation2 + $0x1d90] sm:$0xf]
    %v2343 = vld [vmem:[#allocation2 + $0x1d94] sm:$0xf]
    %v2344 = vld [vmem:[#allocation2 + $0x1d98] sm:$0xf]
    %v2345 = vld [vmem:[#allocation2 + $0x1d9c] sm:$0xf]
    %v2346 = vld [vmem:[#allocation2 + $0x1da0] sm:$0xf]
    %v2347 = vld [vmem:[#allocation2 + $0x1da4] sm:$0xf]
    %v2348 = vld [vmem:[#allocation2 + $0x1da8] sm:$0xf]
    %v2349 = vld [vmem:[#allocation2 + $0x1dac] sm:$0xf]
    %v2350 = vld [vmem:[#allocation2 + $0x1db0] sm:$0xf]
    %v2351 = vld [vmem:[#allocation2 + $0x1db4] sm:$0xf]
    %v2352 = vld [vmem:[#allocation2 + $0x1db8] sm:$0xf]
    %v2353 = vld [vmem:[#allocation2 + $0x1dbc] sm:$0xf]
    %v2354 = vld [vmem:[#allocation2 + $0x1dc0] sm:$0xf]
    %v2355 = vld [vmem:[#allocation2 + $0x1dc4] sm:$0xf]
    %v2356 = vld [vmem:[#allocation2 + $0x1dc8] sm:$0xf]
    %v2357 = vld [vmem:[#allocation2 + $0x1dcc] sm:$0xf]
    %v2358 = vld [vmem:[#allocation2 + $0x1dd0] sm:$0xf]
    %v2359 = vld [vmem:[#allocation2 + $0x1dd4] sm:$0xf]
    %v2360 = vld [vmem:[#allocation2 + $0x1dd8] sm:$0xf]
    %v2361 = vld [vmem:[#allocation2 + $0x1ddc] sm:$0xf]
    %v2362 = vld [vmem:[#allocation2 + $0x1de0] sm:$0xf]
    %v2363 = vld [vmem:[#allocation2 + $0x1de4] sm:$0xf]
    %v2364 = vld [vmem:[#allocation2 + $0x1de8] sm:$0xf]
    %v2365 = vld [vmem:[#allocation2 + $0x1dec] sm:$0xf]
    %v2366 = vld [vmem:[#allocation2 + $0x1df0] sm:$0xf]
    %v2367 = vld [vmem:[#allocation2 + $0x1df4] sm:$0xf]
    %v2368 = vld [vmem:[#allocation2 + $0x1df8] sm:$0xf]
    %v2369 = vld [vmem:[#allocation2 + $0x1dfc] sm:$0xf]
    %v2370 = vld [vmem:[#allocation2 + $0x1e00] sm:$0xf]
    %v2371 = vld [vmem:[#allocation2 + $0x1e04] sm:$0xf]
    %v2372 = vld [vmem:[#allocation2 + $0x1e08] sm:$0xf]
    %v2373 = vld [vmem:[#allocation2 + $0x1e0c] sm:$0xf]
    %v2374 = vld [vmem:[#allocation2 + $0x1e10] sm:$0xf]
    %v2375 = vld [vmem:[#allocation2 + $0x1e14] sm:$0xf]
    %v2376 = vld [vmem:[#allocation2 + $0x1e18] sm:$0xf]
    %v2377 = vld [vmem:[#allocation2 + $0x1e1c] sm:$0xf]
    %v2378 = vld [vmem:[#allocation2 + $0x1e20] sm:$0xf]
    %v2379 = vld [vmem:[#allocation2 + $0x1e24] sm:$0xf]
    %v2380 = vld [vmem:[#allocation2 + $0x1e28] sm:$0xf]
    %v2381 = vld [vmem:[#allocation2 + $0x1e2c] sm:$0xf]
    %v2382 = vld [vmem:[#allocation2 + $0x1e30] sm:$0xf]
    %v2383 = vld [vmem:[#allocation2 + $0x1e34] sm:$0xf]
    %v2384 = vld [vmem:[#allocation2 + $0x1e38] sm:$0xf]
    %v2385 = vld [vmem:[#allocation2 + $0x1e3c] sm:$0xf]
    %v2386 = vld [vmem:[#allocation2 + $0x1e40] sm:$0xf]
    %v2387 = vld [vmem:[#allocation2 + $0x1e44] sm:$0xf]
    %v2388 = vld [vmem:[#allocation2 + $0x1e48] sm:$0xf]
    %v2389 = vld [vmem:[#allocation2 + $0x1e4c] sm:$0xf]
    %v2390 = vld [vmem:[#allocation2 + $0x1e50] sm:$0xf]
    %v2391 = vld [vmem:[#allocation2 + $0x1e54] sm:$0xf]
    %v2392 = vld [vmem:[#allocation2 + $0x1e58] sm:$0xf]
    %v2393 = vld [vmem:[#allocation2 + $0x1e5c] sm:$0xf]
    %v2394 = vld [vmem:[#allocation2 + $0x1e60] sm:$0xf]
    %v2395 = vld [vmem:[#allocation2 + $0x1e64] sm:$0xf]
    %v2396 = vld [vmem:[#allocation2 + $0x1e68] sm:$0xf]
    %v2397 = vld [vmem:[#allocation2 + $0x1e6c] sm:$0xf]
    %v2398 = vld [vmem:[#allocation2 + $0x1e70] sm:$0xf]
    %v2399 = vld [vmem:[#allocation2 + $0x1e74] sm:$0xf]
    %v2400 = vld [vmem:[#allocation2 + $0x1e78] sm:$0xf]
    %v2401 = vld [vmem:[#allocation2 + $0x1e7c] sm:$0xf]
    %v2402 = vld [vmem:[#allocation2 + $0x1e80] sm:$0xf]
    %v2403 = vld [vmem:[#allocation2 + $0x1e84] sm:$0xf]
    %v2404 = vld [vmem:[#allocation2 + $0x1e88] sm:$0xf]
    %v2405 = vld [vmem:[#allocation2 + $0x1e8c] sm:$0xf]
    %v2406 = vld [vmem:[#allocation2 + $0x1e90] sm:$0xf]
    %v2407 = vld [vmem:[#allocation2 + $0x1e94] sm:$0xf]
    %v2408 = vld [vmem:[#allocation2 + $0x1e98] sm:$0xf]
    %v2409 = vld [vmem:[#allocation2 + $0x1e9c] sm:$0xf]
    %v2410 = vld [vmem:[#allocation2 + $0x1ea0] sm:$0xf]
    %v2411 = vld [vmem:[#allocation2 + $0x1ea4] sm:$0xf]
    %v2412 = vld [vmem:[#allocation2 + $0x1ea8] sm:$0xf]
    %v2413 = vld [vmem:[#allocation2 + $0x1eac] sm:$0xf]
    %v2414 = vld [vmem:[#allocation2 + $0x1eb0] sm:$0xf]
    %v2415 = vld [vmem:[#allocation2 + $0x1eb4] sm:$0xf]
    %v2416 = vld [vmem:[#allocation2 + $0x1eb8] sm:$0xf]
    %v2417 = vld [vmem:[#allocation2 + $0x1ebc] sm:$0xf]
    %v2418 = vld [vmem:[#allocation2 + $0x1ec0] sm:$0xf]
    %v2419 = vld [vmem:[#allocation2 + $0x1ec4] sm:$0xf]
    %v2420 = vld [vmem:[#allocation2 + $0x1ec8] sm:$0xf]
    %v2421 = vld [vmem:[#allocation2 + $0x1ecc] sm:$0xf]
    %v2422 = vld [vmem:[#allocation2 + $0x1ed0] sm:$0xf]
    %v2423 = vld [vmem:[#allocation2 + $0x1ed4] sm:$0xf]
    %v2424 = vld [vmem:[#allocation2 + $0x1ed8] sm:$0xf]
    %v2425 = vld [vmem:[#allocation2 + $0x1edc] sm:$0xf]
    %v2426 = vld [vmem:[#allocation2 + $0x1ee0] sm:$0xf]
    %v2427 = vld [vmem:[#allocation2 + $0x1ee4] sm:$0xf]
    %v2428 = vld [vmem:[#allocation2 + $0x1ee8] sm:$0xf]
    %v2429 = vld [vmem:[#allocation2 + $0x1eec] sm:$0xf]
    %v2430 = vld [vmem:[#allocation2 + $0x1ef0] sm:$0xf]
    %v2431 = vld [vmem:[#allocation2 + $0x1ef4] sm:$0xf]
    %v2432 = vld [vmem:[#allocation2 + $0x1ef8] sm:$0xf]
    %v2433 = vld [vmem:[#allocation2 + $0x1efc] sm:$0xf]
    %v2434 = vld [vmem:[#allocation2 + $0x1f00] sm:$0xf]
    %v2435 = vld [vmem:[#allocation2 + $0x1f04] sm:$0xf]
    %v2436 = vld [vmem:[#allocation2 + $0x1f08] sm:$0xf]
    %v2437 = vld [vmem:[#allocation2 + $0x1f0c] sm:$0xf]
    %v2438 = vld [vmem:[#allocation2 + $0x1f10] sm:$0xf]
    %v2439 = vld [vmem:[#allocation2 + $0x1f14] sm:$0xf]
    %v2440 = vld [vmem:[#allocation2 + $0x1f18] sm:$0xf]
    %v2441 = vld [vmem:[#allocation2 + $0x1f1c] sm:$0xf]
    %v2442 = vld [vmem:[#allocation2 + $0x1f20] sm:$0xf]
    %v2443 = vld [vmem:[#allocation2 + $0x1f24] sm:$0xf]
    %v2444 = vld [vmem:[#allocation2 + $0x1f28] sm:$0xf]
    %v2445 = vld [vmem:[#allocation2 + $0x1f2c] sm:$0xf]
    %v2446 = vld [vmem:[#allocation2 + $0x1f30] sm:$0xf]
    %v2447 = vld [vmem:[#allocation2 + $0x1f34] sm:$0xf]
    %v2448 = vld [vmem:[#allocation2 + $0x1f38] sm:$0xf]
    %v2449 = vld [vmem:[#allocation2 + $0x1f3c] sm:$0xf]
    %v2450 = vld [vmem:[#allocation2 + $0x1f40] sm:$0xf]
    %v2451 = vld [vmem:[#allocation2 + $0x1f44] sm:$0xf]
    %v2452 = vld [vmem:[#allocation2 + $0x1f48] sm:$0xf]
    %v2453 = vld [vmem:[#allocation2 + $0x1f4c] sm:$0xf]
    %v2454 = vld [vmem:[#allocation2 + $0x1f50] sm:$0xf]
    %v2455 = vld [vmem:[#allocation2 + $0x1f54] sm:$0xf]
    %v2456 = vld [vmem:[#allocation2 + $0x1f58] sm:$0xf]
    %v2457 = vld [vmem:[#allocation2 + $0x1f5c] sm:$0xf]
    %v2458 = vld [vmem:[#allocation2 + $0x1f60] sm:$0xf]
    %v2459 = vld [vmem:[#allocation2 + $0x1f64] sm:$0xf]
    %v2460 = vld [vmem:[#allocation2 + $0x1f68] sm:$0xf]
    %v2461 = vld [vmem:[#allocation2 + $0x1f6c] sm:$0xf]
    %v2462 = vld [vmem:[#allocation2 + $0x1f70] sm:$0xf]
    %v2463 = vld [vmem:[#allocation2 + $0x1f74] sm:$0xf]
    %v2464 = vld [vmem:[#allocation2 + $0x1f78] sm:$0xf]
    %v2465 = vld [vmem:[#allocation2 + $0x1f7c] sm:$0xf]
    %v2466 = vld [vmem:[#allocation2 + $0x1f80] sm:$0xf]
    %v2467 = vld [vmem:[#allocation2 + $0x1f84] sm:$0xf]
    %v2468 = vld [vmem:[#allocation2 + $0x1f88] sm:$0xf]
    %v2469 = vld [vmem:[#allocation2 + $0x1f8c] sm:$0xf]
    %v2470 = vld [vmem:[#allocation2 + $0x1f90] sm:$0xf]
    %v2471 = vld [vmem:[#allocation2 + $0x1f94] sm:$0xf]
    %v2472 = vld [vmem:[#allocation2 + $0x1f98] sm:$0xf]
    %v2473 = vld [vmem:[#allocation2 + $0x1f9c] sm:$0xf]
    %v2474 = vld [vmem:[#allocation2 + $0x1fa0] sm:$0xf]
    %v2475 = vld [vmem:[#allocation2 + $0x1fa4] sm:$0xf]
    %v2476 = vld [vmem:[#allocation2 + $0x1fa8] sm:$0xf]
    %v2477 = vld [vmem:[#allocation2 + $0x1fac] sm:$0xf]
    %v2478 = vld [vmem:[#allocation2 + $0x1fb0] sm:$0xf]
    %v2479 = vld [vmem:[#allocation2 + $0x1fb4] sm:$0xf]
    %v2480 = vld [vmem:[#allocation2 + $0x1fb8] sm:$0xf]
    %v2481 = vld [vmem:[#allocation2 + $0x1fbc] sm:$0xf]
    %v2482 = vld [vmem:[#allocation2 + $0x1fc0] sm:$0xf]
    %v2483 = vld [vmem:[#allocation2 + $0x1fc4] sm:$0xf]
    %v2484 = vld [vmem:[#allocation2 + $0x1fc8] sm:$0xf]
    %v2485 = vld [vmem:[#allocation2 + $0x1fcc] sm:$0xf]
    %v2486 = vld [vmem:[#allocation2 + $0x1fd0] sm:$0xf]
    %v2487 = vld [vmem:[#allocation2 + $0x1fd4] sm:$0xf]
    %v2488 = vld [vmem:[#allocation2 + $0x1fd8] sm:$0xf]
    %v2489 = vld [vmem:[#allocation2 + $0x1fdc] sm:$0xf]
    %v2490 = vld [vmem:[#allocation2 + $0x1fe0] sm:$0xf]
    %v2491 = vld [vmem:[#allocation2 + $0x1fe4] sm:$0xf]
    %v2492 = vld [vmem:[#allocation2 + $0x1fe8] sm:$0xf]
    %v2493 = vld [vmem:[#allocation2 + $0x1fec] sm:$0xf]
    %v2494 = vld [vmem:[#allocation2 + $0x1ff0] sm:$0xf]
    %v2495 = vld [vmem:[#allocation2 + $0x1ff4] sm:$0xf]
    %v2496 = vld [vmem:[#allocation2 + $0x1ff8] sm:$0xf]
    %v2497 = vld [vmem:[#allocation2 + $0x1ffc] sm:$0xf]
    %v2498 = vld [vmem:[#allocation2 + $0x2000] sm:$0xf]
    %v2499 = vld [vmem:[#allocation2 + $0x2004] sm:$0xf]
    %v2500 = vld [vmem:[#allocation2 + $0x2008] sm:$0xf]
    %v2501 = vld [vmem:[#allocation2 + $0x200c] sm:$0xf]
    %v2502 = vld [vmem:[#allocation2 + $0x2010] sm:$0xf]
    %v2503 = vld [vmem:[#allocation2 + $0x2014] sm:$0xf]
    %v2504 = vld [vmem:[#allocation2 + $0x2018] sm:$0xf]
    %v2505 = vld [vmem:[#allocation2 + $0x201c] sm:$0xf]
    %v2506 = vld [vmem:[#allocation2 + $0x2020] sm:$0xf]
    %v2507 = vld [vmem:[#allocation2 + $0x2024] sm:$0xf]
    %v2508 = vld [vmem:[#allocation2 + $0x2028] sm:$0xf]
    %v2509 = vld [vmem:[#allocation2 + $0x202c] sm:$0xf]
    %v2510 = vld [vmem:[#allocation2 + $0x2030] sm:$0xf]
    %v2511 = vld [vmem:[#allocation2 + $0x2034] sm:$0xf]
    %v2512 = vld [vmem:[#allocation2 + $0x2038] sm:$0xf]
    %v2513 = vld [vmem:[#allocation2 + $0x203c] sm:$0xf]
    %v2514 = vld [vmem:[#allocation2 + $0x2040] sm:$0xf]
    %v2515 = vld [vmem:[#allocation2 + $0x2044] sm:$0xf]
    %v2516 = vld [vmem:[#allocation2 + $0x2048] sm:$0xf]
    %v2517 = vld [vmem:[#allocation2 + $0x204c] sm:$0xf]
    %v2518 = vld [vmem:[#allocation2 + $0x2050] sm:$0xf]
    %v2519 = vld [vmem:[#allocation2 + $0x2054] sm:$0xf]
    %v2520 = vld [vmem:[#allocation2 + $0x2058] sm:$0xf]
    %v2521 = vld [vmem:[#allocation2 + $0x205c] sm:$0xf]
    %v2522 = vld [vmem:[#allocation2 + $0x2060] sm:$0xf]
    %v2523 = vld [vmem:[#allocation2 + $0x2064] sm:$0xf]
    %v2524 = vld [vmem:[#allocation2 + $0x2068] sm:$0xf]
    %v2525 = vld [vmem:[#allocation2 + $0x206c] sm:$0xf]
    %v2526 = vld [vmem:[#allocation2 + $0x2070] sm:$0xf]
    %v2527 = vld [vmem:[#allocation2 + $0x2074] sm:$0xf]
    %v2528 = vld [vmem:[#allocation2 + $0x2078] sm:$0xf]
    %v2529 = vld [vmem:[#allocation2 + $0x207c] sm:$0xf]
    %v2530 = vld [vmem:[#allocation2 + $0x2080] sm:$0xf]
    %v2531 = vld [vmem:[#allocation2 + $0x2084] sm:$0xf]
    %v2532 = vld [vmem:[#allocation2 + $0x2088] sm:$0xf]
    %v2533 = vld [vmem:[#allocation2 + $0x208c] sm:$0xf]
    %v2534 = vld [vmem:[#allocation2 + $0x2090] sm:$0xf]
    %v2535 = vld [vmem:[#allocation2 + $0x2094] sm:$0xf]
    %v2536 = vld [vmem:[#allocation2 + $0x2098] sm:$0xf]
    %v2537 = vld [vmem:[#allocation2 + $0x209c] sm:$0xf]
    %v2538 = vld [vmem:[#allocation2 + $0x20a0] sm:$0xf]
    %v2539 = vld [vmem:[#allocation2 + $0x20a4] sm:$0xf]
    %v2540 = vld [vmem:[#allocation2 + $0x20a8] sm:$0xf]
    %v2541 = vld [vmem:[#allocation2 + $0x20ac] sm:$0xf]
    %v2542 = vld [vmem:[#allocation2 + $0x20b0] sm:$0xf]
    %v2543 = vld [vmem:[#allocation2 + $0x20b4] sm:$0xf]
    %v2544 = vld [vmem:[#allocation2 + $0x20b8] sm:$0xf]
    %v2545 = vld [vmem:[#allocation2 + $0x20bc] sm:$0xf]
    %v2546 = vld [vmem:[#allocation2 + $0x20c0] sm:$0xf]
    %v2547 = vld [vmem:[#allocation2 + $0x20c4] sm:$0xf]
    %v2548 = vld [vmem:[#allocation2 + $0x20c8] sm:$0xf]
    %v2549 = vld [vmem:[#allocation2 + $0x20cc] sm:$0xf]
    %v2550 = vld [vmem:[#allocation2 + $0x20d0] sm:$0xf]
    %v2551 = vld [vmem:[#allocation2 + $0x20d4] sm:$0xf]
    %v2552 = vld [vmem:[#allocation2 + $0x20d8] sm:$0xf]
    %v2553 = vld [vmem:[#allocation2 + $0x20dc] sm:$0xf]
    %v2554 = vld [vmem:[#allocation2 + $0x20e0] sm:$0xf]
    %v2555 = vld [vmem:[#allocation2 + $0x20e4] sm:$0xf]
    %v2556 = vld [vmem:[#allocation2 + $0x20e8] sm:$0xf]
    %v2557 = vld [vmem:[#allocation2 + $0x20ec] sm:$0xf]
    %v2558 = vld [vmem:[#allocation2 + $0x20f0] sm:$0xf]
    %v2559 = vld [vmem:[#allocation2 + $0x20f4] sm:$0xf]
    %v2560 = vld [vmem:[#allocation2 + $0x20f8] sm:$0xf]
    %v2561 = vld [vmem:[#allocation2 + $0x20fc] sm:$0xf]
    %v2562 = vld [vmem:[#allocation2 + $0x2100] sm:$0xf]
    %v2563 = vld [vmem:[#allocation2 + $0x2104] sm:$0xf]
    %v2564 = vld [vmem:[#allocation2 + $0x2108] sm:$0xf]
    %v2565 = vld [vmem:[#allocation2 + $0x210c] sm:$0xf]
    %v2566 = vld [vmem:[#allocation2 + $0x2110] sm:$0xf]
    %v2567 = vld [vmem:[#allocation2 + $0x2114] sm:$0xf]
    %v2568 = vld [vmem:[#allocation2 + $0x2118] sm:$0xf]
    %v2569 = vld [vmem:[#allocation2 + $0x211c] sm:$0xf]
    %v2570 = vld [vmem:[#allocation2 + $0x2120] sm:$0xf]
    %v2571 = vld [vmem:[#allocation2 + $0x2124] sm:$0xf]
    %v2572 = vld [vmem:[#allocation2 + $0x2128] sm:$0xf]
    %v2573 = vld [vmem:[#allocation2 + $0x212c] sm:$0xf]
    %v2574 = vld [vmem:[#allocation2 + $0x2130] sm:$0xf]
    %v2575 = vld [vmem:[#allocation2 + $0x2134] sm:$0xf]
    %v2576 = vld [vmem:[#allocation2 + $0x2138] sm:$0xf]
    %v2577 = vld [vmem:[#allocation2 + $0x213c] sm:$0xf]
    %v2578 = vld [vmem:[#allocation2 + $0x2140] sm:$0xf]
    %v2579 = vld [vmem:[#allocation2 + $0x2144] sm:$0xf]
    %v2580 = vld [vmem:[#allocation2 + $0x2148] sm:$0xf]
    %v2581 = vld [vmem:[#allocation2 + $0x214c] sm:$0xf]
    %v2582 = vld [vmem:[#allocation2 + $0x2150] sm:$0xf]
    %v2583 = vld [vmem:[#allocation2 + $0x2154] sm:$0xf]
    %v2584 = vld [vmem:[#allocation2 + $0x2158] sm:$0xf]
    %v2585 = vld [vmem:[#allocation2 + $0x215c] sm:$0xf]
    %v2586 = vld [vmem:[#allocation2 + $0x2160] sm:$0xf]
    %v2587 = vld [vmem:[#allocation2 + $0x2164] sm:$0xf]
    %v2588 = vld [vmem:[#allocation2 + $0x2168] sm:$0xf]
    %v2589 = vld [vmem:[#allocation2 + $0x216c] sm:$0xf]
    %v2590 = vld [vmem:[#allocation2 + $0x2170] sm:$0xf]
    %v2591 = vld [vmem:[#allocation2 + $0x2174] sm:$0xf]
    %v2592 = vld [vmem:[#allocation2 + $0x2178] sm:$0xf]
    %v2593 = vld [vmem:[#allocation2 + $0x217c] sm:$0xf]
    %v2594 = vld [vmem:[#allocation2 + $0x2180] sm:$0xf]
    %v2595 = vld [vmem:[#allocation2 + $0x2184] sm:$0xf]
    %v2596 = vld [vmem:[#allocation2 + $0x2188] sm:$0xf]
    %v2597 = vld [vmem:[#allocation2 + $0x218c] sm:$0xf]
    %v2598 = vld [vmem:[#allocation2 + $0x2190] sm:$0xf]
    %v2599 = vld [vmem:[#allocation2 + $0x2194] sm:$0xf]
    %v2600 = vld [vmem:[#allocation2 + $0x2198] sm:$0xf]
    %v2601 = vld [vmem:[#allocation2 + $0x219c] sm:$0xf]
    %v2602 = vld [vmem:[#allocation2 + $0x21a0] sm:$0xf]
    %v2603 = vld [vmem:[#allocation2 + $0x21a4] sm:$0xf]
    %v2604 = vld [vmem:[#allocation2 + $0x21a8] sm:$0xf]
    %v2605 = vld [vmem:[#allocation2 + $0x21ac] sm:$0xf]
    %v2606 = vld [vmem:[#allocation2 + $0x21b0] sm:$0xf]
    %v2607 = vld [vmem:[#allocation2 + $0x21b4] sm:$0xf]
    %v2608 = vld [vmem:[#allocation2 + $0x21b8] sm:$0xf]
    %v2609 = vld [vmem:[#allocation2 + $0x21bc] sm:$0xf]
    %v2610 = vld [vmem:[#allocation2 + $0x21c0] sm:$0xf]
    %v2611 = vld [vmem:[#allocation2 + $0x21c4] sm:$0xf]
    %v2612 = vld [vmem:[#allocation2 + $0x21c8] sm:$0xf]
    %v2613 = vld [vmem:[#allocation2 + $0x21cc] sm:$0xf]
    %v2614 = vld [vmem:[#allocation2 + $0x21d0] sm:$0xf]
    %v2615 = vld [vmem:[#allocation2 + $0x21d4] sm:$0xf]
    %v2616 = vld [vmem:[#allocation2 + $0x21d8] sm:$0xf]
    %v2617 = vld [vmem:[#allocation2 + $0x21dc] sm:$0xf]
    %v2618 = vld [vmem:[#allocation2 + $0x21e0] sm:$0xf]
    %v2619 = vld [vmem:[#allocation2 + $0x21e4] sm:$0xf]
    %v2620 = vld [vmem:[#allocation2 + $0x21e8] sm:$0xf]
    %v2621 = vld [vmem:[#allocation2 + $0x21ec] sm:$0xf]
    %v2622 = vld [vmem:[#allocation2 + $0x21f0] sm:$0xf]
    %v2623 = vld [vmem:[#allocation2 + $0x21f4] sm:$0xf]
    %v2624 = vld [vmem:[#allocation2 + $0x21f8] sm:$0xf]
    %v2625 = vld [vmem:[#allocation2 + $0x21fc] sm:$0xf]
    %v2626 = vld [vmem:[#allocation2 + $0x2200] sm:$0xf]
    %v2627 = vld [vmem:[#allocation2 + $0x2204] sm:$0xf]
    %v2628 = vld [vmem:[#allocation2 + $0x2208] sm:$0xf]
    %v2629 = vld [vmem:[#allocation2 + $0x220c] sm:$0xf]
    %v2630 = vld [vmem:[#allocation2 + $0x2210] sm:$0xf]
    %v2631 = vld [vmem:[#allocation2 + $0x2214] sm:$0xf]
    %v2632 = vld [vmem:[#allocation2 + $0x2218] sm:$0xf]
    %v2633 = vld [vmem:[#allocation2 + $0x221c] sm:$0xf]
    %v2634 = vld [vmem:[#allocation2 + $0x2220] sm:$0xf]
    %v2635 = vld [vmem:[#allocation2 + $0x2224] sm:$0xf]
    %v2636 = vld [vmem:[#allocation2 + $0x2228] sm:$0xf]
    %v2637 = vld [vmem:[#allocation2 + $0x222c] sm:$0xf]
    %v2638 = vld [vmem:[#allocation2 + $0x2230] sm:$0xf]
    %v2639 = vld [vmem:[#allocation2 + $0x2234] sm:$0xf]
    %v2640 = vld [vmem:[#allocation2 + $0x2238] sm:$0xf]
    %v2641 = vld [vmem:[#allocation2 + $0x223c] sm:$0xf]
    %v2642 = vld [vmem:[#allocation2 + $0x2240] sm:$0xf]
    %v2643 = vld [vmem:[#allocation2 + $0x2244] sm:$0xf]
    %v2644 = vld [vmem:[#allocation2 + $0x2248] sm:$0xf]
    %v2645 = vld [vmem:[#allocation2 + $0x224c] sm:$0xf]
    %v2646 = vld [vmem:[#allocation2 + $0x2250] sm:$0xf]
    %v2647 = vld [vmem:[#allocation2 + $0x2254] sm:$0xf]
    %v2648 = vld [vmem:[#allocation2 + $0x2258] sm:$0xf]
    %v2649 = vld [vmem:[#allocation2 + $0x225c] sm:$0xf]
    %v2650 = vld [vmem:[#allocation2 + $0x2260] sm:$0xf]
    %v2651 = vld [vmem:[#allocation2 + $0x2264] sm:$0xf]
    %v2652 = vld [vmem:[#allocation2 + $0x2268] sm:$0xf]
    %v2653 = vld [vmem:[#allocation2 + $0x226c] sm:$0xf]
    %v2654 = vld [vmem:[#allocation2 + $0x2270] sm:$0xf]
    %v2655 = vld [vmem:[#allocation2 + $0x2274] sm:$0xf]
    %v2656 = vld [vmem:[#allocation2 + $0x2278] sm:$0xf]
    %v2657 = vld [vmem:[#allocation2 + $0x227c] sm:$0xf]
    %v2658 = vld [vmem:[#allocation2 + $0x2280] sm:$0xf]
    %v2659 = vld [vmem:[#allocation2 + $0x2284] sm:$0xf]
    %v2660 = vld [vmem:[#allocation2 + $0x2288] sm:$0xf]
    %v2661 = vld [vmem:[#allocation2 + $0x228c] sm:$0xf]
    %v2662 = vld [vmem:[#allocation2 + $0x2290] sm:$0xf]
    %v2663 = vld [vmem:[#allocation2 + $0x2294] sm:$0xf]
    %v2664 = vld [vmem:[#allocation2 + $0x2298] sm:$0xf]
    %v2665 = vld [vmem:[#allocation2 + $0x229c] sm:$0xf]
    %v2666 = vld [vmem:[#allocation2 + $0x22a0] sm:$0xf]
    %v2667 = vld [vmem:[#allocation2 + $0x22a4] sm:$0xf]
    %v2668 = vld [vmem:[#allocation2 + $0x22a8] sm:$0xf]
    %v2669 = vld [vmem:[#allocation2 + $0x22ac] sm:$0xf]
    %v2670 = vld [vmem:[#allocation2 + $0x22b0] sm:$0xf]
    %v2671 = vld [vmem:[#allocation2 + $0x22b4] sm:$0xf]
    %v2672 = vld [vmem:[#allocation2 + $0x22b8] sm:$0xf]
    %v2673 = vld [vmem:[#allocation2 + $0x22bc] sm:$0xf]
    %v2674 = vld [vmem:[#allocation2 + $0x22c0] sm:$0xf]
    %v2675 = vld [vmem:[#allocation2 + $0x22c4] sm:$0xf]
    %v2676 = vld [vmem:[#allocation2 + $0x22c8] sm:$0xf]
    %v2677 = vld [vmem:[#allocation2 + $0x22cc] sm:$0xf]
    %v2678 = vld [vmem:[#allocation2 + $0x22d0] sm:$0xf]
    %v2679 = vld [vmem:[#allocation2 + $0x22d4] sm:$0xf]
    %v2680 = vld [vmem:[#allocation2 + $0x22d8] sm:$0xf]
    %v2681 = vld [vmem:[#allocation2 + $0x22dc] sm:$0xf]
    %v2682 = vld [vmem:[#allocation2 + $0x22e0] sm:$0xf]
    %v2683 = vld [vmem:[#allocation2 + $0x22e4] sm:$0xf]
    %v2684 = vld [vmem:[#allocation2 + $0x22e8] sm:$0xf]
    %v2685 = vld [vmem:[#allocation2 + $0x22ec] sm:$0xf]
    %v2686 = vld [vmem:[#allocation2 + $0x22f0] sm:$0xf]
    %v2687 = vld [vmem:[#allocation2 + $0x22f4] sm:$0xf]
    %v2688 = vld [vmem:[#allocation2 + $0x22f8] sm:$0xf]
    %v2689 = vld [vmem:[#allocation2 + $0x22fc] sm:$0xf]
    %v2690 = vld [vmem:[#allocation2 + $0x2300] sm:$0xf]
    %v2691 = vld [vmem:[#allocation2 + $0x2304] sm:$0xf]
    %v2692 = vld [vmem:[#allocation2 + $0x2308] sm:$0xf]
    %v2693 = vld [vmem:[#allocation2 + $0x230c] sm:$0xf]
    %v2694 = vld [vmem:[#allocation2 + $0x2310] sm:$0xf]
    %v2695 = vld [vmem:[#allocation2 + $0x2314] sm:$0xf]
    %v2696 = vld [vmem:[#allocation2 + $0x2318] sm:$0xf]
    %v2697 = vld [vmem:[#allocation2 + $0x231c] sm:$0xf]
    %v2698 = vld [vmem:[#allocation2 + $0x2320] sm:$0xf]
    %v2699 = vld [vmem:[#allocation2 + $0x2324] sm:$0xf]
    %v2700 = vld [vmem:[#allocation2 + $0x2328] sm:$0xf]
    %v2701 = vld [vmem:[#allocation2 + $0x232c] sm:$0xf]
    %v2702 = vld [vmem:[#allocation2 + $0x2330] sm:$0xf]
    %v2703 = vld [vmem:[#allocation2 + $0x2334] sm:$0xf]
    %v2704 = vld [vmem:[#allocation2 + $0x2338] sm:$0xf]
    %v2705 = vld [vmem:[#allocation2 + $0x233c] sm:$0xf]
    %v2706 = vld [vmem:[#allocation2 + $0x2340] sm:$0xf]
    %v2707 = vld [vmem:[#allocation2 + $0x2344] sm:$0xf]
    %v2708 = vld [vmem:[#allocation2 + $0x2348] sm:$0xf]
    %v2709 = vld [vmem:[#allocation2 + $0x234c] sm:$0xf]
    %v2710 = vld [vmem:[#allocation2 + $0x2350] sm:$0xf]
    %v2711 = vld [vmem:[#allocation2 + $0x2354] sm:$0xf]
    %v2712 = vld [vmem:[#allocation2 + $0x2358] sm:$0xf]
    %v2713 = vld [vmem:[#allocation2 + $0x235c] sm:$0xf]
    %v2714 = vld [vmem:[#allocation2 + $0x2360] sm:$0xf]
    %v2715 = vld [vmem:[#allocation2 + $0x2364] sm:$0xf]
    %v2716 = vld [vmem:[#allocation2 + $0x2368] sm:$0xf]
    %v2717 = vld [vmem:[#allocation2 + $0x236c] sm:$0xf]
    %v2718 = vld [vmem:[#allocation2 + $0x2370] sm:$0xf]
    %v2719 = vld [vmem:[#allocation2 + $0x2374] sm:$0xf]
    %v2720 = vld [vmem:[#allocation2 + $0x2378] sm:$0xf]
    %v2721 = vld [vmem:[#allocation2 + $0x237c] sm:$0xf]
    %v2722 = vld [vmem:[#allocation2 + $0x2380] sm:$0xf]
    %v2723 = vld [vmem:[#allocation2 + $0x2384] sm:$0xf]
    %v2724 = vld [vmem:[#allocation2 + $0x2388] sm:$0xf]
    %v2725 = vld [vmem:[#allocation2 + $0x238c] sm:$0xf]
    %v2726 = vld [vmem:[#allocation2 + $0x2390] sm:$0xf]
    %v2727 = vld [vmem:[#allocation2 + $0x2394] sm:$0xf]
    %v2728 = vld [vmem:[#allocation2 + $0x2398] sm:$0xf]
    %v2729 = vld [vmem:[#allocation2 + $0x239c] sm:$0xf]
    %v2730 = vld [vmem:[#allocation2 + $0x23a0] sm:$0xf]
    %v2731 = vld [vmem:[#allocation2 + $0x23a4] sm:$0xf]
    %v2732 = vld [vmem:[#allocation2 + $0x23a8] sm:$0xf]
    %v2733 = vld [vmem:[#allocation2 + $0x23ac] sm:$0xf]
    %v2734 = vld [vmem:[#allocation2 + $0x23b0] sm:$0xf]
    %v2735 = vld [vmem:[#allocation2 + $0x23b4] sm:$0xf]
    %v2736 = vld [vmem:[#allocation2 + $0x23b8] sm:$0xf]
    %v2737 = vld [vmem:[#allocation2 + $0x23bc] sm:$0xf]
    %v2738 = vld [vmem:[#allocation2 + $0x23c0] sm:$0xf]
    %v2739 = vld [vmem:[#allocation2 + $0x23c4] sm:$0xf]
    %v2740 = vld [vmem:[#allocation2 + $0x23c8] sm:$0xf]
    %v2741 = vld [vmem:[#allocation2 + $0x23cc] sm:$0xf]
    %v2742 = vld [vmem:[#allocation2 + $0x23d0] sm:$0xf]
    %v2743 = vld [vmem:[#allocation2 + $0x23d4] sm:$0xf]
    %v2744 = vld [vmem:[#allocation2 + $0x23d8] sm:$0xf]
    %v2745 = vld [vmem:[#allocation2 + $0x23dc] sm:$0xf]
    %v2746 = vld [vmem:[#allocation2 + $0x23e0] sm:$0xf]
    %v2747 = vld [vmem:[#allocation2 + $0x23e4] sm:$0xf]
    %v2748 = vld [vmem:[#allocation2 + $0x23e8] sm:$0xf]
    %v2749 = vld [vmem:[#allocation2 + $0x23ec] sm:$0xf]
    %v2750 = vld [vmem:[#allocation2 + $0x23f0] sm:$0xf]
    %v2751 = vld [vmem:[#allocation2 + $0x23f4] sm:$0xf]
    %v2752 = vld [vmem:[#allocation2 + $0x23f8] sm:$0xf]
    %v2753 = vld [vmem:[#allocation2 + $0x23fc] sm:$0xf]
    %v2754 = vld [vmem:[#allocation2 + $0x2400] sm:$0xf]
    %v2755 = vld [vmem:[#allocation2 + $0x2404] sm:$0xf]
    %v2756 = vld [vmem:[#allocation2 + $0x2408] sm:$0xf]
    %v2757 = vld [vmem:[#allocation2 + $0x240c] sm:$0xf]
    %v2758 = vld [vmem:[#allocation2 + $0x2410] sm:$0xf]
    %v2759 = vld [vmem:[#allocation2 + $0x2414] sm:$0xf]
    %v2760 = vld [vmem:[#allocation2 + $0x2418] sm:$0xf]
    %v2761 = vld [vmem:[#allocation2 + $0x241c] sm:$0xf]
    %v2762 = vld [vmem:[#allocation2 + $0x2420] sm:$0xf]
    %v2763 = vld [vmem:[#allocation2 + $0x2424] sm:$0xf]
    %v2764 = vld [vmem:[#allocation2 + $0x2428] sm:$0xf]
    %v2765 = vld [vmem:[#allocation2 + $0x242c] sm:$0xf]
    %v2766 = vld [vmem:[#allocation2 + $0x2430] sm:$0xf]
    %v2767 = vld [vmem:[#allocation2 + $0x2434] sm:$0xf]
    %v2768 = vld [vmem:[#allocation2 + $0x2438] sm:$0xf]
    %v2769 = vld [vmem:[#allocation2 + $0x243c] sm:$0xf]
    %v2770 = vld [vmem:[#allocation2 + $0x2440] sm:$0xf]
    %v2771 = vld [vmem:[#allocation2 + $0x2444] sm:$0xf]
    %v2772 = vld [vmem:[#allocation2 + $0x2448] sm:$0xf]
    %v2773 = vld [vmem:[#allocation2 + $0x244c] sm:$0xf]
    %v2774 = vld [vmem:[#allocation2 + $0x2450] sm:$0xf]
    %v2775 = vld [vmem:[#allocation2 + $0x2454] sm:$0xf]
    %v2776 = vld [vmem:[#allocation2 + $0x2458] sm:$0xf]
    %v2777 = vld [vmem:[#allocation2 + $0x245c] sm:$0xf]
    %v2778 = vld [vmem:[#allocation2 + $0x2460] sm:$0xf]
    %v2779 = vld [vmem:[#allocation2 + $0x2464] sm:$0xf]
    %v2780 = vld [vmem:[#allocation2 + $0x2468] sm:$0xf]
    %v2781 = vld [vmem:[#allocation2 + $0x246c] sm:$0xf]
    %v2782 = vld [vmem:[#allocation2 + $0x2470] sm:$0xf]
    %v2783 = vld [vmem:[#allocation2 + $0x2474] sm:$0xf]
    %v2784 = vld [vmem:[#allocation2 + $0x2478] sm:$0xf]
    %v2785 = vld [vmem:[#allocation2 + $0x247c] sm:$0xf]
    %v2786 = vld [vmem:[#allocation2 + $0x2480] sm:$0xf]
    %v2787 = vld [vmem:[#allocation2 + $0x2484] sm:$0xf]
    %v2788 = vld [vmem:[#allocation2 + $0x2488] sm:$0xf]
    %v2789 = vld [vmem:[#allocation2 + $0x248c] sm:$0xf]
    %v2790 = vld [vmem:[#allocation2 + $0x2490] sm:$0xf]
    %v2791 = vld [vmem:[#allocation2 + $0x2494] sm:$0xf]
    %v2792 = vld [vmem:[#allocation2 + $0x2498] sm:$0xf]
    %v2793 = vld [vmem:[#allocation2 + $0x249c] sm:$0xf]
    %v2794 = vld [vmem:[#allocation2 + $0x24a0] sm:$0xf]
    %v2795 = vld [vmem:[#allocation2 + $0x24a4] sm:$0xf]
    %v2796 = vld [vmem:[#allocation2 + $0x24a8] sm:$0xf]
    %v2797 = vld [vmem:[#allocation2 + $0x24ac] sm:$0xf]
    %v2798 = vld [vmem:[#allocation2 + $0x24b0] sm:$0xf]
    %v2799 = vld [vmem:[#allocation2 + $0x24b4] sm:$0xf]
    %v2800 = vld [vmem:[#allocation2 + $0x24b8] sm:$0xf]
    %v2801 = vld [vmem:[#allocation2 + $0x24bc] sm:$0xf]
    %v2802 = vld [vmem:[#allocation2 + $0x24c0] sm:$0xf]
    %v2803 = vld [vmem:[#allocation2 + $0x24c4] sm:$0xf]
    %v2804 = vld [vmem:[#allocation2 + $0x24c8] sm:$0xf]
    %v2805 = vld [vmem:[#allocation2 + $0x24cc] sm:$0xf]
    %v2806 = vld [vmem:[#allocation2 + $0x24d0] sm:$0xf]
    %v2807 = vld [vmem:[#allocation2 + $0x24d4] sm:$0xf]
    %v2808 = vld [vmem:[#allocation2 + $0x24d8] sm:$0xf]
    %v2809 = vld [vmem:[#allocation2 + $0x24dc] sm:$0xf]
    %v2810 = vld [vmem:[#allocation2 + $0x24e0] sm:$0xf]
    %v2811 = vld [vmem:[#allocation2 + $0x24e4] sm:$0xf]
    %v2812 = vld [vmem:[#allocation2 + $0x24e8] sm:$0xf]
    %v2813 = vld [vmem:[#allocation2 + $0x24ec] sm:$0xf]
    %v2814 = vld [vmem:[#allocation2 + $0x24f0] sm:$0xf]
    %v2815 = vld [vmem:[#allocation2 + $0x24f4] sm:$0xf]
    %v2816 = vld [vmem:[#allocation2 + $0x24f8] sm:$0xf]
    %v2817 = vld [vmem:[#allocation2 + $0x24fc] sm:$0xf]
    %v2818 = vld [vmem:[#allocation2 + $0x2500] sm:$0xf]
    %v2819 = vld [vmem:[#allocation2 + $0x2504] sm:$0xf]
    %v2820 = vld [vmem:[#allocation2 + $0x2508] sm:$0xf]
    %v2821 = vld [vmem:[#allocation2 + $0x250c] sm:$0xf]
    %v2822 = vld [vmem:[#allocation2 + $0x2510] sm:$0xf]
    %v2823 = vld [vmem:[#allocation2 + $0x2514] sm:$0xf]
    %v2824 = vld [vmem:[#allocation2 + $0x2518] sm:$0xf]
    %v2825 = vld [vmem:[#allocation2 + $0x251c] sm:$0xf]
    %v2826 = vld [vmem:[#allocation2 + $0x2520] sm:$0xf]
    %v2827 = vld [vmem:[#allocation2 + $0x2524] sm:$0xf]
    %v2828 = vld [vmem:[#allocation2 + $0x2528] sm:$0xf]
    %v2829 = vld [vmem:[#allocation2 + $0x252c] sm:$0xf]
    %v2830 = vld [vmem:[#allocation2 + $0x2530] sm:$0xf]
    %v2831 = vld [vmem:[#allocation2 + $0x2534] sm:$0xf]
    %v2832 = vld [vmem:[#allocation2 + $0x2538] sm:$0xf]
    %v2833 = vld [vmem:[#allocation2 + $0x253c] sm:$0xf]
    %v2834 = vld [vmem:[#allocation2 + $0x2540] sm:$0xf]
    %v2835 = vld [vmem:[#allocation2 + $0x2544] sm:$0xf]
    %v2836 = vld [vmem:[#allocation2 + $0x2548] sm:$0xf]
    %v2837 = vld [vmem:[#allocation2 + $0x254c] sm:$0xf]
    %v2838 = vld [vmem:[#allocation2 + $0x2550] sm:$0xf]
    %v2839 = vld [vmem:[#allocation2 + $0x2554] sm:$0xf]
    %v2840 = vld [vmem:[#allocation2 + $0x2558] sm:$0xf]
    %v2841 = vld [vmem:[#allocation2 + $0x255c] sm:$0xf]
    %v2842 = vld [vmem:[#allocation2 + $0x2560] sm:$0xf]
    %v2843 = vld [vmem:[#allocation2 + $0x2564] sm:$0xf]
    %v2844 = vld [vmem:[#allocation2 + $0x2568] sm:$0xf]
    %v2845 = vld [vmem:[#allocation2 + $0x256c] sm:$0xf]
    %v2846 = vld [vmem:[#allocation2 + $0x2570] sm:$0xf]
    %v2847 = vld [vmem:[#allocation2 + $0x2574] sm:$0xf]
    %v2848 = vld [vmem:[#allocation2 + $0x2578] sm:$0xf]
    %v2849 = vld [vmem:[#allocation2 + $0x257c] sm:$0xf]
    %v2850 = vld [vmem:[#allocation5] sm:$0x1]
    %v2852 = vperm.slane %v2850, 0
    %v5254 = vunpack.c.l.b16 %v450
    %v5255 = vunpack.c.l.b16 %v451
    %v5256 = vunpack.c.l.b16 %v452
    %v5257 = vunpack.c.l.b16 %v453
    %v5258 = vunpack.c.l.b16 %v454
    %v5259 = vunpack.c.l.b16 %v455
    %v5260 = vunpack.c.l.b16 %v456
    %v5261 = vunpack.c.l.b16 %v457
    %v5262 = vunpack.c.l.b16 %v458
    %v5263 = vunpack.c.l.b16 %v459
    %v5264 = vunpack.c.l.b16 %v460
    %v5265 = vunpack.c.l.b16 %v461
    %v5266 = vunpack.c.l.b16 %v462
    %v5267 = vunpack.c.l.b16 %v463
    %v5268 = vunpack.c.l.b16 %v464
    %v5269 = vunpack.c.l.b16 %v465
    %v5270 = vunpack.c.l.b16 %v466
    %v5271 = vunpack.c.l.b16 %v467
    %v5272 = vunpack.c.l.b16 %v468
    %v5273 = vunpack.c.l.b16 %v469
    %v5274 = vunpack.c.l.b16 %v470
    %v5275 = vunpack.c.l.b16 %v471
    %v5276 = vunpack.c.l.b16 %v472
    %v5277 = vunpack.c.l.b16 %v473
    %v5278 = vunpack.c.l.b16 %v474
    %v5279 = vunpack.c.l.b16 %v475
    %v5280 = vunpack.c.l.b16 %v476
    %v5281 = vunpack.c.l.b16 %v477
    %v5282 = vunpack.c.l.b16 %v478
    %v5283 = vunpack.c.l.b16 %v479
    %v5284 = vunpack.c.l.b16 %v480
    %v5285 = vunpack.c.l.b16 %v481
    %v5286 = vunpack.c.l.b16 %v482
    %v5287 = vunpack.c.l.b16 %v483
    %v5288 = vunpack.c.l.b16 %v484
    %v5289 = vunpack.c.l.b16 %v485
    %v5290 = vunpack.c.l.b16 %v486
    %v5291 = vunpack.c.l.b16 %v487
    %v5292 = vunpack.c.l.b16 %v488
    %v5293 = vunpack.c.l.b16 %v489
    %v5294 = vunpack.c.l.b16 %v490
    %v5295 = vunpack.c.l.b16 %v491
    %v5296 = vunpack.c.l.b16 %v492
    %v5297 = vunpack.c.l.b16 %v493
    %v5298 = vunpack.c.l.b16 %v494
    %v5299 = vunpack.c.l.b16 %v495
    %v5300 = vunpack.c.l.b16 %v496
    %v5301 = vunpack.c.l.b16 %v497
    %v5302 = vunpack.c.l.b16 %v498
    %v5303 = vunpack.c.l.b16 %v499
    %v5304 = vunpack.c.l.b16 %v500
    %v5305 = vunpack.c.l.b16 %v501
    %v5306 = vunpack.c.l.b16 %v502
    %v5307 = vunpack.c.l.b16 %v503
    %v5308 = vunpack.c.l.b16 %v504
    %v5309 = vunpack.c.l.b16 %v505
    %v5310 = vunpack.c.l.b16 %v506
    %v5311 = vunpack.c.l.b16 %v507
    %v5312 = vunpack.c.l.b16 %v508
    %v5313 = vunpack.c.l.b16 %v509
    %v5314 = vunpack.c.l.b16 %v510
    %v5315 = vunpack.c.l.b16 %v511
    %v5316 = vunpack.c.l.b16 %v512
    %v5317 = vunpack.c.l.b16 %v513
    %v5318 = vunpack.c.l.b16 %v514
    %v5319 = vunpack.c.l.b16 %v515
    %v5320 = vunpack.c.l.b16 %v516
    %v5321 = vunpack.c.l.b16 %v517
    %v5322 = vunpack.c.l.b16 %v518
    %v5323 = vunpack.c.l.b16 %v519
    %v5324 = vunpack.c.l.b16 %v520
    %v5325 = vunpack.c.l.b16 %v521
    %v5326 = vunpack.c.l.b16 %v522
    %v5327 = vunpack.c.l.b16 %v523
    %v5328 = vunpack.c.l.b16 %v524
    %v5329 = vunpack.c.l.b16 %v525
    %v5330 = vunpack.c.l.b16 %v526
    %v5331 = vunpack.c.l.b16 %v527
    %v5332 = vunpack.c.l.b16 %v528
    %v5333 = vunpack.c.l.b16 %v529
    %v5334 = vunpack.c.l.b16 %v530
    %v5335 = vunpack.c.l.b16 %v531
    %v5336 = vunpack.c.l.b16 %v532
    %v5337 = vunpack.c.l.b16 %v533
    %v5338 = vunpack.c.l.b16 %v534
    %v5339 = vunpack.c.l.b16 %v535
    %v5340 = vunpack.c.l.b16 %v536
    %v5341 = vunpack.c.l.b16 %v537
    %v5342 = vunpack.c.l.b16 %v538
    %v5343 = vunpack.c.l.b16 %v539
    %v5344 = vunpack.c.l.b16 %v540
    %v5345 = vunpack.c.l.b16 %v541
    %v5346 = vunpack.c.l.b16 %v542
    %v5347 = vunpack.c.l.b16 %v543
    %v5348 = vunpack.c.l.b16 %v544
    %v5349 = vunpack.c.l.b16 %v545
    %v5350 = vunpack.c.l.b16 %v546
    %v5351 = vunpack.c.l.b16 %v547
    %v5352 = vunpack.c.l.b16 %v548
    %v5353 = vunpack.c.l.b16 %v549
    %v5354 = vunpack.c.l.b16 %v550
    %v5355 = vunpack.c.l.b16 %v551
    %v5356 = vunpack.c.l.b16 %v552
    %v5357 = vunpack.c.l.b16 %v553
    %v5358 = vunpack.c.l.b16 %v554
    %v5359 = vunpack.c.l.b16 %v555
    %v5360 = vunpack.c.l.b16 %v556
    %v5361 = vunpack.c.l.b16 %v557
    %v5362 = vunpack.c.l.b16 %v558
    %v5363 = vunpack.c.l.b16 %v559
    %v5364 = vunpack.c.l.b16 %v560
    %v5365 = vunpack.c.l.b16 %v561
    %v5366 = vunpack.c.l.b16 %v562
    %v5367 = vunpack.c.l.b16 %v563
    %v5368 = vunpack.c.l.b16 %v564
    %v5369 = vunpack.c.l.b16 %v565
    %v5370 = vunpack.c.l.b16 %v566
    %v5371 = vunpack.c.l.b16 %v567
    %v5372 = vunpack.c.l.b16 %v568
    %v5373 = vunpack.c.l.b16 %v569
    %v5374 = vunpack.c.l.b16 %v570
    %v5375 = vunpack.c.l.b16 %v571
    %v5376 = vunpack.c.l.b16 %v572
    %v5377 = vunpack.c.l.b16 %v573
    %v5378 = vunpack.c.l.b16 %v574
    %v5379 = vunpack.c.l.b16 %v575
    %v5380 = vunpack.c.l.b16 %v576
    %v5381 = vunpack.c.l.b16 %v577
    %v5382 = vunpack.c.l.b16 %v578
    %v5383 = vunpack.c.l.b16 %v579
    %v5384 = vunpack.c.l.b16 %v580
    %v5385 = vunpack.c.l.b16 %v581
    %v5386 = vunpack.c.l.b16 %v582
    %v5387 = vunpack.c.l.b16 %v583
    %v5388 = vunpack.c.l.b16 %v584
    %v5389 = vunpack.c.l.b16 %v585
    %v5390 = vunpack.c.l.b16 %v586
    %v5391 = vunpack.c.l.b16 %v587
    %v5392 = vunpack.c.l.b16 %v588
    %v5393 = vunpack.c.l.b16 %v589
    %v5394 = vunpack.c.l.b16 %v590
    %v5395 = vunpack.c.l.b16 %v591
    %v5396 = vunpack.c.l.b16 %v592
    %v5397 = vunpack.c.l.b16 %v593
    %v5398 = vunpack.c.l.b16 %v594
    %v5399 = vunpack.c.l.b16 %v595
    %v5400 = vunpack.c.l.b16 %v596
    %v5401 = vunpack.c.l.b16 %v597
    %v5402 = vunpack.c.l.b16 %v598
    %v5403 = vunpack.c.l.b16 %v599
    %v5404 = vunpack.c.l.b16 %v600
    %v5405 = vunpack.c.l.b16 %v601
    %v5406 = vunpack.c.l.b16 %v602
    %v5407 = vunpack.c.l.b16 %v603
    %v5408 = vunpack.c.l.b16 %v604
    %v5409 = vunpack.c.l.b16 %v605
    %v5410 = vunpack.c.l.b16 %v606
    %v5411 = vunpack.c.l.b16 %v607
    %v5412 = vunpack.c.l.b16 %v608
    %v5413 = vunpack.c.l.b16 %v609
    %v5414 = vunpack.c.l.b16 %v610
    %v5415 = vunpack.c.l.b16 %v611
    %v5416 = vunpack.c.l.b16 %v612
    %v5417 = vunpack.c.l.b16 %v613
    %v5418 = vunpack.c.l.b16 %v614
    %v5419 = vunpack.c.l.b16 %v615
    %v5420 = vunpack.c.l.b16 %v616
    %v5421 = vunpack.c.l.b16 %v617
    %v5422 = vunpack.c.l.b16 %v618
    %v5423 = vunpack.c.l.b16 %v619
    %v5424 = vunpack.c.l.b16 %v620
    %v5425 = vunpack.c.l.b16 %v621
    %v5426 = vunpack.c.l.b16 %v622
    %v5427 = vunpack.c.l.b16 %v623
    %v5428 = vunpack.c.l.b16 %v624
    %v5429 = vunpack.c.l.b16 %v625
    %v5430 = vunpack.c.l.b16 %v626
    %v5431 = vunpack.c.l.b16 %v627
    %v5432 = vunpack.c.l.b16 %v628
    %v5433 = vunpack.c.l.b16 %v629
    %v5434 = vunpack.c.l.b16 %v630
    %v5435 = vunpack.c.l.b16 %v631
    %v5436 = vunpack.c.l.b16 %v632
    %v5437 = vunpack.c.l.b16 %v633
    %v5438 = vunpack.c.l.b16 %v634
    %v5439 = vunpack.c.l.b16 %v635
    %v5440 = vunpack.c.l.b16 %v636
    %v5441 = vunpack.c.l.b16 %v637
    %v5442 = vunpack.c.l.b16 %v638
    %v5443 = vunpack.c.l.b16 %v639
    %v5444 = vunpack.c.l.b16 %v640
    %v5445 = vunpack.c.l.b16 %v641
    %v5446 = vunpack.c.l.b16 %v642
    %v5447 = vunpack.c.l.b16 %v643
    %v5448 = vunpack.c.l.b16 %v644
    %v5449 = vunpack.c.l.b16 %v645
    %v5450 = vunpack.c.l.b16 %v646
    %v5451 = vunpack.c.l.b16 %v647
    %v5452 = vunpack.c.l.b16 %v648
    %v5453 = vunpack.c.l.b16 %v649
    %v5454 = vunpack.c.l.b16 %v650
    %v5455 = vunpack.c.l.b16 %v651
    %v5456 = vunpack.c.l.b16 %v652
    %v5457 = vunpack.c.l.b16 %v653
    %v5458 = vunpack.c.l.b16 %v654
    %v5459 = vunpack.c.l.b16 %v655
    %v5460 = vunpack.c.l.b16 %v656
    %v5461 = vunpack.c.l.b16 %v657
    %v5462 = vunpack.c.l.b16 %v658
    %v5463 = vunpack.c.l.b16 %v659
    %v5464 = vunpack.c.l.b16 %v660
    %v5465 = vunpack.c.l.b16 %v661
    %v5466 = vunpack.c.l.b16 %v662
    %v5467 = vunpack.c.l.b16 %v663
    %v5468 = vunpack.c.l.b16 %v664
    %v5469 = vunpack.c.l.b16 %v665
    %v5470 = vunpack.c.l.b16 %v666
    %v5471 = vunpack.c.l.b16 %v667
    %v5472 = vunpack.c.l.b16 %v668
    %v5473 = vunpack.c.l.b16 %v669
    %v5474 = vunpack.c.l.b16 %v670
    %v5475 = vunpack.c.l.b16 %v671
    %v5476 = vunpack.c.l.b16 %v672
    %v5477 = vunpack.c.l.b16 %v673
    %v5478 = vunpack.c.l.b16 %v674
    %v5479 = vunpack.c.l.b16 %v675
    %v5480 = vunpack.c.l.b16 %v676
    %v5481 = vunpack.c.l.b16 %v677
    %v5482 = vunpack.c.l.b16 %v678
    %v5483 = vunpack.c.l.b16 %v679
    %v5484 = vunpack.c.l.b16 %v680
    %v5485 = vunpack.c.l.b16 %v681
    %v5486 = vunpack.c.l.b16 %v682
    %v5487 = vunpack.c.l.b16 %v683
    %v5488 = vunpack.c.l.b16 %v684
    %v5489 = vunpack.c.l.b16 %v685
    %v5490 = vunpack.c.l.b16 %v686
    %v5491 = vunpack.c.l.b16 %v687
    %v5492 = vunpack.c.l.b16 %v688
    %v5493 = vunpack.c.l.b16 %v689
    %v5494 = vunpack.c.l.b16 %v690
    %v5495 = vunpack.c.l.b16 %v691
    %v5496 = vunpack.c.l.b16 %v692
    %v5497 = vunpack.c.l.b16 %v693
    %v5498 = vunpack.c.l.b16 %v694
    %v5499 = vunpack.c.l.b16 %v695
    %v5500 = vunpack.c.l.b16 %v696
    %v5501 = vunpack.c.l.b16 %v697
    %v5502 = vunpack.c.l.b16 %v698
    %v5503 = vunpack.c.l.b16 %v699
    %v5504 = vunpack.c.l.b16 %v700
    %v5505 = vunpack.c.l.b16 %v701
    %v5506 = vunpack.c.l.b16 %v702
    %v5507 = vunpack.c.l.b16 %v703
    %v5508 = vunpack.c.l.b16 %v704
    %v5509 = vunpack.c.l.b16 %v705
    %v5510 = vunpack.c.l.b16 %v706
    %v5511 = vunpack.c.l.b16 %v707
    %v5512 = vunpack.c.l.b16 %v708
    %v5513 = vunpack.c.l.b16 %v709
    %v5514 = vunpack.c.l.b16 %v710
    %v5515 = vunpack.c.l.b16 %v711
    %v5516 = vunpack.c.l.b16 %v712
    %v5517 = vunpack.c.l.b16 %v713
    %v5518 = vunpack.c.l.b16 %v714
    %v5519 = vunpack.c.l.b16 %v715
    %v5520 = vunpack.c.l.b16 %v716
    %v5521 = vunpack.c.l.b16 %v717
    %v5522 = vunpack.c.l.b16 %v718
    %v5523 = vunpack.c.l.b16 %v719
    %v5524 = vunpack.c.l.b16 %v720
    %v5525 = vunpack.c.l.b16 %v721
    %v5526 = vunpack.c.l.b16 %v722
    %v5527 = vunpack.c.l.b16 %v723
    %v5528 = vunpack.c.l.b16 %v724
    %v5529 = vunpack.c.l.b16 %v725
    %v5530 = vunpack.c.l.b16 %v726
    %v5531 = vunpack.c.l.b16 %v727
    %v5532 = vunpack.c.l.b16 %v728
    %v5533 = vunpack.c.l.b16 %v729
    %v5534 = vunpack.c.l.b16 %v730
    %v5535 = vunpack.c.l.b16 %v731
    %v5536 = vunpack.c.l.b16 %v732
    %v5537 = vunpack.c.l.b16 %v733
    %v5538 = vunpack.c.l.b16 %v734
    %v5539 = vunpack.c.l.b16 %v735
    %v5540 = vunpack.c.l.b16 %v736
    %v5541 = vunpack.c.l.b16 %v737
    %v5542 = vunpack.c.l.b16 %v738
    %v5543 = vunpack.c.l.b16 %v739
    %v5544 = vunpack.c.l.b16 %v740
    %v5545 = vunpack.c.l.b16 %v741
    %v5546 = vunpack.c.l.b16 %v742
    %v5547 = vunpack.c.l.b16 %v743
    %v5548 = vunpack.c.l.b16 %v744
    %v5549 = vunpack.c.l.b16 %v745
    %v5550 = vunpack.c.l.b16 %v746
    %v5551 = vunpack.c.l.b16 %v747
    %v5552 = vunpack.c.l.b16 %v748
    %v5553 = vunpack.c.l.b16 %v749
    %v5554 = vunpack.c.l.b16 %v750
    %v5555 = vunpack.c.l.b16 %v751
    %v5556 = vunpack.c.l.b16 %v752
    %v5557 = vunpack.c.l.b16 %v753
    %v5558 = vunpack.c.l.b16 %v754
    %v5559 = vunpack.c.l.b16 %v755
    %v5560 = vunpack.c.l.b16 %v756
    %v5561 = vunpack.c.l.b16 %v757
    %v5562 = vunpack.c.l.b16 %v758
    %v5563 = vunpack.c.l.b16 %v759
    %v5564 = vunpack.c.l.b16 %v760
    %v5565 = vunpack.c.l.b16 %v761
    %v5566 = vunpack.c.l.b16 %v762
    %v5567 = vunpack.c.l.b16 %v763
    %v5568 = vunpack.c.l.b16 %v764
    %v5569 = vunpack.c.l.b16 %v765
    %v5570 = vunpack.c.l.b16 %v766
    %v5571 = vunpack.c.l.b16 %v767
    %v5572 = vunpack.c.l.b16 %v768
    %v5573 = vunpack.c.l.b16 %v769
    %v5574 = vunpack.c.l.b16 %v770
    %v5575 = vunpack.c.l.b16 %v771
    %v5576 = vunpack.c.l.b16 %v772
    %v5577 = vunpack.c.l.b16 %v773
    %v5578 = vunpack.c.l.b16 %v774
    %v5579 = vunpack.c.l.b16 %v775
    %v5580 = vunpack.c.l.b16 %v776
    %v5581 = vunpack.c.l.b16 %v777
    %v5582 = vunpack.c.l.b16 %v778
    %v5583 = vunpack.c.l.b16 %v779
    %v5584 = vunpack.c.l.b16 %v780
    %v5585 = vunpack.c.l.b16 %v781
    %v5586 = vunpack.c.l.b16 %v782
    %v5587 = vunpack.c.l.b16 %v783
    %v5588 = vunpack.c.l.b16 %v784
    %v5589 = vunpack.c.l.b16 %v785
    %v5590 = vunpack.c.l.b16 %v786
    %v5591 = vunpack.c.l.b16 %v787
    %v5592 = vunpack.c.l.b16 %v788
    %v5593 = vunpack.c.l.b16 %v789
    %v5594 = vunpack.c.l.b16 %v790
    %v5595 = vunpack.c.l.b16 %v791
    %v5596 = vunpack.c.l.b16 %v792
    %v5597 = vunpack.c.l.b16 %v793
    %v5598 = vunpack.c.l.b16 %v794
    %v5599 = vunpack.c.l.b16 %v795
    %v5600 = vunpack.c.l.b16 %v796
    %v5601 = vunpack.c.l.b16 %v797
    %v5602 = vunpack.c.l.b16 %v798
    %v5603 = vunpack.c.l.b16 %v799
    %v5604 = vunpack.c.l.b16 %v800
    %v5605 = vunpack.c.l.b16 %v801
    %v5606 = vunpack.c.l.b16 %v802
    %v5607 = vunpack.c.l.b16 %v803
    %v5608 = vunpack.c.l.b16 %v804
    %v5609 = vunpack.c.l.b16 %v805
    %v5610 = vunpack.c.l.b16 %v806
    %v5611 = vunpack.c.l.b16 %v807
    %v5612 = vunpack.c.l.b16 %v808
    %v5613 = vunpack.c.l.b16 %v809
    %v5614 = vunpack.c.l.b16 %v810
    %v5615 = vunpack.c.l.b16 %v811
    %v5616 = vunpack.c.l.b16 %v812
    %v5617 = vunpack.c.l.b16 %v813
    %v5618 = vunpack.c.l.b16 %v814
    %v5619 = vunpack.c.l.b16 %v815
    %v5620 = vunpack.c.l.b16 %v816
    %v5621 = vunpack.c.l.b16 %v817
    %v5622 = vunpack.c.l.b16 %v818
    %v5623 = vunpack.c.l.b16 %v819
    %v5624 = vunpack.c.l.b16 %v820
    %v5625 = vunpack.c.l.b16 %v821
    %v5626 = vunpack.c.l.b16 %v822
    %v5627 = vunpack.c.l.b16 %v823
    %v5628 = vunpack.c.l.b16 %v824
    %v5629 = vunpack.c.l.b16 %v825
    %v5630 = vunpack.c.l.b16 %v826
    %v5631 = vunpack.c.l.b16 %v827
    %v5632 = vunpack.c.l.b16 %v828
    %v5633 = vunpack.c.l.b16 %v829
    %v5634 = vunpack.c.l.b16 %v830
    %v5635 = vunpack.c.l.b16 %v831
    %v5636 = vunpack.c.l.b16 %v832
    %v5637 = vunpack.c.l.b16 %v833
    %v5638 = vunpack.c.l.b16 %v834
    %v5639 = vunpack.c.l.b16 %v835
    %v5640 = vunpack.c.l.b16 %v836
    %v5641 = vunpack.c.l.b16 %v837
    %v5642 = vunpack.c.l.b16 %v838
    %v5643 = vunpack.c.l.b16 %v839
    %v5644 = vunpack.c.l.b16 %v840
    %v5645 = vunpack.c.l.b16 %v841
    %v5646 = vunpack.c.l.b16 %v842
    %v5647 = vunpack.c.l.b16 %v843
    %v5648 = vunpack.c.l.b16 %v844
    %v5649 = vunpack.c.l.b16 %v845
    %v5650 = vunpack.c.l.b16 %v846
    %v5651 = vunpack.c.l.b16 %v847
    %v5652 = vunpack.c.l.b16 %v848
    %v5653 = vunpack.c.l.b16 %v849
    %v5654 = vunpack.c.l.b16 %v850
    %v5655 = vunpack.c.l.b16 %v851
    %v5656 = vunpack.c.l.b16 %v852
    %v5657 = vunpack.c.l.b16 %v853
    %v5658 = vunpack.c.l.b16 %v854
    %v5659 = vunpack.c.l.b16 %v855
    %v5660 = vunpack.c.l.b16 %v856
    %v5661 = vunpack.c.l.b16 %v857
    %v5662 = vunpack.c.l.b16 %v858
    %v5663 = vunpack.c.l.b16 %v859
    %v5664 = vunpack.c.l.b16 %v860
    %v5665 = vunpack.c.l.b16 %v861
    %v5666 = vunpack.c.l.b16 %v862
    %v5667 = vunpack.c.l.b16 %v863
    %v5668 = vunpack.c.l.b16 %v864
    %v5669 = vunpack.c.l.b16 %v865
    %v5670 = vunpack.c.l.b16 %v866
    %v5671 = vunpack.c.l.b16 %v867
    %v5672 = vunpack.c.l.b16 %v868
    %v5673 = vunpack.c.l.b16 %v869
    %v5674 = vunpack.c.l.b16 %v870
    %v5675 = vunpack.c.l.b16 %v871
    %v5676 = vunpack.c.l.b16 %v872
    %v5677 = vunpack.c.l.b16 %v873
    %v5678 = vunpack.c.l.b16 %v874
    %v5679 = vunpack.c.l.b16 %v875
    %v5680 = vunpack.c.l.b16 %v876
    %v5681 = vunpack.c.l.b16 %v877
    %v5682 = vunpack.c.l.b16 %v878
    %v5683 = vunpack.c.l.b16 %v879
    %v5684 = vunpack.c.l.b16 %v880
    %v5685 = vunpack.c.l.b16 %v881
    %v5686 = vunpack.c.l.b16 %v882
    %v5687 = vunpack.c.l.b16 %v883
    %v5688 = vunpack.c.l.b16 %v884
    %v5689 = vunpack.c.l.b16 %v885
    %v5690 = vunpack.c.l.b16 %v886
    %v5691 = vunpack.c.l.b16 %v887
    %v5692 = vunpack.c.l.b16 %v888
    %v5693 = vunpack.c.l.b16 %v889
    %v5694 = vunpack.c.l.b16 %v890
    %v5695 = vunpack.c.l.b16 %v891
    %v5696 = vunpack.c.l.b16 %v892
    %v5697 = vunpack.c.l.b16 %v893
    %v5698 = vunpack.c.l.b16 %v894
    %v5699 = vunpack.c.l.b16 %v895
    %v5700 = vunpack.c.l.b16 %v896
    %v5701 = vunpack.c.l.b16 %v897
    %v5702 = vunpack.c.l.b16 %v898
    %v5703 = vunpack.c.l.b16 %v899
    %v5704 = vunpack.c.l.b16 %v900
    %v5705 = vunpack.c.l.b16 %v901
    %v5706 = vunpack.c.l.b16 %v902
    %v5707 = vunpack.c.l.b16 %v903
    %v5708 = vunpack.c.l.b16 %v904
    %v5709 = vunpack.c.l.b16 %v905
    %v5710 = vunpack.c.l.b16 %v906
    %v5711 = vunpack.c.l.b16 %v907
    %v5712 = vunpack.c.l.b16 %v908
    %v5713 = vunpack.c.l.b16 %v909
    %v5714 = vunpack.c.l.b16 %v910
    %v5715 = vunpack.c.l.b16 %v911
    %v5716 = vunpack.c.l.b16 %v912
    %v5717 = vunpack.c.l.b16 %v913
    %v5718 = vunpack.c.l.b16 %v914
    %v5719 = vunpack.c.l.b16 %v915
    %v5720 = vunpack.c.l.b16 %v916
    %v5721 = vunpack.c.l.b16 %v917
    %v5722 = vunpack.c.l.b16 %v918
    %v5723 = vunpack.c.l.b16 %v919
    %v5724 = vunpack.c.l.b16 %v920
    %v5725 = vunpack.c.l.b16 %v921
    %v5726 = vunpack.c.l.b16 %v922
    %v5727 = vunpack.c.l.b16 %v923
    %v5728 = vunpack.c.l.b16 %v924
    %v5729 = vunpack.c.l.b16 %v925
    %v5730 = vunpack.c.l.b16 %v926
    %v5731 = vunpack.c.l.b16 %v927
    %v5732 = vunpack.c.l.b16 %v928
    %v5733 = vunpack.c.l.b16 %v929
    %v5734 = vunpack.c.l.b16 %v930
    %v5735 = vunpack.c.l.b16 %v931
    %v5736 = vunpack.c.l.b16 %v932
    %v5737 = vunpack.c.l.b16 %v933
    %v5738 = vunpack.c.l.b16 %v934
    %v5739 = vunpack.c.l.b16 %v935
    %v5740 = vunpack.c.l.b16 %v936
    %v5741 = vunpack.c.l.b16 %v937
    %v5742 = vunpack.c.l.b16 %v938
    %v5743 = vunpack.c.l.b16 %v939
    %v5744 = vunpack.c.l.b16 %v940
    %v5745 = vunpack.c.l.b16 %v941
    %v5746 = vunpack.c.l.b16 %v942
    %v5747 = vunpack.c.l.b16 %v943
    %v5748 = vunpack.c.l.b16 %v944
    %v5749 = vunpack.c.l.b16 %v945
    %v5750 = vunpack.c.l.b16 %v946
    %v5751 = vunpack.c.l.b16 %v947
    %v5752 = vunpack.c.l.b16 %v948
    %v5753 = vunpack.c.l.b16 %v949
    %v5754 = vunpack.c.l.b16 %v950
    %v5755 = vunpack.c.l.b16 %v951
    %v5756 = vunpack.c.l.b16 %v952
    %v5757 = vunpack.c.l.b16 %v953
    %v5758 = vunpack.c.l.b16 %v954
    %v5759 = vunpack.c.l.b16 %v955
    %v5760 = vunpack.c.l.b16 %v956
    %v5761 = vunpack.c.l.b16 %v957
    %v5762 = vunpack.c.l.b16 %v958
    %v5763 = vunpack.c.l.b16 %v959
    %v5764 = vunpack.c.l.b16 %v960
    %v5765 = vunpack.c.l.b16 %v961
    %v5766 = vunpack.c.l.b16 %v962
    %v5767 = vunpack.c.l.b16 %v963
    %v5768 = vunpack.c.l.b16 %v964
    %v5769 = vunpack.c.l.b16 %v965
    %v5770 = vunpack.c.l.b16 %v966
    %v5771 = vunpack.c.l.b16 %v967
    %v5772 = vunpack.c.l.b16 %v968
    %v5773 = vunpack.c.l.b16 %v969
    %v5774 = vunpack.c.l.b16 %v970
    %v5775 = vunpack.c.l.b16 %v971
    %v5776 = vunpack.c.l.b16 %v972
    %v5777 = vunpack.c.l.b16 %v973
    %v5778 = vunpack.c.l.b16 %v974
    %v5779 = vunpack.c.l.b16 %v975
    %v5780 = vunpack.c.l.b16 %v976
    %v5781 = vunpack.c.l.b16 %v977
    %v5782 = vunpack.c.l.b16 %v978
    %v5783 = vunpack.c.l.b16 %v979
    %v5784 = vunpack.c.l.b16 %v980
    %v5785 = vunpack.c.l.b16 %v981
    %v5786 = vunpack.c.l.b16 %v982
    %v5787 = vunpack.c.l.b16 %v983
    %v5788 = vunpack.c.l.b16 %v984
    %v5789 = vunpack.c.l.b16 %v985
    %v5790 = vunpack.c.l.b16 %v986
    %v5791 = vunpack.c.l.b16 %v987
    %v5792 = vunpack.c.l.b16 %v988
    %v5793 = vunpack.c.l.b16 %v989
    %v5794 = vunpack.c.l.b16 %v990
    %v5795 = vunpack.c.l.b16 %v991
    %v5796 = vunpack.c.l.b16 %v992
    %v5797 = vunpack.c.l.b16 %v993
    %v5798 = vunpack.c.l.b16 %v994
    %v5799 = vunpack.c.l.b16 %v995
    %v5800 = vunpack.c.l.b16 %v996
    %v5801 = vunpack.c.l.b16 %v997
    %v5802 = vunpack.c.l.b16 %v998
    %v5803 = vunpack.c.l.b16 %v999
    %v5804 = vunpack.c.l.b16 %v1000
    %v5805 = vunpack.c.l.b16 %v1001
    %v5806 = vunpack.c.l.b16 %v1002
    %v5807 = vunpack.c.l.b16 %v1003
    %v5808 = vunpack.c.l.b16 %v1004
    %v5809 = vunpack.c.l.b16 %v1005
    %v5810 = vunpack.c.l.b16 %v1006
    %v5811 = vunpack.c.l.b16 %v1007
    %v5812 = vunpack.c.l.b16 %v1008
    %v5813 = vunpack.c.l.b16 %v1009
    %v5814 = vunpack.c.l.b16 %v1010
    %v5815 = vunpack.c.l.b16 %v1011
    %v5816 = vunpack.c.l.b16 %v1012
    %v5817 = vunpack.c.l.b16 %v1013
    %v5818 = vunpack.c.l.b16 %v1014
    %v5819 = vunpack.c.l.b16 %v1015
    %v5820 = vunpack.c.l.b16 %v1016
    %v5821 = vunpack.c.l.b16 %v1017
    %v5822 = vunpack.c.l.b16 %v1018
    %v5823 = vunpack.c.l.b16 %v1019
    %v5824 = vunpack.c.l.b16 %v1020
    %v5825 = vunpack.c.l.b16 %v1021
    %v5826 = vunpack.c.l.b16 %v1022
    %v5827 = vunpack.c.l.b16 %v1023
    %v5828 = vunpack.c.l.b16 %v1024
    %v5829 = vunpack.c.l.b16 %v1025
    %v5830 = vunpack.c.l.b16 %v1026
    %v5831 = vunpack.c.l.b16 %v1027
    %v5832 = vunpack.c.l.b16 %v1028
    %v5833 = vunpack.c.l.b16 %v1029
    %v5834 = vunpack.c.l.b16 %v1030
    %v5835 = vunpack.c.l.b16 %v1031
    %v5836 = vunpack.c.l.b16 %v1032
    %v5837 = vunpack.c.l.b16 %v1033
    %v5838 = vunpack.c.l.b16 %v1034
    %v5839 = vunpack.c.l.b16 %v1035
    %v5840 = vunpack.c.l.b16 %v1036
    %v5841 = vunpack.c.l.b16 %v1037
    %v5842 = vunpack.c.l.b16 %v1038
    %v5843 = vunpack.c.l.b16 %v1039
    %v5844 = vunpack.c.l.b16 %v1040
    %v5845 = vunpack.c.l.b16 %v1041
    %v5846 = vunpack.c.l.b16 %v1042
    %v5847 = vunpack.c.l.b16 %v1043
    %v5848 = vunpack.c.l.b16 %v1044
    %v5849 = vunpack.c.l.b16 %v1045
    %v5850 = vunpack.c.l.b16 %v1046
    %v5851 = vunpack.c.l.b16 %v1047
    %v5852 = vunpack.c.l.b16 %v1048
    %v5853 = vunpack.c.l.b16 %v1049
    %v5854 = vunpack.c.l.b16 %v1050
    %v5855 = vunpack.c.l.b16 %v1051
    %v5856 = vunpack.c.l.b16 %v1052
    %v5857 = vunpack.c.l.b16 %v1053
    %v5858 = vunpack.c.l.b16 %v1054
    %v5859 = vunpack.c.l.b16 %v1055
    %v5860 = vunpack.c.l.b16 %v1056
    %v5861 = vunpack.c.l.b16 %v1057
    %v5862 = vunpack.c.l.b16 %v1058
    %v5863 = vunpack.c.l.b16 %v1059
    %v5864 = vunpack.c.l.b16 %v1060
    %v5865 = vunpack.c.l.b16 %v1061
    %v5866 = vunpack.c.l.b16 %v1062
    %v5867 = vunpack.c.l.b16 %v1063
    %v5868 = vunpack.c.l.b16 %v1064
    %v5869 = vunpack.c.l.b16 %v1065
    %v5870 = vunpack.c.l.b16 %v1066
    %v5871 = vunpack.c.l.b16 %v1067
    %v5872 = vunpack.c.l.b16 %v1068
    %v5873 = vunpack.c.l.b16 %v1069
    %v5874 = vunpack.c.l.b16 %v1070
    %v5875 = vunpack.c.l.b16 %v1071
    %v5876 = vunpack.c.l.b16 %v1072
    %v5877 = vunpack.c.l.b16 %v1073
    %v5878 = vunpack.c.l.b16 %v1074
    %v5879 = vunpack.c.l.b16 %v1075
    %v5880 = vunpack.c.l.b16 %v1076
    %v5881 = vunpack.c.l.b16 %v1077
    %v5882 = vunpack.c.l.b16 %v1078
    %v5883 = vunpack.c.l.b16 %v1079
    %v5884 = vunpack.c.l.b16 %v1080
    %v5885 = vunpack.c.l.b16 %v1081
    %v5886 = vunpack.c.l.b16 %v1082
    %v5887 = vunpack.c.l.b16 %v1083
    %v5888 = vunpack.c.l.b16 %v1084
    %v5889 = vunpack.c.l.b16 %v1085
    %v5890 = vunpack.c.l.b16 %v1086
    %v5891 = vunpack.c.l.b16 %v1087
    %v5892 = vunpack.c.l.b16 %v1088
    %v5893 = vunpack.c.l.b16 %v1089
    %v5894 = vunpack.c.l.b16 %v1090
    %v5895 = vunpack.c.l.b16 %v1091
    %v5896 = vunpack.c.l.b16 %v1092
    %v5897 = vunpack.c.l.b16 %v1093
    %v5898 = vunpack.c.l.b16 %v1094
    %v5899 = vunpack.c.l.b16 %v1095
    %v5900 = vunpack.c.l.b16 %v1096
    %v5901 = vunpack.c.l.b16 %v1097
    %v5902 = vunpack.c.l.b16 %v1098
    %v5903 = vunpack.c.l.b16 %v1099
    %v5904 = vunpack.c.l.b16 %v1100
    %v5905 = vunpack.c.l.b16 %v1101
    %v5906 = vunpack.c.l.b16 %v1102
    %v5907 = vunpack.c.l.b16 %v1103
    %v5908 = vunpack.c.l.b16 %v1104
    %v5909 = vunpack.c.l.b16 %v1105
    %v5910 = vunpack.c.l.b16 %v1106
    %v5911 = vunpack.c.l.b16 %v1107
    %v5912 = vunpack.c.l.b16 %v1108
    %v5913 = vunpack.c.l.b16 %v1109
    %v5914 = vunpack.c.l.b16 %v1110
    %v5915 = vunpack.c.l.b16 %v1111
    %v5916 = vunpack.c.l.b16 %v1112
    %v5917 = vunpack.c.l.b16 %v1113
    %v5918 = vunpack.c.l.b16 %v1114
    %v5919 = vunpack.c.l.b16 %v1115
    %v5920 = vunpack.c.l.b16 %v1116
    %v5921 = vunpack.c.l.b16 %v1117
    %v5922 = vunpack.c.l.b16 %v1118
    %v5923 = vunpack.c.l.b16 %v1119
    %v5924 = vunpack.c.l.b16 %v1120
    %v5925 = vunpack.c.l.b16 %v1121
    %v5926 = vunpack.c.l.b16 %v1122
    %v5927 = vunpack.c.l.b16 %v1123
    %v5928 = vunpack.c.l.b16 %v1124
    %v5929 = vunpack.c.l.b16 %v1125
    %v5930 = vunpack.c.l.b16 %v1126
    %v5931 = vunpack.c.l.b16 %v1127
    %v5932 = vunpack.c.l.b16 %v1128
    %v5933 = vunpack.c.l.b16 %v1129
    %v5934 = vunpack.c.l.b16 %v1130
    %v5935 = vunpack.c.l.b16 %v1131
    %v5936 = vunpack.c.l.b16 %v1132
    %v5937 = vunpack.c.l.b16 %v1133
    %v5938 = vunpack.c.l.b16 %v1134
    %v5939 = vunpack.c.l.b16 %v1135
    %v5940 = vunpack.c.l.b16 %v1136
    %v5941 = vunpack.c.l.b16 %v1137
    %v5942 = vunpack.c.l.b16 %v1138
    %v5943 = vunpack.c.l.b16 %v1139
    %v5944 = vunpack.c.l.b16 %v1140
    %v5945 = vunpack.c.l.b16 %v1141
    %v5946 = vunpack.c.l.b16 %v1142
    %v5947 = vunpack.c.l.b16 %v1143
    %v5948 = vunpack.c.l.b16 %v1144
    %v5949 = vunpack.c.l.b16 %v1145
    %v5950 = vunpack.c.l.b16 %v1146
    %v5951 = vunpack.c.l.b16 %v1147
    %v5952 = vunpack.c.l.b16 %v1148
    %v5953 = vunpack.c.l.b16 %v1149
    %v5954 = vunpack.c.l.b16 %v1150
    %v5955 = vunpack.c.l.b16 %v1151
    %v5956 = vunpack.c.l.b16 %v1152
    %v5957 = vunpack.c.l.b16 %v1153
    %v5958 = vunpack.c.l.b16 %v1154
    %v5959 = vunpack.c.l.b16 %v1155
    %v5960 = vunpack.c.l.b16 %v1156
    %v5961 = vunpack.c.l.b16 %v1157
    %v5962 = vunpack.c.l.b16 %v1158
    %v5963 = vunpack.c.l.b16 %v1159
    %v5964 = vunpack.c.l.b16 %v1160
    %v5965 = vunpack.c.l.b16 %v1161
    %v5966 = vunpack.c.l.b16 %v1162
    %v5967 = vunpack.c.l.b16 %v1163
    %v5968 = vunpack.c.l.b16 %v1164
    %v5969 = vunpack.c.l.b16 %v1165
    %v5970 = vunpack.c.l.b16 %v1166
    %v5971 = vunpack.c.l.b16 %v1167
    %v5972 = vunpack.c.l.b16 %v1168
    %v5973 = vunpack.c.l.b16 %v1169
    %v5974 = vunpack.c.l.b16 %v1170
    %v5975 = vunpack.c.l.b16 %v1171
    %v5976 = vunpack.c.l.b16 %v1172
    %v5977 = vunpack.c.l.b16 %v1173
    %v5978 = vunpack.c.l.b16 %v1174
    %v5979 = vunpack.c.l.b16 %v1175
    %v5980 = vunpack.c.l.b16 %v1176
    %v5981 = vunpack.c.l.b16 %v1177
    %v5982 = vunpack.c.l.b16 %v1178
    %v5983 = vunpack.c.l.b16 %v1179
    %v5984 = vunpack.c.l.b16 %v1180
    %v5985 = vunpack.c.l.b16 %v1181
    %v5986 = vunpack.c.l.b16 %v1182
    %v5987 = vunpack.c.l.b16 %v1183
    %v5988 = vunpack.c.l.b16 %v1184
    %v5989 = vunpack.c.l.b16 %v1185
    %v5990 = vunpack.c.l.b16 %v1186
    %v5991 = vunpack.c.l.b16 %v1187
    %v5992 = vunpack.c.l.b16 %v1188
    %v5993 = vunpack.c.l.b16 %v1189
    %v5994 = vunpack.c.l.b16 %v1190
    %v5995 = vunpack.c.l.b16 %v1191
    %v5996 = vunpack.c.l.b16 %v1192
    %v5997 = vunpack.c.l.b16 %v1193
    %v5998 = vunpack.c.l.b16 %v1194
    %v5999 = vunpack.c.l.b16 %v1195
    %v6000 = vunpack.c.l.b16 %v1196
    %v6001 = vunpack.c.l.b16 %v1197
    %v6002 = vunpack.c.l.b16 %v1198
    %v6003 = vunpack.c.l.b16 %v1199
    %v6004 = vunpack.c.l.b16 %v1200
    %v6005 = vunpack.c.l.b16 %v1201
    %v6006 = vunpack.c.l.b16 %v1202
    %v6007 = vunpack.c.l.b16 %v1203
    %v6008 = vunpack.c.l.b16 %v1204
    %v6009 = vunpack.c.l.b16 %v1205
    %v6010 = vunpack.c.l.b16 %v1206
    %v6011 = vunpack.c.l.b16 %v1207
    %v6012 = vunpack.c.l.b16 %v1208
    %v6013 = vunpack.c.l.b16 %v1209
    %v6014 = vunpack.c.l.b16 %v1210
    %v6015 = vunpack.c.l.b16 %v1211
    %v6016 = vunpack.c.l.b16 %v1212
    %v6017 = vunpack.c.l.b16 %v1213
    %v6018 = vunpack.c.l.b16 %v1214
    %v6019 = vunpack.c.l.b16 %v1215
    %v6020 = vunpack.c.l.b16 %v1216
    %v6021 = vunpack.c.l.b16 %v1217
    %v6022 = vunpack.c.l.b16 %v1218
    %v6023 = vunpack.c.l.b16 %v1219
    %v6024 = vunpack.c.l.b16 %v1220
    %v6025 = vunpack.c.l.b16 %v1221
    %v6026 = vunpack.c.l.b16 %v1222
    %v6027 = vunpack.c.l.b16 %v1223
    %v6028 = vunpack.c.l.b16 %v1224
    %v6029 = vunpack.c.l.b16 %v1225
    %v6030 = vunpack.c.l.b16 %v1226
    %v6031 = vunpack.c.l.b16 %v1227
    %v6032 = vunpack.c.l.b16 %v1228
    %v6033 = vunpack.c.l.b16 %v1229
    %v6034 = vunpack.c.l.b16 %v1230
    %v6035 = vunpack.c.l.b16 %v1231
    %v6036 = vunpack.c.l.b16 %v1232
    %v6037 = vunpack.c.l.b16 %v1233
    %v6038 = vunpack.c.l.b16 %v1234
    %v6039 = vunpack.c.l.b16 %v1235
    %v6040 = vunpack.c.l.b16 %v1236
    %v6041 = vunpack.c.l.b16 %v1237
    %v6042 = vunpack.c.l.b16 %v1238
    %v6043 = vunpack.c.l.b16 %v1239
    %v6044 = vunpack.c.l.b16 %v1240
    %v6045 = vunpack.c.l.b16 %v1241
    %v6046 = vunpack.c.l.b16 %v1242
    %v6047 = vunpack.c.l.b16 %v1243
    %v6048 = vunpack.c.l.b16 %v1244
    %v6049 = vunpack.c.l.b16 %v1245
    %v6050 = vunpack.c.l.b16 %v1246
    %v6051 = vunpack.c.l.b16 %v1247
    %v6052 = vunpack.c.l.b16 %v1248
    %v6053 = vunpack.c.l.b16 %v1249
    %v6054 = vunpack.c.l.b16 %v1250
    %v6055 = vunpack.c.l.b16 %v1251
    %v6056 = vunpack.c.l.b16 %v1252
    %v6057 = vunpack.c.l.b16 %v1253
    %v6058 = vunpack.c.l.b16 %v1254
    %v6059 = vunpack.c.l.b16 %v1255
    %v6060 = vunpack.c.l.b16 %v1256
    %v6061 = vunpack.c.l.b16 %v1257
    %v6062 = vunpack.c.l.b16 %v1258
    %v6063 = vunpack.c.l.b16 %v1259
    %v6064 = vunpack.c.l.b16 %v1260
    %v6065 = vunpack.c.l.b16 %v1261
    %v6066 = vunpack.c.l.b16 %v1262
    %v6067 = vunpack.c.l.b16 %v1263
    %v6068 = vunpack.c.l.b16 %v1264
    %v6069 = vunpack.c.l.b16 %v1265
    %v6070 = vunpack.c.l.b16 %v1266
    %v6071 = vunpack.c.l.b16 %v1267
    %v6072 = vunpack.c.l.b16 %v1268
    %v6073 = vunpack.c.l.b16 %v1269
    %v6074 = vunpack.c.l.b16 %v1270
    %v6075 = vunpack.c.l.b16 %v1271
    %v6076 = vunpack.c.l.b16 %v1272
    %v6077 = vunpack.c.l.b16 %v1273
    %v6078 = vunpack.c.l.b16 %v1274
    %v6079 = vunpack.c.l.b16 %v1275
    %v6080 = vunpack.c.l.b16 %v1276
    %v6081 = vunpack.c.l.b16 %v1277
    %v6082 = vunpack.c.l.b16 %v1278
    %v6083 = vunpack.c.l.b16 %v1279
    %v6084 = vunpack.c.l.b16 %v1280
    %v6085 = vunpack.c.l.b16 %v1281
    %v6086 = vunpack.c.l.b16 %v1282
    %v6087 = vunpack.c.l.b16 %v1283
    %v6088 = vunpack.c.l.b16 %v1284
    %v6089 = vunpack.c.l.b16 %v1285
    %v6090 = vunpack.c.l.b16 %v1286
    %v6091 = vunpack.c.l.b16 %v1287
    %v6092 = vunpack.c.l.b16 %v1288
    %v6093 = vunpack.c.l.b16 %v1289
    %v6094 = vunpack.c.l.b16 %v1290
    %v6095 = vunpack.c.l.b16 %v1291
    %v6096 = vunpack.c.l.b16 %v1292
    %v6097 = vunpack.c.l.b16 %v1293
    %v6098 = vunpack.c.l.b16 %v1294
    %v6099 = vunpack.c.l.b16 %v1295
    %v6100 = vunpack.c.l.b16 %v1296
    %v6101 = vunpack.c.l.b16 %v1297
    %v6102 = vunpack.c.l.b16 %v1298
    %v6103 = vunpack.c.l.b16 %v1299
    %v6104 = vunpack.c.l.b16 %v1300
    %v6105 = vunpack.c.l.b16 %v1301
    %v6106 = vunpack.c.l.b16 %v1302
    %v6107 = vunpack.c.l.b16 %v1303
    %v6108 = vunpack.c.l.b16 %v1304
    %v6109 = vunpack.c.l.b16 %v1305
    %v6110 = vunpack.c.l.b16 %v1306
    %v6111 = vunpack.c.l.b16 %v1307
    %v6112 = vunpack.c.l.b16 %v1308
    %v6113 = vunpack.c.l.b16 %v1309
    %v6114 = vunpack.c.l.b16 %v1310
    %v6115 = vunpack.c.l.b16 %v1311
    %v6116 = vunpack.c.l.b16 %v1312
    %v6117 = vunpack.c.l.b16 %v1313
    %v6118 = vunpack.c.l.b16 %v1314
    %v6119 = vunpack.c.l.b16 %v1315
    %v6120 = vunpack.c.l.b16 %v1316
    %v6121 = vunpack.c.l.b16 %v1317
    %v6122 = vunpack.c.l.b16 %v1318
    %v6123 = vunpack.c.l.b16 %v1319
    %v6124 = vunpack.c.l.b16 %v1320
    %v6125 = vunpack.c.l.b16 %v1321
    %v6126 = vunpack.c.l.b16 %v1322
    %v6127 = vunpack.c.l.b16 %v1323
    %v6128 = vunpack.c.l.b16 %v1324
    %v6129 = vunpack.c.l.b16 %v1325
    %v6130 = vunpack.c.l.b16 %v1326
    %v6131 = vunpack.c.l.b16 %v1327
    %v6132 = vunpack.c.l.b16 %v1328
    %v6133 = vunpack.c.l.b16 %v1329
    %v6134 = vunpack.c.l.b16 %v1330
    %v6135 = vunpack.c.l.b16 %v1331
    %v6136 = vunpack.c.l.b16 %v1332
    %v6137 = vunpack.c.l.b16 %v1333
    %v6138 = vunpack.c.l.b16 %v1334
    %v6139 = vunpack.c.l.b16 %v1335
    %v6140 = vunpack.c.l.b16 %v1336
    %v6141 = vunpack.c.l.b16 %v1337
    %v6142 = vunpack.c.l.b16 %v1338
    %v6143 = vunpack.c.l.b16 %v1339
    %v6144 = vunpack.c.l.b16 %v1340
    %v6145 = vunpack.c.l.b16 %v1341
    %v6146 = vunpack.c.l.b16 %v1342
    %v6147 = vunpack.c.l.b16 %v1343
    %v6148 = vunpack.c.l.b16 %v1344
    %v6149 = vunpack.c.l.b16 %v1345
    %v6150 = vunpack.c.l.b16 %v1346
    %v6151 = vunpack.c.l.b16 %v1347
    %v6152 = vunpack.c.l.b16 %v1348
    %v6153 = vunpack.c.l.b16 %v1349
    %v6154 = vunpack.c.l.b16 %v1350
    %v6155 = vunpack.c.l.b16 %v1351
    %v6156 = vunpack.c.l.b16 %v1352
    %v6157 = vunpack.c.l.b16 %v1353
    %v6158 = vunpack.c.l.b16 %v1354
    %v6159 = vunpack.c.l.b16 %v1355
    %v6160 = vunpack.c.l.b16 %v1356
    %v6161 = vunpack.c.l.b16 %v1357
    %v6162 = vunpack.c.l.b16 %v1358
    %v6163 = vunpack.c.l.b16 %v1359
    %v6164 = vunpack.c.l.b16 %v1360
    %v6165 = vunpack.c.l.b16 %v1361
    %v6166 = vunpack.c.l.b16 %v1362
    %v6167 = vunpack.c.l.b16 %v1363
    %v6168 = vunpack.c.l.b16 %v1364
    %v6169 = vunpack.c.l.b16 %v1365
    %v6170 = vunpack.c.l.b16 %v1366
    %v6171 = vunpack.c.l.b16 %v1367
    %v6172 = vunpack.c.l.b16 %v1368
    %v6173 = vunpack.c.l.b16 %v1369
    %v6174 = vunpack.c.l.b16 %v1370
    %v6175 = vunpack.c.l.b16 %v1371
    %v6176 = vunpack.c.l.b16 %v1372
    %v6177 = vunpack.c.l.b16 %v1373
    %v6178 = vunpack.c.l.b16 %v1374
    %v6179 = vunpack.c.l.b16 %v1375
    %v6180 = vunpack.c.l.b16 %v1376
    %v6181 = vunpack.c.l.b16 %v1377
    %v6182 = vunpack.c.l.b16 %v1378
    %v6183 = vunpack.c.l.b16 %v1379
    %v6184 = vunpack.c.l.b16 %v1380
    %v6185 = vunpack.c.l.b16 %v1381
    %v6186 = vunpack.c.l.b16 %v1382
    %v6187 = vunpack.c.l.b16 %v1383
    %v6188 = vunpack.c.l.b16 %v1384
    %v6189 = vunpack.c.l.b16 %v1385
    %v6190 = vunpack.c.l.b16 %v1386
    %v6191 = vunpack.c.l.b16 %v1387
    %v6192 = vunpack.c.l.b16 %v1388
    %v6193 = vunpack.c.l.b16 %v1389
    %v6194 = vunpack.c.l.b16 %v1390
    %v6195 = vunpack.c.l.b16 %v1391
    %v6196 = vunpack.c.l.b16 %v1392
    %v6197 = vunpack.c.l.b16 %v1393
    %v6198 = vunpack.c.l.b16 %v1394
    %v6199 = vunpack.c.l.b16 %v1395
    %v6200 = vunpack.c.l.b16 %v1396
    %v6201 = vunpack.c.l.b16 %v1397
    %v6202 = vunpack.c.l.b16 %v1398
    %v6203 = vunpack.c.l.b16 %v1399
    %v6204 = vunpack.c.l.b16 %v1400
    %v6205 = vunpack.c.l.b16 %v1401
    %v6206 = vunpack.c.l.b16 %v1402
    %v6207 = vunpack.c.l.b16 %v1403
    %v6208 = vunpack.c.l.b16 %v1404
    %v6209 = vunpack.c.l.b16 %v1405
    %v6210 = vunpack.c.l.b16 %v1406
    %v6211 = vunpack.c.l.b16 %v1407
    %v6212 = vunpack.c.l.b16 %v1408
    %v6213 = vunpack.c.l.b16 %v1409
    %v6214 = vunpack.c.l.b16 %v1410
    %v6215 = vunpack.c.l.b16 %v1411
    %v6216 = vunpack.c.l.b16 %v1412
    %v6217 = vunpack.c.l.b16 %v1413
    %v6218 = vunpack.c.l.b16 %v1414
    %v6219 = vunpack.c.l.b16 %v1415
    %v6220 = vunpack.c.l.b16 %v1416
    %v6221 = vunpack.c.l.b16 %v1417
    %v6222 = vunpack.c.l.b16 %v1418
    %v6223 = vunpack.c.l.b16 %v1419
    %v6224 = vunpack.c.l.b16 %v1420
    %v6225 = vunpack.c.l.b16 %v1421
    %v6226 = vunpack.c.l.b16 %v1422
    %v6227 = vunpack.c.l.b16 %v1423
    %v6228 = vunpack.c.l.b16 %v1424
    %v6229 = vunpack.c.l.b16 %v1425
    %v6230 = vunpack.c.l.b16 %v1426
    %v6231 = vunpack.c.l.b16 %v1427
    %v6232 = vunpack.c.l.b16 %v1428
    %v6233 = vunpack.c.l.b16 %v1429
    %v6234 = vunpack.c.l.b16 %v1430
    %v6235 = vunpack.c.l.b16 %v1431
    %v6236 = vunpack.c.l.b16 %v1432
    %v6237 = vunpack.c.l.b16 %v1433
    %v6238 = vunpack.c.l.b16 %v1434
    %v6239 = vunpack.c.l.b16 %v1435
    %v6240 = vunpack.c.l.b16 %v1436
    %v6241 = vunpack.c.l.b16 %v1437
    %v6242 = vunpack.c.l.b16 %v1438
    %v6243 = vunpack.c.l.b16 %v1439
    %v6244 = vunpack.c.l.b16 %v1440
    %v6245 = vunpack.c.l.b16 %v1441
    %v6246 = vunpack.c.l.b16 %v1442
    %v6247 = vunpack.c.l.b16 %v1443
    %v6248 = vunpack.c.l.b16 %v1444
    %v6249 = vunpack.c.l.b16 %v1445
    %v6250 = vunpack.c.l.b16 %v1446
    %v6251 = vunpack.c.l.b16 %v1447
    %v6252 = vunpack.c.l.b16 %v1448
    %v6253 = vunpack.c.l.b16 %v1449
    %v6254 = vunpack.c.l.b16 %v1450
    %v6255 = vunpack.c.l.b16 %v1451
    %v6256 = vunpack.c.l.b16 %v1452
    %v6257 = vunpack.c.l.b16 %v1453
    %v6258 = vunpack.c.l.b16 %v1454
    %v6259 = vunpack.c.l.b16 %v1455
    %v6260 = vunpack.c.l.b16 %v1456
    %v6261 = vunpack.c.l.b16 %v1457
    %v6262 = vunpack.c.l.b16 %v1458
    %v6263 = vunpack.c.l.b16 %v1459
    %v6264 = vunpack.c.l.b16 %v1460
    %v6265 = vunpack.c.l.b16 %v1461
    %v6266 = vunpack.c.l.b16 %v1462
    %v6267 = vunpack.c.l.b16 %v1463
    %v6268 = vunpack.c.l.b16 %v1464
    %v6269 = vunpack.c.l.b16 %v1465
    %v6270 = vunpack.c.l.b16 %v1466
    %v6271 = vunpack.c.l.b16 %v1467
    %v6272 = vunpack.c.l.b16 %v1468
    %v6273 = vunpack.c.l.b16 %v1469
    %v6274 = vunpack.c.l.b16 %v1470
    %v6275 = vunpack.c.l.b16 %v1471
    %v6276 = vunpack.c.l.b16 %v1472
    %v6277 = vunpack.c.l.b16 %v1473
    %v6278 = vunpack.c.l.b16 %v1474
    %v6279 = vunpack.c.l.b16 %v1475
    %v6280 = vunpack.c.l.b16 %v1476
    %v6281 = vunpack.c.l.b16 %v1477
    %v6282 = vunpack.c.l.b16 %v1478
    %v6283 = vunpack.c.l.b16 %v1479
    %v6284 = vunpack.c.l.b16 %v1480
    %v6285 = vunpack.c.l.b16 %v1481
    %v6286 = vunpack.c.l.b16 %v1482
    %v6287 = vunpack.c.l.b16 %v1483
    %v6288 = vunpack.c.l.b16 %v1484
    %v6289 = vunpack.c.l.b16 %v1485
    %v6290 = vunpack.c.l.b16 %v1486
    %v6291 = vunpack.c.l.b16 %v1487
    %v6292 = vunpack.c.l.b16 %v1488
    %v6293 = vunpack.c.l.b16 %v1489
    %v6294 = vunpack.c.l.b16 %v1490
    %v6295 = vunpack.c.l.b16 %v1491
    %v6296 = vunpack.c.l.b16 %v1492
    %v6297 = vunpack.c.l.b16 %v1493
    %v6298 = vunpack.c.l.b16 %v1494
    %v6299 = vunpack.c.l.b16 %v1495
    %v6300 = vunpack.c.l.b16 %v1496
    %v6301 = vunpack.c.l.b16 %v1497
    %v6302 = vunpack.c.l.b16 %v1498
    %v6303 = vunpack.c.l.b16 %v1499
    %v6304 = vunpack.c.l.b16 %v1500
    %v6305 = vunpack.c.l.b16 %v1501
    %v6306 = vunpack.c.l.b16 %v1502
    %v6307 = vunpack.c.l.b16 %v1503
    %v6308 = vunpack.c.l.b16 %v1504
    %v6309 = vunpack.c.l.b16 %v1505
    %v6310 = vunpack.c.l.b16 %v1506
    %v6311 = vunpack.c.l.b16 %v1507
    %v6312 = vunpack.c.l.b16 %v1508
    %v6313 = vunpack.c.l.b16 %v1509
    %v6314 = vunpack.c.l.b16 %v1510
    %v6315 = vunpack.c.l.b16 %v1511
    %v6316 = vunpack.c.l.b16 %v1512
    %v6317 = vunpack.c.l.b16 %v1513
    %v6318 = vunpack.c.l.b16 %v1514
    %v6319 = vunpack.c.l.b16 %v1515
    %v6320 = vunpack.c.l.b16 %v1516
    %v6321 = vunpack.c.l.b16 %v1517
    %v6322 = vunpack.c.l.b16 %v1518
    %v6323 = vunpack.c.l.b16 %v1519
    %v6324 = vunpack.c.l.b16 %v1520
    %v6325 = vunpack.c.l.b16 %v1521
    %v6326 = vunpack.c.l.b16 %v1522
    %v6327 = vunpack.c.l.b16 %v1523
    %v6328 = vunpack.c.l.b16 %v1524
    %v6329 = vunpack.c.l.b16 %v1525
    %v6330 = vunpack.c.l.b16 %v1526
    %v6331 = vunpack.c.l.b16 %v1527
    %v6332 = vunpack.c.l.b16 %v1528
    %v6333 = vunpack.c.l.b16 %v1529
    %v6334 = vunpack.c.l.b16 %v1530
    %v6335 = vunpack.c.l.b16 %v1531
    %v6336 = vunpack.c.l.b16 %v1532
    %v6337 = vunpack.c.l.b16 %v1533
    %v6338 = vunpack.c.l.b16 %v1534
    %v6339 = vunpack.c.l.b16 %v1535
    %v6340 = vunpack.c.l.b16 %v1536
    %v6341 = vunpack.c.l.b16 %v1537
    %v6342 = vunpack.c.l.b16 %v1538
    %v6343 = vunpack.c.l.b16 %v1539
    %v6344 = vunpack.c.l.b16 %v1540
    %v6345 = vunpack.c.l.b16 %v1541
    %v6346 = vunpack.c.l.b16 %v1542
    %v6347 = vunpack.c.l.b16 %v1543
    %v6348 = vunpack.c.l.b16 %v1544
    %v6349 = vunpack.c.l.b16 %v1545
    %v6350 = vunpack.c.l.b16 %v1546
    %v6351 = vunpack.c.l.b16 %v1547
    %v6352 = vunpack.c.l.b16 %v1548
    %v6353 = vunpack.c.l.b16 %v1549
    %v6354 = vunpack.c.l.b16 %v1550
    %v6355 = vunpack.c.l.b16 %v1551
    %v6356 = vunpack.c.l.b16 %v1552
    %v6357 = vunpack.c.l.b16 %v1553
    %v6358 = vunpack.c.l.b16 %v1554
    %v6359 = vunpack.c.l.b16 %v1555
    %v6360 = vunpack.c.l.b16 %v1556
    %v6361 = vunpack.c.l.b16 %v1557
    %v6362 = vunpack.c.l.b16 %v1558
    %v6363 = vunpack.c.l.b16 %v1559
    %v6364 = vunpack.c.l.b16 %v1560
    %v6365 = vunpack.c.l.b16 %v1561
    %v6366 = vunpack.c.l.b16 %v1562
    %v6367 = vunpack.c.l.b16 %v1563
    %v6368 = vunpack.c.l.b16 %v1564
    %v6369 = vunpack.c.l.b16 %v1565
    %v6370 = vunpack.c.l.b16 %v1566
    %v6371 = vunpack.c.l.b16 %v1567
    %v6372 = vunpack.c.l.b16 %v1568
    %v6373 = vunpack.c.l.b16 %v1569
    %v6374 = vunpack.c.l.b16 %v1570
    %v6375 = vunpack.c.l.b16 %v1571
    %v6376 = vunpack.c.l.b16 %v1572
    %v6377 = vunpack.c.l.b16 %v1573
    %v6378 = vunpack.c.l.b16 %v1574
    %v6379 = vunpack.c.l.b16 %v1575
    %v6380 = vunpack.c.l.b16 %v1576
    %v6381 = vunpack.c.l.b16 %v1577
    %v6382 = vunpack.c.l.b16 %v1578
    %v6383 = vunpack.c.l.b16 %v1579
    %v6384 = vunpack.c.l.b16 %v1580
    %v6385 = vunpack.c.l.b16 %v1581
    %v6386 = vunpack.c.l.b16 %v1582
    %v6387 = vunpack.c.l.b16 %v1583
    %v6388 = vunpack.c.l.b16 %v1584
    %v6389 = vunpack.c.l.b16 %v1585
    %v6390 = vunpack.c.l.b16 %v1586
    %v6391 = vunpack.c.l.b16 %v1587
    %v6392 = vunpack.c.l.b16 %v1588
    %v6393 = vunpack.c.l.b16 %v1589
    %v6394 = vunpack.c.l.b16 %v1590
    %v6395 = vunpack.c.l.b16 %v1591
    %v6396 = vunpack.c.l.b16 %v1592
    %v6397 = vunpack.c.l.b16 %v1593
    %v6398 = vunpack.c.l.b16 %v1594
    %v6399 = vunpack.c.l.b16 %v1595
    %v6400 = vunpack.c.l.b16 %v1596
    %v6401 = vunpack.c.l.b16 %v1597
    %v6402 = vunpack.c.l.b16 %v1598
    %v6403 = vunpack.c.l.b16 %v1599
    %v6404 = vunpack.c.l.b16 %v1600
    %v6405 = vunpack.c.l.b16 %v1601
    %v6406 = vunpack.c.l.b16 %v1602
    %v6407 = vunpack.c.l.b16 %v1603
    %v6408 = vunpack.c.l.b16 %v1604
    %v6409 = vunpack.c.l.b16 %v1605
    %v6410 = vunpack.c.l.b16 %v1606
    %v6411 = vunpack.c.l.b16 %v1607
    %v6412 = vunpack.c.l.b16 %v1608
    %v6413 = vunpack.c.l.b16 %v1609
    %v6414 = vunpack.c.l.b16 %v1610
    %v6415 = vunpack.c.l.b16 %v1611
    %v6416 = vunpack.c.l.b16 %v1612
    %v6417 = vunpack.c.l.b16 %v1613
    %v6418 = vunpack.c.l.b16 %v1614
    %v6419 = vunpack.c.l.b16 %v1615
    %v6420 = vunpack.c.l.b16 %v1616
    %v6421 = vunpack.c.l.b16 %v1617
    %v6422 = vunpack.c.l.b16 %v1618
    %v6423 = vunpack.c.l.b16 %v1619
    %v6424 = vunpack.c.l.b16 %v1620
    %v6425 = vunpack.c.l.b16 %v1621
    %v6426 = vunpack.c.l.b16 %v1622
    %v6427 = vunpack.c.l.b16 %v1623
    %v6428 = vunpack.c.l.b16 %v1624
    %v6429 = vunpack.c.l.b16 %v1625
    %v6430 = vunpack.c.l.b16 %v1626
    %v6431 = vunpack.c.l.b16 %v1627
    %v6432 = vunpack.c.l.b16 %v1628
    %v6433 = vunpack.c.l.b16 %v1629
    %v6434 = vunpack.c.l.b16 %v1630
    %v6435 = vunpack.c.l.b16 %v1631
    %v6436 = vunpack.c.l.b16 %v1632
    %v6437 = vunpack.c.l.b16 %v1633
    %v6438 = vunpack.c.l.b16 %v1634
    %v6439 = vunpack.c.l.b16 %v1635
    %v6440 = vunpack.c.l.b16 %v1636
    %v6441 = vunpack.c.l.b16 %v1637
    %v6442 = vunpack.c.l.b16 %v1638
    %v6443 = vunpack.c.l.b16 %v1639
    %v6444 = vunpack.c.l.b16 %v1640
    %v6445 = vunpack.c.l.b16 %v1641
    %v6446 = vunpack.c.l.b16 %v1642
    %v6447 = vunpack.c.l.b16 %v1643
    %v6448 = vunpack.c.l.b16 %v1644
    %v6449 = vunpack.c.l.b16 %v1645
    %v6450 = vunpack.c.l.b16 %v1646
    %v6451 = vunpack.c.l.b16 %v1647
    %v6452 = vunpack.c.l.b16 %v1648
    %v6453 = vunpack.c.l.b16 %v1649
    %v6454 = vunpack.c.l.b16 %v1650
    %v6455 = vunpack.c.l.b16 %v1651
    %v6456 = vunpack.c.l.b16 %v1652
    %v6457 = vunpack.c.l.b16 %v1653
    %v6458 = vunpack.c.l.b16 %v1654
    %v6459 = vunpack.c.l.b16 %v1655
    %v6460 = vunpack.c.l.b16 %v1656
    %v6461 = vunpack.c.l.b16 %v1657
    %v6462 = vunpack.c.l.b16 %v1658
    %v6463 = vunpack.c.l.b16 %v1659
    %v6464 = vunpack.c.l.b16 %v1660
    %v6465 = vunpack.c.l.b16 %v1661
    %v6466 = vunpack.c.l.b16 %v1662
    %v6467 = vunpack.c.l.b16 %v1663
    %v6468 = vunpack.c.l.b16 %v1664
    %v6469 = vunpack.c.l.b16 %v1665
    %v6470 = vunpack.c.l.b16 %v1666
    %v6471 = vunpack.c.l.b16 %v1667
    %v6472 = vunpack.c.l.b16 %v1668
    %v6473 = vunpack.c.l.b16 %v1669
    %v6474 = vunpack.c.l.b16 %v1670
    %v6475 = vunpack.c.l.b16 %v1671
    %v6476 = vunpack.c.l.b16 %v1672
    %v6477 = vunpack.c.l.b16 %v1673
    %v6478 = vunpack.c.l.b16 %v1674
    %v6479 = vunpack.c.l.b16 %v1675
    %v6480 = vunpack.c.l.b16 %v1676
    %v6481 = vunpack.c.l.b16 %v1677
    %v6482 = vunpack.c.l.b16 %v1678
    %v6483 = vunpack.c.l.b16 %v1679
    %v6484 = vunpack.c.l.b16 %v1680
    %v6485 = vunpack.c.l.b16 %v1681
    %v6486 = vunpack.c.l.b16 %v1682
    %v6487 = vunpack.c.l.b16 %v1683
    %v6488 = vunpack.c.l.b16 %v1684
    %v6489 = vunpack.c.l.b16 %v1685
    %v6490 = vunpack.c.l.b16 %v1686
    %v6491 = vunpack.c.l.b16 %v1687
    %v6492 = vunpack.c.l.b16 %v1688
    %v6493 = vunpack.c.l.b16 %v1689
    %v6494 = vunpack.c.l.b16 %v1690
    %v6495 = vunpack.c.l.b16 %v1691
    %v6496 = vunpack.c.l.b16 %v1692
    %v6497 = vunpack.c.l.b16 %v1693
    %v6498 = vunpack.c.l.b16 %v1694
    %v6499 = vunpack.c.l.b16 %v1695
    %v6500 = vunpack.c.l.b16 %v1696
    %v6501 = vunpack.c.l.b16 %v1697
    %v6502 = vunpack.c.l.b16 %v1698
    %v6503 = vunpack.c.l.b16 %v1699
    %v6504 = vunpack.c.l.b16 %v1700
    %v6505 = vunpack.c.l.b16 %v1701
    %v6506 = vunpack.c.l.b16 %v1702
    %v6507 = vunpack.c.l.b16 %v1703
    %v6508 = vunpack.c.l.b16 %v1704
    %v6509 = vunpack.c.l.b16 %v1705
    %v6510 = vunpack.c.l.b16 %v1706
    %v6511 = vunpack.c.l.b16 %v1707
    %v6512 = vunpack.c.l.b16 %v1708
    %v6513 = vunpack.c.l.b16 %v1709
    %v6514 = vunpack.c.l.b16 %v1710
    %v6515 = vunpack.c.l.b16 %v1711
    %v6516 = vunpack.c.l.b16 %v1712
    %v6517 = vunpack.c.l.b16 %v1713
    %v6518 = vunpack.c.l.b16 %v1714
    %v6519 = vunpack.c.l.b16 %v1715
    %v6520 = vunpack.c.l.b16 %v1716
    %v6521 = vunpack.c.l.b16 %v1717
    %v6522 = vunpack.c.l.b16 %v1718
    %v6523 = vunpack.c.l.b16 %v1719
    %v6524 = vunpack.c.l.b16 %v1720
    %v6525 = vunpack.c.l.b16 %v1721
    %v6526 = vunpack.c.l.b16 %v1722
    %v6527 = vunpack.c.l.b16 %v1723
    %v6528 = vunpack.c.l.b16 %v1724
    %v6529 = vunpack.c.l.b16 %v1725
    %v6530 = vunpack.c.l.b16 %v1726
    %v6531 = vunpack.c.l.b16 %v1727
    %v6532 = vunpack.c.l.b16 %v1728
    %v6533 = vunpack.c.l.b16 %v1729
    %v6534 = vunpack.c.l.b16 %v1730
    %v6535 = vunpack.c.l.b16 %v1731
    %v6536 = vunpack.c.l.b16 %v1732
    %v6537 = vunpack.c.l.b16 %v1733
    %v6538 = vunpack.c.l.b16 %v1734
    %v6539 = vunpack.c.l.b16 %v1735
    %v6540 = vunpack.c.l.b16 %v1736
    %v6541 = vunpack.c.l.b16 %v1737
    %v6542 = vunpack.c.l.b16 %v1738
    %v6543 = vunpack.c.l.b16 %v1739
    %v6544 = vunpack.c.l.b16 %v1740
    %v6545 = vunpack.c.l.b16 %v1741
    %v6546 = vunpack.c.l.b16 %v1742
    %v6547 = vunpack.c.l.b16 %v1743
    %v6548 = vunpack.c.l.b16 %v1744
    %v6549 = vunpack.c.l.b16 %v1745
    %v6550 = vunpack.c.l.b16 %v1746
    %v6551 = vunpack.c.l.b16 %v1747
    %v6552 = vunpack.c.l.b16 %v1748
    %v6553 = vunpack.c.l.b16 %v1749
    %v6554 = vunpack.c.l.b16 %v1750
    %v6555 = vunpack.c.l.b16 %v1751
    %v6556 = vunpack.c.l.b16 %v1752
    %v6557 = vunpack.c.l.b16 %v1753
    %v6558 = vunpack.c.l.b16 %v1754
    %v6559 = vunpack.c.l.b16 %v1755
    %v6560 = vunpack.c.l.b16 %v1756
    %v6561 = vunpack.c.l.b16 %v1757
    %v6562 = vunpack.c.l.b16 %v1758
    %v6563 = vunpack.c.l.b16 %v1759
    %v6564 = vunpack.c.l.b16 %v1760
    %v6565 = vunpack.c.l.b16 %v1761
    %v6566 = vunpack.c.l.b16 %v1762
    %v6567 = vunpack.c.l.b16 %v1763
    %v6568 = vunpack.c.l.b16 %v1764
    %v6569 = vunpack.c.l.b16 %v1765
    %v6570 = vunpack.c.l.b16 %v1766
    %v6571 = vunpack.c.l.b16 %v1767
    %v6572 = vunpack.c.l.b16 %v1768
    %v6573 = vunpack.c.l.b16 %v1769
    %v6574 = vunpack.c.l.b16 %v1770
    %v6575 = vunpack.c.l.b16 %v1771
    %v6576 = vunpack.c.l.b16 %v1772
    %v6577 = vunpack.c.l.b16 %v1773
    %v6578 = vunpack.c.l.b16 %v1774
    %v6579 = vunpack.c.l.b16 %v1775
    %v6580 = vunpack.c.l.b16 %v1776
    %v6581 = vunpack.c.l.b16 %v1777
    %v6582 = vunpack.c.l.b16 %v1778
    %v6583 = vunpack.c.l.b16 %v1779
    %v6584 = vunpack.c.l.b16 %v1780
    %v6585 = vunpack.c.l.b16 %v1781
    %v6586 = vunpack.c.l.b16 %v1782
    %v6587 = vunpack.c.l.b16 %v1783
    %v6588 = vunpack.c.l.b16 %v1784
    %v6589 = vunpack.c.l.b16 %v1785
    %v6590 = vunpack.c.l.b16 %v1786
    %v6591 = vunpack.c.l.b16 %v1787
    %v6592 = vunpack.c.l.b16 %v1788
    %v6593 = vunpack.c.l.b16 %v1789
    %v6594 = vunpack.c.l.b16 %v1790
    %v6595 = vunpack.c.l.b16 %v1791
    %v6596 = vunpack.c.l.b16 %v1792
    %v6597 = vunpack.c.l.b16 %v1793
    %v6598 = vunpack.c.l.b16 %v1794
    %v6599 = vunpack.c.l.b16 %v1795
    %v6600 = vunpack.c.l.b16 %v1796
    %v6601 = vunpack.c.l.b16 %v1797
    %v6602 = vunpack.c.l.b16 %v1798
    %v6603 = vunpack.c.l.b16 %v1799
    %v6604 = vunpack.c.l.b16 %v1800
    %v6605 = vunpack.c.l.b16 %v1801
    %v6606 = vunpack.c.l.b16 %v1802
    %v6607 = vunpack.c.l.b16 %v1803
    %v6608 = vunpack.c.l.b16 %v1804
    %v6609 = vunpack.c.l.b16 %v1805
    %v6610 = vunpack.c.l.b16 %v1806
    %v6611 = vunpack.c.l.b16 %v1807
    %v6612 = vunpack.c.l.b16 %v1808
    %v6613 = vunpack.c.l.b16 %v1809
    %v6614 = vunpack.c.l.b16 %v1810
    %v6615 = vunpack.c.l.b16 %v1811
    %v6616 = vunpack.c.l.b16 %v1812
    %v6617 = vunpack.c.l.b16 %v1813
    %v6618 = vunpack.c.l.b16 %v1814
    %v6619 = vunpack.c.l.b16 %v1815
    %v6620 = vunpack.c.l.b16 %v1816
    %v6621 = vunpack.c.l.b16 %v1817
    %v6622 = vunpack.c.l.b16 %v1818
    %v6623 = vunpack.c.l.b16 %v1819
    %v6624 = vunpack.c.l.b16 %v1820
    %v6625 = vunpack.c.l.b16 %v1821
    %v6626 = vunpack.c.l.b16 %v1822
    %v6627 = vunpack.c.l.b16 %v1823
    %v6628 = vunpack.c.l.b16 %v1824
    %v6629 = vunpack.c.l.b16 %v1825
    %v6630 = vunpack.c.l.b16 %v1826
    %v6631 = vunpack.c.l.b16 %v1827
    %v6632 = vunpack.c.l.b16 %v1828
    %v6633 = vunpack.c.l.b16 %v1829
    %v6634 = vunpack.c.l.b16 %v1830
    %v6635 = vunpack.c.l.b16 %v1831
    %v6636 = vunpack.c.l.b16 %v1832
    %v6637 = vunpack.c.l.b16 %v1833
    %v6638 = vunpack.c.l.b16 %v1834
    %v6639 = vunpack.c.l.b16 %v1835
    %v6640 = vunpack.c.l.b16 %v1836
    %v6641 = vunpack.c.l.b16 %v1837
    %v6642 = vunpack.c.l.b16 %v1838
    %v6643 = vunpack.c.l.b16 %v1839
    %v6644 = vunpack.c.l.b16 %v1840
    %v6645 = vunpack.c.l.b16 %v1841
    %v6646 = vunpack.c.l.b16 %v1842
    %v6647 = vunpack.c.l.b16 %v1843
    %v6648 = vunpack.c.l.b16 %v1844
    %v6649 = vunpack.c.l.b16 %v1845
    %v6650 = vunpack.c.l.b16 %v1846
    %v6651 = vunpack.c.l.b16 %v1847
    %v6652 = vunpack.c.l.b16 %v1848
    %v6653 = vunpack.c.l.b16 %v1849
    %v6654 = vunpack.c.l.b16 %v1850
    %v6655 = vunpack.c.l.b16 %v1851
    %v6656 = vunpack.c.l.b16 %v1852
    %v6657 = vunpack.c.l.b16 %v1853
    %v6658 = vunpack.c.l.b16 %v1854
    %v6659 = vunpack.c.l.b16 %v1855
    %v6660 = vunpack.c.l.b16 %v1856
    %v6661 = vunpack.c.l.b16 %v1857
    %v6662 = vunpack.c.l.b16 %v1858
    %v6663 = vunpack.c.l.b16 %v1859
    %v6664 = vunpack.c.l.b16 %v1860
    %v6665 = vunpack.c.l.b16 %v1861
    %v6666 = vunpack.c.l.b16 %v1862
    %v6667 = vunpack.c.l.b16 %v1863
    %v6668 = vunpack.c.l.b16 %v1864
    %v6669 = vunpack.c.l.b16 %v1865
    %v6670 = vunpack.c.l.b16 %v1866
    %v6671 = vunpack.c.l.b16 %v1867
    %v6672 = vunpack.c.l.b16 %v1868
    %v6673 = vunpack.c.l.b16 %v1869
    %v6674 = vunpack.c.l.b16 %v1870
    %v6675 = vunpack.c.l.b16 %v1871
    %v6676 = vunpack.c.l.b16 %v1872
    %v6677 = vunpack.c.l.b16 %v1873
    %v6678 = vunpack.c.l.b16 %v1874
    %v6679 = vunpack.c.l.b16 %v1875
    %v6680 = vunpack.c.l.b16 %v1876
    %v6681 = vunpack.c.l.b16 %v1877
    %v6682 = vunpack.c.l.b16 %v1878
    %v6683 = vunpack.c.l.b16 %v1879
    %v6684 = vunpack.c.l.b16 %v1880
    %v6685 = vunpack.c.l.b16 %v1881
    %v6686 = vunpack.c.l.b16 %v1882
    %v6687 = vunpack.c.l.b16 %v1883
    %v6688 = vunpack.c.l.b16 %v1884
    %v6689 = vunpack.c.l.b16 %v1885
    %v6690 = vunpack.c.l.b16 %v1886
    %v6691 = vunpack.c.l.b16 %v1887
    %v6692 = vunpack.c.l.b16 %v1888
    %v6693 = vunpack.c.l.b16 %v1889
    %v6694 = vunpack.c.l.b16 %v1890
    %v6695 = vunpack.c.l.b16 %v1891
    %v6696 = vunpack.c.l.b16 %v1892
    %v6697 = vunpack.c.l.b16 %v1893
    %v6698 = vunpack.c.l.b16 %v1894
    %v6699 = vunpack.c.l.b16 %v1895
    %v6700 = vunpack.c.l.b16 %v1896
    %v6701 = vunpack.c.l.b16 %v1897
    %v6702 = vunpack.c.l.b16 %v1898
    %v6703 = vunpack.c.l.b16 %v1899
    %v6704 = vunpack.c.l.b16 %v1900
    %v6705 = vunpack.c.l.b16 %v1901
    %v6706 = vunpack.c.l.b16 %v1902
    %v6707 = vunpack.c.l.b16 %v1903
    %v6708 = vunpack.c.l.b16 %v1904
    %v6709 = vunpack.c.l.b16 %v1905
    %v6710 = vunpack.c.l.b16 %v1906
    %v6711 = vunpack.c.l.b16 %v1907
    %v6712 = vunpack.c.l.b16 %v1908
    %v6713 = vunpack.c.l.b16 %v1909
    %v6714 = vunpack.c.l.b16 %v1910
    %v6715 = vunpack.c.l.b16 %v1911
    %v6716 = vunpack.c.l.b16 %v1912
    %v6717 = vunpack.c.l.b16 %v1913
    %v6718 = vunpack.c.l.b16 %v1914
    %v6719 = vunpack.c.l.b16 %v1915
    %v6720 = vunpack.c.l.b16 %v1916
    %v6721 = vunpack.c.l.b16 %v1917
    %v6722 = vunpack.c.l.b16 %v1918
    %v6723 = vunpack.c.l.b16 %v1919
    %v6724 = vunpack.c.l.b16 %v1920
    %v6725 = vunpack.c.l.b16 %v1921
    %v6726 = vunpack.c.l.b16 %v1922
    %v6727 = vunpack.c.l.b16 %v1923
    %v6728 = vunpack.c.l.b16 %v1924
    %v6729 = vunpack.c.l.b16 %v1925
    %v6730 = vunpack.c.l.b16 %v1926
    %v6731 = vunpack.c.l.b16 %v1927
    %v6732 = vunpack.c.l.b16 %v1928
    %v6733 = vunpack.c.l.b16 %v1929
    %v6734 = vunpack.c.l.b16 %v1930
    %v6735 = vunpack.c.l.b16 %v1931
    %v6736 = vunpack.c.l.b16 %v1932
    %v6737 = vunpack.c.l.b16 %v1933
    %v6738 = vunpack.c.l.b16 %v1934
    %v6739 = vunpack.c.l.b16 %v1935
    %v6740 = vunpack.c.l.b16 %v1936
    %v6741 = vunpack.c.l.b16 %v1937
    %v6742 = vunpack.c.l.b16 %v1938
    %v6743 = vunpack.c.l.b16 %v1939
    %v6744 = vunpack.c.l.b16 %v1940
    %v6745 = vunpack.c.l.b16 %v1941
    %v6746 = vunpack.c.l.b16 %v1942
    %v6747 = vunpack.c.l.b16 %v1943
    %v6748 = vunpack.c.l.b16 %v1944
    %v6749 = vunpack.c.l.b16 %v1945
    %v6750 = vunpack.c.l.b16 %v1946
    %v6751 = vunpack.c.l.b16 %v1947
    %v6752 = vunpack.c.l.b16 %v1948
    %v6753 = vunpack.c.l.b16 %v1949
    %v6754 = vunpack.c.l.b16 %v1950
    %v6755 = vunpack.c.l.b16 %v1951
    %v6756 = vunpack.c.l.b16 %v1952
    %v6757 = vunpack.c.l.b16 %v1953
    %v6758 = vunpack.c.l.b16 %v1954
    %v6759 = vunpack.c.l.b16 %v1955
    %v6760 = vunpack.c.l.b16 %v1956
    %v6761 = vunpack.c.l.b16 %v1957
    %v6762 = vunpack.c.l.b16 %v1958
    %v6763 = vunpack.c.l.b16 %v1959
    %v6764 = vunpack.c.l.b16 %v1960
    %v6765 = vunpack.c.l.b16 %v1961
    %v6766 = vunpack.c.l.b16 %v1962
    %v6767 = vunpack.c.l.b16 %v1963
    %v6768 = vunpack.c.l.b16 %v1964
    %v6769 = vunpack.c.l.b16 %v1965
    %v6770 = vunpack.c.l.b16 %v1966
    %v6771 = vunpack.c.l.b16 %v1967
    %v6772 = vunpack.c.l.b16 %v1968
    %v6773 = vunpack.c.l.b16 %v1969
    %v6774 = vunpack.c.l.b16 %v1970
    %v6775 = vunpack.c.l.b16 %v1971
    %v6776 = vunpack.c.l.b16 %v1972
    %v6777 = vunpack.c.l.b16 %v1973
    %v6778 = vunpack.c.l.b16 %v1974
    %v6779 = vunpack.c.l.b16 %v1975
    %v6780 = vunpack.c.l.b16 %v1976
    %v6781 = vunpack.c.l.b16 %v1977
    %v6782 = vunpack.c.l.b16 %v1978
    %v6783 = vunpack.c.l.b16 %v1979
    %v6784 = vunpack.c.l.b16 %v1980
    %v6785 = vunpack.c.l.b16 %v1981
    %v6786 = vunpack.c.l.b16 %v1982
    %v6787 = vunpack.c.l.b16 %v1983
    %v6788 = vunpack.c.l.b16 %v1984
    %v6789 = vunpack.c.l.b16 %v1985
    %v6790 = vunpack.c.l.b16 %v1986
    %v6791 = vunpack.c.l.b16 %v1987
    %v6792 = vunpack.c.l.b16 %v1988
    %v6793 = vunpack.c.l.b16 %v1989
    %v6794 = vunpack.c.l.b16 %v1990
    %v6795 = vunpack.c.l.b16 %v1991
    %v6796 = vunpack.c.l.b16 %v1992
    %v6797 = vunpack.c.l.b16 %v1993
    %v6798 = vunpack.c.l.b16 %v1994
    %v6799 = vunpack.c.l.b16 %v1995
    %v6800 = vunpack.c.l.b16 %v1996
    %v6801 = vunpack.c.l.b16 %v1997
    %v6802 = vunpack.c.l.b16 %v1998
    %v6803 = vunpack.c.l.b16 %v1999
    %v6804 = vunpack.c.l.b16 %v2000
    %v6805 = vunpack.c.l.b16 %v2001
    %v6806 = vunpack.c.l.b16 %v2002
    %v6807 = vunpack.c.l.b16 %v2003
    %v6808 = vunpack.c.l.b16 %v2004
    %v6809 = vunpack.c.l.b16 %v2005
    %v6810 = vunpack.c.l.b16 %v2006
    %v6811 = vunpack.c.l.b16 %v2007
    %v6812 = vunpack.c.l.b16 %v2008
    %v6813 = vunpack.c.l.b16 %v2009
    %v6814 = vunpack.c.l.b16 %v2010
    %v6815 = vunpack.c.l.b16 %v2011
    %v6816 = vunpack.c.l.b16 %v2012
    %v6817 = vunpack.c.l.b16 %v2013
    %v6818 = vunpack.c.l.b16 %v2014
    %v6819 = vunpack.c.l.b16 %v2015
    %v6820 = vunpack.c.l.b16 %v2016
    %v6821 = vunpack.c.l.b16 %v2017
    %v6822 = vunpack.c.l.b16 %v2018
    %v6823 = vunpack.c.l.b16 %v2019
    %v6824 = vunpack.c.l.b16 %v2020
    %v6825 = vunpack.c.l.b16 %v2021
    %v6826 = vunpack.c.l.b16 %v2022
    %v6827 = vunpack.c.l.b16 %v2023
    %v6828 = vunpack.c.l.b16 %v2024
    %v6829 = vunpack.c.l.b16 %v2025
    %v6830 = vunpack.c.l.b16 %v2026
    %v6831 = vunpack.c.l.b16 %v2027
    %v6832 = vunpack.c.l.b16 %v2028
    %v6833 = vunpack.c.l.b16 %v2029
    %v6834 = vunpack.c.l.b16 %v2030
    %v6835 = vunpack.c.l.b16 %v2031
    %v6836 = vunpack.c.l.b16 %v2032
    %v6837 = vunpack.c.l.b16 %v2033
    %v6838 = vunpack.c.l.b16 %v2034
    %v6839 = vunpack.c.l.b16 %v2035
    %v6840 = vunpack.c.l.b16 %v2036
    %v6841 = vunpack.c.l.b16 %v2037
    %v6842 = vunpack.c.l.b16 %v2038
    %v6843 = vunpack.c.l.b16 %v2039
    %v6844 = vunpack.c.l.b16 %v2040
    %v6845 = vunpack.c.l.b16 %v2041
    %v6846 = vunpack.c.l.b16 %v2042
    %v6847 = vunpack.c.l.b16 %v2043
    %v6848 = vunpack.c.l.b16 %v2044
    %v6849 = vunpack.c.l.b16 %v2045
    %v6850 = vunpack.c.l.b16 %v2046
    %v6851 = vunpack.c.l.b16 %v2047
    %v6852 = vunpack.c.l.b16 %v2048
    %v6853 = vunpack.c.l.b16 %v2049
    %v6854 = vunpack.c.l.b16 %v2050
    %v6855 = vunpack.c.l.b16 %v2051
    %v6856 = vunpack.c.l.b16 %v2052
    %v6857 = vunpack.c.l.b16 %v2053
    %v6858 = vunpack.c.l.b16 %v2054
    %v6859 = vunpack.c.l.b16 %v2055
    %v6860 = vunpack.c.l.b16 %v2056
    %v6861 = vunpack.c.l.b16 %v2057
    %v6862 = vunpack.c.l.b16 %v2058
    %v6863 = vunpack.c.l.b16 %v2059
    %v6864 = vunpack.c.l.b16 %v2060
    %v6865 = vunpack.c.l.b16 %v2061
    %v6866 = vunpack.c.l.b16 %v2062
    %v6867 = vunpack.c.l.b16 %v2063
    %v6868 = vunpack.c.l.b16 %v2064
    %v6869 = vunpack.c.l.b16 %v2065
    %v6870 = vunpack.c.l.b16 %v2066
    %v6871 = vunpack.c.l.b16 %v2067
    %v6872 = vunpack.c.l.b16 %v2068
    %v6873 = vunpack.c.l.b16 %v2069
    %v6874 = vunpack.c.l.b16 %v2070
    %v6875 = vunpack.c.l.b16 %v2071
    %v6876 = vunpack.c.l.b16 %v2072
    %v6877 = vunpack.c.l.b16 %v2073
    %v6878 = vunpack.c.l.b16 %v2074
    %v6879 = vunpack.c.l.b16 %v2075
    %v6880 = vunpack.c.l.b16 %v2076
    %v6881 = vunpack.c.l.b16 %v2077
    %v6882 = vunpack.c.l.b16 %v2078
    %v6883 = vunpack.c.l.b16 %v2079
    %v6884 = vunpack.c.l.b16 %v2080
    %v6885 = vunpack.c.l.b16 %v2081
    %v6886 = vunpack.c.l.b16 %v2082
    %v6887 = vunpack.c.l.b16 %v2083
    %v6888 = vunpack.c.l.b16 %v2084
    %v6889 = vunpack.c.l.b16 %v2085
    %v6890 = vunpack.c.l.b16 %v2086
    %v6891 = vunpack.c.l.b16 %v2087
    %v6892 = vunpack.c.l.b16 %v2088
    %v6893 = vunpack.c.l.b16 %v2089
    %v6894 = vunpack.c.l.b16 %v2090
    %v6895 = vunpack.c.l.b16 %v2091
    %v6896 = vunpack.c.l.b16 %v2092
    %v6897 = vunpack.c.l.b16 %v2093
    %v6898 = vunpack.c.l.b16 %v2094
    %v6899 = vunpack.c.l.b16 %v2095
    %v6900 = vunpack.c.l.b16 %v2096
    %v6901 = vunpack.c.l.b16 %v2097
    %v6902 = vunpack.c.l.b16 %v2098
    %v6903 = vunpack.c.l.b16 %v2099
    %v6904 = vunpack.c.l.b16 %v2100
    %v6905 = vunpack.c.l.b16 %v2101
    %v6906 = vunpack.c.l.b16 %v2102
    %v6907 = vunpack.c.l.b16 %v2103
    %v6908 = vunpack.c.l.b16 %v2104
    %v6909 = vunpack.c.l.b16 %v2105
    %v6910 = vunpack.c.l.b16 %v2106
    %v6911 = vunpack.c.l.b16 %v2107
    %v6912 = vunpack.c.l.b16 %v2108
    %v6913 = vunpack.c.l.b16 %v2109
    %v6914 = vunpack.c.l.b16 %v2110
    %v6915 = vunpack.c.l.b16 %v2111
    %v6916 = vunpack.c.l.b16 %v2112
    %v6917 = vunpack.c.l.b16 %v2113
    %v6918 = vunpack.c.l.b16 %v2114
    %v6919 = vunpack.c.l.b16 %v2115
    %v6920 = vunpack.c.l.b16 %v2116
    %v6921 = vunpack.c.l.b16 %v2117
    %v6922 = vunpack.c.l.b16 %v2118
    %v6923 = vunpack.c.l.b16 %v2119
    %v6924 = vunpack.c.l.b16 %v2120
    %v6925 = vunpack.c.l.b16 %v2121
    %v6926 = vunpack.c.l.b16 %v2122
    %v6927 = vunpack.c.l.b16 %v2123
    %v6928 = vunpack.c.l.b16 %v2124
    %v6929 = vunpack.c.l.b16 %v2125
    %v6930 = vunpack.c.l.b16 %v2126
    %v6931 = vunpack.c.l.b16 %v2127
    %v6932 = vunpack.c.l.b16 %v2128
    %v6933 = vunpack.c.l.b16 %v2129
    %v6934 = vunpack.c.l.b16 %v2130
    %v6935 = vunpack.c.l.b16 %v2131
    %v6936 = vunpack.c.l.b16 %v2132
    %v6937 = vunpack.c.l.b16 %v2133
    %v6938 = vunpack.c.l.b16 %v2134
    %v6939 = vunpack.c.l.b16 %v2135
    %v6940 = vunpack.c.l.b16 %v2136
    %v6941 = vunpack.c.l.b16 %v2137
    %v6942 = vunpack.c.l.b16 %v2138
    %v6943 = vunpack.c.l.b16 %v2139
    %v6944 = vunpack.c.l.b16 %v2140
    %v6945 = vunpack.c.l.b16 %v2141
    %v6946 = vunpack.c.l.b16 %v2142
    %v6947 = vunpack.c.l.b16 %v2143
    %v6948 = vunpack.c.l.b16 %v2144
    %v6949 = vunpack.c.l.b16 %v2145
    %v6950 = vunpack.c.l.b16 %v2146
    %v6951 = vunpack.c.l.b16 %v2147
    %v6952 = vunpack.c.l.b16 %v2148
    %v6953 = vunpack.c.l.b16 %v2149
    %v6954 = vunpack.c.l.b16 %v2150
    %v6955 = vunpack.c.l.b16 %v2151
    %v6956 = vunpack.c.l.b16 %v2152
    %v6957 = vunpack.c.l.b16 %v2153
    %v6958 = vunpack.c.l.b16 %v2154
    %v6959 = vunpack.c.l.b16 %v2155
    %v6960 = vunpack.c.l.b16 %v2156
    %v6961 = vunpack.c.l.b16 %v2157
    %v6962 = vunpack.c.l.b16 %v2158
    %v6963 = vunpack.c.l.b16 %v2159
    %v6964 = vunpack.c.l.b16 %v2160
    %v6965 = vunpack.c.l.b16 %v2161
    %v6966 = vunpack.c.l.b16 %v2162
    %v6967 = vunpack.c.l.b16 %v2163
    %v6968 = vunpack.c.l.b16 %v2164
    %v6969 = vunpack.c.l.b16 %v2165
    %v6970 = vunpack.c.l.b16 %v2166
    %v6971 = vunpack.c.l.b16 %v2167
    %v6972 = vunpack.c.l.b16 %v2168
    %v6973 = vunpack.c.l.b16 %v2169
    %v6974 = vunpack.c.l.b16 %v2170
    %v6975 = vunpack.c.l.b16 %v2171
    %v6976 = vunpack.c.l.b16 %v2172
    %v6977 = vunpack.c.l.b16 %v2173
    %v6978 = vunpack.c.l.b16 %v2174
    %v6979 = vunpack.c.l.b16 %v2175
    %v6980 = vunpack.c.l.b16 %v2176
    %v6981 = vunpack.c.l.b16 %v2177
    %v6982 = vunpack.c.l.b16 %v2178
    %v6983 = vunpack.c.l.b16 %v2179
    %v6984 = vunpack.c.l.b16 %v2180
    %v6985 = vunpack.c.l.b16 %v2181
    %v6986 = vunpack.c.l.b16 %v2182
    %v6987 = vunpack.c.l.b16 %v2183
    %v6988 = vunpack.c.l.b16 %v2184
    %v6989 = vunpack.c.l.b16 %v2185
    %v6990 = vunpack.c.l.b16 %v2186
    %v6991 = vunpack.c.l.b16 %v2187
    %v6992 = vunpack.c.l.b16 %v2188
    %v6993 = vunpack.c.l.b16 %v2189
    %v6994 = vunpack.c.l.b16 %v2190
    %v6995 = vunpack.c.l.b16 %v2191
    %v6996 = vunpack.c.l.b16 %v2192
    %v6997 = vunpack.c.l.b16 %v2193
    %v6998 = vunpack.c.l.b16 %v2194
    %v6999 = vunpack.c.l.b16 %v2195
    %v7000 = vunpack.c.l.b16 %v2196
    %v7001 = vunpack.c.l.b16 %v2197
    %v7002 = vunpack.c.l.b16 %v2198
    %v7003 = vunpack.c.l.b16 %v2199
    %v7004 = vunpack.c.l.b16 %v2200
    %v7005 = vunpack.c.l.b16 %v2201
    %v7006 = vunpack.c.l.b16 %v2202
    %v7007 = vunpack.c.l.b16 %v2203
    %v7008 = vunpack.c.l.b16 %v2204
    %v7009 = vunpack.c.l.b16 %v2205
    %v7010 = vunpack.c.l.b16 %v2206
    %v7011 = vunpack.c.l.b16 %v2207
    %v7012 = vunpack.c.l.b16 %v2208
    %v7013 = vunpack.c.l.b16 %v2209
    %v7014 = vunpack.c.l.b16 %v2210
    %v7015 = vunpack.c.l.b16 %v2211
    %v7016 = vunpack.c.l.b16 %v2212
    %v7017 = vunpack.c.l.b16 %v2213
    %v7018 = vunpack.c.l.b16 %v2214
    %v7019 = vunpack.c.l.b16 %v2215
    %v7020 = vunpack.c.l.b16 %v2216
    %v7021 = vunpack.c.l.b16 %v2217
    %v7022 = vunpack.c.l.b16 %v2218
    %v7023 = vunpack.c.l.b16 %v2219
    %v7024 = vunpack.c.l.b16 %v2220
    %v7025 = vunpack.c.l.b16 %v2221
    %v7026 = vunpack.c.l.b16 %v2222
    %v7027 = vunpack.c.l.b16 %v2223
    %v7028 = vunpack.c.l.b16 %v2224
    %v7029 = vunpack.c.l.b16 %v2225
    %v7030 = vunpack.c.l.b16 %v2226
    %v7031 = vunpack.c.l.b16 %v2227
    %v7032 = vunpack.c.l.b16 %v2228
    %v7033 = vunpack.c.l.b16 %v2229
    %v7034 = vunpack.c.l.b16 %v2230
    %v7035 = vunpack.c.l.b16 %v2231
    %v7036 = vunpack.c.l.b16 %v2232
    %v7037 = vunpack.c.l.b16 %v2233
    %v7038 = vunpack.c.l.b16 %v2234
    %v7039 = vunpack.c.l.b16 %v2235
    %v7040 = vunpack.c.l.b16 %v2236
    %v7041 = vunpack.c.l.b16 %v2237
    %v7042 = vunpack.c.l.b16 %v2238
    %v7043 = vunpack.c.l.b16 %v2239
    %v7044 = vunpack.c.l.b16 %v2240
    %v7045 = vunpack.c.l.b16 %v2241
    %v7046 = vunpack.c.l.b16 %v2242
    %v7047 = vunpack.c.l.b16 %v2243
    %v7048 = vunpack.c.l.b16 %v2244
    %v7049 = vunpack.c.l.b16 %v2245
    %v7050 = vunpack.c.l.b16 %v2246
    %v7051 = vunpack.c.l.b16 %v2247
    %v7052 = vunpack.c.l.b16 %v2248
    %v7053 = vunpack.c.l.b16 %v2249
    %v7054 = vunpack.c.l.b16 %v2250
    %v7055 = vunpack.c.l.b16 %v2251
    %v7056 = vunpack.c.l.b16 %v2252
    %v7057 = vunpack.c.l.b16 %v2253
    %v7058 = vunpack.c.l.b16 %v2254
    %v7059 = vunpack.c.l.b16 %v2255
    %v7060 = vunpack.c.l.b16 %v2256
    %v7061 = vunpack.c.l.b16 %v2257
    %v7062 = vunpack.c.l.b16 %v2258
    %v7063 = vunpack.c.l.b16 %v2259
    %v7064 = vunpack.c.l.b16 %v2260
    %v7065 = vunpack.c.l.b16 %v2261
    %v7066 = vunpack.c.l.b16 %v2262
    %v7067 = vunpack.c.l.b16 %v2263
    %v7068 = vunpack.c.l.b16 %v2264
    %v7069 = vunpack.c.l.b16 %v2265
    %v7070 = vunpack.c.l.b16 %v2266
    %v7071 = vunpack.c.l.b16 %v2267
    %v7072 = vunpack.c.l.b16 %v2268
    %v7073 = vunpack.c.l.b16 %v2269
    %v7074 = vunpack.c.l.b16 %v2270
    %v7075 = vunpack.c.l.b16 %v2271
    %v7076 = vunpack.c.l.b16 %v2272
    %v7077 = vunpack.c.l.b16 %v2273
    %v7078 = vunpack.c.l.b16 %v2274
    %v7079 = vunpack.c.l.b16 %v2275
    %v7080 = vunpack.c.l.b16 %v2276
    %v7081 = vunpack.c.l.b16 %v2277
    %v7082 = vunpack.c.l.b16 %v2278
    %v7083 = vunpack.c.l.b16 %v2279
    %v7084 = vunpack.c.l.b16 %v2280
    %v7085 = vunpack.c.l.b16 %v2281
    %v7086 = vunpack.c.l.b16 %v2282
    %v7087 = vunpack.c.l.b16 %v2283
    %v7088 = vunpack.c.l.b16 %v2284
    %v7089 = vunpack.c.l.b16 %v2285
    %v7090 = vunpack.c.l.b16 %v2286
    %v7091 = vunpack.c.l.b16 %v2287
    %v7092 = vunpack.c.l.b16 %v2288
    %v7093 = vunpack.c.l.b16 %v2289
    %v7094 = vunpack.c.l.b16 %v2290
    %v7095 = vunpack.c.l.b16 %v2291
    %v7096 = vunpack.c.l.b16 %v2292
    %v7097 = vunpack.c.l.b16 %v2293
    %v7098 = vunpack.c.l.b16 %v2294
    %v7099 = vunpack.c.l.b16 %v2295
    %v7100 = vunpack.c.l.b16 %v2296
    %v7101 = vunpack.c.l.b16 %v2297
    %v7102 = vunpack.c.l.b16 %v2298
    %v7103 = vunpack.c.l.b16 %v2299
    %v7104 = vunpack.c.l.b16 %v2300
    %v7105 = vunpack.c.l.b16 %v2301
    %v7106 = vunpack.c.l.b16 %v2302
    %v7107 = vunpack.c.l.b16 %v2303
    %v7108 = vunpack.c.l.b16 %v2304
    %v7109 = vunpack.c.l.b16 %v2305
    %v7110 = vunpack.c.l.b16 %v2306
    %v7111 = vunpack.c.l.b16 %v2307
    %v7112 = vunpack.c.l.b16 %v2308
    %v7113 = vunpack.c.l.b16 %v2309
    %v7114 = vunpack.c.l.b16 %v2310
    %v7115 = vunpack.c.l.b16 %v2311
    %v7116 = vunpack.c.l.b16 %v2312
    %v7117 = vunpack.c.l.b16 %v2313
    %v7118 = vunpack.c.l.b16 %v2314
    %v7119 = vunpack.c.l.b16 %v2315
    %v7120 = vunpack.c.l.b16 %v2316
    %v7121 = vunpack.c.l.b16 %v2317
    %v7122 = vunpack.c.l.b16 %v2318
    %v7123 = vunpack.c.l.b16 %v2319
    %v7124 = vunpack.c.l.b16 %v2320
    %v7125 = vunpack.c.l.b16 %v2321
    %v7126 = vunpack.c.l.b16 %v2322
    %v7127 = vunpack.c.l.b16 %v2323
    %v7128 = vunpack.c.l.b16 %v2324
    %v7129 = vunpack.c.l.b16 %v2325
    %v7130 = vunpack.c.l.b16 %v2326
    %v7131 = vunpack.c.l.b16 %v2327
    %v7132 = vunpack.c.l.b16 %v2328
    %v7133 = vunpack.c.l.b16 %v2329
    %v7134 = vunpack.c.l.b16 %v2330
    %v7135 = vunpack.c.l.b16 %v2331
    %v7136 = vunpack.c.l.b16 %v2332
    %v7137 = vunpack.c.l.b16 %v2333
    %v7138 = vunpack.c.l.b16 %v2334
    %v7139 = vunpack.c.l.b16 %v2335
    %v7140 = vunpack.c.l.b16 %v2336
    %v7141 = vunpack.c.l.b16 %v2337
    %v7142 = vunpack.c.l.b16 %v2338
    %v7143 = vunpack.c.l.b16 %v2339
    %v7144 = vunpack.c.l.b16 %v2340
    %v7145 = vunpack.c.l.b16 %v2341
    %v7146 = vunpack.c.l.b16 %v2342
    %v7147 = vunpack.c.l.b16 %v2343
    %v7148 = vunpack.c.l.b16 %v2344
    %v7149 = vunpack.c.l.b16 %v2345
    %v7150 = vunpack.c.l.b16 %v2346
    %v7151 = vunpack.c.l.b16 %v2347
    %v7152 = vunpack.c.l.b16 %v2348
    %v7153 = vunpack.c.l.b16 %v2349
    %v7154 = vunpack.c.l.b16 %v2350
    %v7155 = vunpack.c.l.b16 %v2351
    %v7156 = vunpack.c.l.b16 %v2352
    %v7157 = vunpack.c.l.b16 %v2353
    %v7158 = vunpack.c.l.b16 %v2354
    %v7159 = vunpack.c.l.b16 %v2355
    %v7160 = vunpack.c.l.b16 %v2356
    %v7161 = vunpack.c.l.b16 %v2357
    %v7162 = vunpack.c.l.b16 %v2358
    %v7163 = vunpack.c.l.b16 %v2359
    %v7164 = vunpack.c.l.b16 %v2360
    %v7165 = vunpack.c.l.b16 %v2361
    %v7166 = vunpack.c.l.b16 %v2362
    %v7167 = vunpack.c.l.b16 %v2363
    %v7168 = vunpack.c.l.b16 %v2364
    %v7169 = vunpack.c.l.b16 %v2365
    %v7170 = vunpack.c.l.b16 %v2366
    %v7171 = vunpack.c.l.b16 %v2367
    %v7172 = vunpack.c.l.b16 %v2368
    %v7173 = vunpack.c.l.b16 %v2369
    %v7174 = vunpack.c.l.b16 %v2370
    %v7175 = vunpack.c.l.b16 %v2371
    %v7176 = vunpack.c.l.b16 %v2372
    %v7177 = vunpack.c.l.b16 %v2373
    %v7178 = vunpack.c.l.b16 %v2374
    %v7179 = vunpack.c.l.b16 %v2375
    %v7180 = vunpack.c.l.b16 %v2376
    %v7181 = vunpack.c.l.b16 %v2377
    %v7182 = vunpack.c.l.b16 %v2378
    %v7183 = vunpack.c.l.b16 %v2379
    %v7184 = vunpack.c.l.b16 %v2380
    %v7185 = vunpack.c.l.b16 %v2381
    %v7186 = vunpack.c.l.b16 %v2382
    %v7187 = vunpack.c.l.b16 %v2383
    %v7188 = vunpack.c.l.b16 %v2384
    %v7189 = vunpack.c.l.b16 %v2385
    %v7190 = vunpack.c.l.b16 %v2386
    %v7191 = vunpack.c.l.b16 %v2387
    %v7192 = vunpack.c.l.b16 %v2388
    %v7193 = vunpack.c.l.b16 %v2389
    %v7194 = vunpack.c.l.b16 %v2390
    %v7195 = vunpack.c.l.b16 %v2391
    %v7196 = vunpack.c.l.b16 %v2392
    %v7197 = vunpack.c.l.b16 %v2393
    %v7198 = vunpack.c.l.b16 %v2394
    %v7199 = vunpack.c.l.b16 %v2395
    %v7200 = vunpack.c.l.b16 %v2396
    %v7201 = vunpack.c.l.b16 %v2397
    %v7202 = vunpack.c.l.b16 %v2398
    %v7203 = vunpack.c.l.b16 %v2399
    %v7204 = vunpack.c.l.b16 %v2400
    %v7205 = vunpack.c.l.b16 %v2401
    %v7206 = vunpack.c.l.b16 %v2402
    %v7207 = vunpack.c.l.b16 %v2403
    %v7208 = vunpack.c.l.b16 %v2404
    %v7209 = vunpack.c.l.b16 %v2405
    %v7210 = vunpack.c.l.b16 %v2406
    %v7211 = vunpack.c.l.b16 %v2407
    %v7212 = vunpack.c.l.b16 %v2408
    %v7213 = vunpack.c.l.b16 %v2409
    %v7214 = vunpack.c.l.b16 %v2410
    %v7215 = vunpack.c.l.b16 %v2411
    %v7216 = vunpack.c.l.b16 %v2412
    %v7217 = vunpack.c.l.b16 %v2413
    %v7218 = vunpack.c.l.b16 %v2414
    %v7219 = vunpack.c.l.b16 %v2415
    %v7220 = vunpack.c.l.b16 %v2416
    %v7221 = vunpack.c.l.b16 %v2417
    %v7222 = vunpack.c.l.b16 %v2418
    %v7223 = vunpack.c.l.b16 %v2419
    %v7224 = vunpack.c.l.b16 %v2420
    %v7225 = vunpack.c.l.b16 %v2421
    %v7226 = vunpack.c.l.b16 %v2422
    %v7227 = vunpack.c.l.b16 %v2423
    %v7228 = vunpack.c.l.b16 %v2424
    %v7229 = vunpack.c.l.b16 %v2425
    %v7230 = vunpack.c.l.b16 %v2426
    %v7231 = vunpack.c.l.b16 %v2427
    %v7232 = vunpack.c.l.b16 %v2428
    %v7233 = vunpack.c.l.b16 %v2429
    %v7234 = vunpack.c.l.b16 %v2430
    %v7235 = vunpack.c.l.b16 %v2431
    %v7236 = vunpack.c.l.b16 %v2432
    %v7237 = vunpack.c.l.b16 %v2433
    %v7238 = vunpack.c.l.b16 %v2434
    %v7239 = vunpack.c.l.b16 %v2435
    %v7240 = vunpack.c.l.b16 %v2436
    %v7241 = vunpack.c.l.b16 %v2437
    %v7242 = vunpack.c.l.b16 %v2438
    %v7243 = vunpack.c.l.b16 %v2439
    %v7244 = vunpack.c.l.b16 %v2440
    %v7245 = vunpack.c.l.b16 %v2441
    %v7246 = vunpack.c.l.b16 %v2442
    %v7247 = vunpack.c.l.b16 %v2443
    %v7248 = vunpack.c.l.b16 %v2444
    %v7249 = vunpack.c.l.b16 %v2445
    %v7250 = vunpack.c.l.b16 %v2446
    %v7251 = vunpack.c.l.b16 %v2447
    %v7252 = vunpack.c.l.b16 %v2448
    %v7253 = vunpack.c.l.b16 %v2449
    %v7254 = vunpack.c.l.b16 %v2450
    %v7255 = vunpack.c.l.b16 %v2451
    %v7256 = vunpack.c.l.b16 %v2452
    %v7257 = vunpack.c.l.b16 %v2453
    %v7258 = vunpack.c.l.b16 %v2454
    %v7259 = vunpack.c.l.b16 %v2455
    %v7260 = vunpack.c.l.b16 %v2456
    %v7261 = vunpack.c.l.b16 %v2457
    %v7262 = vunpack.c.l.b16 %v2458
    %v7263 = vunpack.c.l.b16 %v2459
    %v7264 = vunpack.c.l.b16 %v2460
    %v7265 = vunpack.c.l.b16 %v2461
    %v7266 = vunpack.c.l.b16 %v2462
    %v7267 = vunpack.c.l.b16 %v2463
    %v7268 = vunpack.c.l.b16 %v2464
    %v7269 = vunpack.c.l.b16 %v2465
    %v7270 = vunpack.c.l.b16 %v2466
    %v7271 = vunpack.c.l.b16 %v2467
    %v7272 = vunpack.c.l.b16 %v2468
    %v7273 = vunpack.c.l.b16 %v2469
    %v7274 = vunpack.c.l.b16 %v2470
    %v7275 = vunpack.c.l.b16 %v2471
    %v7276 = vunpack.c.l.b16 %v2472
    %v7277 = vunpack.c.l.b16 %v2473
    %v7278 = vunpack.c.l.b16 %v2474
    %v7279 = vunpack.c.l.b16 %v2475
    %v7280 = vunpack.c.l.b16 %v2476
    %v7281 = vunpack.c.l.b16 %v2477
    %v7282 = vunpack.c.l.b16 %v2478
    %v7283 = vunpack.c.l.b16 %v2479
    %v7284 = vunpack.c.l.b16 %v2480
    %v7285 = vunpack.c.l.b16 %v2481
    %v7286 = vunpack.c.l.b16 %v2482
    %v7287 = vunpack.c.l.b16 %v2483
    %v7288 = vunpack.c.l.b16 %v2484
    %v7289 = vunpack.c.l.b16 %v2485
    %v7290 = vunpack.c.l.b16 %v2486
    %v7291 = vunpack.c.l.b16 %v2487
    %v7292 = vunpack.c.l.b16 %v2488
    %v7293 = vunpack.c.l.b16 %v2489
    %v7294 = vunpack.c.l.b16 %v2490
    %v7295 = vunpack.c.l.b16 %v2491
    %v7296 = vunpack.c.l.b16 %v2492
    %v7297 = vunpack.c.l.b16 %v2493
    %v7298 = vunpack.c.l.b16 %v2494
    %v7299 = vunpack.c.l.b16 %v2495
    %v7300 = vunpack.c.l.b16 %v2496
    %v7301 = vunpack.c.l.b16 %v2497
    %v7302 = vunpack.c.l.b16 %v2498
    %v7303 = vunpack.c.l.b16 %v2499
    %v7304 = vunpack.c.l.b16 %v2500
    %v7305 = vunpack.c.l.b16 %v2501
    %v7306 = vunpack.c.l.b16 %v2502
    %v7307 = vunpack.c.l.b16 %v2503
    %v7308 = vunpack.c.l.b16 %v2504
    %v7309 = vunpack.c.l.b16 %v2505
    %v7310 = vunpack.c.l.b16 %v2506
    %v7311 = vunpack.c.l.b16 %v2507
    %v7312 = vunpack.c.l.b16 %v2508
    %v7313 = vunpack.c.l.b16 %v2509
    %v7314 = vunpack.c.l.b16 %v2510
    %v7315 = vunpack.c.l.b16 %v2511
    %v7316 = vunpack.c.l.b16 %v2512
    %v7317 = vunpack.c.l.b16 %v2513
    %v7318 = vunpack.c.l.b16 %v2514
    %v7319 = vunpack.c.l.b16 %v2515
    %v7320 = vunpack.c.l.b16 %v2516
    %v7321 = vunpack.c.l.b16 %v2517
    %v7322 = vunpack.c.l.b16 %v2518
    %v7323 = vunpack.c.l.b16 %v2519
    %v7324 = vunpack.c.l.b16 %v2520
    %v7325 = vunpack.c.l.b16 %v2521
    %v7326 = vunpack.c.l.b16 %v2522
    %v7327 = vunpack.c.l.b16 %v2523
    %v7328 = vunpack.c.l.b16 %v2524
    %v7329 = vunpack.c.l.b16 %v2525
    %v7330 = vunpack.c.l.b16 %v2526
    %v7331 = vunpack.c.l.b16 %v2527
    %v7332 = vunpack.c.l.b16 %v2528
    %v7333 = vunpack.c.l.b16 %v2529
    %v7334 = vunpack.c.l.b16 %v2530
    %v7335 = vunpack.c.l.b16 %v2531
    %v7336 = vunpack.c.l.b16 %v2532
    %v7337 = vunpack.c.l.b16 %v2533
    %v7338 = vunpack.c.l.b16 %v2534
    %v7339 = vunpack.c.l.b16 %v2535
    %v7340 = vunpack.c.l.b16 %v2536
    %v7341 = vunpack.c.l.b16 %v2537
    %v7342 = vunpack.c.l.b16 %v2538
    %v7343 = vunpack.c.l.b16 %v2539
    %v7344 = vunpack.c.l.b16 %v2540
    %v7345 = vunpack.c.l.b16 %v2541
    %v7346 = vunpack.c.l.b16 %v2542
    %v7347 = vunpack.c.l.b16 %v2543
    %v7348 = vunpack.c.l.b16 %v2544
    %v7349 = vunpack.c.l.b16 %v2545
    %v7350 = vunpack.c.l.b16 %v2546
    %v7351 = vunpack.c.l.b16 %v2547
    %v7352 = vunpack.c.l.b16 %v2548
    %v7353 = vunpack.c.l.b16 %v2549
    %v7354 = vunpack.c.l.b16 %v2550
    %v7355 = vunpack.c.l.b16 %v2551
    %v7356 = vunpack.c.l.b16 %v2552
    %v7357 = vunpack.c.l.b16 %v2553
    %v7358 = vunpack.c.l.b16 %v2554
    %v7359 = vunpack.c.l.b16 %v2555
    %v7360 = vunpack.c.l.b16 %v2556
    %v7361 = vunpack.c.l.b16 %v2557
    %v7362 = vunpack.c.l.b16 %v2558
    %v7363 = vunpack.c.l.b16 %v2559
    %v7364 = vunpack.c.l.b16 %v2560
    %v7365 = vunpack.c.l.b16 %v2561
    %v7366 = vunpack.c.l.b16 %v2562
    %v7367 = vunpack.c.l.b16 %v2563
    %v7368 = vunpack.c.l.b16 %v2564
    %v7369 = vunpack.c.l.b16 %v2565
    %v7370 = vunpack.c.l.b16 %v2566
    %v7371 = vunpack.c.l.b16 %v2567
    %v7372 = vunpack.c.l.b16 %v2568
    %v7373 = vunpack.c.l.b16 %v2569
    %v7374 = vunpack.c.l.b16 %v2570
    %v7375 = vunpack.c.l.b16 %v2571
    %v7376 = vunpack.c.l.b16 %v2572
    %v7377 = vunpack.c.l.b16 %v2573
    %v7378 = vunpack.c.l.b16 %v2574
    %v7379 = vunpack.c.l.b16 %v2575
    %v7380 = vunpack.c.l.b16 %v2576
    %v7381 = vunpack.c.l.b16 %v2577
    %v7382 = vunpack.c.l.b16 %v2578
    %v7383 = vunpack.c.l.b16 %v2579
    %v7384 = vunpack.c.l.b16 %v2580
    %v7385 = vunpack.c.l.b16 %v2581
    %v7386 = vunpack.c.l.b16 %v2582
    %v7387 = vunpack.c.l.b16 %v2583
    %v7388 = vunpack.c.l.b16 %v2584
    %v7389 = vunpack.c.l.b16 %v2585
    %v7390 = vunpack.c.l.b16 %v2586
    %v7391 = vunpack.c.l.b16 %v2587
    %v7392 = vunpack.c.l.b16 %v2588
    %v7393 = vunpack.c.l.b16 %v2589
    %v7394 = vunpack.c.l.b16 %v2590
    %v7395 = vunpack.c.l.b16 %v2591
    %v7396 = vunpack.c.l.b16 %v2592
    %v7397 = vunpack.c.l.b16 %v2593
    %v7398 = vunpack.c.l.b16 %v2594
    %v7399 = vunpack.c.l.b16 %v2595
    %v7400 = vunpack.c.l.b16 %v2596
    %v7401 = vunpack.c.l.b16 %v2597
    %v7402 = vunpack.c.l.b16 %v2598
    %v7403 = vunpack.c.l.b16 %v2599
    %v7404 = vunpack.c.l.b16 %v2600
    %v7405 = vunpack.c.l.b16 %v2601
    %v7406 = vunpack.c.l.b16 %v2602
    %v7407 = vunpack.c.l.b16 %v2603
    %v7408 = vunpack.c.l.b16 %v2604
    %v7409 = vunpack.c.l.b16 %v2605
    %v7410 = vunpack.c.l.b16 %v2606
    %v7411 = vunpack.c.l.b16 %v2607
    %v7412 = vunpack.c.l.b16 %v2608
    %v7413 = vunpack.c.l.b16 %v2609
    %v7414 = vunpack.c.l.b16 %v2610
    %v7415 = vunpack.c.l.b16 %v2611
    %v7416 = vunpack.c.l.b16 %v2612
    %v7417 = vunpack.c.l.b16 %v2613
    %v7418 = vunpack.c.l.b16 %v2614
    %v7419 = vunpack.c.l.b16 %v2615
    %v7420 = vunpack.c.l.b16 %v2616
    %v7421 = vunpack.c.l.b16 %v2617
    %v7422 = vunpack.c.l.b16 %v2618
    %v7423 = vunpack.c.l.b16 %v2619
    %v7424 = vunpack.c.l.b16 %v2620
    %v7425 = vunpack.c.l.b16 %v2621
    %v7426 = vunpack.c.l.b16 %v2622
    %v7427 = vunpack.c.l.b16 %v2623
    %v7428 = vunpack.c.l.b16 %v2624
    %v7429 = vunpack.c.l.b16 %v2625
    %v7430 = vunpack.c.l.b16 %v2626
    %v7431 = vunpack.c.l.b16 %v2627
    %v7432 = vunpack.c.l.b16 %v2628
    %v7433 = vunpack.c.l.b16 %v2629
    %v7434 = vunpack.c.l.b16 %v2630
    %v7435 = vunpack.c.l.b16 %v2631
    %v7436 = vunpack.c.l.b16 %v2632
    %v7437 = vunpack.c.l.b16 %v2633
    %v7438 = vunpack.c.l.b16 %v2634
    %v7439 = vunpack.c.l.b16 %v2635
    %v7440 = vunpack.c.l.b16 %v2636
    %v7441 = vunpack.c.l.b16 %v2637
    %v7442 = vunpack.c.l.b16 %v2638
    %v7443 = vunpack.c.l.b16 %v2639
    %v7444 = vunpack.c.l.b16 %v2640
    %v7445 = vunpack.c.l.b16 %v2641
    %v7446 = vunpack.c.l.b16 %v2642
    %v7447 = vunpack.c.l.b16 %v2643
    %v7448 = vunpack.c.l.b16 %v2644
    %v7449 = vunpack.c.l.b16 %v2645
    %v7450 = vunpack.c.l.b16 %v2646
    %v7451 = vunpack.c.l.b16 %v2647
    %v7452 = vunpack.c.l.b16 %v2648
    %v7453 = vunpack.c.l.b16 %v2649
    %v7454 = vunpack.c.l.b16 %v2650
    %v7455 = vunpack.c.l.b16 %v2651
    %v7456 = vunpack.c.l.b16 %v2652
    %v7457 = vunpack.c.l.b16 %v2653
    %v7458 = vunpack.c.l.b16 %v2654
    %v7459 = vunpack.c.l.b16 %v2655
    %v7460 = vunpack.c.l.b16 %v2656
    %v7461 = vunpack.c.l.b16 %v2657
    %v7462 = vunpack.c.l.b16 %v2658
    %v7463 = vunpack.c.l.b16 %v2659
    %v7464 = vunpack.c.l.b16 %v2660
    %v7465 = vunpack.c.l.b16 %v2661
    %v7466 = vunpack.c.l.b16 %v2662
    %v7467 = vunpack.c.l.b16 %v2663
    %v7468 = vunpack.c.l.b16 %v2664
    %v7469 = vunpack.c.l.b16 %v2665
    %v7470 = vunpack.c.l.b16 %v2666
    %v7471 = vunpack.c.l.b16 %v2667
    %v7472 = vunpack.c.l.b16 %v2668
    %v7473 = vunpack.c.l.b16 %v2669
    %v7474 = vunpack.c.l.b16 %v2670
    %v7475 = vunpack.c.l.b16 %v2671
    %v7476 = vunpack.c.l.b16 %v2672
    %v7477 = vunpack.c.l.b16 %v2673
    %v7478 = vunpack.c.l.b16 %v2674
    %v7479 = vunpack.c.l.b16 %v2675
    %v7480 = vunpack.c.l.b16 %v2676
    %v7481 = vunpack.c.l.b16 %v2677
    %v7482 = vunpack.c.l.b16 %v2678
    %v7483 = vunpack.c.l.b16 %v2679
    %v7484 = vunpack.c.l.b16 %v2680
    %v7485 = vunpack.c.l.b16 %v2681
    %v7486 = vunpack.c.l.b16 %v2682
    %v7487 = vunpack.c.l.b16 %v2683
    %v7488 = vunpack.c.l.b16 %v2684
    %v7489 = vunpack.c.l.b16 %v2685
    %v7490 = vunpack.c.l.b16 %v2686
    %v7491 = vunpack.c.l.b16 %v2687
    %v7492 = vunpack.c.l.b16 %v2688
    %v7493 = vunpack.c.l.b16 %v2689
    %v7494 = vunpack.c.l.b16 %v2690
    %v7495 = vunpack.c.l.b16 %v2691
    %v7496 = vunpack.c.l.b16 %v2692
    %v7497 = vunpack.c.l.b16 %v2693
    %v7498 = vunpack.c.l.b16 %v2694
    %v7499 = vunpack.c.l.b16 %v2695
    %v7500 = vunpack.c.l.b16 %v2696
    %v7501 = vunpack.c.l.b16 %v2697
    %v7502 = vunpack.c.l.b16 %v2698
    %v7503 = vunpack.c.l.b16 %v2699
    %v7504 = vunpack.c.l.b16 %v2700
    %v7505 = vunpack.c.l.b16 %v2701
    %v7506 = vunpack.c.l.b16 %v2702
    %v7507 = vunpack.c.l.b16 %v2703
    %v7508 = vunpack.c.l.b16 %v2704
    %v7509 = vunpack.c.l.b16 %v2705
    %v7510 = vunpack.c.l.b16 %v2706
    %v7511 = vunpack.c.l.b16 %v2707
    %v7512 = vunpack.c.l.b16 %v2708
    %v7513 = vunpack.c.l.b16 %v2709
    %v7514 = vunpack.c.l.b16 %v2710
    %v7515 = vunpack.c.l.b16 %v2711
    %v7516 = vunpack.c.l.b16 %v2712
    %v7517 = vunpack.c.l.b16 %v2713
    %v7518 = vunpack.c.l.b16 %v2714
    %v7519 = vunpack.c.l.b16 %v2715
    %v7520 = vunpack.c.l.b16 %v2716
    %v7521 = vunpack.c.l.b16 %v2717
    %v7522 = vunpack.c.l.b16 %v2718
    %v7523 = vunpack.c.l.b16 %v2719
    %v7524 = vunpack.c.l.b16 %v2720
    %v7525 = vunpack.c.l.b16 %v2721
    %v7526 = vunpack.c.l.b16 %v2722
    %v7527 = vunpack.c.l.b16 %v2723
    %v7528 = vunpack.c.l.b16 %v2724
    %v7529 = vunpack.c.l.b16 %v2725
    %v7530 = vunpack.c.l.b16 %v2726
    %v7531 = vunpack.c.l.b16 %v2727
    %v7532 = vunpack.c.l.b16 %v2728
    %v7533 = vunpack.c.l.b16 %v2729
    %v7534 = vunpack.c.l.b16 %v2730
    %v7535 = vunpack.c.l.b16 %v2731
    %v7536 = vunpack.c.l.b16 %v2732
    %v7537 = vunpack.c.l.b16 %v2733
    %v7538 = vunpack.c.l.b16 %v2734
    %v7539 = vunpack.c.l.b16 %v2735
    %v7540 = vunpack.c.l.b16 %v2736
    %v7541 = vunpack.c.l.b16 %v2737
    %v7542 = vunpack.c.l.b16 %v2738
    %v7543 = vunpack.c.l.b16 %v2739
    %v7544 = vunpack.c.l.b16 %v2740
    %v7545 = vunpack.c.l.b16 %v2741
    %v7546 = vunpack.c.l.b16 %v2742
    %v7547 = vunpack.c.l.b16 %v2743
    %v7548 = vunpack.c.l.b16 %v2744
    %v7549 = vunpack.c.l.b16 %v2745
    %v7550 = vunpack.c.l.b16 %v2746
    %v7551 = vunpack.c.l.b16 %v2747
    %v7552 = vunpack.c.l.b16 %v2748
    %v7553 = vunpack.c.l.b16 %v2749
    %v7554 = vunpack.c.l.b16 %v2750
    %v7555 = vunpack.c.l.b16 %v2751
    %v7556 = vunpack.c.l.b16 %v2752
    %v7557 = vunpack.c.l.b16 %v2753
    %v7558 = vunpack.c.l.b16 %v2754
    %v7559 = vunpack.c.l.b16 %v2755
    %v7560 = vunpack.c.l.b16 %v2756
    %v7561 = vunpack.c.l.b16 %v2757
    %v7562 = vunpack.c.l.b16 %v2758
    %v7563 = vunpack.c.l.b16 %v2759
    %v7564 = vunpack.c.l.b16 %v2760
    %v7565 = vunpack.c.l.b16 %v2761
    %v7566 = vunpack.c.l.b16 %v2762
    %v7567 = vunpack.c.l.b16 %v2763
    %v7568 = vunpack.c.l.b16 %v2764
    %v7569 = vunpack.c.l.b16 %v2765
    %v7570 = vunpack.c.l.b16 %v2766
    %v7571 = vunpack.c.l.b16 %v2767
    %v7572 = vunpack.c.l.b16 %v2768
    %v7573 = vunpack.c.l.b16 %v2769
    %v7574 = vunpack.c.l.b16 %v2770
    %v7575 = vunpack.c.l.b16 %v2771
    %v7576 = vunpack.c.l.b16 %v2772
    %v7577 = vunpack.c.l.b16 %v2773
    %v7578 = vunpack.c.l.b16 %v2774
    %v7579 = vunpack.c.l.b16 %v2775
    %v7580 = vunpack.c.l.b16 %v2776
    %v7581 = vunpack.c.l.b16 %v2777
    %v7582 = vunpack.c.l.b16 %v2778
    %v7583 = vunpack.c.l.b16 %v2779
    %v7584 = vunpack.c.l.b16 %v2780
    %v7585 = vunpack.c.l.b16 %v2781
    %v7586 = vunpack.c.l.b16 %v2782
    %v7587 = vunpack.c.l.b16 %v2783
    %v7588 = vunpack.c.l.b16 %v2784
    %v7589 = vunpack.c.l.b16 %v2785
    %v7590 = vunpack.c.l.b16 %v2786
    %v7591 = vunpack.c.l.b16 %v2787
    %v7592 = vunpack.c.l.b16 %v2788
    %v7593 = vunpack.c.l.b16 %v2789
    %v7594 = vunpack.c.l.b16 %v2790
    %v7595 = vunpack.c.l.b16 %v2791
    %v7596 = vunpack.c.l.b16 %v2792
    %v7597 = vunpack.c.l.b16 %v2793
    %v7598 = vunpack.c.l.b16 %v2794
    %v7599 = vunpack.c.l.b16 %v2795
    %v7600 = vunpack.c.l.b16 %v2796
    %v7601 = vunpack.c.l.b16 %v2797
    %v7602 = vunpack.c.l.b16 %v2798
    %v7603 = vunpack.c.l.b16 %v2799
    %v7604 = vunpack.c.l.b16 %v2800
    %v7605 = vunpack.c.l.b16 %v2801
    %v7606 = vunpack.c.l.b16 %v2802
    %v7607 = vunpack.c.l.b16 %v2803
    %v7608 = vunpack.c.l.b16 %v2804
    %v7609 = vunpack.c.l.b16 %v2805
    %v7610 = vunpack.c.l.b16 %v2806
    %v7611 = vunpack.c.l.b16 %v2807
    %v7612 = vunpack.c.l.b16 %v2808
    %v7613 = vunpack.c.l.b16 %v2809
    %v7614 = vunpack.c.l.b16 %v2810
    %v7615 = vunpack.c.l.b16 %v2811
    %v7616 = vunpack.c.l.b16 %v2812
    %v7617 = vunpack.c.l.b16 %v2813
    %v7618 = vunpack.c.l.b16 %v2814
    %v7619 = vunpack.c.l.b16 %v2815
    %v7620 = vunpack.c.l.b16 %v2816
    %v7621 = vunpack.c.l.b16 %v2817
    %v7622 = vunpack.c.l.b16 %v2818
    %v7623 = vunpack.c.l.b16 %v2819
    %v7624 = vunpack.c.l.b16 %v2820
    %v7625 = vunpack.c.l.b16 %v2821
    %v7626 = vunpack.c.l.b16 %v2822
    %v7627 = vunpack.c.l.b16 %v2823
    %v7628 = vunpack.c.l.b16 %v2824
    %v7629 = vunpack.c.l.b16 %v2825
    %v7630 = vunpack.c.l.b16 %v2826
    %v7631 = vunpack.c.l.b16 %v2827
    %v7632 = vunpack.c.l.b16 %v2828
    %v7633 = vunpack.c.l.b16 %v2829
    %v7634 = vunpack.c.l.b16 %v2830
    %v7635 = vunpack.c.l.b16 %v2831
    %v7636 = vunpack.c.l.b16 %v2832
    %v7637 = vunpack.c.l.b16 %v2833
    %v7638 = vunpack.c.l.b16 %v2834
    %v7639 = vunpack.c.l.b16 %v2835
    %v7640 = vunpack.c.l.b16 %v2836
    %v7641 = vunpack.c.l.b16 %v2837
    %v7642 = vunpack.c.l.b16 %v2838
    %v7643 = vunpack.c.l.b16 %v2839
    %v7644 = vunpack.c.l.b16 %v2840
    %v7645 = vunpack.c.l.b16 %v2841
    %v7646 = vunpack.c.l.b16 %v2842
    %v7647 = vunpack.c.l.b16 %v2843
    %v7648 = vunpack.c.l.b16 %v2844
    %v7649 = vunpack.c.l.b16 %v2845
    %v7650 = vunpack.c.l.b16 %v2846
    %v7651 = vunpack.c.l.b16 %v2847
    %v7652 = vunpack.c.l.b16 %v2848
    %v7653 = vunpack.c.l.b16 %v2849
    %v7654 = vpack.c.b16 %v5255, %v5254
    %v7655 = vpack.c.b16 %v5257, %v5256
    %v7656 = vpack.c.b16 %v5259, %v5258
    %v7657 = vpack.c.b16 %v5261, %v5260
    %v7658 = vpack.c.b16 %v5263, %v5262
    %v7659 = vpack.c.b16 %v5265, %v5264
    %v7660 = vpack.c.b16 %v5267, %v5266
    %v7661 = vpack.c.b16 %v5269, %v5268
    %v7662 = vpack.c.b16 %v5271, %v5270
    %v7663 = vpack.c.b16 %v5273, %v5272
    %v7664 = vpack.c.b16 %v5275, %v5274
    %v7665 = vpack.c.b16 %v5277, %v5276
    %v7666 = vpack.c.b16 %v5279, %v5278
    %v7667 = vpack.c.b16 %v5281, %v5280
    %v7668 = vpack.c.b16 %v5283, %v5282
    %v7669 = vpack.c.b16 %v5285, %v5284
    %v7670 = vpack.c.b16 %v5287, %v5286
    %v7671 = vpack.c.b16 %v5289, %v5288
    %v7672 = vpack.c.b16 %v5291, %v5290
    %v7673 = vpack.c.b16 %v5293, %v5292
    %v7674 = vpack.c.b16 %v5295, %v5294
    %v7675 = vpack.c.b16 %v5297, %v5296
    %v7676 = vpack.c.b16 %v5299, %v5298
    %v7677 = vpack.c.b16 %v5301, %v5300
    %v7678 = vpack.c.b16 %v5303, %v5302
    %v7679 = vpack.c.b16 %v5305, %v5304
    %v7680 = vpack.c.b16 %v5307, %v5306
    %v7681 = vpack.c.b16 %v5309, %v5308
    %v7682 = vpack.c.b16 %v5311, %v5310
    %v7683 = vpack.c.b16 %v5313, %v5312
    %v7684 = vpack.c.b16 %v5315, %v5314
    %v7685 = vpack.c.b16 %v5317, %v5316
    %v7686 = vpack.c.b16 %v5319, %v5318
    %v7687 = vpack.c.b16 %v5321, %v5320
    %v7688 = vpack.c.b16 %v5323, %v5322
    %v7689 = vpack.c.b16 %v5325, %v5324
    %v7690 = vpack.c.b16 %v5327, %v5326
    %v7691 = vpack.c.b16 %v5329, %v5328
    %v7692 = vpack.c.b16 %v5331, %v5330
    %v7693 = vpack.c.b16 %v5333, %v5332
    %v7694 = vpack.c.b16 %v5335, %v5334
    %v7695 = vpack.c.b16 %v5337, %v5336
    %v7696 = vpack.c.b16 %v5339, %v5338
    %v7697 = vpack.c.b16 %v5341, %v5340
    %v7698 = vpack.c.b16 %v5343, %v5342
    %v7699 = vpack.c.b16 %v5345, %v5344
    %v7700 = vpack.c.b16 %v5347, %v5346
    %v7701 = vpack.c.b16 %v5349, %v5348
    %v7702 = vpack.c.b16 %v5351, %v5350
    %v7703 = vpack.c.b16 %v5353, %v5352
    %v7704 = vpack.c.b16 %v5355, %v5354
    %v7705 = vpack.c.b16 %v5357, %v5356
    %v7706 = vpack.c.b16 %v5359, %v5358
    %v7707 = vpack.c.b16 %v5361, %v5360
    %v7708 = vpack.c.b16 %v5363, %v5362
    %v7709 = vpack.c.b16 %v5365, %v5364
    %v7710 = vpack.c.b16 %v5367, %v5366
    %v7711 = vpack.c.b16 %v5369, %v5368
    %v7712 = vpack.c.b16 %v5371, %v5370
    %v7713 = vpack.c.b16 %v5373, %v5372
    %v7714 = vpack.c.b16 %v5375, %v5374
    %v7715 = vpack.c.b16 %v5377, %v5376
    %v7716 = vpack.c.b16 %v5379, %v5378
    %v7717 = vpack.c.b16 %v5381, %v5380
    %v7718 = vpack.c.b16 %v5383, %v5382
    %v7719 = vpack.c.b16 %v5385, %v5384
    %v7720 = vpack.c.b16 %v5387, %v5386
    %v7721 = vpack.c.b16 %v5389, %v5388
    %v7722 = vpack.c.b16 %v5391, %v5390
    %v7723 = vpack.c.b16 %v5393, %v5392
    %v7724 = vpack.c.b16 %v5395, %v5394
    %v7725 = vpack.c.b16 %v5397, %v5396
    %v7726 = vpack.c.b16 %v5399, %v5398
    %v7727 = vpack.c.b16 %v5401, %v5400
    %v7728 = vpack.c.b16 %v5403, %v5402
    %v7729 = vpack.c.b16 %v5405, %v5404
    %v7730 = vpack.c.b16 %v5407, %v5406
    %v7731 = vpack.c.b16 %v5409, %v5408
    %v7732 = vpack.c.b16 %v5411, %v5410
    %v7733 = vpack.c.b16 %v5413, %v5412
    %v7734 = vpack.c.b16 %v5415, %v5414
    %v7735 = vpack.c.b16 %v5417, %v5416
    %v7736 = vpack.c.b16 %v5419, %v5418
    %v7737 = vpack.c.b16 %v5421, %v5420
    %v7738 = vpack.c.b16 %v5423, %v5422
    %v7739 = vpack.c.b16 %v5425, %v5424
    %v7740 = vpack.c.b16 %v5427, %v5426
    %v7741 = vpack.c.b16 %v5429, %v5428
    %v7742 = vpack.c.b16 %v5431, %v5430
    %v7743 = vpack.c.b16 %v5433, %v5432
    %v7744 = vpack.c.b16 %v5435, %v5434
    %v7745 = vpack.c.b16 %v5437, %v5436
    %v7746 = vpack.c.b16 %v5439, %v5438
    %v7747 = vpack.c.b16 %v5441, %v5440
    %v7748 = vpack.c.b16 %v5443, %v5442
    %v7749 = vpack.c.b16 %v5445, %v5444
    %v7750 = vpack.c.b16 %v5447, %v5446
    %v7751 = vpack.c.b16 %v5449, %v5448
    %v7752 = vpack.c.b16 %v5451, %v5450
    %v7753 = vpack.c.b16 %v5453, %v5452
    %v7754 = vpack.c.b16 %v5455, %v5454
    %v7755 = vpack.c.b16 %v5457, %v5456
    %v7756 = vpack.c.b16 %v5459, %v5458
    %v7757 = vpack.c.b16 %v5461, %v5460
    %v7758 = vpack.c.b16 %v5463, %v5462
    %v7759 = vpack.c.b16 %v5465, %v5464
    %v7760 = vpack.c.b16 %v5467, %v5466
    %v7761 = vpack.c.b16 %v5469, %v5468
    %v7762 = vpack.c.b16 %v5471, %v5470
    %v7763 = vpack.c.b16 %v5473, %v5472
    %v7764 = vpack.c.b16 %v5475, %v5474
    %v7765 = vpack.c.b16 %v5477, %v5476
    %v7766 = vpack.c.b16 %v5479, %v5478
    %v7767 = vpack.c.b16 %v5481, %v5480
    %v7768 = vpack.c.b16 %v5483, %v5482
    %v7769 = vpack.c.b16 %v5485, %v5484
    %v7770 = vpack.c.b16 %v5487, %v5486
    %v7771 = vpack.c.b16 %v5489, %v5488
    %v7772 = vpack.c.b16 %v5491, %v5490
    %v7773 = vpack.c.b16 %v5493, %v5492
    %v7774 = vpack.c.b16 %v5495, %v5494
    %v7775 = vpack.c.b16 %v5497, %v5496
    %v7776 = vpack.c.b16 %v5499, %v5498
    %v7777 = vpack.c.b16 %v5501, %v5500
    %v7778 = vpack.c.b16 %v5503, %v5502
    %v7779 = vpack.c.b16 %v5505, %v5504
    %v7780 = vpack.c.b16 %v5507, %v5506
    %v7781 = vpack.c.b16 %v5509, %v5508
    %v7782 = vpack.c.b16 %v5511, %v5510
    %v7783 = vpack.c.b16 %v5513, %v5512
    %v7784 = vpack.c.b16 %v5515, %v5514
    %v7785 = vpack.c.b16 %v5517, %v5516
    %v7786 = vpack.c.b16 %v5519, %v5518
    %v7787 = vpack.c.b16 %v5521, %v5520
    %v7788 = vpack.c.b16 %v5523, %v5522
    %v7789 = vpack.c.b16 %v5525, %v5524
    %v7790 = vpack.c.b16 %v5527, %v5526
    %v7791 = vpack.c.b16 %v5529, %v5528
    %v7792 = vpack.c.b16 %v5531, %v5530
    %v7793 = vpack.c.b16 %v5533, %v5532
    %v7794 = vpack.c.b16 %v5535, %v5534
    %v7795 = vpack.c.b16 %v5537, %v5536
    %v7796 = vpack.c.b16 %v5539, %v5538
    %v7797 = vpack.c.b16 %v5541, %v5540
    %v7798 = vpack.c.b16 %v5543, %v5542
    %v7799 = vpack.c.b16 %v5545, %v5544
    %v7800 = vpack.c.b16 %v5547, %v5546
    %v7801 = vpack.c.b16 %v5549, %v5548
    %v7802 = vpack.c.b16 %v5551, %v5550
    %v7803 = vpack.c.b16 %v5553, %v5552
    %v7804 = vpack.c.b16 %v5555, %v5554
    %v7805 = vpack.c.b16 %v5557, %v5556
    %v7806 = vpack.c.b16 %v5559, %v5558
    %v7807 = vpack.c.b16 %v5561, %v5560
    %v7808 = vpack.c.b16 %v5563, %v5562
    %v7809 = vpack.c.b16 %v5565, %v5564
    %v7810 = vpack.c.b16 %v5567, %v5566
    %v7811 = vpack.c.b16 %v5569, %v5568
    %v7812 = vpack.c.b16 %v5571, %v5570
    %v7813 = vpack.c.b16 %v5573, %v5572
    %v7814 = vpack.c.b16 %v5575, %v5574
    %v7815 = vpack.c.b16 %v5577, %v5576
    %v7816 = vpack.c.b16 %v5579, %v5578
    %v7817 = vpack.c.b16 %v5581, %v5580
    %v7818 = vpack.c.b16 %v5583, %v5582
    %v7819 = vpack.c.b16 %v5585, %v5584
    %v7820 = vpack.c.b16 %v5587, %v5586
    %v7821 = vpack.c.b16 %v5589, %v5588
    %v7822 = vpack.c.b16 %v5591, %v5590
    %v7823 = vpack.c.b16 %v5593, %v5592
    %v7824 = vpack.c.b16 %v5595, %v5594
    %v7825 = vpack.c.b16 %v5597, %v5596
    %v7826 = vpack.c.b16 %v5599, %v5598
    %v7827 = vpack.c.b16 %v5601, %v5600
    %v7828 = vpack.c.b16 %v5603, %v5602
    %v7829 = vpack.c.b16 %v5605, %v5604
    %v7830 = vpack.c.b16 %v5607, %v5606
    %v7831 = vpack.c.b16 %v5609, %v5608
    %v7832 = vpack.c.b16 %v5611, %v5610
    %v7833 = vpack.c.b16 %v5613, %v5612
    %v7834 = vpack.c.b16 %v5615, %v5614
    %v7835 = vpack.c.b16 %v5617, %v5616
    %v7836 = vpack.c.b16 %v5619, %v5618
    %v7837 = vpack.c.b16 %v5621, %v5620
    %v7838 = vpack.c.b16 %v5623, %v5622
    %v7839 = vpack.c.b16 %v5625, %v5624
    %v7840 = vpack.c.b16 %v5627, %v5626
    %v7841 = vpack.c.b16 %v5629, %v5628
    %v7842 = vpack.c.b16 %v5631, %v5630
    %v7843 = vpack.c.b16 %v5633, %v5632
    %v7844 = vpack.c.b16 %v5635, %v5634
    %v7845 = vpack.c.b16 %v5637, %v5636
    %v7846 = vpack.c.b16 %v5639, %v5638
    %v7847 = vpack.c.b16 %v5641, %v5640
    %v7848 = vpack.c.b16 %v5643, %v5642
    %v7849 = vpack.c.b16 %v5645, %v5644
    %v7850 = vpack.c.b16 %v5647, %v5646
    %v7851 = vpack.c.b16 %v5649, %v5648
    %v7852 = vpack.c.b16 %v5651, %v5650
    %v7853 = vpack.c.b16 %v5653, %v5652
    %v7854 = vpack.c.b16 %v5655, %v5654
    %v7855 = vpack.c.b16 %v5657, %v5656
    %v7856 = vpack.c.b16 %v5659, %v5658
    %v7857 = vpack.c.b16 %v5661, %v5660
    %v7858 = vpack.c.b16 %v5663, %v5662
    %v7859 = vpack.c.b16 %v5665, %v5664
    %v7860 = vpack.c.b16 %v5667, %v5666
    %v7861 = vpack.c.b16 %v5669, %v5668
    %v7862 = vpack.c.b16 %v5671, %v5670
    %v7863 = vpack.c.b16 %v5673, %v5672
    %v7864 = vpack.c.b16 %v5675, %v5674
    %v7865 = vpack.c.b16 %v5677, %v5676
    %v7866 = vpack.c.b16 %v5679, %v5678
    %v7867 = vpack.c.b16 %v5681, %v5680
    %v7868 = vpack.c.b16 %v5683, %v5682
    %v7869 = vpack.c.b16 %v5685, %v5684
    %v7870 = vpack.c.b16 %v5687, %v5686
    %v7871 = vpack.c.b16 %v5689, %v5688
    %v7872 = vpack.c.b16 %v5691, %v5690
    %v7873 = vpack.c.b16 %v5693, %v5692
    %v7874 = vpack.c.b16 %v5695, %v5694
    %v7875 = vpack.c.b16 %v5697, %v5696
    %v7876 = vpack.c.b16 %v5699, %v5698
    %v7877 = vpack.c.b16 %v5701, %v5700
    %v7878 = vpack.c.b16 %v5703, %v5702
    %v7879 = vpack.c.b16 %v5705, %v5704
    %v7880 = vpack.c.b16 %v5707, %v5706
    %v7881 = vpack.c.b16 %v5709, %v5708
    %v7882 = vpack.c.b16 %v5711, %v5710
    %v7883 = vpack.c.b16 %v5713, %v5712
    %v7884 = vpack.c.b16 %v5715, %v5714
    %v7885 = vpack.c.b16 %v5717, %v5716
    %v7886 = vpack.c.b16 %v5719, %v5718
    %v7887 = vpack.c.b16 %v5721, %v5720
    %v7888 = vpack.c.b16 %v5723, %v5722
    %v7889 = vpack.c.b16 %v5725, %v5724
    %v7890 = vpack.c.b16 %v5727, %v5726
    %v7891 = vpack.c.b16 %v5729, %v5728
    %v7892 = vpack.c.b16 %v5731, %v5730
    %v7893 = vpack.c.b16 %v5733, %v5732
    %v7894 = vpack.c.b16 %v5735, %v5734
    %v7895 = vpack.c.b16 %v5737, %v5736
    %v7896 = vpack.c.b16 %v5739, %v5738
    %v7897 = vpack.c.b16 %v5741, %v5740
    %v7898 = vpack.c.b16 %v5743, %v5742
    %v7899 = vpack.c.b16 %v5745, %v5744
    %v7900 = vpack.c.b16 %v5747, %v5746
    %v7901 = vpack.c.b16 %v5749, %v5748
    %v7902 = vpack.c.b16 %v5751, %v5750
    %v7903 = vpack.c.b16 %v5753, %v5752
    %v7904 = vpack.c.b16 %v5755, %v5754
    %v7905 = vpack.c.b16 %v5757, %v5756
    %v7906 = vpack.c.b16 %v5759, %v5758
    %v7907 = vpack.c.b16 %v5761, %v5760
    %v7908 = vpack.c.b16 %v5763, %v5762
    %v7909 = vpack.c.b16 %v5765, %v5764
    %v7910 = vpack.c.b16 %v5767, %v5766
    %v7911 = vpack.c.b16 %v5769, %v5768
    %v7912 = vpack.c.b16 %v5771, %v5770
    %v7913 = vpack.c.b16 %v5773, %v5772
    %v7914 = vpack.c.b16 %v5775, %v5774
    %v7915 = vpack.c.b16 %v5777, %v5776
    %v7916 = vpack.c.b16 %v5779, %v5778
    %v7917 = vpack.c.b16 %v5781, %v5780
    %v7918 = vpack.c.b16 %v5783, %v5782
    %v7919 = vpack.c.b16 %v5785, %v5784
    %v7920 = vpack.c.b16 %v5787, %v5786
    %v7921 = vpack.c.b16 %v5789, %v5788
    %v7922 = vpack.c.b16 %v5791, %v5790
    %v7923 = vpack.c.b16 %v5793, %v5792
    %v7924 = vpack.c.b16 %v5795, %v5794
    %v7925 = vpack.c.b16 %v5797, %v5796
    %v7926 = vpack.c.b16 %v5799, %v5798
    %v7927 = vpack.c.b16 %v5801, %v5800
    %v7928 = vpack.c.b16 %v5803, %v5802
    %v7929 = vpack.c.b16 %v5805, %v5804
    %v7930 = vpack.c.b16 %v5807, %v5806
    %v7931 = vpack.c.b16 %v5809, %v5808
    %v7932 = vpack.c.b16 %v5811, %v5810
    %v7933 = vpack.c.b16 %v5813, %v5812
    %v7934 = vpack.c.b16 %v5815, %v5814
    %v7935 = vpack.c.b16 %v5817, %v5816
    %v7936 = vpack.c.b16 %v5819, %v5818
    %v7937 = vpack.c.b16 %v5821, %v5820
    %v7938 = vpack.c.b16 %v5823, %v5822
    %v7939 = vpack.c.b16 %v5825, %v5824
    %v7940 = vpack.c.b16 %v5827, %v5826
    %v7941 = vpack.c.b16 %v5829, %v5828
    %v7942 = vpack.c.b16 %v5831, %v5830
    %v7943 = vpack.c.b16 %v5833, %v5832
    %v7944 = vpack.c.b16 %v5835, %v5834
    %v7945 = vpack.c.b16 %v5837, %v5836
    %v7946 = vpack.c.b16 %v5839, %v5838
    %v7947 = vpack.c.b16 %v5841, %v5840
    %v7948 = vpack.c.b16 %v5843, %v5842
    %v7949 = vpack.c.b16 %v5845, %v5844
    %v7950 = vpack.c.b16 %v5847, %v5846
    %v7951 = vpack.c.b16 %v5849, %v5848
    %v7952 = vpack.c.b16 %v5851, %v5850
    %v7953 = vpack.c.b16 %v5853, %v5852
    %v7954 = vpack.c.b16 %v5855, %v5854
    %v7955 = vpack.c.b16 %v5857, %v5856
    %v7956 = vpack.c.b16 %v5859, %v5858
    %v7957 = vpack.c.b16 %v5861, %v5860
    %v7958 = vpack.c.b16 %v5863, %v5862
    %v7959 = vpack.c.b16 %v5865, %v5864
    %v7960 = vpack.c.b16 %v5867, %v5866
    %v7961 = vpack.c.b16 %v5869, %v5868
    %v7962 = vpack.c.b16 %v5871, %v5870
    %v7963 = vpack.c.b16 %v5873, %v5872
    %v7964 = vpack.c.b16 %v5875, %v5874
    %v7965 = vpack.c.b16 %v5877, %v5876
    %v7966 = vpack.c.b16 %v5879, %v5878
    %v7967 = vpack.c.b16 %v5881, %v5880
    %v7968 = vpack.c.b16 %v5883, %v5882
    %v7969 = vpack.c.b16 %v5885, %v5884
    %v7970 = vpack.c.b16 %v5887, %v5886
    %v7971 = vpack.c.b16 %v5889, %v5888
    %v7972 = vpack.c.b16 %v5891, %v5890
    %v7973 = vpack.c.b16 %v5893, %v5892
    %v7974 = vpack.c.b16 %v5895, %v5894
    %v7975 = vpack.c.b16 %v5897, %v5896
    %v7976 = vpack.c.b16 %v5899, %v5898
    %v7977 = vpack.c.b16 %v5901, %v5900
    %v7978 = vpack.c.b16 %v5903, %v5902
    %v7979 = vpack.c.b16 %v5905, %v5904
    %v7980 = vpack.c.b16 %v5907, %v5906
    %v7981 = vpack.c.b16 %v5909, %v5908
    %v7982 = vpack.c.b16 %v5911, %v5910
    %v7983 = vpack.c.b16 %v5913, %v5912
    %v7984 = vpack.c.b16 %v5915, %v5914
    %v7985 = vpack.c.b16 %v5917, %v5916
    %v7986 = vpack.c.b16 %v5919, %v5918
    %v7987 = vpack.c.b16 %v5921, %v5920
    %v7988 = vpack.c.b16 %v5923, %v5922
    %v7989 = vpack.c.b16 %v5925, %v5924
    %v7990 = vpack.c.b16 %v5927, %v5926
    %v7991 = vpack.c.b16 %v5929, %v5928
    %v7992 = vpack.c.b16 %v5931, %v5930
    %v7993 = vpack.c.b16 %v5933, %v5932
    %v7994 = vpack.c.b16 %v5935, %v5934
    %v7995 = vpack.c.b16 %v5937, %v5936
    %v7996 = vpack.c.b16 %v5939, %v5938
    %v7997 = vpack.c.b16 %v5941, %v5940
    %v7998 = vpack.c.b16 %v5943, %v5942
    %v7999 = vpack.c.b16 %v5945, %v5944
    %v8000 = vpack.c.b16 %v5947, %v5946
    %v8001 = vpack.c.b16 %v5949, %v5948
    %v8002 = vpack.c.b16 %v5951, %v5950
    %v8003 = vpack.c.b16 %v5953, %v5952
    %v8004 = vpack.c.b16 %v5955, %v5954
    %v8005 = vpack.c.b16 %v5957, %v5956
    %v8006 = vpack.c.b16 %v5959, %v5958
    %v8007 = vpack.c.b16 %v5961, %v5960
    %v8008 = vpack.c.b16 %v5963, %v5962
    %v8009 = vpack.c.b16 %v5965, %v5964
    %v8010 = vpack.c.b16 %v5967, %v5966
    %v8011 = vpack.c.b16 %v5969, %v5968
    %v8012 = vpack.c.b16 %v5971, %v5970
    %v8013 = vpack.c.b16 %v5973, %v5972
    %v8014 = vpack.c.b16 %v5975, %v5974
    %v8015 = vpack.c.b16 %v5977, %v5976
    %v8016 = vpack.c.b16 %v5979, %v5978
    %v8017 = vpack.c.b16 %v5981, %v5980
    %v8018 = vpack.c.b16 %v5983, %v5982
    %v8019 = vpack.c.b16 %v5985, %v5984
    %v8020 = vpack.c.b16 %v5987, %v5986
    %v8021 = vpack.c.b16 %v5989, %v5988
    %v8022 = vpack.c.b16 %v5991, %v5990
    %v8023 = vpack.c.b16 %v5993, %v5992
    %v8024 = vpack.c.b16 %v5995, %v5994
    %v8025 = vpack.c.b16 %v5997, %v5996
    %v8026 = vpack.c.b16 %v5999, %v5998
    %v8027 = vpack.c.b16 %v6001, %v6000
    %v8028 = vpack.c.b16 %v6003, %v6002
    %v8029 = vpack.c.b16 %v6005, %v6004
    %v8030 = vpack.c.b16 %v6007, %v6006
    %v8031 = vpack.c.b16 %v6009, %v6008
    %v8032 = vpack.c.b16 %v6011, %v6010
    %v8033 = vpack.c.b16 %v6013, %v6012
    %v8034 = vpack.c.b16 %v6015, %v6014
    %v8035 = vpack.c.b16 %v6017, %v6016
    %v8036 = vpack.c.b16 %v6019, %v6018
    %v8037 = vpack.c.b16 %v6021, %v6020
    %v8038 = vpack.c.b16 %v6023, %v6022
    %v8039 = vpack.c.b16 %v6025, %v6024
    %v8040 = vpack.c.b16 %v6027, %v6026
    %v8041 = vpack.c.b16 %v6029, %v6028
    %v8042 = vpack.c.b16 %v6031, %v6030
    %v8043 = vpack.c.b16 %v6033, %v6032
    %v8044 = vpack.c.b16 %v6035, %v6034
    %v8045 = vpack.c.b16 %v6037, %v6036
    %v8046 = vpack.c.b16 %v6039, %v6038
    %v8047 = vpack.c.b16 %v6041, %v6040
    %v8048 = vpack.c.b16 %v6043, %v6042
    %v8049 = vpack.c.b16 %v6045, %v6044
    %v8050 = vpack.c.b16 %v6047, %v6046
    %v8051 = vpack.c.b16 %v6049, %v6048
    %v8052 = vpack.c.b16 %v6051, %v6050
    %v8053 = vpack.c.b16 %v6053, %v6052
    %v8054 = vpack.c.b16 %v6055, %v6054
    %v8055 = vpack.c.b16 %v6057, %v6056
    %v8056 = vpack.c.b16 %v6059, %v6058
    %v8057 = vpack.c.b16 %v6061, %v6060
    %v8058 = vpack.c.b16 %v6063, %v6062
    %v8059 = vpack.c.b16 %v6065, %v6064
    %v8060 = vpack.c.b16 %v6067, %v6066
    %v8061 = vpack.c.b16 %v6069, %v6068
    %v8062 = vpack.c.b16 %v6071, %v6070
    %v8063 = vpack.c.b16 %v6073, %v6072
    %v8064 = vpack.c.b16 %v6075, %v6074
    %v8065 = vpack.c.b16 %v6077, %v6076
    %v8066 = vpack.c.b16 %v6079, %v6078
    %v8067 = vpack.c.b16 %v6081, %v6080
    %v8068 = vpack.c.b16 %v6083, %v6082
    %v8069 = vpack.c.b16 %v6085, %v6084
    %v8070 = vpack.c.b16 %v6087, %v6086
    %v8071 = vpack.c.b16 %v6089, %v6088
    %v8072 = vpack.c.b16 %v6091, %v6090
    %v8073 = vpack.c.b16 %v6093, %v6092
    %v8074 = vpack.c.b16 %v6095, %v6094
    %v8075 = vpack.c.b16 %v6097, %v6096
    %v8076 = vpack.c.b16 %v6099, %v6098
    %v8077 = vpack.c.b16 %v6101, %v6100
    %v8078 = vpack.c.b16 %v6103, %v6102
    %v8079 = vpack.c.b16 %v6105, %v6104
    %v8080 = vpack.c.b16 %v6107, %v6106
    %v8081 = vpack.c.b16 %v6109, %v6108
    %v8082 = vpack.c.b16 %v6111, %v6110
    %v8083 = vpack.c.b16 %v6113, %v6112
    %v8084 = vpack.c.b16 %v6115, %v6114
    %v8085 = vpack.c.b16 %v6117, %v6116
    %v8086 = vpack.c.b16 %v6119, %v6118
    %v8087 = vpack.c.b16 %v6121, %v6120
    %v8088 = vpack.c.b16 %v6123, %v6122
    %v8089 = vpack.c.b16 %v6125, %v6124
    %v8090 = vpack.c.b16 %v6127, %v6126
    %v8091 = vpack.c.b16 %v6129, %v6128
    %v8092 = vpack.c.b16 %v6131, %v6130
    %v8093 = vpack.c.b16 %v6133, %v6132
    %v8094 = vpack.c.b16 %v6135, %v6134
    %v8095 = vpack.c.b16 %v6137, %v6136
    %v8096 = vpack.c.b16 %v6139, %v6138
    %v8097 = vpack.c.b16 %v6141, %v6140
    %v8098 = vpack.c.b16 %v6143, %v6142
    %v8099 = vpack.c.b16 %v6145, %v6144
    %v8100 = vpack.c.b16 %v6147, %v6146
    %v8101 = vpack.c.b16 %v6149, %v6148
    %v8102 = vpack.c.b16 %v6151, %v6150
    %v8103 = vpack.c.b16 %v6153, %v6152
    %v8104 = vpack.c.b16 %v6155, %v6154
    %v8105 = vpack.c.b16 %v6157, %v6156
    %v8106 = vpack.c.b16 %v6159, %v6158
    %v8107 = vpack.c.b16 %v6161, %v6160
    %v8108 = vpack.c.b16 %v6163, %v6162
    %v8109 = vpack.c.b16 %v6165, %v6164
    %v8110 = vpack.c.b16 %v6167, %v6166
    %v8111 = vpack.c.b16 %v6169, %v6168
    %v8112 = vpack.c.b16 %v6171, %v6170
    %v8113 = vpack.c.b16 %v6173, %v6172
    %v8114 = vpack.c.b16 %v6175, %v6174
    %v8115 = vpack.c.b16 %v6177, %v6176
    %v8116 = vpack.c.b16 %v6179, %v6178
    %v8117 = vpack.c.b16 %v6181, %v6180
    %v8118 = vpack.c.b16 %v6183, %v6182
    %v8119 = vpack.c.b16 %v6185, %v6184
    %v8120 = vpack.c.b16 %v6187, %v6186
    %v8121 = vpack.c.b16 %v6189, %v6188
    %v8122 = vpack.c.b16 %v6191, %v6190
    %v8123 = vpack.c.b16 %v6193, %v6192
    %v8124 = vpack.c.b16 %v6195, %v6194
    %v8125 = vpack.c.b16 %v6197, %v6196
    %v8126 = vpack.c.b16 %v6199, %v6198
    %v8127 = vpack.c.b16 %v6201, %v6200
    %v8128 = vpack.c.b16 %v6203, %v6202
    %v8129 = vpack.c.b16 %v6205, %v6204
    %v8130 = vpack.c.b16 %v6207, %v6206
    %v8131 = vpack.c.b16 %v6209, %v6208
    %v8132 = vpack.c.b16 %v6211, %v6210
    %v8133 = vpack.c.b16 %v6213, %v6212
    %v8134 = vpack.c.b16 %v6215, %v6214
    %v8135 = vpack.c.b16 %v6217, %v6216
    %v8136 = vpack.c.b16 %v6219, %v6218
    %v8137 = vpack.c.b16 %v6221, %v6220
    %v8138 = vpack.c.b16 %v6223, %v6222
    %v8139 = vpack.c.b16 %v6225, %v6224
    %v8140 = vpack.c.b16 %v6227, %v6226
    %v8141 = vpack.c.b16 %v6229, %v6228
    %v8142 = vpack.c.b16 %v6231, %v6230
    %v8143 = vpack.c.b16 %v6233, %v6232
    %v8144 = vpack.c.b16 %v6235, %v6234
    %v8145 = vpack.c.b16 %v6237, %v6236
    %v8146 = vpack.c.b16 %v6239, %v6238
    %v8147 = vpack.c.b16 %v6241, %v6240
    %v8148 = vpack.c.b16 %v6243, %v6242
    %v8149 = vpack.c.b16 %v6245, %v6244
    %v8150 = vpack.c.b16 %v6247, %v6246
    %v8151 = vpack.c.b16 %v6249, %v6248
    %v8152 = vpack.c.b16 %v6251, %v6250
    %v8153 = vpack.c.b16 %v6253, %v6252
    %v8154 = vpack.c.b16 %v6255, %v6254
    %v8155 = vpack.c.b16 %v6257, %v6256
    %v8156 = vpack.c.b16 %v6259, %v6258
    %v8157 = vpack.c.b16 %v6261, %v6260
    %v8158 = vpack.c.b16 %v6263, %v6262
    %v8159 = vpack.c.b16 %v6265, %v6264
    %v8160 = vpack.c.b16 %v6267, %v6266
    %v8161 = vpack.c.b16 %v6269, %v6268
    %v8162 = vpack.c.b16 %v6271, %v6270
    %v8163 = vpack.c.b16 %v6273, %v6272
    %v8164 = vpack.c.b16 %v6275, %v6274
    %v8165 = vpack.c.b16 %v6277, %v6276
    %v8166 = vpack.c.b16 %v6279, %v6278
    %v8167 = vpack.c.b16 %v6281, %v6280
    %v8168 = vpack.c.b16 %v6283, %v6282
    %v8169 = vpack.c.b16 %v6285, %v6284
    %v8170 = vpack.c.b16 %v6287, %v6286
    %v8171 = vpack.c.b16 %v6289, %v6288
    %v8172 = vpack.c.b16 %v6291, %v6290
    %v8173 = vpack.c.b16 %v6293, %v6292
    %v8174 = vpack.c.b16 %v6295, %v6294
    %v8175 = vpack.c.b16 %v6297, %v6296
    %v8176 = vpack.c.b16 %v6299, %v6298
    %v8177 = vpack.c.b16 %v6301, %v6300
    %v8178 = vpack.c.b16 %v6303, %v6302
    %v8179 = vpack.c.b16 %v6305, %v6304
    %v8180 = vpack.c.b16 %v6307, %v6306
    %v8181 = vpack.c.b16 %v6309, %v6308
    %v8182 = vpack.c.b16 %v6311, %v6310
    %v8183 = vpack.c.b16 %v6313, %v6312
    %v8184 = vpack.c.b16 %v6315, %v6314
    %v8185 = vpack.c.b16 %v6317, %v6316
    %v8186 = vpack.c.b16 %v6319, %v6318
    %v8187 = vpack.c.b16 %v6321, %v6320
    %v8188 = vpack.c.b16 %v6323, %v6322
    %v8189 = vpack.c.b16 %v6325, %v6324
    %v8190 = vpack.c.b16 %v6327, %v6326
    %v8191 = vpack.c.b16 %v6329, %v6328
    %v8192 = vpack.c.b16 %v6331, %v6330
    %v8193 = vpack.c.b16 %v6333, %v6332
    %v8194 = vpack.c.b16 %v6335, %v6334
    %v8195 = vpack.c.b16 %v6337, %v6336
    %v8196 = vpack.c.b16 %v6339, %v6338
    %v8197 = vpack.c.b16 %v6341, %v6340
    %v8198 = vpack.c.b16 %v6343, %v6342
    %v8199 = vpack.c.b16 %v6345, %v6344
    %v8200 = vpack.c.b16 %v6347, %v6346
    %v8201 = vpack.c.b16 %v6349, %v6348
    %v8202 = vpack.c.b16 %v6351, %v6350
    %v8203 = vpack.c.b16 %v6353, %v6352
    %v8204 = vpack.c.b16 %v6355, %v6354
    %v8205 = vpack.c.b16 %v6357, %v6356
    %v8206 = vpack.c.b16 %v6359, %v6358
    %v8207 = vpack.c.b16 %v6361, %v6360
    %v8208 = vpack.c.b16 %v6363, %v6362
    %v8209 = vpack.c.b16 %v6365, %v6364
    %v8210 = vpack.c.b16 %v6367, %v6366
    %v8211 = vpack.c.b16 %v6369, %v6368
    %v8212 = vpack.c.b16 %v6371, %v6370
    %v8213 = vpack.c.b16 %v6373, %v6372
    %v8214 = vpack.c.b16 %v6375, %v6374
    %v8215 = vpack.c.b16 %v6377, %v6376
    %v8216 = vpack.c.b16 %v6379, %v6378
    %v8217 = vpack.c.b16 %v6381, %v6380
    %v8218 = vpack.c.b16 %v6383, %v6382
    %v8219 = vpack.c.b16 %v6385, %v6384
    %v8220 = vpack.c.b16 %v6387, %v6386
    %v8221 = vpack.c.b16 %v6389, %v6388
    %v8222 = vpack.c.b16 %v6391, %v6390
    %v8223 = vpack.c.b16 %v6393, %v6392
    %v8224 = vpack.c.b16 %v6395, %v6394
    %v8225 = vpack.c.b16 %v6397, %v6396
    %v8226 = vpack.c.b16 %v6399, %v6398
    %v8227 = vpack.c.b16 %v6401, %v6400
    %v8228 = vpack.c.b16 %v6403, %v6402
    %v8229 = vpack.c.b16 %v6405, %v6404
    %v8230 = vpack.c.b16 %v6407, %v6406
    %v8231 = vpack.c.b16 %v6409, %v6408
    %v8232 = vpack.c.b16 %v6411, %v6410
    %v8233 = vpack.c.b16 %v6413, %v6412
    %v8234 = vpack.c.b16 %v6415, %v6414
    %v8235 = vpack.c.b16 %v6417, %v6416
    %v8236 = vpack.c.b16 %v6419, %v6418
    %v8237 = vpack.c.b16 %v6421, %v6420
    %v8238 = vpack.c.b16 %v6423, %v6422
    %v8239 = vpack.c.b16 %v6425, %v6424
    %v8240 = vpack.c.b16 %v6427, %v6426
    %v8241 = vpack.c.b16 %v6429, %v6428
    %v8242 = vpack.c.b16 %v6431, %v6430
    %v8243 = vpack.c.b16 %v6433, %v6432
    %v8244 = vpack.c.b16 %v6435, %v6434
    %v8245 = vpack.c.b16 %v6437, %v6436
    %v8246 = vpack.c.b16 %v6439, %v6438
    %v8247 = vpack.c.b16 %v6441, %v6440
    %v8248 = vpack.c.b16 %v6443, %v6442
    %v8249 = vpack.c.b16 %v6445, %v6444
    %v8250 = vpack.c.b16 %v6447, %v6446
    %v8251 = vpack.c.b16 %v6449, %v6448
    %v8252 = vpack.c.b16 %v6451, %v6450
    %v8253 = vpack.c.b16 %v6453, %v6452
    %v8254 = vpack.c.b16 %v6455, %v6454
    %v8255 = vpack.c.b16 %v6457, %v6456
    %v8256 = vpack.c.b16 %v6459, %v6458
    %v8257 = vpack.c.b16 %v6461, %v6460
    %v8258 = vpack.c.b16 %v6463, %v6462
    %v8259 = vpack.c.b16 %v6465, %v6464
    %v8260 = vpack.c.b16 %v6467, %v6466
    %v8261 = vpack.c.b16 %v6469, %v6468
    %v8262 = vpack.c.b16 %v6471, %v6470
    %v8263 = vpack.c.b16 %v6473, %v6472
    %v8264 = vpack.c.b16 %v6475, %v6474
    %v8265 = vpack.c.b16 %v6477, %v6476
    %v8266 = vpack.c.b16 %v6479, %v6478
    %v8267 = vpack.c.b16 %v6481, %v6480
    %v8268 = vpack.c.b16 %v6483, %v6482
    %v8269 = vpack.c.b16 %v6485, %v6484
    %v8270 = vpack.c.b16 %v6487, %v6486
    %v8271 = vpack.c.b16 %v6489, %v6488
    %v8272 = vpack.c.b16 %v6491, %v6490
    %v8273 = vpack.c.b16 %v6493, %v6492
    %v8274 = vpack.c.b16 %v6495, %v6494
    %v8275 = vpack.c.b16 %v6497, %v6496
    %v8276 = vpack.c.b16 %v6499, %v6498
    %v8277 = vpack.c.b16 %v6501, %v6500
    %v8278 = vpack.c.b16 %v6503, %v6502
    %v8279 = vpack.c.b16 %v6505, %v6504
    %v8280 = vpack.c.b16 %v6507, %v6506
    %v8281 = vpack.c.b16 %v6509, %v6508
    %v8282 = vpack.c.b16 %v6511, %v6510
    %v8283 = vpack.c.b16 %v6513, %v6512
    %v8284 = vpack.c.b16 %v6515, %v6514
    %v8285 = vpack.c.b16 %v6517, %v6516
    %v8286 = vpack.c.b16 %v6519, %v6518
    %v8287 = vpack.c.b16 %v6521, %v6520
    %v8288 = vpack.c.b16 %v6523, %v6522
    %v8289 = vpack.c.b16 %v6525, %v6524
    %v8290 = vpack.c.b16 %v6527, %v6526
    %v8291 = vpack.c.b16 %v6529, %v6528
    %v8292 = vpack.c.b16 %v6531, %v6530
    %v8293 = vpack.c.b16 %v6533, %v6532
    %v8294 = vpack.c.b16 %v6535, %v6534
    %v8295 = vpack.c.b16 %v6537, %v6536
    %v8296 = vpack.c.b16 %v6539, %v6538
    %v8297 = vpack.c.b16 %v6541, %v6540
    %v8298 = vpack.c.b16 %v6543, %v6542
    %v8299 = vpack.c.b16 %v6545, %v6544
    %v8300 = vpack.c.b16 %v6547, %v6546
    %v8301 = vpack.c.b16 %v6549, %v6548
    %v8302 = vpack.c.b16 %v6551, %v6550
    %v8303 = vpack.c.b16 %v6553, %v6552
    %v8304 = vpack.c.b16 %v6555, %v6554
    %v8305 = vpack.c.b16 %v6557, %v6556
    %v8306 = vpack.c.b16 %v6559, %v6558
    %v8307 = vpack.c.b16 %v6561, %v6560
    %v8308 = vpack.c.b16 %v6563, %v6562
    %v8309 = vpack.c.b16 %v6565, %v6564
    %v8310 = vpack.c.b16 %v6567, %v6566
    %v8311 = vpack.c.b16 %v6569, %v6568
    %v8312 = vpack.c.b16 %v6571, %v6570
    %v8313 = vpack.c.b16 %v6573, %v6572
    %v8314 = vpack.c.b16 %v6575, %v6574
    %v8315 = vpack.c.b16 %v6577, %v6576
    %v8316 = vpack.c.b16 %v6579, %v6578
    %v8317 = vpack.c.b16 %v6581, %v6580
    %v8318 = vpack.c.b16 %v6583, %v6582
    %v8319 = vpack.c.b16 %v6585, %v6584
    %v8320 = vpack.c.b16 %v6587, %v6586
    %v8321 = vpack.c.b16 %v6589, %v6588
    %v8322 = vpack.c.b16 %v6591, %v6590
    %v8323 = vpack.c.b16 %v6593, %v6592
    %v8324 = vpack.c.b16 %v6595, %v6594
    %v8325 = vpack.c.b16 %v6597, %v6596
    %v8326 = vpack.c.b16 %v6599, %v6598
    %v8327 = vpack.c.b16 %v6601, %v6600
    %v8328 = vpack.c.b16 %v6603, %v6602
    %v8329 = vpack.c.b16 %v6605, %v6604
    %v8330 = vpack.c.b16 %v6607, %v6606
    %v8331 = vpack.c.b16 %v6609, %v6608
    %v8332 = vpack.c.b16 %v6611, %v6610
    %v8333 = vpack.c.b16 %v6613, %v6612
    %v8334 = vpack.c.b16 %v6615, %v6614
    %v8335 = vpack.c.b16 %v6617, %v6616
    %v8336 = vpack.c.b16 %v6619, %v6618
    %v8337 = vpack.c.b16 %v6621, %v6620
    %v8338 = vpack.c.b16 %v6623, %v6622
    %v8339 = vpack.c.b16 %v6625, %v6624
    %v8340 = vpack.c.b16 %v6627, %v6626
    %v8341 = vpack.c.b16 %v6629, %v6628
    %v8342 = vpack.c.b16 %v6631, %v6630
    %v8343 = vpack.c.b16 %v6633, %v6632
    %v8344 = vpack.c.b16 %v6635, %v6634
    %v8345 = vpack.c.b16 %v6637, %v6636
    %v8346 = vpack.c.b16 %v6639, %v6638
    %v8347 = vpack.c.b16 %v6641, %v6640
    %v8348 = vpack.c.b16 %v6643, %v6642
    %v8349 = vpack.c.b16 %v6645, %v6644
    %v8350 = vpack.c.b16 %v6647, %v6646
    %v8351 = vpack.c.b16 %v6649, %v6648
    %v8352 = vpack.c.b16 %v6651, %v6650
    %v8353 = vpack.c.b16 %v6653, %v6652
    %v8354 = vpack.c.b16 %v6655, %v6654
    %v8355 = vpack.c.b16 %v6657, %v6656
    %v8356 = vpack.c.b16 %v6659, %v6658
    %v8357 = vpack.c.b16 %v6661, %v6660
    %v8358 = vpack.c.b16 %v6663, %v6662
    %v8359 = vpack.c.b16 %v6665, %v6664
    %v8360 = vpack.c.b16 %v6667, %v6666
    %v8361 = vpack.c.b16 %v6669, %v6668
    %v8362 = vpack.c.b16 %v6671, %v6670
    %v8363 = vpack.c.b16 %v6673, %v6672
    %v8364 = vpack.c.b16 %v6675, %v6674
    %v8365 = vpack.c.b16 %v6677, %v6676
    %v8366 = vpack.c.b16 %v6679, %v6678
    %v8367 = vpack.c.b16 %v6681, %v6680
    %v8368 = vpack.c.b16 %v6683, %v6682
    %v8369 = vpack.c.b16 %v6685, %v6684
    %v8370 = vpack.c.b16 %v6687, %v6686
    %v8371 = vpack.c.b16 %v6689, %v6688
    %v8372 = vpack.c.b16 %v6691, %v6690
    %v8373 = vpack.c.b16 %v6693, %v6692
    %v8374 = vpack.c.b16 %v6695, %v6694
    %v8375 = vpack.c.b16 %v6697, %v6696
    %v8376 = vpack.c.b16 %v6699, %v6698
    %v8377 = vpack.c.b16 %v6701, %v6700
    %v8378 = vpack.c.b16 %v6703, %v6702
    %v8379 = vpack.c.b16 %v6705, %v6704
    %v8380 = vpack.c.b16 %v6707, %v6706
    %v8381 = vpack.c.b16 %v6709, %v6708
    %v8382 = vpack.c.b16 %v6711, %v6710
    %v8383 = vpack.c.b16 %v6713, %v6712
    %v8384 = vpack.c.b16 %v6715, %v6714
    %v8385 = vpack.c.b16 %v6717, %v6716
    %v8386 = vpack.c.b16 %v6719, %v6718
    %v8387 = vpack.c.b16 %v6721, %v6720
    %v8388 = vpack.c.b16 %v6723, %v6722
    %v8389 = vpack.c.b16 %v6725, %v6724
    %v8390 = vpack.c.b16 %v6727, %v6726
    %v8391 = vpack.c.b16 %v6729, %v6728
    %v8392 = vpack.c.b16 %v6731, %v6730
    %v8393 = vpack.c.b16 %v6733, %v6732
    %v8394 = vpack.c.b16 %v6735, %v6734
    %v8395 = vpack.c.b16 %v6737, %v6736
    %v8396 = vpack.c.b16 %v6739, %v6738
    %v8397 = vpack.c.b16 %v6741, %v6740
    %v8398 = vpack.c.b16 %v6743, %v6742
    %v8399 = vpack.c.b16 %v6745, %v6744
    %v8400 = vpack.c.b16 %v6747, %v6746
    %v8401 = vpack.c.b16 %v6749, %v6748
    %v8402 = vpack.c.b16 %v6751, %v6750
    %v8403 = vpack.c.b16 %v6753, %v6752
    %v8404 = vpack.c.b16 %v6755, %v6754
    %v8405 = vpack.c.b16 %v6757, %v6756
    %v8406 = vpack.c.b16 %v6759, %v6758
    %v8407 = vpack.c.b16 %v6761, %v6760
    %v8408 = vpack.c.b16 %v6763, %v6762
    %v8409 = vpack.c.b16 %v6765, %v6764
    %v8410 = vpack.c.b16 %v6767, %v6766
    %v8411 = vpack.c.b16 %v6769, %v6768
    %v8412 = vpack.c.b16 %v6771, %v6770
    %v8413 = vpack.c.b16 %v6773, %v6772
    %v8414 = vpack.c.b16 %v6775, %v6774
    %v8415 = vpack.c.b16 %v6777, %v6776
    %v8416 = vpack.c.b16 %v6779, %v6778
    %v8417 = vpack.c.b16 %v6781, %v6780
    %v8418 = vpack.c.b16 %v6783, %v6782
    %v8419 = vpack.c.b16 %v6785, %v6784
    %v8420 = vpack.c.b16 %v6787, %v6786
    %v8421 = vpack.c.b16 %v6789, %v6788
    %v8422 = vpack.c.b16 %v6791, %v6790
    %v8423 = vpack.c.b16 %v6793, %v6792
    %v8424 = vpack.c.b16 %v6795, %v6794
    %v8425 = vpack.c.b16 %v6797, %v6796
    %v8426 = vpack.c.b16 %v6799, %v6798
    %v8427 = vpack.c.b16 %v6801, %v6800
    %v8428 = vpack.c.b16 %v6803, %v6802
    %v8429 = vpack.c.b16 %v6805, %v6804
    %v8430 = vpack.c.b16 %v6807, %v6806
    %v8431 = vpack.c.b16 %v6809, %v6808
    %v8432 = vpack.c.b16 %v6811, %v6810
    %v8433 = vpack.c.b16 %v6813, %v6812
    %v8434 = vpack.c.b16 %v6815, %v6814
    %v8435 = vpack.c.b16 %v6817, %v6816
    %v8436 = vpack.c.b16 %v6819, %v6818
    %v8437 = vpack.c.b16 %v6821, %v6820
    %v8438 = vpack.c.b16 %v6823, %v6822
    %v8439 = vpack.c.b16 %v6825, %v6824
    %v8440 = vpack.c.b16 %v6827, %v6826
    %v8441 = vpack.c.b16 %v6829, %v6828
    %v8442 = vpack.c.b16 %v6831, %v6830
    %v8443 = vpack.c.b16 %v6833, %v6832
    %v8444 = vpack.c.b16 %v6835, %v6834
    %v8445 = vpack.c.b16 %v6837, %v6836
    %v8446 = vpack.c.b16 %v6839, %v6838
    %v8447 = vpack.c.b16 %v6841, %v6840
    %v8448 = vpack.c.b16 %v6843, %v6842
    %v8449 = vpack.c.b16 %v6845, %v6844
    %v8450 = vpack.c.b16 %v6847, %v6846
    %v8451 = vpack.c.b16 %v6849, %v6848
    %v8452 = vpack.c.b16 %v6851, %v6850
    %v8453 = vpack.c.b16 %v6853, %v6852
    %v8454 = vpack.c.b16 %v6855, %v6854
    %v8455 = vpack.c.b16 %v6857, %v6856
    %v8456 = vpack.c.b16 %v6859, %v6858
    %v8457 = vpack.c.b16 %v6861, %v6860
    %v8458 = vpack.c.b16 %v6863, %v6862
    %v8459 = vpack.c.b16 %v6865, %v6864
    %v8460 = vpack.c.b16 %v6867, %v6866
    %v8461 = vpack.c.b16 %v6869, %v6868
    %v8462 = vpack.c.b16 %v6871, %v6870
    %v8463 = vpack.c.b16 %v6873, %v6872
    %v8464 = vpack.c.b16 %v6875, %v6874
    %v8465 = vpack.c.b16 %v6877, %v6876
    %v8466 = vpack.c.b16 %v6879, %v6878
    %v8467 = vpack.c.b16 %v6881, %v6880
    %v8468 = vpack.c.b16 %v6883, %v6882
    %v8469 = vpack.c.b16 %v6885, %v6884
    %v8470 = vpack.c.b16 %v6887, %v6886
    %v8471 = vpack.c.b16 %v6889, %v6888
    %v8472 = vpack.c.b16 %v6891, %v6890
    %v8473 = vpack.c.b16 %v6893, %v6892
    %v8474 = vpack.c.b16 %v6895, %v6894
    %v8475 = vpack.c.b16 %v6897, %v6896
    %v8476 = vpack.c.b16 %v6899, %v6898
    %v8477 = vpack.c.b16 %v6901, %v6900
    %v8478 = vpack.c.b16 %v6903, %v6902
    %v8479 = vpack.c.b16 %v6905, %v6904
    %v8480 = vpack.c.b16 %v6907, %v6906
    %v8481 = vpack.c.b16 %v6909, %v6908
    %v8482 = vpack.c.b16 %v6911, %v6910
    %v8483 = vpack.c.b16 %v6913, %v6912
    %v8484 = vpack.c.b16 %v6915, %v6914
    %v8485 = vpack.c.b16 %v6917, %v6916
    %v8486 = vpack.c.b16 %v6919, %v6918
    %v8487 = vpack.c.b16 %v6921, %v6920
    %v8488 = vpack.c.b16 %v6923, %v6922
    %v8489 = vpack.c.b16 %v6925, %v6924
    %v8490 = vpack.c.b16 %v6927, %v6926
    %v8491 = vpack.c.b16 %v6929, %v6928
    %v8492 = vpack.c.b16 %v6931, %v6930
    %v8493 = vpack.c.b16 %v6933, %v6932
    %v8494 = vpack.c.b16 %v6935, %v6934
    %v8495 = vpack.c.b16 %v6937, %v6936
    %v8496 = vpack.c.b16 %v6939, %v6938
    %v8497 = vpack.c.b16 %v6941, %v6940
    %v8498 = vpack.c.b16 %v6943, %v6942
    %v8499 = vpack.c.b16 %v6945, %v6944
    %v8500 = vpack.c.b16 %v6947, %v6946
    %v8501 = vpack.c.b16 %v6949, %v6948
    %v8502 = vpack.c.b16 %v6951, %v6950
    %v8503 = vpack.c.b16 %v6953, %v6952
    %v8504 = vpack.c.b16 %v6955, %v6954
    %v8505 = vpack.c.b16 %v6957, %v6956
    %v8506 = vpack.c.b16 %v6959, %v6958
    %v8507 = vpack.c.b16 %v6961, %v6960
    %v8508 = vpack.c.b16 %v6963, %v6962
    %v8509 = vpack.c.b16 %v6965, %v6964
    %v8510 = vpack.c.b16 %v6967, %v6966
    %v8511 = vpack.c.b16 %v6969, %v6968
    %v8512 = vpack.c.b16 %v6971, %v6970
    %v8513 = vpack.c.b16 %v6973, %v6972
    %v8514 = vpack.c.b16 %v6975, %v6974
    %v8515 = vpack.c.b16 %v6977, %v6976
    %v8516 = vpack.c.b16 %v6979, %v6978
    %v8517 = vpack.c.b16 %v6981, %v6980
    %v8518 = vpack.c.b16 %v6983, %v6982
    %v8519 = vpack.c.b16 %v6985, %v6984
    %v8520 = vpack.c.b16 %v6987, %v6986
    %v8521 = vpack.c.b16 %v6989, %v6988
    %v8522 = vpack.c.b16 %v6991, %v6990
    %v8523 = vpack.c.b16 %v6993, %v6992
    %v8524 = vpack.c.b16 %v6995, %v6994
    %v8525 = vpack.c.b16 %v6997, %v6996
    %v8526 = vpack.c.b16 %v6999, %v6998
    %v8527 = vpack.c.b16 %v7001, %v7000
    %v8528 = vpack.c.b16 %v7003, %v7002
    %v8529 = vpack.c.b16 %v7005, %v7004
    %v8530 = vpack.c.b16 %v7007, %v7006
    %v8531 = vpack.c.b16 %v7009, %v7008
    %v8532 = vpack.c.b16 %v7011, %v7010
    %v8533 = vpack.c.b16 %v7013, %v7012
    %v8534 = vpack.c.b16 %v7015, %v7014
    %v8535 = vpack.c.b16 %v7017, %v7016
    %v8536 = vpack.c.b16 %v7019, %v7018
    %v8537 = vpack.c.b16 %v7021, %v7020
    %v8538 = vpack.c.b16 %v7023, %v7022
    %v8539 = vpack.c.b16 %v7025, %v7024
    %v8540 = vpack.c.b16 %v7027, %v7026
    %v8541 = vpack.c.b16 %v7029, %v7028
    %v8542 = vpack.c.b16 %v7031, %v7030
    %v8543 = vpack.c.b16 %v7033, %v7032
    %v8544 = vpack.c.b16 %v7035, %v7034
    %v8545 = vpack.c.b16 %v7037, %v7036
    %v8546 = vpack.c.b16 %v7039, %v7038
    %v8547 = vpack.c.b16 %v7041, %v7040
    %v8548 = vpack.c.b16 %v7043, %v7042
    %v8549 = vpack.c.b16 %v7045, %v7044
    %v8550 = vpack.c.b16 %v7047, %v7046
    %v8551 = vpack.c.b16 %v7049, %v7048
    %v8552 = vpack.c.b16 %v7051, %v7050
    %v8553 = vpack.c.b16 %v7053, %v7052
    %v8554 = vpack.c.b16 %v7055, %v7054
    %v8555 = vpack.c.b16 %v7057, %v7056
    %v8556 = vpack.c.b16 %v7059, %v7058
    %v8557 = vpack.c.b16 %v7061, %v7060
    %v8558 = vpack.c.b16 %v7063, %v7062
    %v8559 = vpack.c.b16 %v7065, %v7064
    %v8560 = vpack.c.b16 %v7067, %v7066
    %v8561 = vpack.c.b16 %v7069, %v7068
    %v8562 = vpack.c.b16 %v7071, %v7070
    %v8563 = vpack.c.b16 %v7073, %v7072
    %v8564 = vpack.c.b16 %v7075, %v7074
    %v8565 = vpack.c.b16 %v7077, %v7076
    %v8566 = vpack.c.b16 %v7079, %v7078
    %v8567 = vpack.c.b16 %v7081, %v7080
    %v8568 = vpack.c.b16 %v7083, %v7082
    %v8569 = vpack.c.b16 %v7085, %v7084
    %v8570 = vpack.c.b16 %v7087, %v7086
    %v8571 = vpack.c.b16 %v7089, %v7088
    %v8572 = vpack.c.b16 %v7091, %v7090
    %v8573 = vpack.c.b16 %v7093, %v7092
    %v8574 = vpack.c.b16 %v7095, %v7094
    %v8575 = vpack.c.b16 %v7097, %v7096
    %v8576 = vpack.c.b16 %v7099, %v7098
    %v8577 = vpack.c.b16 %v7101, %v7100
    %v8578 = vpack.c.b16 %v7103, %v7102
    %v8579 = vpack.c.b16 %v7105, %v7104
    %v8580 = vpack.c.b16 %v7107, %v7106
    %v8581 = vpack.c.b16 %v7109, %v7108
    %v8582 = vpack.c.b16 %v7111, %v7110
    %v8583 = vpack.c.b16 %v7113, %v7112
    %v8584 = vpack.c.b16 %v7115, %v7114
    %v8585 = vpack.c.b16 %v7117, %v7116
    %v8586 = vpack.c.b16 %v7119, %v7118
    %v8587 = vpack.c.b16 %v7121, %v7120
    %v8588 = vpack.c.b16 %v7123, %v7122
    %v8589 = vpack.c.b16 %v7125, %v7124
    %v8590 = vpack.c.b16 %v7127, %v7126
    %v8591 = vpack.c.b16 %v7129, %v7128
    %v8592 = vpack.c.b16 %v7131, %v7130
    %v8593 = vpack.c.b16 %v7133, %v7132
    %v8594 = vpack.c.b16 %v7135, %v7134
    %v8595 = vpack.c.b16 %v7137, %v7136
    %v8596 = vpack.c.b16 %v7139, %v7138
    %v8597 = vpack.c.b16 %v7141, %v7140
    %v8598 = vpack.c.b16 %v7143, %v7142
    %v8599 = vpack.c.b16 %v7145, %v7144
    %v8600 = vpack.c.b16 %v7147, %v7146
    %v8601 = vpack.c.b16 %v7149, %v7148
    %v8602 = vpack.c.b16 %v7151, %v7150
    %v8603 = vpack.c.b16 %v7153, %v7152
    %v8604 = vpack.c.b16 %v7155, %v7154
    %v8605 = vpack.c.b16 %v7157, %v7156
    %v8606 = vpack.c.b16 %v7159, %v7158
    %v8607 = vpack.c.b16 %v7161, %v7160
    %v8608 = vpack.c.b16 %v7163, %v7162
    %v8609 = vpack.c.b16 %v7165, %v7164
    %v8610 = vpack.c.b16 %v7167, %v7166
    %v8611 = vpack.c.b16 %v7169, %v7168
    %v8612 = vpack.c.b16 %v7171, %v7170
    %v8613 = vpack.c.b16 %v7173, %v7172
    %v8614 = vpack.c.b16 %v7175, %v7174
    %v8615 = vpack.c.b16 %v7177, %v7176
    %v8616 = vpack.c.b16 %v7179, %v7178
    %v8617 = vpack.c.b16 %v7181, %v7180
    %v8618 = vpack.c.b16 %v7183, %v7182
    %v8619 = vpack.c.b16 %v7185, %v7184
    %v8620 = vpack.c.b16 %v7187, %v7186
    %v8621 = vpack.c.b16 %v7189, %v7188
    %v8622 = vpack.c.b16 %v7191, %v7190
    %v8623 = vpack.c.b16 %v7193, %v7192
    %v8624 = vpack.c.b16 %v7195, %v7194
    %v8625 = vpack.c.b16 %v7197, %v7196
    %v8626 = vpack.c.b16 %v7199, %v7198
    %v8627 = vpack.c.b16 %v7201, %v7200
    %v8628 = vpack.c.b16 %v7203, %v7202
    %v8629 = vpack.c.b16 %v7205, %v7204
    %v8630 = vpack.c.b16 %v7207, %v7206
    %v8631 = vpack.c.b16 %v7209, %v7208
    %v8632 = vpack.c.b16 %v7211, %v7210
    %v8633 = vpack.c.b16 %v7213, %v7212
    %v8634 = vpack.c.b16 %v7215, %v7214
    %v8635 = vpack.c.b16 %v7217, %v7216
    %v8636 = vpack.c.b16 %v7219, %v7218
    %v8637 = vpack.c.b16 %v7221, %v7220
    %v8638 = vpack.c.b16 %v7223, %v7222
    %v8639 = vpack.c.b16 %v7225, %v7224
    %v8640 = vpack.c.b16 %v7227, %v7226
    %v8641 = vpack.c.b16 %v7229, %v7228
    %v8642 = vpack.c.b16 %v7231, %v7230
    %v8643 = vpack.c.b16 %v7233, %v7232
    %v8644 = vpack.c.b16 %v7235, %v7234
    %v8645 = vpack.c.b16 %v7237, %v7236
    %v8646 = vpack.c.b16 %v7239, %v7238
    %v8647 = vpack.c.b16 %v7241, %v7240
    %v8648 = vpack.c.b16 %v7243, %v7242
    %v8649 = vpack.c.b16 %v7245, %v7244
    %v8650 = vpack.c.b16 %v7247, %v7246
    %v8651 = vpack.c.b16 %v7249, %v7248
    %v8652 = vpack.c.b16 %v7251, %v7250
    %v8653 = vpack.c.b16 %v7253, %v7252
    %v8654 = vpack.c.b16 %v7255, %v7254
    %v8655 = vpack.c.b16 %v7257, %v7256
    %v8656 = vpack.c.b16 %v7259, %v7258
    %v8657 = vpack.c.b16 %v7261, %v7260
    %v8658 = vpack.c.b16 %v7263, %v7262
    %v8659 = vpack.c.b16 %v7265, %v7264
    %v8660 = vpack.c.b16 %v7267, %v7266
    %v8661 = vpack.c.b16 %v7269, %v7268
    %v8662 = vpack.c.b16 %v7271, %v7270
    %v8663 = vpack.c.b16 %v7273, %v7272
    %v8664 = vpack.c.b16 %v7275, %v7274
    %v8665 = vpack.c.b16 %v7277, %v7276
    %v8666 = vpack.c.b16 %v7279, %v7278
    %v8667 = vpack.c.b16 %v7281, %v7280
    %v8668 = vpack.c.b16 %v7283, %v7282
    %v8669 = vpack.c.b16 %v7285, %v7284
    %v8670 = vpack.c.b16 %v7287, %v7286
    %v8671 = vpack.c.b16 %v7289, %v7288
    %v8672 = vpack.c.b16 %v7291, %v7290
    %v8673 = vpack.c.b16 %v7293, %v7292
    %v8674 = vpack.c.b16 %v7295, %v7294
    %v8675 = vpack.c.b16 %v7297, %v7296
    %v8676 = vpack.c.b16 %v7299, %v7298
    %v8677 = vpack.c.b16 %v7301, %v7300
    %v8678 = vpack.c.b16 %v7303, %v7302
    %v8679 = vpack.c.b16 %v7305, %v7304
    %v8680 = vpack.c.b16 %v7307, %v7306
    %v8681 = vpack.c.b16 %v7309, %v7308
    %v8682 = vpack.c.b16 %v7311, %v7310
    %v8683 = vpack.c.b16 %v7313, %v7312
    %v8684 = vpack.c.b16 %v7315, %v7314
    %v8685 = vpack.c.b16 %v7317, %v7316
    %v8686 = vpack.c.b16 %v7319, %v7318
    %v8687 = vpack.c.b16 %v7321, %v7320
    %v8688 = vpack.c.b16 %v7323, %v7322
    %v8689 = vpack.c.b16 %v7325, %v7324
    %v8690 = vpack.c.b16 %v7327, %v7326
    %v8691 = vpack.c.b16 %v7329, %v7328
    %v8692 = vpack.c.b16 %v7331, %v7330
    %v8693 = vpack.c.b16 %v7333, %v7332
    %v8694 = vpack.c.b16 %v7335, %v7334
    %v8695 = vpack.c.b16 %v7337, %v7336
    %v8696 = vpack.c.b16 %v7339, %v7338
    %v8697 = vpack.c.b16 %v7341, %v7340
    %v8698 = vpack.c.b16 %v7343, %v7342
    %v8699 = vpack.c.b16 %v7345, %v7344
    %v8700 = vpack.c.b16 %v7347, %v7346
    %v8701 = vpack.c.b16 %v7349, %v7348
    %v8702 = vpack.c.b16 %v7351, %v7350
    %v8703 = vpack.c.b16 %v7353, %v7352
    %v8704 = vpack.c.b16 %v7355, %v7354
    %v8705 = vpack.c.b16 %v7357, %v7356
    %v8706 = vpack.c.b16 %v7359, %v7358
    %v8707 = vpack.c.b16 %v7361, %v7360
    %v8708 = vpack.c.b16 %v7363, %v7362
    %v8709 = vpack.c.b16 %v7365, %v7364
    %v8710 = vpack.c.b16 %v7367, %v7366
    %v8711 = vpack.c.b16 %v7369, %v7368
    %v8712 = vpack.c.b16 %v7371, %v7370
    %v8713 = vpack.c.b16 %v7373, %v7372
    %v8714 = vpack.c.b16 %v7375, %v7374
    %v8715 = vpack.c.b16 %v7377, %v7376
    %v8716 = vpack.c.b16 %v7379, %v7378
    %v8717 = vpack.c.b16 %v7381, %v7380
    %v8718 = vpack.c.b16 %v7383, %v7382
    %v8719 = vpack.c.b16 %v7385, %v7384
    %v8720 = vpack.c.b16 %v7387, %v7386
    %v8721 = vpack.c.b16 %v7389, %v7388
    %v8722 = vpack.c.b16 %v7391, %v7390
    %v8723 = vpack.c.b16 %v7393, %v7392
    %v8724 = vpack.c.b16 %v7395, %v7394
    %v8725 = vpack.c.b16 %v7397, %v7396
    %v8726 = vpack.c.b16 %v7399, %v7398
    %v8727 = vpack.c.b16 %v7401, %v7400
    %v8728 = vpack.c.b16 %v7403, %v7402
    %v8729 = vpack.c.b16 %v7405, %v7404
    %v8730 = vpack.c.b16 %v7407, %v7406
    %v8731 = vpack.c.b16 %v7409, %v7408
    %v8732 = vpack.c.b16 %v7411, %v7410
    %v8733 = vpack.c.b16 %v7413, %v7412
    %v8734 = vpack.c.b16 %v7415, %v7414
    %v8735 = vpack.c.b16 %v7417, %v7416
    %v8736 = vpack.c.b16 %v7419, %v7418
    %v8737 = vpack.c.b16 %v7421, %v7420
    %v8738 = vpack.c.b16 %v7423, %v7422
    %v8739 = vpack.c.b16 %v7425, %v7424
    %v8740 = vpack.c.b16 %v7427, %v7426
    %v8741 = vpack.c.b16 %v7429, %v7428
    %v8742 = vpack.c.b16 %v7431, %v7430
    %v8743 = vpack.c.b16 %v7433, %v7432
    %v8744 = vpack.c.b16 %v7435, %v7434
    %v8745 = vpack.c.b16 %v7437, %v7436
    %v8746 = vpack.c.b16 %v7439, %v7438
    %v8747 = vpack.c.b16 %v7441, %v7440
    %v8748 = vpack.c.b16 %v7443, %v7442
    %v8749 = vpack.c.b16 %v7445, %v7444
    %v8750 = vpack.c.b16 %v7447, %v7446
    %v8751 = vpack.c.b16 %v7449, %v7448
    %v8752 = vpack.c.b16 %v7451, %v7450
    %v8753 = vpack.c.b16 %v7453, %v7452
    %v8754 = vpack.c.b16 %v7455, %v7454
    %v8755 = vpack.c.b16 %v7457, %v7456
    %v8756 = vpack.c.b16 %v7459, %v7458
    %v8757 = vpack.c.b16 %v7461, %v7460
    %v8758 = vpack.c.b16 %v7463, %v7462
    %v8759 = vpack.c.b16 %v7465, %v7464
    %v8760 = vpack.c.b16 %v7467, %v7466
    %v8761 = vpack.c.b16 %v7469, %v7468
    %v8762 = vpack.c.b16 %v7471, %v7470
    %v8763 = vpack.c.b16 %v7473, %v7472
    %v8764 = vpack.c.b16 %v7475, %v7474
    %v8765 = vpack.c.b16 %v7477, %v7476
    %v8766 = vpack.c.b16 %v7479, %v7478
    %v8767 = vpack.c.b16 %v7481, %v7480
    %v8768 = vpack.c.b16 %v7483, %v7482
    %v8769 = vpack.c.b16 %v7485, %v7484
    %v8770 = vpack.c.b16 %v7487, %v7486
    %v8771 = vpack.c.b16 %v7489, %v7488
    %v8772 = vpack.c.b16 %v7491, %v7490
    %v8773 = vpack.c.b16 %v7493, %v7492
    %v8774 = vpack.c.b16 %v7495, %v7494
    %v8775 = vpack.c.b16 %v7497, %v7496
    %v8776 = vpack.c.b16 %v7499, %v7498
    %v8777 = vpack.c.b16 %v7501, %v7500
    %v8778 = vpack.c.b16 %v7503, %v7502
    %v8779 = vpack.c.b16 %v7505, %v7504
    %v8780 = vpack.c.b16 %v7507, %v7506
    %v8781 = vpack.c.b16 %v7509, %v7508
    %v8782 = vpack.c.b16 %v7511, %v7510
    %v8783 = vpack.c.b16 %v7513, %v7512
    %v8784 = vpack.c.b16 %v7515, %v7514
    %v8785 = vpack.c.b16 %v7517, %v7516
    %v8786 = vpack.c.b16 %v7519, %v7518
    %v8787 = vpack.c.b16 %v7521, %v7520
    %v8788 = vpack.c.b16 %v7523, %v7522
    %v8789 = vpack.c.b16 %v7525, %v7524
    %v8790 = vpack.c.b16 %v7527, %v7526
    %v8791 = vpack.c.b16 %v7529, %v7528
    %v8792 = vpack.c.b16 %v7531, %v7530
    %v8793 = vpack.c.b16 %v7533, %v7532
    %v8794 = vpack.c.b16 %v7535, %v7534
    %v8795 = vpack.c.b16 %v7537, %v7536
    %v8796 = vpack.c.b16 %v7539, %v7538
    %v8797 = vpack.c.b16 %v7541, %v7540
    %v8798 = vpack.c.b16 %v7543, %v7542
    %v8799 = vpack.c.b16 %v7545, %v7544
    %v8800 = vpack.c.b16 %v7547, %v7546
    %v8801 = vpack.c.b16 %v7549, %v7548
    %v8802 = vpack.c.b16 %v7551, %v7550
    %v8803 = vpack.c.b16 %v7553, %v7552
    %v8804 = vpack.c.b16 %v7555, %v7554
    %v8805 = vpack.c.b16 %v7557, %v7556
    %v8806 = vpack.c.b16 %v7559, %v7558
    %v8807 = vpack.c.b16 %v7561, %v7560
    %v8808 = vpack.c.b16 %v7563, %v7562
    %v8809 = vpack.c.b16 %v7565, %v7564
    %v8810 = vpack.c.b16 %v7567, %v7566
    %v8811 = vpack.c.b16 %v7569, %v7568
    %v8812 = vpack.c.b16 %v7571, %v7570
    %v8813 = vpack.c.b16 %v7573, %v7572
    %v8814 = vpack.c.b16 %v7575, %v7574
    %v8815 = vpack.c.b16 %v7577, %v7576
    %v8816 = vpack.c.b16 %v7579, %v7578
    %v8817 = vpack.c.b16 %v7581, %v7580
    %v8818 = vpack.c.b16 %v7583, %v7582
    %v8819 = vpack.c.b16 %v7585, %v7584
    %v8820 = vpack.c.b16 %v7587, %v7586
    %v8821 = vpack.c.b16 %v7589, %v7588
    %v8822 = vpack.c.b16 %v7591, %v7590
    %v8823 = vpack.c.b16 %v7593, %v7592
    %v8824 = vpack.c.b16 %v7595, %v7594
    %v8825 = vpack.c.b16 %v7597, %v7596
    %v8826 = vpack.c.b16 %v7599, %v7598
    %v8827 = vpack.c.b16 %v7601, %v7600
    %v8828 = vpack.c.b16 %v7603, %v7602
    %v8829 = vpack.c.b16 %v7605, %v7604
    %v8830 = vpack.c.b16 %v7607, %v7606
    %v8831 = vpack.c.b16 %v7609, %v7608
    %v8832 = vpack.c.b16 %v7611, %v7610
    %v8833 = vpack.c.b16 %v7613, %v7612
    %v8834 = vpack.c.b16 %v7615, %v7614
    %v8835 = vpack.c.b16 %v7617, %v7616
    %v8836 = vpack.c.b16 %v7619, %v7618
    %v8837 = vpack.c.b16 %v7621, %v7620
    %v8838 = vpack.c.b16 %v7623, %v7622
    %v8839 = vpack.c.b16 %v7625, %v7624
    %v8840 = vpack.c.b16 %v7627, %v7626
    %v8841 = vpack.c.b16 %v7629, %v7628
    %v8842 = vpack.c.b16 %v7631, %v7630
    %v8843 = vpack.c.b16 %v7633, %v7632
    %v8844 = vpack.c.b16 %v7635, %v7634
    %v8845 = vpack.c.b16 %v7637, %v7636
    %v8846 = vpack.c.b16 %v7639, %v7638
    %v8847 = vpack.c.b16 %v7641, %v7640
    %v8848 = vpack.c.b16 %v7643, %v7642
    %v8849 = vpack.c.b16 %v7645, %v7644
    %v8850 = vpack.c.b16 %v7647, %v7646
    %v8851 = vpack.c.b16 %v7649, %v7648
    %v8852 = vpack.c.b16 %v7651, %v7650
    %v8853 = vpack.c.b16 %v7653, %v7652
    %10054 = vmatpush.bf16.msra.mxu0 %v7661
    %10055 = vmatpush.bf16.msra.mxu0 %v7660
    %10056 = vmatpush.bf16.msra.mxu0 %v7659
    %10057 = vmatpush.bf16.msra.mxu0 %v7658
    %10058 = vmatpush.bf16.msra.mxu0 %v7657
    %10059 = vmatpush.bf16.msra.mxu0 %v7656
    %10060 = vmatpush.bf16.msra.mxu0 %v7655
    %10061 = vmatpush.bf16.msra.mxu0 %v7654
    %10062 = vmatmul.bf16.gmra.mxu0 %v300
    %v10063 = vpop.f32.mrf.mxu0
    %v10064 = vadd.f32 %v2852, %v10063
    %v10065 = vpop.f32.mrf.mxu0
    %10066 = vdwg.mxu0
    %10067 = vmatpush.bf16.msra.mxu0 %v7669
    %10068 = vmatpush.bf16.msra.mxu0 %v7668
    %10069 = vmatpush.bf16.msra.mxu0 %v7667
    %10070 = vmatpush.bf16.msra.mxu0 %v7666
    %10071 = vmatpush.bf16.msra.mxu0 %v7665
    %10072 = vmatpush.bf16.msra.mxu0 %v7664
    %10073 = vmatpush.bf16.msra.mxu0 %v7663
    %10074 = vmatpush.bf16.msra.mxu0 %v7662
    %10075 = vmatmul.bf16.gmra.mxu0 %v301
    %v10076 = vpop.f32.mrf.mxu0
    %v10077 = vadd.f32 %v10064, %v10076
    %v10078 = vpop.f32.mrf.mxu0
    %10079 = vdwg.mxu0
    %10080 = vmatpush.bf16.msra.mxu0 %v7677
    %10081 = vmatpush.bf16.msra.mxu0 %v7676
    %10082 = vmatpush.bf16.msra.mxu0 %v7675
    %10083 = vmatpush.bf16.msra.mxu0 %v7674
    %10084 = vmatpush.bf16.msra.mxu0 %v7673
    %10085 = vmatpush.bf16.msra.mxu0 %v7672
    %10086 = vmatpush.bf16.msra.mxu0 %v7671
    %10087 = vmatpush.bf16.msra.mxu0 %v7670
    %10088 = vmatmul.bf16.gmra.mxu0 %v302
    %v10089 = vpop.f32.mrf.mxu0
    %v10090 = vadd.f32 %v10077, %v10089
    %v10091 = vpop.f32.mrf.mxu0
    %10092 = vdwg.mxu0
    %10093 = vmatpush.bf16.msra.mxu0 %v7685
    %10094 = vmatpush.bf16.msra.mxu0 %v7684
    %10095 = vmatpush.bf16.msra.mxu0 %v7683
    %10096 = vmatpush.bf16.msra.mxu0 %v7682
    %10097 = vmatpush.bf16.msra.mxu0 %v7681
    %10098 = vmatpush.bf16.msra.mxu0 %v7680
    %10099 = vmatpush.bf16.msra.mxu0 %v7679
    %10100 = vmatpush.bf16.msra.mxu0 %v7678
    %10101 = vmatmul.bf16.gmra.mxu0 %v303
    %v10102 = vpop.f32.mrf.mxu0
    %v10103 = vadd.f32 %v10090, %v10102
    %v10104 = vpop.f32.mrf.mxu0
    %10105 = vdwg.mxu0
    %10106 = vmatpush.bf16.msra.mxu0 %v7693
    %10107 = vmatpush.bf16.msra.mxu0 %v7692
    %10108 = vmatpush.bf16.msra.mxu0 %v7691
    %10109 = vmatpush.bf16.msra.mxu0 %v7690
    %10110 = vmatpush.bf16.msra.mxu0 %v7689
    %10111 = vmatpush.bf16.msra.mxu0 %v7688
    %10112 = vmatpush.bf16.msra.mxu0 %v7687
    %10113 = vmatpush.bf16.msra.mxu0 %v7686
    %10114 = vmatmul.bf16.gmra.mxu0 %v304
    %v10115 = vpop.f32.mrf.mxu0
    %v10116 = vadd.f32 %v10103, %v10115
    %v10117 = vpop.f32.mrf.mxu0
    %10118 = vdwg.mxu0
    %10119 = vmatpush.bf16.msra.mxu0 %v7701
    %10120 = vmatpush.bf16.msra.mxu0 %v7700
    %10121 = vmatpush.bf16.msra.mxu0 %v7699
    %10122 = vmatpush.bf16.msra.mxu0 %v7698
    %10123 = vmatpush.bf16.msra.mxu0 %v7697
    %10124 = vmatpush.bf16.msra.mxu0 %v7696
    %10125 = vmatpush.bf16.msra.mxu0 %v7695
    %10126 = vmatpush.bf16.msra.mxu0 %v7694
    %10127 = vmatmul.bf16.gmra.mxu0 %v305
    %v10128 = vpop.f32.mrf.mxu0
    %v10129 = vadd.f32 %v10116, %v10128
    %v10130 = vpop.f32.mrf.mxu0
    %10131 = vdwg.mxu0
    %10132 = vmatpush.bf16.msra.mxu0 %v7709
    %10133 = vmatpush.bf16.msra.mxu0 %v7708
    %10134 = vmatpush.bf16.msra.mxu0 %v7707
    %10135 = vmatpush.bf16.msra.mxu0 %v7706
    %10136 = vmatpush.bf16.msra.mxu0 %v7705
    %10137 = vmatpush.bf16.msra.mxu0 %v7704
    %10138 = vmatpush.bf16.msra.mxu0 %v7703
    %10139 = vmatpush.bf16.msra.mxu0 %v7702
    %10140 = vmatmul.bf16.gmra.mxu0 %v306
    %v10141 = vpop.f32.mrf.mxu0
    %v10142 = vadd.f32 %v10129, %v10141
    %v10143 = vpop.f32.mrf.mxu0
    %10144 = vdwg.mxu0
    %10145 = vmatpush.bf16.msra.mxu0 %v7717
    %10146 = vmatpush.bf16.msra.mxu0 %v7716
    %10147 = vmatpush.bf16.msra.mxu0 %v7715
    %10148 = vmatpush.bf16.msra.mxu0 %v7714
    %10149 = vmatpush.bf16.msra.mxu0 %v7713
    %10150 = vmatpush.bf16.msra.mxu0 %v7712
    %10151 = vmatpush.bf16.msra.mxu0 %v7711
    %10152 = vmatpush.bf16.msra.mxu0 %v7710
    %10153 = vmatmul.bf16.gmra.mxu0 %v307
    %v10154 = vpop.f32.mrf.mxu0
    %v10155 = vadd.f32 %v10142, %v10154
    %v10156 = vpop.f32.mrf.mxu0
    %10157 = vdwg.mxu0
    %10158 = vmatpush.bf16.msra.mxu0 %v7725
    %10159 = vmatpush.bf16.msra.mxu0 %v7724
    %10160 = vmatpush.bf16.msra.mxu0 %v7723
    %10161 = vmatpush.bf16.msra.mxu0 %v7722
    %10162 = vmatpush.bf16.msra.mxu0 %v7721
    %10163 = vmatpush.bf16.msra.mxu0 %v7720
    %10164 = vmatpush.bf16.msra.mxu0 %v7719
    %10165 = vmatpush.bf16.msra.mxu0 %v7718
    %10166 = vmatmul.bf16.gmra.mxu0 %v308
    %v10167 = vpop.f32.mrf.mxu0
    %v10168 = vadd.f32 %v10155, %v10167
    %v10169 = vpop.f32.mrf.mxu0
    %10170 = vdwg.mxu0
    %10171 = vmatpush.bf16.msra.mxu0 %v7733
    %10172 = vmatpush.bf16.msra.mxu0 %v7732
    %10173 = vmatpush.bf16.msra.mxu0 %v7731
    %10174 = vmatpush.bf16.msra.mxu0 %v7730
    %10175 = vmatpush.bf16.msra.mxu0 %v7729
    %10176 = vmatpush.bf16.msra.mxu0 %v7728
    %10177 = vmatpush.bf16.msra.mxu0 %v7727
    %10178 = vmatpush.bf16.msra.mxu0 %v7726
    %10179 = vmatmul.bf16.gmra.mxu0 %v309
    %v10180 = vpop.f32.mrf.mxu0
    %v10181 = vadd.f32 %v10168, %v10180
    %v10182 = vpop.f32.mrf.mxu0
    %10183 = vdwg.mxu0
    %10184 = vmatpush.bf16.msra.mxu0 %v7741
    %10185 = vmatpush.bf16.msra.mxu0 %v7740
    %10186 = vmatpush.bf16.msra.mxu0 %v7739
    %10187 = vmatpush.bf16.msra.mxu0 %v7738
    %10188 = vmatpush.bf16.msra.mxu0 %v7737
    %10189 = vmatpush.bf16.msra.mxu0 %v7736
    %10190 = vmatpush.bf16.msra.mxu0 %v7735
    %10191 = vmatpush.bf16.msra.mxu0 %v7734
    %10192 = vmatmul.bf16.gmra.mxu0 %v310
    %v10193 = vpop.f32.mrf.mxu0
    %v10194 = vadd.f32 %v10181, %v10193
    %v10195 = vpop.f32.mrf.mxu0
    %10196 = vdwg.mxu0
    %10197 = vmatpush.bf16.msra.mxu0 %v7749
    %10198 = vmatpush.bf16.msra.mxu0 %v7748
    %10199 = vmatpush.bf16.msra.mxu0 %v7747
    %10200 = vmatpush.bf16.msra.mxu0 %v7746
    %10201 = vmatpush.bf16.msra.mxu0 %v7745
    %10202 = vmatpush.bf16.msra.mxu0 %v7744
    %10203 = vmatpush.bf16.msra.mxu0 %v7743
    %10204 = vmatpush.bf16.msra.mxu0 %v7742
    %10205 = vmatmul.bf16.gmra.mxu0 %v311
    %v10206 = vpop.f32.mrf.mxu0
    %v10207 = vadd.f32 %v10194, %v10206
    %v10208 = vpop.f32.mrf.mxu0
    %10209 = vdwg.mxu0
    %10210 = vmatpush.bf16.msra.mxu0 %v7757
    %10211 = vmatpush.bf16.msra.mxu0 %v7756
    %10212 = vmatpush.bf16.msra.mxu0 %v7755
    %10213 = vmatpush.bf16.msra.mxu0 %v7754
    %10214 = vmatpush.bf16.msra.mxu0 %v7753
    %10215 = vmatpush.bf16.msra.mxu0 %v7752
    %10216 = vmatpush.bf16.msra.mxu0 %v7751
    %10217 = vmatpush.bf16.msra.mxu0 %v7750
    %10218 = vmatmul.bf16.gmra.mxu0 %v312
    %v10219 = vpop.f32.mrf.mxu0
    %v10220 = vadd.f32 %v10207, %v10219
    %v10221 = vpop.f32.mrf.mxu0
    %10222 = vdwg.mxu0
    %10223 = vmatpush.bf16.msra.mxu0 %v7765
    %10224 = vmatpush.bf16.msra.mxu0 %v7764
    %10225 = vmatpush.bf16.msra.mxu0 %v7763
    %10226 = vmatpush.bf16.msra.mxu0 %v7762
    %10227 = vmatpush.bf16.msra.mxu0 %v7761
    %10228 = vmatpush.bf16.msra.mxu0 %v7760
    %10229 = vmatpush.bf16.msra.mxu0 %v7759
    %10230 = vmatpush.bf16.msra.mxu0 %v7758
    %10231 = vmatmul.bf16.gmra.mxu0 %v313
    %v10232 = vpop.f32.mrf.mxu0
    %v10233 = vadd.f32 %v10220, %v10232
    %v10234 = vpop.f32.mrf.mxu0
    %10235 = vdwg.mxu0
    %10236 = vmatpush.bf16.msra.mxu0 %v7773
    %10237 = vmatpush.bf16.msra.mxu0 %v7772
    %10238 = vmatpush.bf16.msra.mxu0 %v7771
    %10239 = vmatpush.bf16.msra.mxu0 %v7770
    %10240 = vmatpush.bf16.msra.mxu0 %v7769
    %10241 = vmatpush.bf16.msra.mxu0 %v7768
    %10242 = vmatpush.bf16.msra.mxu0 %v7767
    %10243 = vmatpush.bf16.msra.mxu0 %v7766
    %10244 = vmatmul.bf16.gmra.mxu0 %v314
    %v10245 = vpop.f32.mrf.mxu0
    %v10246 = vadd.f32 %v10233, %v10245
    %v10247 = vpop.f32.mrf.mxu0
    %10248 = vdwg.mxu0
    %10249 = vmatpush.bf16.msra.mxu0 %v7781
    %10250 = vmatpush.bf16.msra.mxu0 %v7780
    %10251 = vmatpush.bf16.msra.mxu0 %v7779
    %10252 = vmatpush.bf16.msra.mxu0 %v7778
    %10253 = vmatpush.bf16.msra.mxu0 %v7777
    %10254 = vmatpush.bf16.msra.mxu0 %v7776
    %10255 = vmatpush.bf16.msra.mxu0 %v7775
    %10256 = vmatpush.bf16.msra.mxu0 %v7774
    %10257 = vmatmul.bf16.gmra.mxu0 %v315
    %v10258 = vpop.f32.mrf.mxu0
    %v10259 = vadd.f32 %v10246, %v10258
    %v10260 = vpop.f32.mrf.mxu0
    %10261 = vdwg.mxu0
    %10262 = vmatpush.bf16.msra.mxu0 %v7789
    %10263 = vmatpush.bf16.msra.mxu0 %v7788
    %10264 = vmatpush.bf16.msra.mxu0 %v7787
    %10265 = vmatpush.bf16.msra.mxu0 %v7786
    %10266 = vmatpush.bf16.msra.mxu0 %v7785
    %10267 = vmatpush.bf16.msra.mxu0 %v7784
    %10268 = vmatpush.bf16.msra.mxu0 %v7783
    %10269 = vmatpush.bf16.msra.mxu0 %v7782
    %10270 = vmatmul.bf16.gmra.mxu0 %v316
    %v10271 = vpop.f32.mrf.mxu0
    %v10272 = vadd.f32 %v10259, %v10271
    %v10273 = vpop.f32.mrf.mxu0
    %10274 = vdwg.mxu0
    %10275 = vmatpush.bf16.msra.mxu0 %v7797
    %10276 = vmatpush.bf16.msra.mxu0 %v7796
    %10277 = vmatpush.bf16.msra.mxu0 %v7795
    %10278 = vmatpush.bf16.msra.mxu0 %v7794
    %10279 = vmatpush.bf16.msra.mxu0 %v7793
    %10280 = vmatpush.bf16.msra.mxu0 %v7792
    %10281 = vmatpush.bf16.msra.mxu0 %v7791
    %10282 = vmatpush.bf16.msra.mxu0 %v7790
    %10283 = vmatmul.bf16.gmra.mxu0 %v317
    %v10284 = vpop.f32.mrf.mxu0
    %v10285 = vadd.f32 %v10272, %v10284
    %v10286 = vpop.f32.mrf.mxu0
    %10287 = vdwg.mxu0
    %10288 = vmatpush.bf16.msra.mxu0 %v7805
    %10289 = vmatpush.bf16.msra.mxu0 %v7804
    %10290 = vmatpush.bf16.msra.mxu0 %v7803
    %10291 = vmatpush.bf16.msra.mxu0 %v7802
    %10292 = vmatpush.bf16.msra.mxu0 %v7801
    %10293 = vmatpush.bf16.msra.mxu0 %v7800
    %10294 = vmatpush.bf16.msra.mxu0 %v7799
    %10295 = vmatpush.bf16.msra.mxu0 %v7798
    %10296 = vmatmul.bf16.gmra.mxu0 %v318
    %v10297 = vpop.f32.mrf.mxu0
    %v10298 = vadd.f32 %v10285, %v10297
    %v10299 = vpop.f32.mrf.mxu0
    %10300 = vdwg.mxu0
    %10301 = vmatpush.bf16.msra.mxu0 %v7813
    %10302 = vmatpush.bf16.msra.mxu0 %v7812
    %10303 = vmatpush.bf16.msra.mxu0 %v7811
    %10304 = vmatpush.bf16.msra.mxu0 %v7810
    %10305 = vmatpush.bf16.msra.mxu0 %v7809
    %10306 = vmatpush.bf16.msra.mxu0 %v7808
    %10307 = vmatpush.bf16.msra.mxu0 %v7807
    %10308 = vmatpush.bf16.msra.mxu0 %v7806
    %10309 = vmatmul.bf16.gmra.mxu0 %v319
    %v10310 = vpop.f32.mrf.mxu0
    %v10311 = vadd.f32 %v10298, %v10310
    %v10312 = vpop.f32.mrf.mxu0
    %10313 = vdwg.mxu0
    %10314 = vmatpush.bf16.msra.mxu0 %v7821
    %10315 = vmatpush.bf16.msra.mxu0 %v7820
    %10316 = vmatpush.bf16.msra.mxu0 %v7819
    %10317 = vmatpush.bf16.msra.mxu0 %v7818
    %10318 = vmatpush.bf16.msra.mxu0 %v7817
    %10319 = vmatpush.bf16.msra.mxu0 %v7816
    %10320 = vmatpush.bf16.msra.mxu0 %v7815
    %10321 = vmatpush.bf16.msra.mxu0 %v7814
    %10322 = vmatmul.bf16.gmra.mxu0 %v320
    %v10323 = vpop.f32.mrf.mxu0
    %v10324 = vadd.f32 %v10311, %v10323
    %v10325 = vpop.f32.mrf.mxu0
    %10326 = vdwg.mxu0
    %10327 = vmatpush.bf16.msra.mxu0 %v7829
    %10328 = vmatpush.bf16.msra.mxu0 %v7828
    %10329 = vmatpush.bf16.msra.mxu0 %v7827
    %10330 = vmatpush.bf16.msra.mxu0 %v7826
    %10331 = vmatpush.bf16.msra.mxu0 %v7825
    %10332 = vmatpush.bf16.msra.mxu0 %v7824
    %10333 = vmatpush.bf16.msra.mxu0 %v7823
    %10334 = vmatpush.bf16.msra.mxu0 %v7822
    %10335 = vmatmul.bf16.gmra.mxu0 %v321
    %v10336 = vpop.f32.mrf.mxu0
    %v10337 = vadd.f32 %v10324, %v10336
    %v10338 = vpop.f32.mrf.mxu0
    %10339 = vdwg.mxu0
    %10340 = vmatpush.bf16.msra.mxu0 %v7837
    %10341 = vmatpush.bf16.msra.mxu0 %v7836
    %10342 = vmatpush.bf16.msra.mxu0 %v7835
    %10343 = vmatpush.bf16.msra.mxu0 %v7834
    %10344 = vmatpush.bf16.msra.mxu0 %v7833
    %10345 = vmatpush.bf16.msra.mxu0 %v7832
    %10346 = vmatpush.bf16.msra.mxu0 %v7831
    %10347 = vmatpush.bf16.msra.mxu0 %v7830
    %10348 = vmatmul.bf16.gmra.mxu0 %v322
    %v10349 = vpop.f32.mrf.mxu0
    %v10350 = vadd.f32 %v10337, %v10349
    %v10351 = vpop.f32.mrf.mxu0
    %10352 = vdwg.mxu0
    %10353 = vmatpush.bf16.msra.mxu0 %v7845
    %10354 = vmatpush.bf16.msra.mxu0 %v7844
    %10355 = vmatpush.bf16.msra.mxu0 %v7843
    %10356 = vmatpush.bf16.msra.mxu0 %v7842
    %10357 = vmatpush.bf16.msra.mxu0 %v7841
    %10358 = vmatpush.bf16.msra.mxu0 %v7840
    %10359 = vmatpush.bf16.msra.mxu0 %v7839
    %10360 = vmatpush.bf16.msra.mxu0 %v7838
    %10361 = vmatmul.bf16.gmra.mxu0 %v323
    %v10362 = vpop.f32.mrf.mxu0
    %v10363 = vadd.f32 %v10350, %v10362
    %v10364 = vpop.f32.mrf.mxu0
    %10365 = vdwg.mxu0
    %10366 = vmatpush.bf16.msra.mxu0 %v7853
    %10367 = vmatpush.bf16.msra.mxu0 %v7852
    %10368 = vmatpush.bf16.msra.mxu0 %v7851
    %10369 = vmatpush.bf16.msra.mxu0 %v7850
    %10370 = vmatpush.bf16.msra.mxu0 %v7849
    %10371 = vmatpush.bf16.msra.mxu0 %v7848
    %10372 = vmatpush.bf16.msra.mxu0 %v7847
    %10373 = vmatpush.bf16.msra.mxu0 %v7846
    %10374 = vmatmul.bf16.gmra.mxu0 %v324
    %v10375 = vpop.f32.mrf.mxu0
    %v10376 = vadd.f32 %v10363, %v10375
    %v10377 = vpop.f32.mrf.mxu0
    %10378 = vdwg.mxu0
    %10379 = vmatpush.bf16.msra.mxu0 %v7861
    %10380 = vmatpush.bf16.msra.mxu0 %v7860
    %10381 = vmatpush.bf16.msra.mxu0 %v7859
    %10382 = vmatpush.bf16.msra.mxu0 %v7858
    %10383 = vmatpush.bf16.msra.mxu0 %v7857
    %10384 = vmatpush.bf16.msra.mxu0 %v7856
    %10385 = vmatpush.bf16.msra.mxu0 %v7855
    %10386 = vmatpush.bf16.msra.mxu0 %v7854
    %10387 = vmatmul.bf16.gmra.mxu0 %v325
    %v10388 = vpop.f32.mrf.mxu0
    %v10389 = vadd.f32 %v10376, %v10388
    %v10390 = vpop.f32.mrf.mxu0
    %10391 = vdwg.mxu0
    %10392 = vmatpush.bf16.msra.mxu0 %v7869
    %10393 = vmatpush.bf16.msra.mxu0 %v7868
    %10394 = vmatpush.bf16.msra.mxu0 %v7867
    %10395 = vmatpush.bf16.msra.mxu0 %v7866
    %10396 = vmatpush.bf16.msra.mxu0 %v7865
    %10397 = vmatpush.bf16.msra.mxu0 %v7864
    %10398 = vmatpush.bf16.msra.mxu0 %v7863
    %10399 = vmatpush.bf16.msra.mxu0 %v7862
    %10400 = vmatmul.bf16.gmra.mxu0 %v326
    %v10401 = vpop.f32.mrf.mxu0
    %v10402 = vadd.f32 %v10389, %v10401
    %v10403 = vpop.f32.mrf.mxu0
    %10404 = vdwg.mxu0
    %10405 = vmatpush.bf16.msra.mxu0 %v7877
    %10406 = vmatpush.bf16.msra.mxu0 %v7876
    %10407 = vmatpush.bf16.msra.mxu0 %v7875
    %10408 = vmatpush.bf16.msra.mxu0 %v7874
    %10409 = vmatpush.bf16.msra.mxu0 %v7873
    %10410 = vmatpush.bf16.msra.mxu0 %v7872
    %10411 = vmatpush.bf16.msra.mxu0 %v7871
    %10412 = vmatpush.bf16.msra.mxu0 %v7870
    %10413 = vmatmul.bf16.gmra.mxu0 %v327
    %v10414 = vpop.f32.mrf.mxu0
    %v10415 = vadd.f32 %v10402, %v10414
    %v10416 = vpop.f32.mrf.mxu0
    %10417 = vdwg.mxu0
    %10418 = vmatpush.bf16.msra.mxu0 %v7885
    %10419 = vmatpush.bf16.msra.mxu0 %v7884
    %10420 = vmatpush.bf16.msra.mxu0 %v7883
    %10421 = vmatpush.bf16.msra.mxu0 %v7882
    %10422 = vmatpush.bf16.msra.mxu0 %v7881
    %10423 = vmatpush.bf16.msra.mxu0 %v7880
    %10424 = vmatpush.bf16.msra.mxu0 %v7879
    %10425 = vmatpush.bf16.msra.mxu0 %v7878
    %10426 = vmatmul.bf16.gmra.mxu0 %v328
    %v10427 = vpop.f32.mrf.mxu0
    %v10428 = vadd.f32 %v10415, %v10427
    %v10429 = vpop.f32.mrf.mxu0
    %10430 = vdwg.mxu0
    %10431 = vmatpush.bf16.msra.mxu0 %v7893
    %10432 = vmatpush.bf16.msra.mxu0 %v7892
    %10433 = vmatpush.bf16.msra.mxu0 %v7891
    %10434 = vmatpush.bf16.msra.mxu0 %v7890
    %10435 = vmatpush.bf16.msra.mxu0 %v7889
    %10436 = vmatpush.bf16.msra.mxu0 %v7888
    %10437 = vmatpush.bf16.msra.mxu0 %v7887
    %10438 = vmatpush.bf16.msra.mxu0 %v7886
    %10439 = vmatmul.bf16.gmra.mxu0 %v329
    %v10440 = vpop.f32.mrf.mxu0
    %v10441 = vadd.f32 %v10428, %v10440
    %v10442 = vpop.f32.mrf.mxu0
    %10443 = vdwg.mxu0
    %10444 = vmatpush.bf16.msra.mxu0 %v7901
    %10445 = vmatpush.bf16.msra.mxu0 %v7900
    %10446 = vmatpush.bf16.msra.mxu0 %v7899
    %10447 = vmatpush.bf16.msra.mxu0 %v7898
    %10448 = vmatpush.bf16.msra.mxu0 %v7897
    %10449 = vmatpush.bf16.msra.mxu0 %v7896
    %10450 = vmatpush.bf16.msra.mxu0 %v7895
    %10451 = vmatpush.bf16.msra.mxu0 %v7894
    %10452 = vmatmul.bf16.gmra.mxu0 %v330
    %v10453 = vpop.f32.mrf.mxu0
    %v10454 = vadd.f32 %v10441, %v10453
    %v10455 = vpop.f32.mrf.mxu0
    %10456 = vdwg.mxu0
    %10457 = vmatpush.bf16.msra.mxu0 %v7909
    %10458 = vmatpush.bf16.msra.mxu0 %v7908
    %10459 = vmatpush.bf16.msra.mxu0 %v7907
    %10460 = vmatpush.bf16.msra.mxu0 %v7906
    %10461 = vmatpush.bf16.msra.mxu0 %v7905
    %10462 = vmatpush.bf16.msra.mxu0 %v7904
    %10463 = vmatpush.bf16.msra.mxu0 %v7903
    %10464 = vmatpush.bf16.msra.mxu0 %v7902
    %10465 = vmatmul.bf16.gmra.mxu0 %v331
    %v10466 = vpop.f32.mrf.mxu0
    %v10467 = vadd.f32 %v10454, %v10466
    %v10468 = vpop.f32.mrf.mxu0
    %10469 = vdwg.mxu0
    %10470 = vmatpush.bf16.msra.mxu0 %v7917
    %10471 = vmatpush.bf16.msra.mxu0 %v7916
    %10472 = vmatpush.bf16.msra.mxu0 %v7915
    %10473 = vmatpush.bf16.msra.mxu0 %v7914
    %10474 = vmatpush.bf16.msra.mxu0 %v7913
    %10475 = vmatpush.bf16.msra.mxu0 %v7912
    %10476 = vmatpush.bf16.msra.mxu0 %v7911
    %10477 = vmatpush.bf16.msra.mxu0 %v7910
    %10478 = vmatmul.bf16.gmra.mxu0 %v332
    %v10479 = vpop.f32.mrf.mxu0
    %v10480 = vadd.f32 %v10467, %v10479
    %v10481 = vpop.f32.mrf.mxu0
    %10482 = vdwg.mxu0
    %10483 = vmatpush.bf16.msra.mxu0 %v7925
    %10484 = vmatpush.bf16.msra.mxu0 %v7924
    %10485 = vmatpush.bf16.msra.mxu0 %v7923
    %10486 = vmatpush.bf16.msra.mxu0 %v7922
    %10487 = vmatpush.bf16.msra.mxu0 %v7921
    %10488 = vmatpush.bf16.msra.mxu0 %v7920
    %10489 = vmatpush.bf16.msra.mxu0 %v7919
    %10490 = vmatpush.bf16.msra.mxu0 %v7918
    %10491 = vmatmul.bf16.gmra.mxu0 %v333
    %v10492 = vpop.f32.mrf.mxu0
    %v10493 = vadd.f32 %v10480, %v10492
    %v10494 = vpop.f32.mrf.mxu0
    %10495 = vdwg.mxu0
    %10496 = vmatpush.bf16.msra.mxu0 %v7933
    %10497 = vmatpush.bf16.msra.mxu0 %v7932
    %10498 = vmatpush.bf16.msra.mxu0 %v7931
    %10499 = vmatpush.bf16.msra.mxu0 %v7930
    %10500 = vmatpush.bf16.msra.mxu0 %v7929
    %10501 = vmatpush.bf16.msra.mxu0 %v7928
    %10502 = vmatpush.bf16.msra.mxu0 %v7927
    %10503 = vmatpush.bf16.msra.mxu0 %v7926
    %10504 = vmatmul.bf16.gmra.mxu0 %v334
    %v10505 = vpop.f32.mrf.mxu0
    %v10506 = vadd.f32 %v10493, %v10505
    %v10507 = vpop.f32.mrf.mxu0
    %10508 = vdwg.mxu0
    %10509 = vmatpush.bf16.msra.mxu0 %v7941
    %10510 = vmatpush.bf16.msra.mxu0 %v7940
    %10511 = vmatpush.bf16.msra.mxu0 %v7939
    %10512 = vmatpush.bf16.msra.mxu0 %v7938
    %10513 = vmatpush.bf16.msra.mxu0 %v7937
    %10514 = vmatpush.bf16.msra.mxu0 %v7936
    %10515 = vmatpush.bf16.msra.mxu0 %v7935
    %10516 = vmatpush.bf16.msra.mxu0 %v7934
    %10517 = vmatmul.bf16.gmra.mxu0 %v335
    %v10518 = vpop.f32.mrf.mxu0
    %v10519 = vadd.f32 %v10506, %v10518
    %v10520 = vpop.f32.mrf.mxu0
    %10521 = vdwg.mxu0
    %10522 = vmatpush.bf16.msra.mxu0 %v7949
    %10523 = vmatpush.bf16.msra.mxu0 %v7948
    %10524 = vmatpush.bf16.msra.mxu0 %v7947
    %10525 = vmatpush.bf16.msra.mxu0 %v7946
    %10526 = vmatpush.bf16.msra.mxu0 %v7945
    %10527 = vmatpush.bf16.msra.mxu0 %v7944
    %10528 = vmatpush.bf16.msra.mxu0 %v7943
    %10529 = vmatpush.bf16.msra.mxu0 %v7942
    %10530 = vmatmul.bf16.gmra.mxu0 %v336
    %v10531 = vpop.f32.mrf.mxu0
    %v10532 = vadd.f32 %v10519, %v10531
    %v10533 = vpop.f32.mrf.mxu0
    %10534 = vdwg.mxu0
    %10535 = vmatpush.bf16.msra.mxu0 %v7957
    %10536 = vmatpush.bf16.msra.mxu0 %v7956
    %10537 = vmatpush.bf16.msra.mxu0 %v7955
    %10538 = vmatpush.bf16.msra.mxu0 %v7954
    %10539 = vmatpush.bf16.msra.mxu0 %v7953
    %10540 = vmatpush.bf16.msra.mxu0 %v7952
    %10541 = vmatpush.bf16.msra.mxu0 %v7951
    %10542 = vmatpush.bf16.msra.mxu0 %v7950
    %10543 = vmatmul.bf16.gmra.mxu0 %v337
    %v10544 = vpop.f32.mrf.mxu0
    %v10545 = vadd.f32 %v10532, %v10544
    %v10546 = vpop.f32.mrf.mxu0
    %10547 = vdwg.mxu0
    %10548 = vmatpush.bf16.msra.mxu0 %v7965
    %10549 = vmatpush.bf16.msra.mxu0 %v7964
    %10550 = vmatpush.bf16.msra.mxu0 %v7963
    %10551 = vmatpush.bf16.msra.mxu0 %v7962
    %10552 = vmatpush.bf16.msra.mxu0 %v7961
    %10553 = vmatpush.bf16.msra.mxu0 %v7960
    %10554 = vmatpush.bf16.msra.mxu0 %v7959
    %10555 = vmatpush.bf16.msra.mxu0 %v7958
    %10556 = vmatmul.bf16.gmra.mxu0 %v338
    %v10557 = vpop.f32.mrf.mxu0
    %v10558 = vadd.f32 %v10545, %v10557
    %v10559 = vpop.f32.mrf.mxu0
    %10560 = vdwg.mxu0
    %10561 = vmatpush.bf16.msra.mxu0 %v7973
    %10562 = vmatpush.bf16.msra.mxu0 %v7972
    %10563 = vmatpush.bf16.msra.mxu0 %v7971
    %10564 = vmatpush.bf16.msra.mxu0 %v7970
    %10565 = vmatpush.bf16.msra.mxu0 %v7969
    %10566 = vmatpush.bf16.msra.mxu0 %v7968
    %10567 = vmatpush.bf16.msra.mxu0 %v7967
    %10568 = vmatpush.bf16.msra.mxu0 %v7966
    %10569 = vmatmul.bf16.gmra.mxu0 %v339
    %v10570 = vpop.f32.mrf.mxu0
    %v10571 = vadd.f32 %v10558, %v10570
    %v10572 = vpop.f32.mrf.mxu0
    %10573 = vdwg.mxu0
    %10574 = vmatpush.bf16.msra.mxu0 %v7981
    %10575 = vmatpush.bf16.msra.mxu0 %v7980
    %10576 = vmatpush.bf16.msra.mxu0 %v7979
    %10577 = vmatpush.bf16.msra.mxu0 %v7978
    %10578 = vmatpush.bf16.msra.mxu0 %v7977
    %10579 = vmatpush.bf16.msra.mxu0 %v7976
    %10580 = vmatpush.bf16.msra.mxu0 %v7975
    %10581 = vmatpush.bf16.msra.mxu0 %v7974
    %10582 = vmatmul.bf16.gmra.mxu0 %v340
    %v10583 = vpop.f32.mrf.mxu0
    %v10584 = vadd.f32 %v10571, %v10583
    %v10585 = vpop.f32.mrf.mxu0
    %10586 = vdwg.mxu0
    %10587 = vmatpush.bf16.msra.mxu0 %v7989
    %10588 = vmatpush.bf16.msra.mxu0 %v7988
    %10589 = vmatpush.bf16.msra.mxu0 %v7987
    %10590 = vmatpush.bf16.msra.mxu0 %v7986
    %10591 = vmatpush.bf16.msra.mxu0 %v7985
    %10592 = vmatpush.bf16.msra.mxu0 %v7984
    %10593 = vmatpush.bf16.msra.mxu0 %v7983
    %10594 = vmatpush.bf16.msra.mxu0 %v7982
    %10595 = vmatmul.bf16.gmra.mxu0 %v341
    %v10596 = vpop.f32.mrf.mxu0
    %v10597 = vadd.f32 %v10584, %v10596
    %v10598 = vpop.f32.mrf.mxu0
    %10599 = vdwg.mxu0
    %10600 = vmatpush.bf16.msra.mxu0 %v7997
    %10601 = vmatpush.bf16.msra.mxu0 %v7996
    %10602 = vmatpush.bf16.msra.mxu0 %v7995
    %10603 = vmatpush.bf16.msra.mxu0 %v7994
    %10604 = vmatpush.bf16.msra.mxu0 %v7993
    %10605 = vmatpush.bf16.msra.mxu0 %v7992
    %10606 = vmatpush.bf16.msra.mxu0 %v7991
    %10607 = vmatpush.bf16.msra.mxu0 %v7990
    %10608 = vmatmul.bf16.gmra.mxu0 %v342
    %v10609 = vpop.f32.mrf.mxu0
    %v10610 = vadd.f32 %v10597, %v10609
    %v10611 = vpop.f32.mrf.mxu0
    %10612 = vdwg.mxu0
    %10613 = vmatpush.bf16.msra.mxu0 %v8005
    %10614 = vmatpush.bf16.msra.mxu0 %v8004
    %10615 = vmatpush.bf16.msra.mxu0 %v8003
    %10616 = vmatpush.bf16.msra.mxu0 %v8002
    %10617 = vmatpush.bf16.msra.mxu0 %v8001
    %10618 = vmatpush.bf16.msra.mxu0 %v8000
    %10619 = vmatpush.bf16.msra.mxu0 %v7999
    %10620 = vmatpush.bf16.msra.mxu0 %v7998
    %10621 = vmatmul.bf16.gmra.mxu0 %v343
    %v10622 = vpop.f32.mrf.mxu0
    %v10623 = vadd.f32 %v10610, %v10622
    %v10624 = vpop.f32.mrf.mxu0
    %10625 = vdwg.mxu0
    %10626 = vmatpush.bf16.msra.mxu0 %v8013
    %10627 = vmatpush.bf16.msra.mxu0 %v8012
    %10628 = vmatpush.bf16.msra.mxu0 %v8011
    %10629 = vmatpush.bf16.msra.mxu0 %v8010
    %10630 = vmatpush.bf16.msra.mxu0 %v8009
    %10631 = vmatpush.bf16.msra.mxu0 %v8008
    %10632 = vmatpush.bf16.msra.mxu0 %v8007
    %10633 = vmatpush.bf16.msra.mxu0 %v8006
    %10634 = vmatmul.bf16.gmra.mxu0 %v344
    %v10635 = vpop.f32.mrf.mxu0
    %v10636 = vadd.f32 %v10623, %v10635
    %v10637 = vpop.f32.mrf.mxu0
    %10638 = vdwg.mxu0
    %10639 = vmatpush.bf16.msra.mxu0 %v8021
    %10640 = vmatpush.bf16.msra.mxu0 %v8020
    %10641 = vmatpush.bf16.msra.mxu0 %v8019
    %10642 = vmatpush.bf16.msra.mxu0 %v8018
    %10643 = vmatpush.bf16.msra.mxu0 %v8017
    %10644 = vmatpush.bf16.msra.mxu0 %v8016
    %10645 = vmatpush.bf16.msra.mxu0 %v8015
    %10646 = vmatpush.bf16.msra.mxu0 %v8014
    %10647 = vmatmul.bf16.gmra.mxu0 %v345
    %v10648 = vpop.f32.mrf.mxu0
    %v10649 = vadd.f32 %v10636, %v10648
    %v10650 = vpop.f32.mrf.mxu0
    %10651 = vdwg.mxu0
    %10652 = vmatpush.bf16.msra.mxu0 %v8029
    %10653 = vmatpush.bf16.msra.mxu0 %v8028
    %10654 = vmatpush.bf16.msra.mxu0 %v8027
    %10655 = vmatpush.bf16.msra.mxu0 %v8026
    %10656 = vmatpush.bf16.msra.mxu0 %v8025
    %10657 = vmatpush.bf16.msra.mxu0 %v8024
    %10658 = vmatpush.bf16.msra.mxu0 %v8023
    %10659 = vmatpush.bf16.msra.mxu0 %v8022
    %10660 = vmatmul.bf16.gmra.mxu0 %v346
    %v10661 = vpop.f32.mrf.mxu0
    %v10662 = vadd.f32 %v10649, %v10661
    %v10663 = vpop.f32.mrf.mxu0
    %10664 = vdwg.mxu0
    %10665 = vmatpush.bf16.msra.mxu0 %v8037
    %10666 = vmatpush.bf16.msra.mxu0 %v8036
    %10667 = vmatpush.bf16.msra.mxu0 %v8035
    %10668 = vmatpush.bf16.msra.mxu0 %v8034
    %10669 = vmatpush.bf16.msra.mxu0 %v8033
    %10670 = vmatpush.bf16.msra.mxu0 %v8032
    %10671 = vmatpush.bf16.msra.mxu0 %v8031
    %10672 = vmatpush.bf16.msra.mxu0 %v8030
    %10673 = vmatmul.bf16.gmra.mxu0 %v347
    %v10674 = vpop.f32.mrf.mxu0
    %v10675 = vadd.f32 %v10662, %v10674
    %v10676 = vpop.f32.mrf.mxu0
    %10677 = vdwg.mxu0
    %10678 = vmatpush.bf16.msra.mxu0 %v8045
    %10679 = vmatpush.bf16.msra.mxu0 %v8044
    %10680 = vmatpush.bf16.msra.mxu0 %v8043
    %10681 = vmatpush.bf16.msra.mxu0 %v8042
    %10682 = vmatpush.bf16.msra.mxu0 %v8041
    %10683 = vmatpush.bf16.msra.mxu0 %v8040
    %10684 = vmatpush.bf16.msra.mxu0 %v8039
    %10685 = vmatpush.bf16.msra.mxu0 %v8038
    %10686 = vmatmul.bf16.gmra.mxu0 %v348
    %v10687 = vpop.f32.mrf.mxu0
    %v10688 = vadd.f32 %v10675, %v10687
    %v10689 = vpop.f32.mrf.mxu0
    %10690 = vdwg.mxu0
    %10691 = vmatpush.bf16.msra.mxu0 %v8053
    %10692 = vmatpush.bf16.msra.mxu0 %v8052
    %10693 = vmatpush.bf16.msra.mxu0 %v8051
    %10694 = vmatpush.bf16.msra.mxu0 %v8050
    %10695 = vmatpush.bf16.msra.mxu0 %v8049
    %10696 = vmatpush.bf16.msra.mxu0 %v8048
    %10697 = vmatpush.bf16.msra.mxu0 %v8047
    %10698 = vmatpush.bf16.msra.mxu0 %v8046
    %10699 = vmatmul.bf16.gmra.mxu0 %v349
    %v10700 = vpop.f32.mrf.mxu0
    %v10701 = vadd.f32 %v10688, %v10700
    %v10702 = vpop.f32.mrf.mxu0
    %10703 = vdwg.mxu0
    %10704 = vmatpush.bf16.msra.mxu0 %v8061
    %10705 = vmatpush.bf16.msra.mxu0 %v8060
    %10706 = vmatpush.bf16.msra.mxu0 %v8059
    %10707 = vmatpush.bf16.msra.mxu0 %v8058
    %10708 = vmatpush.bf16.msra.mxu0 %v8057
    %10709 = vmatpush.bf16.msra.mxu0 %v8056
    %10710 = vmatpush.bf16.msra.mxu0 %v8055
    %10711 = vmatpush.bf16.msra.mxu0 %v8054
    %10712 = vmatmul.bf16.gmra.mxu0 %v350
    %v10713 = vpop.f32.mrf.mxu0
    %v10714 = vadd.f32 %v10701, %v10713
    %v10715 = vpop.f32.mrf.mxu0
    %10716 = vdwg.mxu0
    %10717 = vmatpush.bf16.msra.mxu0 %v8069
    %10718 = vmatpush.bf16.msra.mxu0 %v8068
    %10719 = vmatpush.bf16.msra.mxu0 %v8067
    %10720 = vmatpush.bf16.msra.mxu0 %v8066
    %10721 = vmatpush.bf16.msra.mxu0 %v8065
    %10722 = vmatpush.bf16.msra.mxu0 %v8064
    %10723 = vmatpush.bf16.msra.mxu0 %v8063
    %10724 = vmatpush.bf16.msra.mxu0 %v8062
    %10725 = vmatmul.bf16.gmra.mxu0 %v351
    %v10726 = vpop.f32.mrf.mxu0
    %v10727 = vadd.f32 %v10714, %v10726
    %v10728 = vpop.f32.mrf.mxu0
    %10729 = vdwg.mxu0
    %10730 = vmatpush.bf16.msra.mxu0 %v8077
    %10731 = vmatpush.bf16.msra.mxu0 %v8076
    %10732 = vmatpush.bf16.msra.mxu0 %v8075
    %10733 = vmatpush.bf16.msra.mxu0 %v8074
    %10734 = vmatpush.bf16.msra.mxu0 %v8073
    %10735 = vmatpush.bf16.msra.mxu0 %v8072
    %10736 = vmatpush.bf16.msra.mxu0 %v8071
    %10737 = vmatpush.bf16.msra.mxu0 %v8070
    %10738 = vmatmul.bf16.gmra.mxu0 %v352
    %v10739 = vpop.f32.mrf.mxu0
    %v10740 = vadd.f32 %v10727, %v10739
    %v10741 = vpop.f32.mrf.mxu0
    %10742 = vdwg.mxu0
    %10743 = vmatpush.bf16.msra.mxu0 %v8085
    %10744 = vmatpush.bf16.msra.mxu0 %v8084
    %10745 = vmatpush.bf16.msra.mxu0 %v8083
    %10746 = vmatpush.bf16.msra.mxu0 %v8082
    %10747 = vmatpush.bf16.msra.mxu0 %v8081
    %10748 = vmatpush.bf16.msra.mxu0 %v8080
    %10749 = vmatpush.bf16.msra.mxu0 %v8079
    %10750 = vmatpush.bf16.msra.mxu0 %v8078
    %10751 = vmatmul.bf16.gmra.mxu0 %v353
    %v10752 = vpop.f32.mrf.mxu0
    %v10753 = vadd.f32 %v10740, %v10752
    %v10754 = vpop.f32.mrf.mxu0
    %10755 = vdwg.mxu0
    %10756 = vmatpush.bf16.msra.mxu0 %v8093
    %10757 = vmatpush.bf16.msra.mxu0 %v8092
    %10758 = vmatpush.bf16.msra.mxu0 %v8091
    %10759 = vmatpush.bf16.msra.mxu0 %v8090
    %10760 = vmatpush.bf16.msra.mxu0 %v8089
    %10761 = vmatpush.bf16.msra.mxu0 %v8088
    %10762 = vmatpush.bf16.msra.mxu0 %v8087
    %10763 = vmatpush.bf16.msra.mxu0 %v8086
    %10764 = vmatmul.bf16.gmra.mxu0 %v354
    %v10765 = vpop.f32.mrf.mxu0
    %v10766 = vadd.f32 %v10753, %v10765
    %v10767 = vpop.f32.mrf.mxu0
    %10768 = vdwg.mxu0
    %10769 = vmatpush.bf16.msra.mxu0 %v8101
    %10770 = vmatpush.bf16.msra.mxu0 %v8100
    %10771 = vmatpush.bf16.msra.mxu0 %v8099
    %10772 = vmatpush.bf16.msra.mxu0 %v8098
    %10773 = vmatpush.bf16.msra.mxu0 %v8097
    %10774 = vmatpush.bf16.msra.mxu0 %v8096
    %10775 = vmatpush.bf16.msra.mxu0 %v8095
    %10776 = vmatpush.bf16.msra.mxu0 %v8094
    %10777 = vmatmul.bf16.gmra.mxu0 %v355
    %v10778 = vpop.f32.mrf.mxu0
    %v10779 = vadd.f32 %v10766, %v10778
    %v10780 = vpop.f32.mrf.mxu0
    %10781 = vdwg.mxu0
    %10782 = vmatpush.bf16.msra.mxu0 %v8109
    %10783 = vmatpush.bf16.msra.mxu0 %v8108
    %10784 = vmatpush.bf16.msra.mxu0 %v8107
    %10785 = vmatpush.bf16.msra.mxu0 %v8106
    %10786 = vmatpush.bf16.msra.mxu0 %v8105
    %10787 = vmatpush.bf16.msra.mxu0 %v8104
    %10788 = vmatpush.bf16.msra.mxu0 %v8103
    %10789 = vmatpush.bf16.msra.mxu0 %v8102
    %10790 = vmatmul.bf16.gmra.mxu0 %v356
    %v10791 = vpop.f32.mrf.mxu0
    %v10792 = vadd.f32 %v10779, %v10791
    %v10793 = vpop.f32.mrf.mxu0
    %10794 = vdwg.mxu0
    %10795 = vmatpush.bf16.msra.mxu0 %v8117
    %10796 = vmatpush.bf16.msra.mxu0 %v8116
    %10797 = vmatpush.bf16.msra.mxu0 %v8115
    %10798 = vmatpush.bf16.msra.mxu0 %v8114
    %10799 = vmatpush.bf16.msra.mxu0 %v8113
    %10800 = vmatpush.bf16.msra.mxu0 %v8112
    %10801 = vmatpush.bf16.msra.mxu0 %v8111
    %10802 = vmatpush.bf16.msra.mxu0 %v8110
    %10803 = vmatmul.bf16.gmra.mxu0 %v357
    %v10804 = vpop.f32.mrf.mxu0
    %v10805 = vadd.f32 %v10792, %v10804
    %v10806 = vpop.f32.mrf.mxu0
    %10807 = vdwg.mxu0
    %10808 = vmatpush.bf16.msra.mxu0 %v8125
    %10809 = vmatpush.bf16.msra.mxu0 %v8124
    %10810 = vmatpush.bf16.msra.mxu0 %v8123
    %10811 = vmatpush.bf16.msra.mxu0 %v8122
    %10812 = vmatpush.bf16.msra.mxu0 %v8121
    %10813 = vmatpush.bf16.msra.mxu0 %v8120
    %10814 = vmatpush.bf16.msra.mxu0 %v8119
    %10815 = vmatpush.bf16.msra.mxu0 %v8118
    %10816 = vmatmul.bf16.gmra.mxu0 %v358
    %v10817 = vpop.f32.mrf.mxu0
    %v10818 = vadd.f32 %v10805, %v10817
    %v10819 = vpop.f32.mrf.mxu0
    %10820 = vdwg.mxu0
    %10821 = vmatpush.bf16.msra.mxu0 %v8133
    %10822 = vmatpush.bf16.msra.mxu0 %v8132
    %10823 = vmatpush.bf16.msra.mxu0 %v8131
    %10824 = vmatpush.bf16.msra.mxu0 %v8130
    %10825 = vmatpush.bf16.msra.mxu0 %v8129
    %10826 = vmatpush.bf16.msra.mxu0 %v8128
    %10827 = vmatpush.bf16.msra.mxu0 %v8127
    %10828 = vmatpush.bf16.msra.mxu0 %v8126
    %10829 = vmatmul.bf16.gmra.mxu0 %v359
    %v10830 = vpop.f32.mrf.mxu0
    %v10831 = vadd.f32 %v10818, %v10830
    %v10832 = vpop.f32.mrf.mxu0
    %10833 = vdwg.mxu0
    %10834 = vmatpush.bf16.msra.mxu0 %v8141
    %10835 = vmatpush.bf16.msra.mxu0 %v8140
    %10836 = vmatpush.bf16.msra.mxu0 %v8139
    %10837 = vmatpush.bf16.msra.mxu0 %v8138
    %10838 = vmatpush.bf16.msra.mxu0 %v8137
    %10839 = vmatpush.bf16.msra.mxu0 %v8136
    %10840 = vmatpush.bf16.msra.mxu0 %v8135
    %10841 = vmatpush.bf16.msra.mxu0 %v8134
    %10842 = vmatmul.bf16.gmra.mxu0 %v360
    %v10843 = vpop.f32.mrf.mxu0
    %v10844 = vadd.f32 %v10831, %v10843
    %v10845 = vpop.f32.mrf.mxu0
    %10846 = vdwg.mxu0
    %10847 = vmatpush.bf16.msra.mxu0 %v8149
    %10848 = vmatpush.bf16.msra.mxu0 %v8148
    %10849 = vmatpush.bf16.msra.mxu0 %v8147
    %10850 = vmatpush.bf16.msra.mxu0 %v8146
    %10851 = vmatpush.bf16.msra.mxu0 %v8145
    %10852 = vmatpush.bf16.msra.mxu0 %v8144
    %10853 = vmatpush.bf16.msra.mxu0 %v8143
    %10854 = vmatpush.bf16.msra.mxu0 %v8142
    %10855 = vmatmul.bf16.gmra.mxu0 %v361
    %v10856 = vpop.f32.mrf.mxu0
    %v10857 = vadd.f32 %v10844, %v10856
    %v10858 = vpop.f32.mrf.mxu0
    %10859 = vdwg.mxu0
    %10860 = vmatpush.bf16.msra.mxu0 %v8157
    %10861 = vmatpush.bf16.msra.mxu0 %v8156
    %10862 = vmatpush.bf16.msra.mxu0 %v8155
    %10863 = vmatpush.bf16.msra.mxu0 %v8154
    %10864 = vmatpush.bf16.msra.mxu0 %v8153
    %10865 = vmatpush.bf16.msra.mxu0 %v8152
    %10866 = vmatpush.bf16.msra.mxu0 %v8151
    %10867 = vmatpush.bf16.msra.mxu0 %v8150
    %10868 = vmatmul.bf16.gmra.mxu0 %v362
    %v10869 = vpop.f32.mrf.mxu0
    %v10870 = vadd.f32 %v10857, %v10869
    %v10871 = vpop.f32.mrf.mxu0
    %10872 = vdwg.mxu0
    %10873 = vmatpush.bf16.msra.mxu0 %v8165
    %10874 = vmatpush.bf16.msra.mxu0 %v8164
    %10875 = vmatpush.bf16.msra.mxu0 %v8163
    %10876 = vmatpush.bf16.msra.mxu0 %v8162
    %10877 = vmatpush.bf16.msra.mxu0 %v8161
    %10878 = vmatpush.bf16.msra.mxu0 %v8160
    %10879 = vmatpush.bf16.msra.mxu0 %v8159
    %10880 = vmatpush.bf16.msra.mxu0 %v8158
    %10881 = vmatmul.bf16.gmra.mxu0 %v363
    %v10882 = vpop.f32.mrf.mxu0
    %v10883 = vadd.f32 %v10870, %v10882
    %v10884 = vpop.f32.mrf.mxu0
    %10885 = vdwg.mxu0
    %10886 = vmatpush.bf16.msra.mxu0 %v8173
    %10887 = vmatpush.bf16.msra.mxu0 %v8172
    %10888 = vmatpush.bf16.msra.mxu0 %v8171
    %10889 = vmatpush.bf16.msra.mxu0 %v8170
    %10890 = vmatpush.bf16.msra.mxu0 %v8169
    %10891 = vmatpush.bf16.msra.mxu0 %v8168
    %10892 = vmatpush.bf16.msra.mxu0 %v8167
    %10893 = vmatpush.bf16.msra.mxu0 %v8166
    %10894 = vmatmul.bf16.gmra.mxu0 %v364
    %v10895 = vpop.f32.mrf.mxu0
    %v10896 = vadd.f32 %v10883, %v10895
    %v10897 = vpop.f32.mrf.mxu0
    %10898 = vdwg.mxu0
    %10899 = vmatpush.bf16.msra.mxu0 %v8181
    %10900 = vmatpush.bf16.msra.mxu0 %v8180
    %10901 = vmatpush.bf16.msra.mxu0 %v8179
    %10902 = vmatpush.bf16.msra.mxu0 %v8178
    %10903 = vmatpush.bf16.msra.mxu0 %v8177
    %10904 = vmatpush.bf16.msra.mxu0 %v8176
    %10905 = vmatpush.bf16.msra.mxu0 %v8175
    %10906 = vmatpush.bf16.msra.mxu0 %v8174
    %10907 = vmatmul.bf16.gmra.mxu0 %v365
    %v10908 = vpop.f32.mrf.mxu0
    %v10909 = vadd.f32 %v10896, %v10908
    %v10910 = vpop.f32.mrf.mxu0
    %10911 = vdwg.mxu0
    %10912 = vmatpush.bf16.msra.mxu0 %v8189
    %10913 = vmatpush.bf16.msra.mxu0 %v8188
    %10914 = vmatpush.bf16.msra.mxu0 %v8187
    %10915 = vmatpush.bf16.msra.mxu0 %v8186
    %10916 = vmatpush.bf16.msra.mxu0 %v8185
    %10917 = vmatpush.bf16.msra.mxu0 %v8184
    %10918 = vmatpush.bf16.msra.mxu0 %v8183
    %10919 = vmatpush.bf16.msra.mxu0 %v8182
    %10920 = vmatmul.bf16.gmra.mxu0 %v366
    %v10921 = vpop.f32.mrf.mxu0
    %v10922 = vadd.f32 %v10909, %v10921
    %v10923 = vpop.f32.mrf.mxu0
    %10924 = vdwg.mxu0
    %10925 = vmatpush.bf16.msra.mxu0 %v8197
    %10926 = vmatpush.bf16.msra.mxu0 %v8196
    %10927 = vmatpush.bf16.msra.mxu0 %v8195
    %10928 = vmatpush.bf16.msra.mxu0 %v8194
    %10929 = vmatpush.bf16.msra.mxu0 %v8193
    %10930 = vmatpush.bf16.msra.mxu0 %v8192
    %10931 = vmatpush.bf16.msra.mxu0 %v8191
    %10932 = vmatpush.bf16.msra.mxu0 %v8190
    %10933 = vmatmul.bf16.gmra.mxu0 %v367
    %v10934 = vpop.f32.mrf.mxu0
    %v10935 = vadd.f32 %v10922, %v10934
    %v10936 = vpop.f32.mrf.mxu0
    %10937 = vdwg.mxu0
    %10938 = vmatpush.bf16.msra.mxu0 %v8205
    %10939 = vmatpush.bf16.msra.mxu0 %v8204
    %10940 = vmatpush.bf16.msra.mxu0 %v8203
    %10941 = vmatpush.bf16.msra.mxu0 %v8202
    %10942 = vmatpush.bf16.msra.mxu0 %v8201
    %10943 = vmatpush.bf16.msra.mxu0 %v8200
    %10944 = vmatpush.bf16.msra.mxu0 %v8199
    %10945 = vmatpush.bf16.msra.mxu0 %v8198
    %10946 = vmatmul.bf16.gmra.mxu0 %v368
    %v10947 = vpop.f32.mrf.mxu0
    %v10948 = vadd.f32 %v10935, %v10947
    %v10949 = vpop.f32.mrf.mxu0
    %10950 = vdwg.mxu0
    %10951 = vmatpush.bf16.msra.mxu0 %v8213
    %10952 = vmatpush.bf16.msra.mxu0 %v8212
    %10953 = vmatpush.bf16.msra.mxu0 %v8211
    %10954 = vmatpush.bf16.msra.mxu0 %v8210
    %10955 = vmatpush.bf16.msra.mxu0 %v8209
    %10956 = vmatpush.bf16.msra.mxu0 %v8208
    %10957 = vmatpush.bf16.msra.mxu0 %v8207
    %10958 = vmatpush.bf16.msra.mxu0 %v8206
    %10959 = vmatmul.bf16.gmra.mxu0 %v369
    %v10960 = vpop.f32.mrf.mxu0
    %v10961 = vadd.f32 %v10948, %v10960
    %v10962 = vpop.f32.mrf.mxu0
    %10963 = vdwg.mxu0
    %10964 = vmatpush.bf16.msra.mxu0 %v8221
    %10965 = vmatpush.bf16.msra.mxu0 %v8220
    %10966 = vmatpush.bf16.msra.mxu0 %v8219
    %10967 = vmatpush.bf16.msra.mxu0 %v8218
    %10968 = vmatpush.bf16.msra.mxu0 %v8217
    %10969 = vmatpush.bf16.msra.mxu0 %v8216
    %10970 = vmatpush.bf16.msra.mxu0 %v8215
    %10971 = vmatpush.bf16.msra.mxu0 %v8214
    %10972 = vmatmul.bf16.gmra.mxu0 %v370
    %v10973 = vpop.f32.mrf.mxu0
    %v10974 = vadd.f32 %v10961, %v10973
    %v10975 = vpop.f32.mrf.mxu0
    %10976 = vdwg.mxu0
    %10977 = vmatpush.bf16.msra.mxu0 %v8229
    %10978 = vmatpush.bf16.msra.mxu0 %v8228
    %10979 = vmatpush.bf16.msra.mxu0 %v8227
    %10980 = vmatpush.bf16.msra.mxu0 %v8226
    %10981 = vmatpush.bf16.msra.mxu0 %v8225
    %10982 = vmatpush.bf16.msra.mxu0 %v8224
    %10983 = vmatpush.bf16.msra.mxu0 %v8223
    %10984 = vmatpush.bf16.msra.mxu0 %v8222
    %10985 = vmatmul.bf16.gmra.mxu0 %v371
    %v10986 = vpop.f32.mrf.mxu0
    %v10987 = vadd.f32 %v10974, %v10986
    %v10988 = vpop.f32.mrf.mxu0
    %10989 = vdwg.mxu0
    %10990 = vmatpush.bf16.msra.mxu0 %v8237
    %10991 = vmatpush.bf16.msra.mxu0 %v8236
    %10992 = vmatpush.bf16.msra.mxu0 %v8235
    %10993 = vmatpush.bf16.msra.mxu0 %v8234
    %10994 = vmatpush.bf16.msra.mxu0 %v8233
    %10995 = vmatpush.bf16.msra.mxu0 %v8232
    %10996 = vmatpush.bf16.msra.mxu0 %v8231
    %10997 = vmatpush.bf16.msra.mxu0 %v8230
    %10998 = vmatmul.bf16.gmra.mxu0 %v372
    %v10999 = vpop.f32.mrf.mxu0
    %v11000 = vadd.f32 %v10987, %v10999
    %v11001 = vpop.f32.mrf.mxu0
    %11002 = vdwg.mxu0
    %11003 = vmatpush.bf16.msra.mxu0 %v8245
    %11004 = vmatpush.bf16.msra.mxu0 %v8244
    %11005 = vmatpush.bf16.msra.mxu0 %v8243
    %11006 = vmatpush.bf16.msra.mxu0 %v8242
    %11007 = vmatpush.bf16.msra.mxu0 %v8241
    %11008 = vmatpush.bf16.msra.mxu0 %v8240
    %11009 = vmatpush.bf16.msra.mxu0 %v8239
    %11010 = vmatpush.bf16.msra.mxu0 %v8238
    %11011 = vmatmul.bf16.gmra.mxu0 %v373
    %v11012 = vpop.f32.mrf.mxu0
    %v11013 = vadd.f32 %v11000, %v11012
    %v11014 = vpop.f32.mrf.mxu0
    %11015 = vdwg.mxu0
    %11016 = vmatpush.bf16.msra.mxu0 %v8253
    %11017 = vmatpush.bf16.msra.mxu0 %v8252
    %11018 = vmatpush.bf16.msra.mxu0 %v8251
    %11019 = vmatpush.bf16.msra.mxu0 %v8250
    %11020 = vmatpush.bf16.msra.mxu0 %v8249
    %11021 = vmatpush.bf16.msra.mxu0 %v8248
    %11022 = vmatpush.bf16.msra.mxu0 %v8247
    %11023 = vmatpush.bf16.msra.mxu0 %v8246
    %11024 = vmatmul.bf16.gmra.mxu0 %v374
    %v11025 = vpop.f32.mrf.mxu0
    %v11026 = vadd.f32 %v11013, %v11025
    %v11027 = vpop.f32.mrf.mxu0
    %11028 = vdwg.mxu0
    %11029 = vmatpush.bf16.msra.mxu0 %v8261
    %11030 = vmatpush.bf16.msra.mxu0 %v8260
    %11031 = vmatpush.bf16.msra.mxu0 %v8259
    %11032 = vmatpush.bf16.msra.mxu0 %v8258
    %11033 = vmatpush.bf16.msra.mxu0 %v8257
    %11034 = vmatpush.bf16.msra.mxu0 %v8256
    %11035 = vmatpush.bf16.msra.mxu0 %v8255
    %11036 = vmatpush.bf16.msra.mxu0 %v8254
    %11037 = vmatmul.bf16.gmra.mxu0 %v375
    %v11038 = vpop.f32.mrf.mxu0
    %v11039 = vadd.f32 %v11026, %v11038
    %v11040 = vpop.f32.mrf.mxu0
    %11041 = vdwg.mxu0
    %11042 = vmatpush.bf16.msra.mxu0 %v8269
    %11043 = vmatpush.bf16.msra.mxu0 %v8268
    %11044 = vmatpush.bf16.msra.mxu0 %v8267
    %11045 = vmatpush.bf16.msra.mxu0 %v8266
    %11046 = vmatpush.bf16.msra.mxu0 %v8265
    %11047 = vmatpush.bf16.msra.mxu0 %v8264
    %11048 = vmatpush.bf16.msra.mxu0 %v8263
    %11049 = vmatpush.bf16.msra.mxu0 %v8262
    %11050 = vmatmul.bf16.gmra.mxu0 %v376
    %v11051 = vpop.f32.mrf.mxu0
    %v11052 = vadd.f32 %v11039, %v11051
    %v11053 = vpop.f32.mrf.mxu0
    %11054 = vdwg.mxu0
    %11055 = vmatpush.bf16.msra.mxu0 %v8277
    %11056 = vmatpush.bf16.msra.mxu0 %v8276
    %11057 = vmatpush.bf16.msra.mxu0 %v8275
    %11058 = vmatpush.bf16.msra.mxu0 %v8274
    %11059 = vmatpush.bf16.msra.mxu0 %v8273
    %11060 = vmatpush.bf16.msra.mxu0 %v8272
    %11061 = vmatpush.bf16.msra.mxu0 %v8271
    %11062 = vmatpush.bf16.msra.mxu0 %v8270
    %11063 = vmatmul.bf16.gmra.mxu0 %v377
    %v11064 = vpop.f32.mrf.mxu0
    %v11065 = vadd.f32 %v11052, %v11064
    %v11066 = vpop.f32.mrf.mxu0
    %11067 = vdwg.mxu0
    %11068 = vmatpush.bf16.msra.mxu0 %v8285
    %11069 = vmatpush.bf16.msra.mxu0 %v8284
    %11070 = vmatpush.bf16.msra.mxu0 %v8283
    %11071 = vmatpush.bf16.msra.mxu0 %v8282
    %11072 = vmatpush.bf16.msra.mxu0 %v8281
    %11073 = vmatpush.bf16.msra.mxu0 %v8280
    %11074 = vmatpush.bf16.msra.mxu0 %v8279
    %11075 = vmatpush.bf16.msra.mxu0 %v8278
    %11076 = vmatmul.bf16.gmra.mxu0 %v378
    %v11077 = vpop.f32.mrf.mxu0
    %v11078 = vadd.f32 %v11065, %v11077
    %v11079 = vpop.f32.mrf.mxu0
    %11080 = vdwg.mxu0
    %11081 = vmatpush.bf16.msra.mxu0 %v8293
    %11082 = vmatpush.bf16.msra.mxu0 %v8292
    %11083 = vmatpush.bf16.msra.mxu0 %v8291
    %11084 = vmatpush.bf16.msra.mxu0 %v8290
    %11085 = vmatpush.bf16.msra.mxu0 %v8289
    %11086 = vmatpush.bf16.msra.mxu0 %v8288
    %11087 = vmatpush.bf16.msra.mxu0 %v8287
    %11088 = vmatpush.bf16.msra.mxu0 %v8286
    %11089 = vmatmul.bf16.gmra.mxu0 %v379
    %v11090 = vpop.f32.mrf.mxu0
    %v11091 = vadd.f32 %v11078, %v11090
    %v11092 = vpop.f32.mrf.mxu0
    %11093 = vdwg.mxu0
    %11094 = vmatpush.bf16.msra.mxu0 %v8301
    %11095 = vmatpush.bf16.msra.mxu0 %v8300
    %11096 = vmatpush.bf16.msra.mxu0 %v8299
    %11097 = vmatpush.bf16.msra.mxu0 %v8298
    %11098 = vmatpush.bf16.msra.mxu0 %v8297
    %11099 = vmatpush.bf16.msra.mxu0 %v8296
    %11100 = vmatpush.bf16.msra.mxu0 %v8295
    %11101 = vmatpush.bf16.msra.mxu0 %v8294
    %11102 = vmatmul.bf16.gmra.mxu0 %v380
    %v11103 = vpop.f32.mrf.mxu0
    %v11104 = vadd.f32 %v11091, %v11103
    %v11105 = vpop.f32.mrf.mxu0
    %11106 = vdwg.mxu0
    %11107 = vmatpush.bf16.msra.mxu0 %v8309
    %11108 = vmatpush.bf16.msra.mxu0 %v8308
    %11109 = vmatpush.bf16.msra.mxu0 %v8307
    %11110 = vmatpush.bf16.msra.mxu0 %v8306
    %11111 = vmatpush.bf16.msra.mxu0 %v8305
    %11112 = vmatpush.bf16.msra.mxu0 %v8304
    %11113 = vmatpush.bf16.msra.mxu0 %v8303
    %11114 = vmatpush.bf16.msra.mxu0 %v8302
    %11115 = vmatmul.bf16.gmra.mxu0 %v381
    %v11116 = vpop.f32.mrf.mxu0
    %v11117 = vadd.f32 %v11104, %v11116
    %v11118 = vpop.f32.mrf.mxu0
    %11119 = vdwg.mxu0
    %11120 = vmatpush.bf16.msra.mxu0 %v8317
    %11121 = vmatpush.bf16.msra.mxu0 %v8316
    %11122 = vmatpush.bf16.msra.mxu0 %v8315
    %11123 = vmatpush.bf16.msra.mxu0 %v8314
    %11124 = vmatpush.bf16.msra.mxu0 %v8313
    %11125 = vmatpush.bf16.msra.mxu0 %v8312
    %11126 = vmatpush.bf16.msra.mxu0 %v8311
    %11127 = vmatpush.bf16.msra.mxu0 %v8310
    %11128 = vmatmul.bf16.gmra.mxu0 %v382
    %v11129 = vpop.f32.mrf.mxu0
    %v11130 = vadd.f32 %v11117, %v11129
    %v11131 = vpop.f32.mrf.mxu0
    %11132 = vdwg.mxu0
    %11133 = vmatpush.bf16.msra.mxu0 %v8325
    %11134 = vmatpush.bf16.msra.mxu0 %v8324
    %11135 = vmatpush.bf16.msra.mxu0 %v8323
    %11136 = vmatpush.bf16.msra.mxu0 %v8322
    %11137 = vmatpush.bf16.msra.mxu0 %v8321
    %11138 = vmatpush.bf16.msra.mxu0 %v8320
    %11139 = vmatpush.bf16.msra.mxu0 %v8319
    %11140 = vmatpush.bf16.msra.mxu0 %v8318
    %11141 = vmatmul.bf16.gmra.mxu0 %v383
    %v11142 = vpop.f32.mrf.mxu0
    %v11143 = vadd.f32 %v11130, %v11142
    %v11144 = vpop.f32.mrf.mxu0
    %11145 = vdwg.mxu0
    %11146 = vmatpush.bf16.msra.mxu0 %v8333
    %11147 = vmatpush.bf16.msra.mxu0 %v8332
    %11148 = vmatpush.bf16.msra.mxu0 %v8331
    %11149 = vmatpush.bf16.msra.mxu0 %v8330
    %11150 = vmatpush.bf16.msra.mxu0 %v8329
    %11151 = vmatpush.bf16.msra.mxu0 %v8328
    %11152 = vmatpush.bf16.msra.mxu0 %v8327
    %11153 = vmatpush.bf16.msra.mxu0 %v8326
    %11154 = vmatmul.bf16.gmra.mxu0 %v384
    %v11155 = vpop.f32.mrf.mxu0
    %v11156 = vadd.f32 %v11143, %v11155
    %v11157 = vpop.f32.mrf.mxu0
    %11158 = vdwg.mxu0
    %11159 = vmatpush.bf16.msra.mxu0 %v8341
    %11160 = vmatpush.bf16.msra.mxu0 %v8340
    %11161 = vmatpush.bf16.msra.mxu0 %v8339
    %11162 = vmatpush.bf16.msra.mxu0 %v8338
    %11163 = vmatpush.bf16.msra.mxu0 %v8337
    %11164 = vmatpush.bf16.msra.mxu0 %v8336
    %11165 = vmatpush.bf16.msra.mxu0 %v8335
    %11166 = vmatpush.bf16.msra.mxu0 %v8334
    %11167 = vmatmul.bf16.gmra.mxu0 %v385
    %v11168 = vpop.f32.mrf.mxu0
    %v11169 = vadd.f32 %v11156, %v11168
    %v11170 = vpop.f32.mrf.mxu0
    %11171 = vdwg.mxu0
    %11172 = vmatpush.bf16.msra.mxu0 %v8349
    %11173 = vmatpush.bf16.msra.mxu0 %v8348
    %11174 = vmatpush.bf16.msra.mxu0 %v8347
    %11175 = vmatpush.bf16.msra.mxu0 %v8346
    %11176 = vmatpush.bf16.msra.mxu0 %v8345
    %11177 = vmatpush.bf16.msra.mxu0 %v8344
    %11178 = vmatpush.bf16.msra.mxu0 %v8343
    %11179 = vmatpush.bf16.msra.mxu0 %v8342
    %11180 = vmatmul.bf16.gmra.mxu0 %v386
    %v11181 = vpop.f32.mrf.mxu0
    %v11182 = vadd.f32 %v11169, %v11181
    %v11183 = vpop.f32.mrf.mxu0
    %11184 = vdwg.mxu0
    %11185 = vmatpush.bf16.msra.mxu0 %v8357
    %11186 = vmatpush.bf16.msra.mxu0 %v8356
    %11187 = vmatpush.bf16.msra.mxu0 %v8355
    %11188 = vmatpush.bf16.msra.mxu0 %v8354
    %11189 = vmatpush.bf16.msra.mxu0 %v8353
    %11190 = vmatpush.bf16.msra.mxu0 %v8352
    %11191 = vmatpush.bf16.msra.mxu0 %v8351
    %11192 = vmatpush.bf16.msra.mxu0 %v8350
    %11193 = vmatmul.bf16.gmra.mxu0 %v387
    %v11194 = vpop.f32.mrf.mxu0
    %v11195 = vadd.f32 %v11182, %v11194
    %v11196 = vpop.f32.mrf.mxu0
    %11197 = vdwg.mxu0
    %11198 = vmatpush.bf16.msra.mxu0 %v8365
    %11199 = vmatpush.bf16.msra.mxu0 %v8364
    %11200 = vmatpush.bf16.msra.mxu0 %v8363
    %11201 = vmatpush.bf16.msra.mxu0 %v8362
    %11202 = vmatpush.bf16.msra.mxu0 %v8361
    %11203 = vmatpush.bf16.msra.mxu0 %v8360
    %11204 = vmatpush.bf16.msra.mxu0 %v8359
    %11205 = vmatpush.bf16.msra.mxu0 %v8358
    %11206 = vmatmul.bf16.gmra.mxu0 %v388
    %v11207 = vpop.f32.mrf.mxu0
    %v11208 = vadd.f32 %v11195, %v11207
    %v11209 = vpop.f32.mrf.mxu0
    %11210 = vdwg.mxu0
    %11211 = vmatpush.bf16.msra.mxu0 %v8373
    %11212 = vmatpush.bf16.msra.mxu0 %v8372
    %11213 = vmatpush.bf16.msra.mxu0 %v8371
    %11214 = vmatpush.bf16.msra.mxu0 %v8370
    %11215 = vmatpush.bf16.msra.mxu0 %v8369
    %11216 = vmatpush.bf16.msra.mxu0 %v8368
    %11217 = vmatpush.bf16.msra.mxu0 %v8367
    %11218 = vmatpush.bf16.msra.mxu0 %v8366
    %11219 = vmatmul.bf16.gmra.mxu0 %v389
    %v11220 = vpop.f32.mrf.mxu0
    %v11221 = vadd.f32 %v11208, %v11220
    %v11222 = vpop.f32.mrf.mxu0
    %11223 = vdwg.mxu0
    %11224 = vmatpush.bf16.msra.mxu0 %v8381
    %11225 = vmatpush.bf16.msra.mxu0 %v8380
    %11226 = vmatpush.bf16.msra.mxu0 %v8379
    %11227 = vmatpush.bf16.msra.mxu0 %v8378
    %11228 = vmatpush.bf16.msra.mxu0 %v8377
    %11229 = vmatpush.bf16.msra.mxu0 %v8376
    %11230 = vmatpush.bf16.msra.mxu0 %v8375
    %11231 = vmatpush.bf16.msra.mxu0 %v8374
    %11232 = vmatmul.bf16.gmra.mxu0 %v390
    %v11233 = vpop.f32.mrf.mxu0
    %v11234 = vadd.f32 %v11221, %v11233
    %v11235 = vpop.f32.mrf.mxu0
    %11236 = vdwg.mxu0
    %11237 = vmatpush.bf16.msra.mxu0 %v8389
    %11238 = vmatpush.bf16.msra.mxu0 %v8388
    %11239 = vmatpush.bf16.msra.mxu0 %v8387
    %11240 = vmatpush.bf16.msra.mxu0 %v8386
    %11241 = vmatpush.bf16.msra.mxu0 %v8385
    %11242 = vmatpush.bf16.msra.mxu0 %v8384
    %11243 = vmatpush.bf16.msra.mxu0 %v8383
    %11244 = vmatpush.bf16.msra.mxu0 %v8382
    %11245 = vmatmul.bf16.gmra.mxu0 %v391
    %v11246 = vpop.f32.mrf.mxu0
    %v11247 = vadd.f32 %v11234, %v11246
    %v11248 = vpop.f32.mrf.mxu0
    %11249 = vdwg.mxu0
    %11250 = vmatpush.bf16.msra.mxu0 %v8397
    %11251 = vmatpush.bf16.msra.mxu0 %v8396
    %11252 = vmatpush.bf16.msra.mxu0 %v8395
    %11253 = vmatpush.bf16.msra.mxu0 %v8394
    %11254 = vmatpush.bf16.msra.mxu0 %v8393
    %11255 = vmatpush.bf16.msra.mxu0 %v8392
    %11256 = vmatpush.bf16.msra.mxu0 %v8391
    %11257 = vmatpush.bf16.msra.mxu0 %v8390
    %11258 = vmatmul.bf16.gmra.mxu0 %v392
    %v11259 = vpop.f32.mrf.mxu0
    %v11260 = vadd.f32 %v11247, %v11259
    %v11261 = vpop.f32.mrf.mxu0
    %11262 = vdwg.mxu0
    %11263 = vmatpush.bf16.msra.mxu0 %v8405
    %11264 = vmatpush.bf16.msra.mxu0 %v8404
    %11265 = vmatpush.bf16.msra.mxu0 %v8403
    %11266 = vmatpush.bf16.msra.mxu0 %v8402
    %11267 = vmatpush.bf16.msra.mxu0 %v8401
    %11268 = vmatpush.bf16.msra.mxu0 %v8400
    %11269 = vmatpush.bf16.msra.mxu0 %v8399
    %11270 = vmatpush.bf16.msra.mxu0 %v8398
    %11271 = vmatmul.bf16.gmra.mxu0 %v393
    %v11272 = vpop.f32.mrf.mxu0
    %v11273 = vadd.f32 %v11260, %v11272
    %v11274 = vpop.f32.mrf.mxu0
    %11275 = vdwg.mxu0
    %11276 = vmatpush.bf16.msra.mxu0 %v8413
    %11277 = vmatpush.bf16.msra.mxu0 %v8412
    %11278 = vmatpush.bf16.msra.mxu0 %v8411
    %11279 = vmatpush.bf16.msra.mxu0 %v8410
    %11280 = vmatpush.bf16.msra.mxu0 %v8409
    %11281 = vmatpush.bf16.msra.mxu0 %v8408
    %11282 = vmatpush.bf16.msra.mxu0 %v8407
    %11283 = vmatpush.bf16.msra.mxu0 %v8406
    %11284 = vmatmul.bf16.gmra.mxu0 %v394
    %v11285 = vpop.f32.mrf.mxu0
    %v11286 = vadd.f32 %v11273, %v11285
    %v11287 = vpop.f32.mrf.mxu0
    %11288 = vdwg.mxu0
    %11289 = vmatpush.bf16.msra.mxu0 %v8421
    %11290 = vmatpush.bf16.msra.mxu0 %v8420
    %11291 = vmatpush.bf16.msra.mxu0 %v8419
    %11292 = vmatpush.bf16.msra.mxu0 %v8418
    %11293 = vmatpush.bf16.msra.mxu0 %v8417
    %11294 = vmatpush.bf16.msra.mxu0 %v8416
    %11295 = vmatpush.bf16.msra.mxu0 %v8415
    %11296 = vmatpush.bf16.msra.mxu0 %v8414
    %11297 = vmatmul.bf16.gmra.mxu0 %v395
    %v11298 = vpop.f32.mrf.mxu0
    %v11299 = vadd.f32 %v11286, %v11298
    %v11300 = vpop.f32.mrf.mxu0
    %11301 = vdwg.mxu0
    %11302 = vmatpush.bf16.msra.mxu0 %v8429
    %11303 = vmatpush.bf16.msra.mxu0 %v8428
    %11304 = vmatpush.bf16.msra.mxu0 %v8427
    %11305 = vmatpush.bf16.msra.mxu0 %v8426
    %11306 = vmatpush.bf16.msra.mxu0 %v8425
    %11307 = vmatpush.bf16.msra.mxu0 %v8424
    %11308 = vmatpush.bf16.msra.mxu0 %v8423
    %11309 = vmatpush.bf16.msra.mxu0 %v8422
    %11310 = vmatmul.bf16.gmra.mxu0 %v396
    %v11311 = vpop.f32.mrf.mxu0
    %v11312 = vadd.f32 %v11299, %v11311
    %v11313 = vpop.f32.mrf.mxu0
    %11314 = vdwg.mxu0
    %11315 = vmatpush.bf16.msra.mxu0 %v8437
    %11316 = vmatpush.bf16.msra.mxu0 %v8436
    %11317 = vmatpush.bf16.msra.mxu0 %v8435
    %11318 = vmatpush.bf16.msra.mxu0 %v8434
    %11319 = vmatpush.bf16.msra.mxu0 %v8433
    %11320 = vmatpush.bf16.msra.mxu0 %v8432
    %11321 = vmatpush.bf16.msra.mxu0 %v8431
    %11322 = vmatpush.bf16.msra.mxu0 %v8430
    %11323 = vmatmul.bf16.gmra.mxu0 %v397
    %v11324 = vpop.f32.mrf.mxu0
    %v11325 = vadd.f32 %v11312, %v11324
    %v11326 = vpop.f32.mrf.mxu0
    %11327 = vdwg.mxu0
    %11328 = vmatpush.bf16.msra.mxu0 %v8445
    %11329 = vmatpush.bf16.msra.mxu0 %v8444
    %11330 = vmatpush.bf16.msra.mxu0 %v8443
    %11331 = vmatpush.bf16.msra.mxu0 %v8442
    %11332 = vmatpush.bf16.msra.mxu0 %v8441
    %11333 = vmatpush.bf16.msra.mxu0 %v8440
    %11334 = vmatpush.bf16.msra.mxu0 %v8439
    %11335 = vmatpush.bf16.msra.mxu0 %v8438
    %11336 = vmatmul.bf16.gmra.mxu0 %v398
    %v11337 = vpop.f32.mrf.mxu0
    %v11338 = vadd.f32 %v11325, %v11337
    %v11339 = vpop.f32.mrf.mxu0
    %11340 = vdwg.mxu0
    %11341 = vmatpush.bf16.msra.mxu0 %v8453
    %11342 = vmatpush.bf16.msra.mxu0 %v8452
    %11343 = vmatpush.bf16.msra.mxu0 %v8451
    %11344 = vmatpush.bf16.msra.mxu0 %v8450
    %11345 = vmatpush.bf16.msra.mxu0 %v8449
    %11346 = vmatpush.bf16.msra.mxu0 %v8448
    %11347 = vmatpush.bf16.msra.mxu0 %v8447
    %11348 = vmatpush.bf16.msra.mxu0 %v8446
    %11349 = vmatmul.bf16.gmra.mxu0 %v399
    %v11350 = vpop.f32.mrf.mxu0
    %v11351 = vadd.f32 %v11338, %v11350
    %v11352 = vpop.f32.mrf.mxu0
    %11353 = vdwg.mxu0
    %11354 = vmatpush.bf16.msra.mxu0 %v8461
    %11355 = vmatpush.bf16.msra.mxu0 %v8460
    %11356 = vmatpush.bf16.msra.mxu0 %v8459
    %11357 = vmatpush.bf16.msra.mxu0 %v8458
    %11358 = vmatpush.bf16.msra.mxu0 %v8457
    %11359 = vmatpush.bf16.msra.mxu0 %v8456
    %11360 = vmatpush.bf16.msra.mxu0 %v8455
    %11361 = vmatpush.bf16.msra.mxu0 %v8454
    %11362 = vmatmul.bf16.gmra.mxu0 %v400
    %v11363 = vpop.f32.mrf.mxu0
    %v11364 = vadd.f32 %v11351, %v11363
    %v11365 = vpop.f32.mrf.mxu0
    %11366 = vdwg.mxu0
    %11367 = vmatpush.bf16.msra.mxu0 %v8469
    %11368 = vmatpush.bf16.msra.mxu0 %v8468
    %11369 = vmatpush.bf16.msra.mxu0 %v8467
    %11370 = vmatpush.bf16.msra.mxu0 %v8466
    %11371 = vmatpush.bf16.msra.mxu0 %v8465
    %11372 = vmatpush.bf16.msra.mxu0 %v8464
    %11373 = vmatpush.bf16.msra.mxu0 %v8463
    %11374 = vmatpush.bf16.msra.mxu0 %v8462
    %11375 = vmatmul.bf16.gmra.mxu0 %v401
    %v11376 = vpop.f32.mrf.mxu0
    %v11377 = vadd.f32 %v11364, %v11376
    %v11378 = vpop.f32.mrf.mxu0
    %11379 = vdwg.mxu0
    %11380 = vmatpush.bf16.msra.mxu0 %v8477
    %11381 = vmatpush.bf16.msra.mxu0 %v8476
    %11382 = vmatpush.bf16.msra.mxu0 %v8475
    %11383 = vmatpush.bf16.msra.mxu0 %v8474
    %11384 = vmatpush.bf16.msra.mxu0 %v8473
    %11385 = vmatpush.bf16.msra.mxu0 %v8472
    %11386 = vmatpush.bf16.msra.mxu0 %v8471
    %11387 = vmatpush.bf16.msra.mxu0 %v8470
    %11388 = vmatmul.bf16.gmra.mxu0 %v402
    %v11389 = vpop.f32.mrf.mxu0
    %v11390 = vadd.f32 %v11377, %v11389
    %v11391 = vpop.f32.mrf.mxu0
    %11392 = vdwg.mxu0
    %11393 = vmatpush.bf16.msra.mxu0 %v8485
    %11394 = vmatpush.bf16.msra.mxu0 %v8484
    %11395 = vmatpush.bf16.msra.mxu0 %v8483
    %11396 = vmatpush.bf16.msra.mxu0 %v8482
    %11397 = vmatpush.bf16.msra.mxu0 %v8481
    %11398 = vmatpush.bf16.msra.mxu0 %v8480
    %11399 = vmatpush.bf16.msra.mxu0 %v8479
    %11400 = vmatpush.bf16.msra.mxu0 %v8478
    %11401 = vmatmul.bf16.gmra.mxu0 %v403
    %v11402 = vpop.f32.mrf.mxu0
    %v11403 = vadd.f32 %v11390, %v11402
    %v11404 = vpop.f32.mrf.mxu0
    %11405 = vdwg.mxu0
    %11406 = vmatpush.bf16.msra.mxu0 %v8493
    %11407 = vmatpush.bf16.msra.mxu0 %v8492
    %11408 = vmatpush.bf16.msra.mxu0 %v8491
    %11409 = vmatpush.bf16.msra.mxu0 %v8490
    %11410 = vmatpush.bf16.msra.mxu0 %v8489
    %11411 = vmatpush.bf16.msra.mxu0 %v8488
    %11412 = vmatpush.bf16.msra.mxu0 %v8487
    %11413 = vmatpush.bf16.msra.mxu0 %v8486
    %11414 = vmatmul.bf16.gmra.mxu0 %v404
    %v11415 = vpop.f32.mrf.mxu0
    %v11416 = vadd.f32 %v11403, %v11415
    %v11417 = vpop.f32.mrf.mxu0
    %11418 = vdwg.mxu0
    %11419 = vmatpush.bf16.msra.mxu0 %v8501
    %11420 = vmatpush.bf16.msra.mxu0 %v8500
    %11421 = vmatpush.bf16.msra.mxu0 %v8499
    %11422 = vmatpush.bf16.msra.mxu0 %v8498
    %11423 = vmatpush.bf16.msra.mxu0 %v8497
    %11424 = vmatpush.bf16.msra.mxu0 %v8496
    %11425 = vmatpush.bf16.msra.mxu0 %v8495
    %11426 = vmatpush.bf16.msra.mxu0 %v8494
    %11427 = vmatmul.bf16.gmra.mxu0 %v405
    %v11428 = vpop.f32.mrf.mxu0
    %v11429 = vadd.f32 %v11416, %v11428
    %v11430 = vpop.f32.mrf.mxu0
    %11431 = vdwg.mxu0
    %11432 = vmatpush.bf16.msra.mxu0 %v8509
    %11433 = vmatpush.bf16.msra.mxu0 %v8508
    %11434 = vmatpush.bf16.msra.mxu0 %v8507
    %11435 = vmatpush.bf16.msra.mxu0 %v8506
    %11436 = vmatpush.bf16.msra.mxu0 %v8505
    %11437 = vmatpush.bf16.msra.mxu0 %v8504
    %11438 = vmatpush.bf16.msra.mxu0 %v8503
    %11439 = vmatpush.bf16.msra.mxu0 %v8502
    %11440 = vmatmul.bf16.gmra.mxu0 %v406
    %v11441 = vpop.f32.mrf.mxu0
    %v11442 = vadd.f32 %v11429, %v11441
    %v11443 = vpop.f32.mrf.mxu0
    %11444 = vdwg.mxu0
    %11445 = vmatpush.bf16.msra.mxu0 %v8517
    %11446 = vmatpush.bf16.msra.mxu0 %v8516
    %11447 = vmatpush.bf16.msra.mxu0 %v8515
    %11448 = vmatpush.bf16.msra.mxu0 %v8514
    %11449 = vmatpush.bf16.msra.mxu0 %v8513
    %11450 = vmatpush.bf16.msra.mxu0 %v8512
    %11451 = vmatpush.bf16.msra.mxu0 %v8511
    %11452 = vmatpush.bf16.msra.mxu0 %v8510
    %11453 = vmatmul.bf16.gmra.mxu0 %v407
    %v11454 = vpop.f32.mrf.mxu0
    %v11455 = vadd.f32 %v11442, %v11454
    %v11456 = vpop.f32.mrf.mxu0
    %11457 = vdwg.mxu0
    %11458 = vmatpush.bf16.msra.mxu0 %v8525
    %11459 = vmatpush.bf16.msra.mxu0 %v8524
    %11460 = vmatpush.bf16.msra.mxu0 %v8523
    %11461 = vmatpush.bf16.msra.mxu0 %v8522
    %11462 = vmatpush.bf16.msra.mxu0 %v8521
    %11463 = vmatpush.bf16.msra.mxu0 %v8520
    %11464 = vmatpush.bf16.msra.mxu0 %v8519
    %11465 = vmatpush.bf16.msra.mxu0 %v8518
    %11466 = vmatmul.bf16.gmra.mxu0 %v408
    %v11467 = vpop.f32.mrf.mxu0
    %v11468 = vadd.f32 %v11455, %v11467
    %v11469 = vpop.f32.mrf.mxu0
    %11470 = vdwg.mxu0
    %11471 = vmatpush.bf16.msra.mxu0 %v8533
    %11472 = vmatpush.bf16.msra.mxu0 %v8532
    %11473 = vmatpush.bf16.msra.mxu0 %v8531
    %11474 = vmatpush.bf16.msra.mxu0 %v8530
    %11475 = vmatpush.bf16.msra.mxu0 %v8529
    %11476 = vmatpush.bf16.msra.mxu0 %v8528
    %11477 = vmatpush.bf16.msra.mxu0 %v8527
    %11478 = vmatpush.bf16.msra.mxu0 %v8526
    %11479 = vmatmul.bf16.gmra.mxu0 %v409
    %v11480 = vpop.f32.mrf.mxu0
    %v11481 = vadd.f32 %v11468, %v11480
    %v11482 = vpop.f32.mrf.mxu0
    %11483 = vdwg.mxu0
    %11484 = vmatpush.bf16.msra.mxu0 %v8541
    %11485 = vmatpush.bf16.msra.mxu0 %v8540
    %11486 = vmatpush.bf16.msra.mxu0 %v8539
    %11487 = vmatpush.bf16.msra.mxu0 %v8538
    %11488 = vmatpush.bf16.msra.mxu0 %v8537
    %11489 = vmatpush.bf16.msra.mxu0 %v8536
    %11490 = vmatpush.bf16.msra.mxu0 %v8535
    %11491 = vmatpush.bf16.msra.mxu0 %v8534
    %11492 = vmatmul.bf16.gmra.mxu0 %v410
    %v11493 = vpop.f32.mrf.mxu0
    %v11494 = vadd.f32 %v11481, %v11493
    %v11495 = vpop.f32.mrf.mxu0
    %11496 = vdwg.mxu0
    %11497 = vmatpush.bf16.msra.mxu0 %v8549
    %11498 = vmatpush.bf16.msra.mxu0 %v8548
    %11499 = vmatpush.bf16.msra.mxu0 %v8547
    %11500 = vmatpush.bf16.msra.mxu0 %v8546
    %11501 = vmatpush.bf16.msra.mxu0 %v8545
    %11502 = vmatpush.bf16.msra.mxu0 %v8544
    %11503 = vmatpush.bf16.msra.mxu0 %v8543
    %11504 = vmatpush.bf16.msra.mxu0 %v8542
    %11505 = vmatmul.bf16.gmra.mxu0 %v411
    %v11506 = vpop.f32.mrf.mxu0
    %v11507 = vadd.f32 %v11494, %v11506
    %v11508 = vpop.f32.mrf.mxu0
    %11509 = vdwg.mxu0
    %11510 = vmatpush.bf16.msra.mxu0 %v8557
    %11511 = vmatpush.bf16.msra.mxu0 %v8556
    %11512 = vmatpush.bf16.msra.mxu0 %v8555
    %11513 = vmatpush.bf16.msra.mxu0 %v8554
    %11514 = vmatpush.bf16.msra.mxu0 %v8553
    %11515 = vmatpush.bf16.msra.mxu0 %v8552
    %11516 = vmatpush.bf16.msra.mxu0 %v8551
    %11517 = vmatpush.bf16.msra.mxu0 %v8550
    %11518 = vmatmul.bf16.gmra.mxu0 %v412
    %v11519 = vpop.f32.mrf.mxu0
    %v11520 = vadd.f32 %v11507, %v11519
    %v11521 = vpop.f32.mrf.mxu0
    %11522 = vdwg.mxu0
    %11523 = vmatpush.bf16.msra.mxu0 %v8565
    %11524 = vmatpush.bf16.msra.mxu0 %v8564
    %11525 = vmatpush.bf16.msra.mxu0 %v8563
    %11526 = vmatpush.bf16.msra.mxu0 %v8562
    %11527 = vmatpush.bf16.msra.mxu0 %v8561
    %11528 = vmatpush.bf16.msra.mxu0 %v8560
    %11529 = vmatpush.bf16.msra.mxu0 %v8559
    %11530 = vmatpush.bf16.msra.mxu0 %v8558
    %11531 = vmatmul.bf16.gmra.mxu0 %v413
    %v11532 = vpop.f32.mrf.mxu0
    %v11533 = vadd.f32 %v11520, %v11532
    %v11534 = vpop.f32.mrf.mxu0
    %11535 = vdwg.mxu0
    %11536 = vmatpush.bf16.msra.mxu0 %v8573
    %11537 = vmatpush.bf16.msra.mxu0 %v8572
    %11538 = vmatpush.bf16.msra.mxu0 %v8571
    %11539 = vmatpush.bf16.msra.mxu0 %v8570
    %11540 = vmatpush.bf16.msra.mxu0 %v8569
    %11541 = vmatpush.bf16.msra.mxu0 %v8568
    %11542 = vmatpush.bf16.msra.mxu0 %v8567
    %11543 = vmatpush.bf16.msra.mxu0 %v8566
    %11544 = vmatmul.bf16.gmra.mxu0 %v414
    %v11545 = vpop.f32.mrf.mxu0
    %v11546 = vadd.f32 %v11533, %v11545
    %v11547 = vpop.f32.mrf.mxu0
    %11548 = vdwg.mxu0
    %11549 = vmatpush.bf16.msra.mxu0 %v8581
    %11550 = vmatpush.bf16.msra.mxu0 %v8580
    %11551 = vmatpush.bf16.msra.mxu0 %v8579
    %11552 = vmatpush.bf16.msra.mxu0 %v8578
    %11553 = vmatpush.bf16.msra.mxu0 %v8577
    %11554 = vmatpush.bf16.msra.mxu0 %v8576
    %11555 = vmatpush.bf16.msra.mxu0 %v8575
    %11556 = vmatpush.bf16.msra.mxu0 %v8574
    %11557 = vmatmul.bf16.gmra.mxu0 %v415
    %v11558 = vpop.f32.mrf.mxu0
    %v11559 = vadd.f32 %v11546, %v11558
    %v11560 = vpop.f32.mrf.mxu0
    %11561 = vdwg.mxu0
    %11562 = vmatpush.bf16.msra.mxu0 %v8589
    %11563 = vmatpush.bf16.msra.mxu0 %v8588
    %11564 = vmatpush.bf16.msra.mxu0 %v8587
    %11565 = vmatpush.bf16.msra.mxu0 %v8586
    %11566 = vmatpush.bf16.msra.mxu0 %v8585
    %11567 = vmatpush.bf16.msra.mxu0 %v8584
    %11568 = vmatpush.bf16.msra.mxu0 %v8583
    %11569 = vmatpush.bf16.msra.mxu0 %v8582
    %11570 = vmatmul.bf16.gmra.mxu0 %v416
    %v11571 = vpop.f32.mrf.mxu0
    %v11572 = vadd.f32 %v11559, %v11571
    %v11573 = vpop.f32.mrf.mxu0
    %11574 = vdwg.mxu0
    %11575 = vmatpush.bf16.msra.mxu0 %v8597
    %11576 = vmatpush.bf16.msra.mxu0 %v8596
    %11577 = vmatpush.bf16.msra.mxu0 %v8595
    %11578 = vmatpush.bf16.msra.mxu0 %v8594
    %11579 = vmatpush.bf16.msra.mxu0 %v8593
    %11580 = vmatpush.bf16.msra.mxu0 %v8592
    %11581 = vmatpush.bf16.msra.mxu0 %v8591
    %11582 = vmatpush.bf16.msra.mxu0 %v8590
    %11583 = vmatmul.bf16.gmra.mxu0 %v417
    %v11584 = vpop.f32.mrf.mxu0
    %v11585 = vadd.f32 %v11572, %v11584
    %v11586 = vpop.f32.mrf.mxu0
    %11587 = vdwg.mxu0
    %11588 = vmatpush.bf16.msra.mxu0 %v8605
    %11589 = vmatpush.bf16.msra.mxu0 %v8604
    %11590 = vmatpush.bf16.msra.mxu0 %v8603
    %11591 = vmatpush.bf16.msra.mxu0 %v8602
    %11592 = vmatpush.bf16.msra.mxu0 %v8601
    %11593 = vmatpush.bf16.msra.mxu0 %v8600
    %11594 = vmatpush.bf16.msra.mxu0 %v8599
    %11595 = vmatpush.bf16.msra.mxu0 %v8598
    %11596 = vmatmul.bf16.gmra.mxu0 %v418
    %v11597 = vpop.f32.mrf.mxu0
    %v11598 = vadd.f32 %v11585, %v11597
    %v11599 = vpop.f32.mrf.mxu0
    %11600 = vdwg.mxu0
    %11601 = vmatpush.bf16.msra.mxu0 %v8613
    %11602 = vmatpush.bf16.msra.mxu0 %v8612
    %11603 = vmatpush.bf16.msra.mxu0 %v8611
    %11604 = vmatpush.bf16.msra.mxu0 %v8610
    %11605 = vmatpush.bf16.msra.mxu0 %v8609
    %11606 = vmatpush.bf16.msra.mxu0 %v8608
    %11607 = vmatpush.bf16.msra.mxu0 %v8607
    %11608 = vmatpush.bf16.msra.mxu0 %v8606
    %11609 = vmatmul.bf16.gmra.mxu0 %v419
    %v11610 = vpop.f32.mrf.mxu0
    %v11611 = vadd.f32 %v11598, %v11610
    %v11612 = vpop.f32.mrf.mxu0
    %11613 = vdwg.mxu0
    %11614 = vmatpush.bf16.msra.mxu0 %v8621
    %11615 = vmatpush.bf16.msra.mxu0 %v8620
    %11616 = vmatpush.bf16.msra.mxu0 %v8619
    %11617 = vmatpush.bf16.msra.mxu0 %v8618
    %11618 = vmatpush.bf16.msra.mxu0 %v8617
    %11619 = vmatpush.bf16.msra.mxu0 %v8616
    %11620 = vmatpush.bf16.msra.mxu0 %v8615
    %11621 = vmatpush.bf16.msra.mxu0 %v8614
    %11622 = vmatmul.bf16.gmra.mxu0 %v420
    %v11623 = vpop.f32.mrf.mxu0
    %v11624 = vadd.f32 %v11611, %v11623
    %v11625 = vpop.f32.mrf.mxu0
    %11626 = vdwg.mxu0
    %11627 = vmatpush.bf16.msra.mxu0 %v8629
    %11628 = vmatpush.bf16.msra.mxu0 %v8628
    %11629 = vmatpush.bf16.msra.mxu0 %v8627
    %11630 = vmatpush.bf16.msra.mxu0 %v8626
    %11631 = vmatpush.bf16.msra.mxu0 %v8625
    %11632 = vmatpush.bf16.msra.mxu0 %v8624
    %11633 = vmatpush.bf16.msra.mxu0 %v8623
    %11634 = vmatpush.bf16.msra.mxu0 %v8622
    %11635 = vmatmul.bf16.gmra.mxu0 %v421
    %v11636 = vpop.f32.mrf.mxu0
    %v11637 = vadd.f32 %v11624, %v11636
    %v11638 = vpop.f32.mrf.mxu0
    %11639 = vdwg.mxu0
    %11640 = vmatpush.bf16.msra.mxu0 %v8637
    %11641 = vmatpush.bf16.msra.mxu0 %v8636
    %11642 = vmatpush.bf16.msra.mxu0 %v8635
    %11643 = vmatpush.bf16.msra.mxu0 %v8634
    %11644 = vmatpush.bf16.msra.mxu0 %v8633
    %11645 = vmatpush.bf16.msra.mxu0 %v8632
    %11646 = vmatpush.bf16.msra.mxu0 %v8631
    %11647 = vmatpush.bf16.msra.mxu0 %v8630
    %11648 = vmatmul.bf16.gmra.mxu0 %v422
    %v11649 = vpop.f32.mrf.mxu0
    %v11650 = vadd.f32 %v11637, %v11649
    %v11651 = vpop.f32.mrf.mxu0
    %11652 = vdwg.mxu0
    %11653 = vmatpush.bf16.msra.mxu0 %v8645
    %11654 = vmatpush.bf16.msra.mxu0 %v8644
    %11655 = vmatpush.bf16.msra.mxu0 %v8643
    %11656 = vmatpush.bf16.msra.mxu0 %v8642
    %11657 = vmatpush.bf16.msra.mxu0 %v8641
    %11658 = vmatpush.bf16.msra.mxu0 %v8640
    %11659 = vmatpush.bf16.msra.mxu0 %v8639
    %11660 = vmatpush.bf16.msra.mxu0 %v8638
    %11661 = vmatmul.bf16.gmra.mxu0 %v423
    %v11662 = vpop.f32.mrf.mxu0
    %v11663 = vadd.f32 %v11650, %v11662
    %v11664 = vpop.f32.mrf.mxu0
    %11665 = vdwg.mxu0
    %11666 = vmatpush.bf16.msra.mxu0 %v8653
    %11667 = vmatpush.bf16.msra.mxu0 %v8652
    %11668 = vmatpush.bf16.msra.mxu0 %v8651
    %11669 = vmatpush.bf16.msra.mxu0 %v8650
    %11670 = vmatpush.bf16.msra.mxu0 %v8649
    %11671 = vmatpush.bf16.msra.mxu0 %v8648
    %11672 = vmatpush.bf16.msra.mxu0 %v8647
    %11673 = vmatpush.bf16.msra.mxu0 %v8646
    %11674 = vmatmul.bf16.gmra.mxu0 %v424
    %v11675 = vpop.f32.mrf.mxu0
    %v11676 = vadd.f32 %v11663, %v11675
    %v11677 = vpop.f32.mrf.mxu0
    %11678 = vdwg.mxu0
    %11679 = vmatpush.bf16.msra.mxu0 %v8661
    %11680 = vmatpush.bf16.msra.mxu0 %v8660
    %11681 = vmatpush.bf16.msra.mxu0 %v8659
    %11682 = vmatpush.bf16.msra.mxu0 %v8658
    %11683 = vmatpush.bf16.msra.mxu0 %v8657
    %11684 = vmatpush.bf16.msra.mxu0 %v8656
    %11685 = vmatpush.bf16.msra.mxu0 %v8655
    %11686 = vmatpush.bf16.msra.mxu0 %v8654
    %11687 = vmatmul.bf16.gmra.mxu0 %v425
    %v11688 = vpop.f32.mrf.mxu0
    %v11689 = vadd.f32 %v11676, %v11688
    %v11690 = vpop.f32.mrf.mxu0
    %11691 = vdwg.mxu0
    %11692 = vmatpush.bf16.msra.mxu0 %v8669
    %11693 = vmatpush.bf16.msra.mxu0 %v8668
    %11694 = vmatpush.bf16.msra.mxu0 %v8667
    %11695 = vmatpush.bf16.msra.mxu0 %v8666
    %11696 = vmatpush.bf16.msra.mxu0 %v8665
    %11697 = vmatpush.bf16.msra.mxu0 %v8664
    %11698 = vmatpush.bf16.msra.mxu0 %v8663
    %11699 = vmatpush.bf16.msra.mxu0 %v8662
    %11700 = vmatmul.bf16.gmra.mxu0 %v426
    %v11701 = vpop.f32.mrf.mxu0
    %v11702 = vadd.f32 %v11689, %v11701
    %v11703 = vpop.f32.mrf.mxu0
    %11704 = vdwg.mxu0
    %11705 = vmatpush.bf16.msra.mxu0 %v8677
    %11706 = vmatpush.bf16.msra.mxu0 %v8676
    %11707 = vmatpush.bf16.msra.mxu0 %v8675
    %11708 = vmatpush.bf16.msra.mxu0 %v8674
    %11709 = vmatpush.bf16.msra.mxu0 %v8673
    %11710 = vmatpush.bf16.msra.mxu0 %v8672
    %11711 = vmatpush.bf16.msra.mxu0 %v8671
    %11712 = vmatpush.bf16.msra.mxu0 %v8670
    %11713 = vmatmul.bf16.gmra.mxu0 %v427
    %v11714 = vpop.f32.mrf.mxu0
    %v11715 = vadd.f32 %v11702, %v11714
    %v11716 = vpop.f32.mrf.mxu0
    %11717 = vdwg.mxu0
    %11718 = vmatpush.bf16.msra.mxu0 %v8685
    %11719 = vmatpush.bf16.msra.mxu0 %v8684
    %11720 = vmatpush.bf16.msra.mxu0 %v8683
    %11721 = vmatpush.bf16.msra.mxu0 %v8682
    %11722 = vmatpush.bf16.msra.mxu0 %v8681
    %11723 = vmatpush.bf16.msra.mxu0 %v8680
    %11724 = vmatpush.bf16.msra.mxu0 %v8679
    %11725 = vmatpush.bf16.msra.mxu0 %v8678
    %11726 = vmatmul.bf16.gmra.mxu0 %v428
    %v11727 = vpop.f32.mrf.mxu0
    %v11728 = vadd.f32 %v11715, %v11727
    %v11729 = vpop.f32.mrf.mxu0
    %11730 = vdwg.mxu0
    %11731 = vmatpush.bf16.msra.mxu0 %v8693
    %11732 = vmatpush.bf16.msra.mxu0 %v8692
    %11733 = vmatpush.bf16.msra.mxu0 %v8691
    %11734 = vmatpush.bf16.msra.mxu0 %v8690
    %11735 = vmatpush.bf16.msra.mxu0 %v8689
    %11736 = vmatpush.bf16.msra.mxu0 %v8688
    %11737 = vmatpush.bf16.msra.mxu0 %v8687
    %11738 = vmatpush.bf16.msra.mxu0 %v8686
    %11739 = vmatmul.bf16.gmra.mxu0 %v429
    %v11740 = vpop.f32.mrf.mxu0
    %v11741 = vadd.f32 %v11728, %v11740
    %v11742 = vpop.f32.mrf.mxu0
    %11743 = vdwg.mxu0
    %11744 = vmatpush.bf16.msra.mxu0 %v8701
    %11745 = vmatpush.bf16.msra.mxu0 %v8700
    %11746 = vmatpush.bf16.msra.mxu0 %v8699
    %11747 = vmatpush.bf16.msra.mxu0 %v8698
    %11748 = vmatpush.bf16.msra.mxu0 %v8697
    %11749 = vmatpush.bf16.msra.mxu0 %v8696
    %11750 = vmatpush.bf16.msra.mxu0 %v8695
    %11751 = vmatpush.bf16.msra.mxu0 %v8694
    %11752 = vmatmul.bf16.gmra.mxu0 %v430
    %v11753 = vpop.f32.mrf.mxu0
    %v11754 = vadd.f32 %v11741, %v11753
    %v11755 = vpop.f32.mrf.mxu0
    %11756 = vdwg.mxu0
    %11757 = vmatpush.bf16.msra.mxu0 %v8709
    %11758 = vmatpush.bf16.msra.mxu0 %v8708
    %11759 = vmatpush.bf16.msra.mxu0 %v8707
    %11760 = vmatpush.bf16.msra.mxu0 %v8706
    %11761 = vmatpush.bf16.msra.mxu0 %v8705
    %11762 = vmatpush.bf16.msra.mxu0 %v8704
    %11763 = vmatpush.bf16.msra.mxu0 %v8703
    %11764 = vmatpush.bf16.msra.mxu0 %v8702
    %11765 = vmatmul.bf16.gmra.mxu0 %v431
    %v11766 = vpop.f32.mrf.mxu0
    %v11767 = vadd.f32 %v11754, %v11766
    %v11768 = vpop.f32.mrf.mxu0
    %11769 = vdwg.mxu0
    %11770 = vmatpush.bf16.msra.mxu0 %v8717
    %11771 = vmatpush.bf16.msra.mxu0 %v8716
    %11772 = vmatpush.bf16.msra.mxu0 %v8715
    %11773 = vmatpush.bf16.msra.mxu0 %v8714
    %11774 = vmatpush.bf16.msra.mxu0 %v8713
    %11775 = vmatpush.bf16.msra.mxu0 %v8712
    %11776 = vmatpush.bf16.msra.mxu0 %v8711
    %11777 = vmatpush.bf16.msra.mxu0 %v8710
    %11778 = vmatmul.bf16.gmra.mxu0 %v432
    %v11779 = vpop.f32.mrf.mxu0
    %v11780 = vadd.f32 %v11767, %v11779
    %v11781 = vpop.f32.mrf.mxu0
    %11782 = vdwg.mxu0
    %11783 = vmatpush.bf16.msra.mxu0 %v8725
    %11784 = vmatpush.bf16.msra.mxu0 %v8724
    %11785 = vmatpush.bf16.msra.mxu0 %v8723
    %11786 = vmatpush.bf16.msra.mxu0 %v8722
    %11787 = vmatpush.bf16.msra.mxu0 %v8721
    %11788 = vmatpush.bf16.msra.mxu0 %v8720
    %11789 = vmatpush.bf16.msra.mxu0 %v8719
    %11790 = vmatpush.bf16.msra.mxu0 %v8718
    %11791 = vmatmul.bf16.gmra.mxu0 %v433
    %v11792 = vpop.f32.mrf.mxu0
    %v11793 = vadd.f32 %v11780, %v11792
    %v11794 = vpop.f32.mrf.mxu0
    %11795 = vdwg.mxu0
    %11796 = vmatpush.bf16.msra.mxu0 %v8733
    %11797 = vmatpush.bf16.msra.mxu0 %v8732
    %11798 = vmatpush.bf16.msra.mxu0 %v8731
    %11799 = vmatpush.bf16.msra.mxu0 %v8730
    %11800 = vmatpush.bf16.msra.mxu0 %v8729
    %11801 = vmatpush.bf16.msra.mxu0 %v8728
    %11802 = vmatpush.bf16.msra.mxu0 %v8727
    %11803 = vmatpush.bf16.msra.mxu0 %v8726
    %11804 = vmatmul.bf16.gmra.mxu0 %v434
    %v11805 = vpop.f32.mrf.mxu0
    %v11806 = vadd.f32 %v11793, %v11805
    %v11807 = vpop.f32.mrf.mxu0
    %11808 = vdwg.mxu0
    %11809 = vmatpush.bf16.msra.mxu0 %v8741
    %11810 = vmatpush.bf16.msra.mxu0 %v8740
    %11811 = vmatpush.bf16.msra.mxu0 %v8739
    %11812 = vmatpush.bf16.msra.mxu0 %v8738
    %11813 = vmatpush.bf16.msra.mxu0 %v8737
    %11814 = vmatpush.bf16.msra.mxu0 %v8736
    %11815 = vmatpush.bf16.msra.mxu0 %v8735
    %11816 = vmatpush.bf16.msra.mxu0 %v8734
    %11817 = vmatmul.bf16.gmra.mxu0 %v435
    %v11818 = vpop.f32.mrf.mxu0
    %v11819 = vadd.f32 %v11806, %v11818
    %v11820 = vpop.f32.mrf.mxu0
    %11821 = vdwg.mxu0
    %11822 = vmatpush.bf16.msra.mxu0 %v8749
    %11823 = vmatpush.bf16.msra.mxu0 %v8748
    %11824 = vmatpush.bf16.msra.mxu0 %v8747
    %11825 = vmatpush.bf16.msra.mxu0 %v8746
    %11826 = vmatpush.bf16.msra.mxu0 %v8745
    %11827 = vmatpush.bf16.msra.mxu0 %v8744
    %11828 = vmatpush.bf16.msra.mxu0 %v8743
    %11829 = vmatpush.bf16.msra.mxu0 %v8742
    %11830 = vmatmul.bf16.gmra.mxu0 %v436
    %v11831 = vpop.f32.mrf.mxu0
    %v11832 = vadd.f32 %v11819, %v11831
    %v11833 = vpop.f32.mrf.mxu0
    %11834 = vdwg.mxu0
    %11835 = vmatpush.bf16.msra.mxu0 %v8757
    %11836 = vmatpush.bf16.msra.mxu0 %v8756
    %11837 = vmatpush.bf16.msra.mxu0 %v8755
    %11838 = vmatpush.bf16.msra.mxu0 %v8754
    %11839 = vmatpush.bf16.msra.mxu0 %v8753
    %11840 = vmatpush.bf16.msra.mxu0 %v8752
    %11841 = vmatpush.bf16.msra.mxu0 %v8751
    %11842 = vmatpush.bf16.msra.mxu0 %v8750
    %11843 = vmatmul.bf16.gmra.mxu0 %v437
    %v11844 = vpop.f32.mrf.mxu0
    %v11845 = vadd.f32 %v11832, %v11844
    %v11846 = vpop.f32.mrf.mxu0
    %11847 = vdwg.mxu0
    %11848 = vmatpush.bf16.msra.mxu0 %v8765
    %11849 = vmatpush.bf16.msra.mxu0 %v8764
    %11850 = vmatpush.bf16.msra.mxu0 %v8763
    %11851 = vmatpush.bf16.msra.mxu0 %v8762
    %11852 = vmatpush.bf16.msra.mxu0 %v8761
    %11853 = vmatpush.bf16.msra.mxu0 %v8760
    %11854 = vmatpush.bf16.msra.mxu0 %v8759
    %11855 = vmatpush.bf16.msra.mxu0 %v8758
    %11856 = vmatmul.bf16.gmra.mxu0 %v438
    %v11857 = vpop.f32.mrf.mxu0
    %v11858 = vadd.f32 %v11845, %v11857
    %v11859 = vpop.f32.mrf.mxu0
    %11860 = vdwg.mxu0
    %11861 = vmatpush.bf16.msra.mxu0 %v8773
    %11862 = vmatpush.bf16.msra.mxu0 %v8772
    %11863 = vmatpush.bf16.msra.mxu0 %v8771
    %11864 = vmatpush.bf16.msra.mxu0 %v8770
    %11865 = vmatpush.bf16.msra.mxu0 %v8769
    %11866 = vmatpush.bf16.msra.mxu0 %v8768
    %11867 = vmatpush.bf16.msra.mxu0 %v8767
    %11868 = vmatpush.bf16.msra.mxu0 %v8766
    %11869 = vmatmul.bf16.gmra.mxu0 %v439
    %v11870 = vpop.f32.mrf.mxu0
    %v11871 = vadd.f32 %v11858, %v11870
    %v11872 = vpop.f32.mrf.mxu0
    %11873 = vdwg.mxu0
    %11874 = vmatpush.bf16.msra.mxu0 %v8781
    %11875 = vmatpush.bf16.msra.mxu0 %v8780
    %11876 = vmatpush.bf16.msra.mxu0 %v8779
    %11877 = vmatpush.bf16.msra.mxu0 %v8778
    %11878 = vmatpush.bf16.msra.mxu0 %v8777
    %11879 = vmatpush.bf16.msra.mxu0 %v8776
    %11880 = vmatpush.bf16.msra.mxu0 %v8775
    %11881 = vmatpush.bf16.msra.mxu0 %v8774
    %11882 = vmatmul.bf16.gmra.mxu0 %v440
    %v11883 = vpop.f32.mrf.mxu0
    %v11884 = vadd.f32 %v11871, %v11883
    %v11885 = vpop.f32.mrf.mxu0
    %11886 = vdwg.mxu0
    %11887 = vmatpush.bf16.msra.mxu0 %v8789
    %11888 = vmatpush.bf16.msra.mxu0 %v8788
    %11889 = vmatpush.bf16.msra.mxu0 %v8787
    %11890 = vmatpush.bf16.msra.mxu0 %v8786
    %11891 = vmatpush.bf16.msra.mxu0 %v8785
    %11892 = vmatpush.bf16.msra.mxu0 %v8784
    %11893 = vmatpush.bf16.msra.mxu0 %v8783
    %11894 = vmatpush.bf16.msra.mxu0 %v8782
    %11895 = vmatmul.bf16.gmra.mxu0 %v441
    %v11896 = vpop.f32.mrf.mxu0
    %v11897 = vadd.f32 %v11884, %v11896
    %v11898 = vpop.f32.mrf.mxu0
    %11899 = vdwg.mxu0
    %11900 = vmatpush.bf16.msra.mxu0 %v8797
    %11901 = vmatpush.bf16.msra.mxu0 %v8796
    %11902 = vmatpush.bf16.msra.mxu0 %v8795
    %11903 = vmatpush.bf16.msra.mxu0 %v8794
    %11904 = vmatpush.bf16.msra.mxu0 %v8793
    %11905 = vmatpush.bf16.msra.mxu0 %v8792
    %11906 = vmatpush.bf16.msra.mxu0 %v8791
    %11907 = vmatpush.bf16.msra.mxu0 %v8790
    %11908 = vmatmul.bf16.gmra.mxu0 %v442
    %v11909 = vpop.f32.mrf.mxu0
    %v11910 = vadd.f32 %v11897, %v11909
    %v11911 = vpop.f32.mrf.mxu0
    %11912 = vdwg.mxu0
    %11913 = vmatpush.bf16.msra.mxu0 %v8805
    %11914 = vmatpush.bf16.msra.mxu0 %v8804
    %11915 = vmatpush.bf16.msra.mxu0 %v8803
    %11916 = vmatpush.bf16.msra.mxu0 %v8802
    %11917 = vmatpush.bf16.msra.mxu0 %v8801
    %11918 = vmatpush.bf16.msra.mxu0 %v8800
    %11919 = vmatpush.bf16.msra.mxu0 %v8799
    %11920 = vmatpush.bf16.msra.mxu0 %v8798
    %11921 = vmatmul.bf16.gmra.mxu0 %v443
    %v11922 = vpop.f32.mrf.mxu0
    %v11923 = vadd.f32 %v11910, %v11922
    %v11924 = vpop.f32.mrf.mxu0
    %11925 = vdwg.mxu0
    %11926 = vmatpush.bf16.msra.mxu0 %v8813
    %11927 = vmatpush.bf16.msra.mxu0 %v8812
    %11928 = vmatpush.bf16.msra.mxu0 %v8811
    %11929 = vmatpush.bf16.msra.mxu0 %v8810
    %11930 = vmatpush.bf16.msra.mxu0 %v8809
    %11931 = vmatpush.bf16.msra.mxu0 %v8808
    %11932 = vmatpush.bf16.msra.mxu0 %v8807
    %11933 = vmatpush.bf16.msra.mxu0 %v8806
    %11934 = vmatmul.bf16.gmra.mxu0 %v444
    %v11935 = vpop.f32.mrf.mxu0
    %v11936 = vadd.f32 %v11923, %v11935
    %v11937 = vpop.f32.mrf.mxu0
    %11938 = vdwg.mxu0
    %11939 = vmatpush.bf16.msra.mxu0 %v8821
    %11940 = vmatpush.bf16.msra.mxu0 %v8820
    %11941 = vmatpush.bf16.msra.mxu0 %v8819
    %11942 = vmatpush.bf16.msra.mxu0 %v8818
    %11943 = vmatpush.bf16.msra.mxu0 %v8817
    %11944 = vmatpush.bf16.msra.mxu0 %v8816
    %11945 = vmatpush.bf16.msra.mxu0 %v8815
    %11946 = vmatpush.bf16.msra.mxu0 %v8814
    %11947 = vmatmul.bf16.gmra.mxu0 %v445
    %v11948 = vpop.f32.mrf.mxu0
    %v11949 = vadd.f32 %v11936, %v11948
    %v11950 = vpop.f32.mrf.mxu0
    %11951 = vdwg.mxu0
    %11952 = vmatpush.bf16.msra.mxu0 %v8829
    %11953 = vmatpush.bf16.msra.mxu0 %v8828
    %11954 = vmatpush.bf16.msra.mxu0 %v8827
    %11955 = vmatpush.bf16.msra.mxu0 %v8826
    %11956 = vmatpush.bf16.msra.mxu0 %v8825
    %11957 = vmatpush.bf16.msra.mxu0 %v8824
    %11958 = vmatpush.bf16.msra.mxu0 %v8823
    %11959 = vmatpush.bf16.msra.mxu0 %v8822
    %11960 = vmatmul.bf16.gmra.mxu0 %v446
    %v11961 = vpop.f32.mrf.mxu0
    %v11962 = vadd.f32 %v11949, %v11961
    %v11963 = vpop.f32.mrf.mxu0
    %11964 = vdwg.mxu0
    %11965 = vmatpush.bf16.msra.mxu0 %v8837
    %11966 = vmatpush.bf16.msra.mxu0 %v8836
    %11967 = vmatpush.bf16.msra.mxu0 %v8835
    %11968 = vmatpush.bf16.msra.mxu0 %v8834
    %11969 = vmatpush.bf16.msra.mxu0 %v8833
    %11970 = vmatpush.bf16.msra.mxu0 %v8832
    %11971 = vmatpush.bf16.msra.mxu0 %v8831
    %11972 = vmatpush.bf16.msra.mxu0 %v8830
    %11973 = vmatmul.bf16.gmra.mxu0 %v447
    %v11974 = vpop.f32.mrf.mxu0
    %v11975 = vadd.f32 %v11962, %v11974
    %v11976 = vpop.f32.mrf.mxu0
    %11977 = vdwg.mxu0
    %11978 = vmatpush.bf16.msra.mxu0 %v8845
    %11979 = vmatpush.bf16.msra.mxu0 %v8844
    %11980 = vmatpush.bf16.msra.mxu0 %v8843
    %11981 = vmatpush.bf16.msra.mxu0 %v8842
    %11982 = vmatpush.bf16.msra.mxu0 %v8841
    %11983 = vmatpush.bf16.msra.mxu0 %v8840
    %11984 = vmatpush.bf16.msra.mxu0 %v8839
    %11985 = vmatpush.bf16.msra.mxu0 %v8838
    %11986 = vmatmul.bf16.gmra.mxu0 %v448
    %v11987 = vpop.f32.mrf.mxu0
    %v11988 = vadd.f32 %v11975, %v11987
    %v11989 = vpop.f32.mrf.mxu0
    %11990 = vdwg.mxu0
    %11991 = vmatpush.bf16.msra.mxu0 %v8853
    %11992 = vmatpush.bf16.msra.mxu0 %v8852
    %11993 = vmatpush.bf16.msra.mxu0 %v8851
    %11994 = vmatpush.bf16.msra.mxu0 %v8850
    %11995 = vmatpush.bf16.msra.mxu0 %v8849
    %11996 = vmatpush.bf16.msra.mxu0 %v8848
    %11997 = vmatpush.bf16.msra.mxu0 %v8847
    %11998 = vmatpush.bf16.msra.mxu0 %v8846
    %11999 = vmatmul.bf16.gmra.mxu0 %v449
    %v12000 = vpop.f32.mrf.mxu0
    %v12001 = vadd.f32 %v11988, %v12000
    %v12002 = vpop.f32.mrf.mxu0
    %12003 = vdwg.mxu0
    %v12004 = vmax.f32 %v12001, 0.0
    %v12005 = vpack.c.bf16 %v12004, %v12004
    %v12006 = vld [vmem:[#allocation7] sm:$0xf]
    %v12007 = vld [vmem:[#allocation7 + $0x4] sm:$0xf]
    %v12008 = vld [vmem:[#allocation7 + $0x8] sm:$0xf]
    %v12009 = vld [vmem:[#allocation7 + $0xc] sm:$0xf]
    %v12010 = vld [vmem:[#allocation7 + $0x10] sm:$0xf]
    %v12011 = vld [vmem:[#allocation7 + $0x14] sm:$0xf]
    %v12012 = vld [vmem:[#allocation7 + $0x18] sm:$0xf]
    %v12013 = vld [vmem:[#allocation7 + $0x1c] sm:$0xf]
    %v12014 = vld [vmem:[#allocation7 + $0x20] sm:$0xf]
    %v12015 = vld [vmem:[#allocation7 + $0x24] sm:$0xf]
    %v12016 = vld [vmem:[#allocation7 + $0x28] sm:$0xf]
    %v12017 = vld [vmem:[#allocation7 + $0x2c] sm:$0xf]
    %v12018 = vld [vmem:[#allocation7 + $0x30] sm:$0xf]
    %v12019 = vld [vmem:[#allocation7 + $0x34] sm:$0xf]
    %v12020 = vld [vmem:[#allocation7 + $0x38] sm:$0xf]
    %v12021 = vld [vmem:[#allocation7 + $0x3c] sm:$0xf]
    %v12022 = vld [vmem:[#allocation8] sm:$0x1]
    %v12024 = vperm.slane %v12022, 0
    %v12042 = vunpack.c.l.b16 %v12006
    %v12043 = vunpack.c.l.b16 %v12007
    %v12044 = vunpack.c.l.b16 %v12008
    %v12045 = vunpack.c.l.b16 %v12009
    %v12046 = vunpack.c.l.b16 %v12010
    %v12047 = vunpack.c.l.b16 %v12011
    %v12048 = vunpack.c.l.b16 %v12012
    %v12049 = vunpack.c.l.b16 %v12013
    %v12050 = vunpack.c.l.b16 %v12014
    %v12051 = vunpack.c.l.b16 %v12015
    %v12052 = vunpack.c.l.b16 %v12016
    %v12053 = vunpack.c.l.b16 %v12017
    %v12054 = vunpack.c.l.b16 %v12018
    %v12055 = vunpack.c.l.b16 %v12019
    %v12056 = vunpack.c.l.b16 %v12020
    %v12057 = vunpack.c.l.b16 %v12021
    %v12058 = vpack.c.b16 %v12043, %v12042
    %v12059 = vpack.c.b16 %v12045, %v12044
    %v12060 = vpack.c.b16 %v12047, %v12046
    %v12061 = vpack.c.b16 %v12049, %v12048
    %v12062 = vpack.c.b16 %v12051, %v12050
    %v12063 = vpack.c.b16 %v12053, %v12052
    %v12064 = vpack.c.b16 %v12055, %v12054
    %v12065 = vpack.c.b16 %v12057, %v12056
    %12074 = vmatpush.bf16.msra.mxu0 %v12065
    %12075 = vmatpush.bf16.msra.mxu0 %v12064
    %12076 = vmatpush.bf16.msra.mxu0 %v12063
    %12077 = vmatpush.bf16.msra.mxu0 %v12062
    %12078 = vmatpush.bf16.msra.mxu0 %v12061
    %12079 = vmatpush.bf16.msra.mxu0 %v12060
    %12080 = vmatpush.bf16.msra.mxu0 %v12059
    %12081 = vmatpush.bf16.msra.mxu0 %v12058
    %12082 = vmatmul.bf16.gmra.mxu0 %v12005
    %v12083 = vpop.f32.mrf.mxu0
    %v12084 = vadd.f32 %v12024, %v12083
    %v12085 = vpop.f32.mrf.mxu0
    %12086 = vdwg.mxu0
    %v12087 = vmax.f32 %v12084, 0.0
    %v12088 = vpack.c.bf16 %v12087, %v12087
    %v12089 = vld [vmem:[#allocation10] sm:$0xf]
    %v12090 = vld [vmem:[#allocation10 + $0x4] sm:$0xf]
    %v12091 = vld [vmem:[#allocation10 + $0x8] sm:$0xf]
    %v12092 = vld [vmem:[#allocation10 + $0xc] sm:$0xf]
    %v12093 = vld [vmem:[#allocation10 + $0x10] sm:$0xf]
    %v12094 = vld [vmem:[#allocation10 + $0x14] sm:$0xf]
    %v12095 = vld [vmem:[#allocation10 + $0x18] sm:$0xf]
    %v12096 = vld [vmem:[#allocation10 + $0x1c] sm:$0xf]
    %v12097 = vld [vmem:[#allocation10 + $0x20] sm:$0xf]
    %v12098 = vld [vmem:[#allocation10 + $0x24] sm:$0xf]
    %v12099 = vld [vmem:[#allocation10 + $0x28] sm:$0xf]
    %v12100 = vld [vmem:[#allocation10 + $0x2c] sm:$0xf]
    %v12101 = vld [vmem:[#allocation10 + $0x30] sm:$0xf]
    %v12102 = vld [vmem:[#allocation10 + $0x34] sm:$0xf]
    %v12103 = vld [vmem:[#allocation10 + $0x38] sm:$0xf]
    %v12104 = vld [vmem:[#allocation10 + $0x3c] sm:$0xf]
    %v12105 = vld [vmem:[#allocation11] sm:$0x1]
    %v12107 = vperm.slane %v12105, 0
    %v12125 = vunpack.c.l.b16 %v12089
    %v12126 = vunpack.c.l.b16 %v12090
    %v12127 = vunpack.c.l.b16 %v12091
    %v12128 = vunpack.c.l.b16 %v12092
    %v12129 = vunpack.c.l.b16 %v12093
    %v12130 = vunpack.c.l.b16 %v12094
    %v12131 = vunpack.c.l.b16 %v12095
    %v12132 = vunpack.c.l.b16 %v12096
    %v12133 = vunpack.c.l.b16 %v12097
    %v12134 = vunpack.c.l.b16 %v12098
    %v12135 = vunpack.c.l.b16 %v12099
    %v12136 = vunpack.c.l.b16 %v12100
    %v12137 = vunpack.c.l.b16 %v12101
    %v12138 = vunpack.c.l.b16 %v12102
    %v12139 = vunpack.c.l.b16 %v12103
    %v12140 = vunpack.c.l.b16 %v12104
    %v12141 = vpack.c.b16 %v12126, %v12125
    %v12142 = vpack.c.b16 %v12128, %v12127
    %v12143 = vpack.c.b16 %v12130, %v12129
    %v12144 = vpack.c.b16 %v12132, %v12131
    %v12145 = vpack.c.b16 %v12134, %v12133
    %v12146 = vpack.c.b16 %v12136, %v12135
    %v12147 = vpack.c.b16 %v12138, %v12137
    %v12148 = vpack.c.b16 %v12140, %v12139
    %12157 = vmatpush.bf16.msra.mxu0 %v12148
    %12158 = vmatpush.bf16.msra.mxu0 %v12147
    %12159 = vmatpush.bf16.msra.mxu0 %v12146
    %12160 = vmatpush.bf16.msra.mxu0 %v12145
    %12161 = vmatpush.bf16.msra.mxu0 %v12144
    %12162 = vmatpush.bf16.msra.mxu0 %v12143
    %12163 = vmatpush.bf16.msra.mxu0 %v12142
    %12164 = vmatpush.bf16.msra.mxu0 %v12141
    %12165 = vmatmul.bf16.gmra.mxu0 %v12088
    %v12166 = vpop.f32.mrf.mxu0
    %v12167 = vadd.f32 %v12107, %v12166
    %v12168 = vpop.f32.mrf.mxu0
    %12169 = vdwg.mxu0
    %v12170 = vmax.f32 %v12167, 0.0
    %v12171 = vpack.c.bf16 %v12170, %v12170
    %v12172 = vld [vmem:[#allocation13] sm:$0xf]
    %v12173 = vld [vmem:[#allocation13 + $0x4] sm:$0xf]
    %v12174 = vld [vmem:[#allocation13 + $0x8] sm:$0xf]
    %v12175 = vld [vmem:[#allocation13 + $0xc] sm:$0xf]
    %v12176 = vld [vmem:[#allocation13 + $0x10] sm:$0xf]
    %v12177 = vld [vmem:[#allocation13 + $0x14] sm:$0xf]
    %v12178 = vld [vmem:[#allocation13 + $0x18] sm:$0xf]
    %v12179 = vld [vmem:[#allocation13 + $0x1c] sm:$0xf]
    %v12180 = vld [vmem:[#allocation13 + $0x20] sm:$0xf]
    %v12181 = vld [vmem:[#allocation13 + $0x24] sm:$0xf]
    %v12182 = vld [vmem:[#allocation13 + $0x28] sm:$0xf]
    %v12183 = vld [vmem:[#allocation13 + $0x2c] sm:$0xf]
    %v12184 = vld [vmem:[#allocation13 + $0x30] sm:$0xf]
    %v12185 = vld [vmem:[#allocation13 + $0x34] sm:$0xf]
    %v12186 = vld [vmem:[#allocation13 + $0x38] sm:$0xf]
    %v12187 = vld [vmem:[#allocation13 + $0x3c] sm:$0xf]
    %v12188 = vld [vmem:[#allocation14] sm:$0x1]
    %v12190 = vperm.slane %v12188, 0
    %v12208 = vunpack.c.l.b16 %v12172
    %v12209 = vunpack.c.l.b16 %v12173
    %v12210 = vunpack.c.l.b16 %v12174
    %v12211 = vunpack.c.l.b16 %v12175
    %v12212 = vunpack.c.l.b16 %v12176
    %v12213 = vunpack.c.l.b16 %v12177
    %v12214 = vunpack.c.l.b16 %v12178
    %v12215 = vunpack.c.l.b16 %v12179
    %v12216 = vunpack.c.l.b16 %v12180
    %v12217 = vunpack.c.l.b16 %v12181
    %v12218 = vunpack.c.l.b16 %v12182
    %v12219 = vunpack.c.l.b16 %v12183
    %v12220 = vunpack.c.l.b16 %v12184
    %v12221 = vunpack.c.l.b16 %v12185
    %v12222 = vunpack.c.l.b16 %v12186
    %v12223 = vunpack.c.l.b16 %v12187
    %v12224 = vpack.c.b16 %v12209, %v12208
    %v12225 = vpack.c.b16 %v12211, %v12210
    %v12226 = vpack.c.b16 %v12213, %v12212
    %v12227 = vpack.c.b16 %v12215, %v12214
    %v12228 = vpack.c.b16 %v12217, %v12216
    %v12229 = vpack.c.b16 %v12219, %v12218
    %v12230 = vpack.c.b16 %v12221, %v12220
    %v12231 = vpack.c.b16 %v12223, %v12222
    %12240 = vmatpush.bf16.msra.mxu0 %v12231
    %12241 = vmatpush.bf16.msra.mxu0 %v12230
    %12242 = vmatpush.bf16.msra.mxu0 %v12229
    %12243 = vmatpush.bf16.msra.mxu0 %v12228
    %12244 = vmatpush.bf16.msra.mxu0 %v12227
    %12245 = vmatpush.bf16.msra.mxu0 %v12226
    %12246 = vmatpush.bf16.msra.mxu0 %v12225
    %12247 = vmatpush.bf16.msra.mxu0 %v12224
    %12248 = vmatmul.bf16.gmra.mxu0 %v12171
    %v12249 = vpop.f32.mrf.mxu0
    %v12250 = vadd.f32 %v12190, %v12249
    %v12251 = vpop.f32.mrf.mxu0
    %12252 = vdwg.mxu0
    %12253 = vst [vmem:[#allocation16] sm:$0xff] %v12250
    // Predicated region
    $region70: #{neural_network_forward.1} parent=1 // pred_check
      _
    $region71: #{neural_network_forward.1} parent=1 // pred_check_branch
      %12255 = sbr.rel (0) target = $region73
    $region72: #{neural_network_forward.1} parent=1 // pred_region
      %12257 = vsyncadd [#allocation4], 0
      %s12259 = sshll.u32 [#allocation16], 4
      %s12260 = int_to_ptr.vmem [resolvable:$true] %s12259
      %s12261 = sshll.u32 %s9, 4
      %s12262 = int_to_ptr.hbm [resolvable:$true] %s12261
      %12264 = dma.vmem_to_hbm [thread:$0]  %s12260, 128, %s12262, [#allocation4]
    $region73: #{neural_network_forward.1} parent=1 // pred_fallthru
      _
    // Predicated region
    $region74: #{neural_network_forward.1} parent=1 // pred_check
      _
    $region75: #{neural_network_forward.1} parent=1 // pred_check_branch
      %12266 = sbr.rel (0) target = $region77
    $region76: #{neural_network_forward.1} parent=1 // pred_region
      %12268 = dma.done [#allocation4], 128
    $region77: #{neural_network_forward.1} parent=1 // pred_fallthru
      _
    %12269 = vsyncpa [#allocation3], 1
    %12270 = vsyncpa [#allocation6], 1
    %12271 = vsyncpa [#allocation9], 1
    %12272 = vsyncpa [#allocation12], 1
    %12273 = vsyncpa [#allocation15], 1
    %12274 = vsyncpa [#allocation4], 1

</llo_original>
